<compile_context>
chip_gen: v7x
topology: tpu7x:2x2x1
jax: 0.10.0
libtpu: 0.0.40
codegen_flags: <defaults>
</compile_context>

<pallas_src>
import functools

import jax
import jax.numpy as jnp
from jax.experimental import pallas as pl
from jax.experimental.pallas import tpu as pltpu

# ----------------------------------------------------------------------------
# Scaled-down SE-ResNeXt configuration (analogue of seresnext50_32x4d)
# ----------------------------------------------------------------------------
STEM_CH = 8                    # analogue of 64
PLANES = [4, 8, 16, 32]        # analogue of [64, 128, 256, 512]
WIDTHS = [8, 16, 32, 64]       # grouped-conv width per stage
BLOCKS = [1, 1, 1, 1]          # analogue of [3, 4, 6, 3]
STRIDES = [1, 2, 2, 2]
GROUPS = 4                     # analogue of cardinality 32
EXPANSION = 4
OUT = 2
BN_EPS = 1e-5

TM = TN = TK = 128             # MXU-friendly matmul tiles
K_SINGLE_MAX = 2048            # K <= this -> single-pass matmul (no K grid axis)


def _rup(x, m):
    return ((x + m - 1) // m) * m


# ----------------------------------------------------------------------------
# Pallas kernel 1a: single-pass matmul + bias + fused activation (common case)
# ----------------------------------------------------------------------------
def _mm_kernel_single(a_ref, b_ref, bias_ref, o_ref, *, act):
    r = jnp.dot(a_ref[...], b_ref[...], preferred_element_type=jnp.float32)
    r = r + bias_ref[...]
    if act == "relu":
        r = jnp.maximum(r, 0.0)
    elif act == "sigmoid":
        r = 1.0 / (1.0 + jnp.exp(-r))
    o_ref[...] = r.astype(o_ref.dtype)


# ----------------------------------------------------------------------------
# Pallas kernel 1b: K-accumulating matmul (fallback for large K; unused here)
# ----------------------------------------------------------------------------
def _mm_kernel_acc(a_ref, b_ref, bias_ref, o_ref, acc_ref, *, act):
    @pl.when(pl.program_id(2) == 0)
    def _():
        acc_ref[...] = jnp.zeros_like(acc_ref)

    acc_ref[...] += jnp.dot(a_ref[...], b_ref[...],
                            preferred_element_type=jnp.float32)

    @pl.when(pl.program_id(2) == pl.num_programs(2) - 1)
    def _():
        r = acc_ref[...] + bias_ref[...]
        if act == "relu":
            r = jnp.maximum(r, 0.0)
        elif act == "sigmoid":
            r = 1.0 / (1.0 + jnp.exp(-r))
        o_ref[...] = r.astype(o_ref.dtype)


def pallas_matmul_prepped(a, cp, act="none", out_dtype=jnp.bfloat16):
    """a:(M,K) @ prepped weight (Kp,Np bf16) + bias, fused activation, on the MXU.

    Returns the full lane-dense (M, Np) result (Np = 128-padded out channels);
    padded lanes are exactly zero for act in {none, relu}.  M <= 128 uses a single
    full-M tile (no row padding, no pad op); only the stem/FC inputs need a K pad.
    """
    M, K = a.shape
    Kp, Np = cp["wp"].shape
    assert K == cp["k"], (K, cp["k"])
    if a.dtype != jnp.bfloat16:
        a = a.astype(jnp.bfloat16)

    if M <= TM:                               # adaptive M tile: one full-M block
        tm_eff, Mp = M, M
    else:
        tm_eff, Mp = TM, _rup(M, TM)
    if Mp != M or Kp != K:
        a = jnp.pad(a, ((0, Mp - M), (0, Kp - K)))

    if Kp <= K_SINGLE_MAX:
        out = pl.pallas_call(
            functools.partial(_mm_kernel_single, act=act),
            out_shape=jax.ShapeDtypeStruct((Mp, Np), out_dtype),
            grid_spec=pltpu.PrefetchScalarGridSpec(
                num_scalar_prefetch=0,
                grid=(Mp // tm_eff, Np // TN),
                in_specs=[
                    pl.BlockSpec((tm_eff, Kp), lambda i, j: (i, 0)),
                    pl.BlockSpec((Kp, TN), lambda i, j: (0, j)),
                    pl.BlockSpec((1, TN), lambda i, j: (0, j)),
                ],
                out_specs=pl.BlockSpec((tm_eff, TN), lambda i, j: (i, j)),
            ),
            compiler_params=pltpu.CompilerParams(
                dimension_semantics=("parallel", "parallel")),
        )(a, cp["wp"], cp["bp"])
    else:
        out = pl.pallas_call(
            functools.partial(_mm_kernel_acc, act=act),
            out_shape=jax.ShapeDtypeStruct((Mp, Np), out_dtype),
            grid_spec=pltpu.PrefetchScalarGridSpec(
                num_scalar_prefetch=0,
                grid=(Mp // tm_eff, Np // TN, Kp // TK),
                in_specs=[
                    pl.BlockSpec((tm_eff, TK), lambda i, j, k: (i, k)),
                    pl.BlockSpec((TK, TN), lambda i, j, k: (k, j)),
                    pl.BlockSpec((1, TN), lambda i, j, k: (0, j)),
                ],
                out_specs=pl.BlockSpec((tm_eff, TN), lambda i, j, k: (i, j)),
                scratch_shapes=[pltpu.VMEM((tm_eff, TN), jnp.float32)],
            ),
            compiler_params=pltpu.CompilerParams(
                dimension_semantics=("parallel", "parallel", "arbitrary")),
        )(a, cp["wp"], cp["bp"])
    if Mp != M:
        out = out[:M]
    return out


# ----------------------------------------------------------------------------
# Pallas kernel 2: global average pool  (B, H*W, C) -> (B, C)   (channels-last)
# ----------------------------------------------------------------------------
def _gap_kernel(x_ref, o_ref):
    o_ref[...] = jnp.mean(x_ref[...].astype(jnp.float32), axis=1)


def global_avg_pool(x_nhwc):
    B, H, W, C = x_nhwc.shape
    return pl.pallas_call(
        _gap_kernel,
        out_shape=jax.ShapeDtypeStruct((B, C), jnp.float32),
    )(x_nhwc.reshape(B, H * W, C))


# ----------------------------------------------------------------------------
# Pallas kernel 3: fused block tail (one launch per bottleneck block)
#   GAP -> fc1+ReLU -> fc2+sigmoid -> excite*gate -> + residual -> ReLU
#   Operates on 128-lane-padded channels; padded lanes stay exactly zero.
# ----------------------------------------------------------------------------
def _se_tail_kernel(x_ref, r_ref, w1_ref, b1_ref, w2_ref, b2_ref, o_ref):
    x = x_ref[...].astype(jnp.float32)                       # (B, HW, Cp)
    s = jnp.mean(x, axis=1)                                  # squeeze  (B, Cp)
    h = jnp.dot(s.astype(jnp.bfloat16), w1_ref[...],
                preferred_element_type=jnp.float32) + b1_ref[...]
    h = jnp.maximum(h, 0.0)
    g = jnp.dot(h.astype(jnp.bfloat16), w2_ref[...],
                preferred_element_type=jnp.float32) + b2_ref[...]
    g = 1.0 / (1.0 + jnp.exp(-g))                            # sigmoid gate (B, Cp)
    o = jnp.maximum(x * g[:, None, :] + r_ref[...].astype(jnp.float32), 0.0)
    o_ref[...] = o.astype(o_ref.dtype)


def se_tail(x3, shortcut, sep, out_dtype=jnp.bfloat16):
    B, HW, C = x3.shape
    # Everything fits one VMEM block (max stage1: 4x64x128 bf16 per operand).
    return pl.pallas_call(
        _se_tail_kernel,
        out_shape=jax.ShapeDtypeStruct((B, HW, C), out_dtype),
    )(x3, shortcut, sep["w1p"], sep["b1p"], sep["w2p"], sep["b2p"])


# ----------------------------------------------------------------------------
# im2col in NHWC (lane-contiguous slicing; 1x1 convs bypass it entirely)
# ----------------------------------------------------------------------------
def im2col_nhwc(x, kh, kw, stride, pad):
    B, H, W, C = x.shape
    OH = (H + 2 * pad - kh) // stride + 1
    OW = (W + 2 * pad - kw) // stride + 1
    if kh == 1 and kw == 1 and pad == 0:
        cols = x[:, ::stride, ::stride, :]
        return cols.reshape(B * OH * OW, C), OH, OW
    xp = jnp.pad(x, ((0, 0), (pad, pad), (pad, pad), (0, 0)))
    taps = []
    for i in range(kh):
        for j in range(kw):
            taps.append(xp[:, i:i + stride * OH:stride, j:j + stride * OW:stride, :])
    col = jnp.concatenate(taps, axis=-1)          # (B, OH, OW, KH*KW*C)
    return col.reshape(B * OH * OW, kh * kw * C), OH, OW


def conv_prepped(x_nhwc, cp, act, out_dtype=jnp.bfloat16):
    B = x_nhwc.shape[0]
    cols, OH, OW = im2col_nhwc(x_nhwc, cp["kh"], cp["kw"], cp["stride"], cp["pad"])
    y = pallas_matmul_prepped(cols, cp, act=act, out_dtype=out_dtype)
    return y.reshape(B, OH, OW, y.shape[-1])      # channels stay 128-lane padded


def maxpool3x3s2(x_nhwc):
    # PyTorch MaxPool2d(3, stride=2, padding=1) — plain JAX glue (negligible cost).
    neg_inf = jnp.array(-jnp.inf, dtype=x_nhwc.dtype)
    return jax.lax.reduce_window(
        x_nhwc, neg_inf, jax.lax.max,
        window_dimensions=(1, 3, 3, 1),
        window_strides=(1, 2, 2, 1),
        padding=((0, 0), (1, 1), (1, 1), (0, 0)))


# ----------------------------------------------------------------------------
# SE-ResNeXt bottleneck block (NHWC, 128-padded channels, prepped weights)
# ----------------------------------------------------------------------------
def bottleneck_forward(x, p):
    B = x.shape[0]
    out = conv_prepped(x, p["c1"], "relu")          # 1x1 -> width        (bf16)
    out = conv_prepped(out, p["c2"], "relu")        # 3x3 grouped (block-diag matmul)
    out = conv_prepped(out, p["c3"], "none")        # 1x1 -> out_ch
    _, OH, OW, Cp = out.shape

    if "cd" in p:
        shortcut = conv_prepped(x, p["cd"], "none")
    else:
        shortcut = x                                 # same padded channel layout

    out = se_tail(out.reshape(B, OH * OW, Cp),
                  shortcut.reshape(B, OH * OW, Cp), p["se"])
    # nn.Dropout2d(p) after each block: identity in eval mode.
    return out.reshape(B, OH, OW, Cp)


# ----------------------------------------------------------------------------
# Deterministic parameter init (synthetic weights; shapes follow the module)
# ----------------------------------------------------------------------------
def _init_conv(key, oc, ic, kh, kw):
    fan_in = ic * kh * kw
    return jax.random.normal(key, (oc, ic, kh, kw), jnp.float32) / jnp.sqrt(fan_in)


def _init_bn(key, c):
    k1, k2, k3, k4 = jax.random.split(key, 4)
    return dict(
        gamma=1.0 + 0.1 * jax.random.normal(k1, (c,), jnp.float32),
        beta=0.1 * jax.random.normal(k2, (c,), jnp.float32),
        mean=0.1 * jax.random.normal(k3, (c,), jnp.float32),
        var=1.0 + 0.1 * jnp.abs(jax.random.normal(k4, (c,), jnp.float32)),
    )


def _init_block(key, in_ch, width, out_ch, stride):
    ks = jax.random.split(key, 10)
    rd = max(out_ch // 4, 4)
    p = dict(
        stride=stride,
        w1=_init_conv(ks[0], width, in_ch, 1, 1), bn1=_init_bn(ks[1], width),
        w2=_init_conv(ks[2], width, width // GROUPS, 3, 3), bn2=_init_bn(ks[3], width),
        w3=_init_conv(ks[4], out_ch, width, 1, 1), bn3=_init_bn(ks[5], out_ch),
        se_w1=jax.random.normal(ks[6], (out_ch, rd), jnp.float32) / jnp.sqrt(out_ch),
        se_b1=jnp.zeros((rd,), jnp.float32),
        se_w2=jax.random.normal(ks[7], (rd, out_ch), jnp.float32) / jnp.sqrt(rd),
        se_b2=jnp.zeros((out_ch,), jnp.float32),
    )
    if stride != 1 or in_ch != out_ch:
        p["wd"] = _init_conv(ks[8], out_ch, in_ch, 1, 1)
        p["bnd"] = _init_bn(ks[9], out_ch)
    return p


def init_params(key):
    ks = iter(jax.random.split(key, 64))
    params = {
        "stem_w": _init_conv(next(ks), STEM_CH, 3, 7, 7),
        "stem_bn": _init_bn(next(ks), STEM_CH),
    }
    stages, in_ch = [], STEM_CH
    for planes, width, n_blocks, stride in zip(PLANES, WIDTHS, BLOCKS, STRIDES):
        out_ch = planes * EXPANSION
        blocks = []
        for bi in range(n_blocks):
            s = stride if bi == 0 else 1
            blocks.append(_init_block(next(ks), in_ch, width, out_ch, s))
            in_ch = out_ch
        stages.append(blocks)
    params["stages"] = stages
    num_features = in_ch                                   # analogue of 2048
    params["fc_w"] = jax.random.normal(next(ks), (num_features * 2, OUT),
                                       jnp.float32) / jnp.sqrt(num_features * 2)
    params["fc_b"] = jnp.zeros((OUT,), jnp.float32)
    return params


# ----------------------------------------------------------------------------
# One-time weight prep: fold BN, build (K,N) / block-diagonal matrices laid out
# against the 128-padded input-channel count, pad to 128-aligned shapes, cast
# matmul weights to bf16.
# ----------------------------------------------------------------------------
def _prep_conv(w, bn, stride, pad, groups, in_real, in_pad):
    OC, _, KH, KW = w.shape
    scale = bn["gamma"] / jnp.sqrt(bn["var"] + BN_EPS)     # exact eval-mode BN fold
    w_f = w * scale[:, None, None, None]
    b_f = bn["beta"] - bn["mean"] * scale
    # Weight rows follow the im2col layout on a 128-lane-padded input:
    # row (tap, padded_channel); padded input channels get zero rows.
    wtap = jnp.zeros((KH, KW, in_pad, OC), jnp.float32)
    if groups == 1:
        wtap = wtap.at[:, :, :in_real, :].set(jnp.transpose(w_f, (2, 3, 1, 0)))
    else:
        cg, ocg = in_real // groups, OC // groups
        for g in range(groups):
            blk = jnp.transpose(w_f[g * ocg:(g + 1) * ocg], (2, 3, 1, 0))
            wtap = wtap.at[:, :, g * cg:(g + 1) * cg,
                           g * ocg:(g + 1) * ocg].set(blk)   # block-diagonal
    wm = wtap.reshape(KH * KW * in_pad, OC)
    K, N = wm.shape
    Kp, Np = _rup(K, 128), _rup(N, 128)
    return dict(
        wp=jnp.pad(wm, ((0, Kp - K), (0, Np - N))).astype(jnp.bfloat16),
        bp=jnp.pad(b_f, (0, Np - N)).reshape(1, Np).astype(jnp.float32),
        k=K, n=N, kh=KH, kw=KW, stride=stride, pad=pad,
    )


def _prep_se(w1, b1, w2, b2):
    C, R = w1.shape
    Cp, Rp = _rup(C, 128), _rup(R, 128)
    return dict(
        w1p=jnp.pad(w1, ((0, Cp - C), (0, Rp - R))).astype(jnp.bfloat16),
        b1p=jnp.pad(b1, (0, Rp - R)).reshape(1, Rp).astype(jnp.float32),
        w2p=jnp.pad(w2, ((0, Rp - R), (0, Cp - C))).astype(jnp.bfloat16),
        b2p=jnp.pad(b2, (0, Cp - C)).reshape(1, Cp).astype(jnp.float32),
    )


def prepare_params(params):
    # Stem sees the raw 3-channel image (no channel padding on the input itself).
    prep = {"stem": _prep_conv(params["stem_w"], params["stem_bn"], 2, 3, 1, 3, 3)}
    stages, in_real = [], STEM_CH
    for si, (planes, width, n_blocks, stride) in enumerate(
            zip(PLANES, WIDTHS, BLOCKS, STRIDES)):
        out_ch = planes * EXPANSION
        blocks = []
        for bi in range(n_blocks):
            s = stride if bi == 0 else 1
            p = params["stages"][si][bi]
            in_pad = _rup(in_real, 128)        # padded channels of the block input
            w_pad = _rup(width, 128)           # padded channels inside the block
            blk = dict(
                c1=_prep_conv(p["w1"], p["bn1"], 1, 0, 1, in_real, in_pad),
                c2=_prep_conv(p["w2"], p["bn2"], s, 1, GROUPS, width, w_pad),
                c3=_prep_conv(p["w3"], p["bn3"], 1, 0, 1, width, w_pad),
                se=_prep_se(p["se_w1"], p["se_b1"], p["se_w2"], p["se_b2"]),
            )
            if "wd" in p:
                blk["cd"] = _prep_conv(p["wd"], p["bnd"], s, 0, 1, in_real, in_pad)
            blocks.append(blk)
            in_real = out_ch
        stages.append(blocks)
    prep["stages"] = stages

    # FC head: features are [left(Cp) | right(Cp)] with real channels first in
    # each half; scatter the real weight rows into the padded layout.
    F = in_real
    Cp = _rup(F, 128)
    fc_w, fc_b = params["fc_w"], params["fc_b"]           # (2F, OUT), (OUT,)
    wm = jnp.zeros((2 * Cp, OUT), jnp.float32)
    wm = wm.at[:F].set(fc_w[:F]).at[Cp:Cp + F].set(fc_w[F:])
    K, N = wm.shape
    Kp, Np = _rup(K, 128), _rup(N, 128)
    prep["fc"] = dict(
        wp=jnp.pad(wm, ((0, Kp - K), (0, Np - N))).astype(jnp.bfloat16),
        bp=jnp.pad(fc_b, (0, Np - N)).reshape(1, Np).astype(jnp.float32),
        k=K, n=N, kh=1, kw=1, stride=1, pad=0,
    )
    return prep


# ----------------------------------------------------------------------------
# Full Siamese forward pass (both branches batched together; shared weights)
# ----------------------------------------------------------------------------
def siamese_forward(prep, combined_image):
    B = combined_image.shape[0]
    left = combined_image[:, :3, :, :]
    right = combined_image[:, 3:6, :, :]
    x = jnp.concatenate([left, right], axis=0)       # (2B, 3, H, W) — one pass
    x = jnp.transpose(x, (0, 2, 3, 1))               # NCHW -> NHWC (once)

    # initial_layers: conv 7x7/2 + BN + ReLU   (spatial dropout: identity in eval)
    x = conv_prepped(x, prep["stem"], "relu")        # bf16, 128-padded channels
    x = maxpool3x3s2(x)                              # first element of blocks[3:-2]
    for stage in prep["stages"]:
        for blk in stage:
            x = bottleneck_forward(x, blk)

    feats = global_avg_pool(x)                       # avgpool + flatten -> (2B, Cp)
    left_features, right_features = feats[:B], feats[B:]
    combined_features = jnp.concatenate([left_features, right_features], axis=1)
    # nn.Dropout(p): identity in eval mode.
    out = pallas_matmul_prepped(combined_features, prep["fc"],
                                act="none", out_dtype=jnp.float32)
    return out[:, :prep["fc"]["n"]]


# ----------------------------------------------------------------------------
if __name__ == "__main__":
    key = jax.random.PRNGKey(0)
    k_in, k_par = jax.random.split(key)
    # combined_image: NCHW, 6 channels (left RGB + right RGB)
    combined_image = jax.random.normal(k_in, (2, 6, 32, 32), jnp.float32)
    params = init_params(k_par)
    prep = prepare_params(params)                    # one-time weight prep

    fwd = jax.jit(lambda img: siamese_forward(prep, img))
    out = fwd(combined_image)
    out = jax.block_until_ready(out)

    assert out.shape == (2, OUT), out.shape
    assert out.dtype == jnp.float32
    print("KERNEL_OK")
</pallas_src>

<mosaic_0001>
module attributes {stable_mosaic.version = 11 : i64} {
  func.func @_mm_kernel_single(%arg0: i32, %arg1: i32, %arg2: memref<128x256xbf16, #tpu.memory_space<vmem>>, %arg3: memref<256x128xbf16, #tpu.memory_space<vmem>>, %arg4: memref<1x128xf32, #tpu.memory_space<vmem>>, %arg5: memref<128x128xbf16, #tpu.memory_space<vmem>>) attributes {dimension_semantics = [#tpu.dimension_semantics<parallel>, #tpu.dimension_semantics<parallel>], iteration_bounds = array<i64: 8, 1>, scalar_prefetch = 0 : i64, scratch_operands = 0 : i64, tpu.core_type = #tpu.core_type<tc>, window_params = [{transform_indices = @transform_0, window_bounds = array<i64: 128, 256>}, {transform_indices = @transform_1, window_bounds = array<i64: 256, 128>}, {transform_indices = @transform_2, window_bounds = array<i64: 1, 128>}, {transform_indices = @transform_3, window_bounds = array<i64: 128, 128>}]} {
    %c0 = arith.constant 0 : index
    %c0_0 = arith.constant 0 : index
    %0 = vector.load %arg2[%c0, %c0_0] : memref<128x256xbf16, #tpu.memory_space<vmem>>, vector<128x256xbf16>
    %c0_1 = arith.constant 0 : index
    %c0_2 = arith.constant 0 : index
    %1 = vector.load %arg3[%c0_1, %c0_2] : memref<256x128xbf16, #tpu.memory_space<vmem>>, vector<256x128xbf16>
    %cst = arith.constant dense<0.000000e+00> : vector<128x128xf32>
    %2 = tpu.matmul %0, %1, %cst {dimension_numbers = #tpu.dot_dimension_numbers<[1], [0], [0], [1], [0, 0, 1, 1], [], []>} : vector<128x256xbf16>, vector<256x128xbf16>, vector<128x128xf32> -> vector<128x128xf32>
    %c0_3 = arith.constant 0 : index
    %c0_4 = arith.constant 0 : index
    %3 = vector.load %arg4[%c0_3, %c0_4] : memref<1x128xf32, #tpu.memory_space<vmem>>, vector<1x128xf32>
    %4 = vector.broadcast %3 : vector<1x128xf32> to vector<128x128xf32>
    %5 = arith.addf %2, %4 : vector<128x128xf32>
    %cst_5 = arith.constant 0.000000e+00 : f32
    %6 = vector.broadcast %cst_5 : f32 to vector<128x128xf32>
    %7 = arith.maximumf %5, %6 : vector<128x128xf32>
    %8 = arith.truncf %7 : vector<128x128xf32> to vector<128x128xbf16>
    %c0_6 = arith.constant 0 : index
    %c0_7 = arith.constant 0 : index
    %9 = vector.load %arg5[%c0_6, %c0_7] : memref<128x128xbf16, #tpu.memory_space<vmem>>, vector<128x128xbf16>
    tpu.vector_store %arg5[%c0_6, %c0_7], %8 {strides = array<i32>} : memref<128x128xbf16, #tpu.memory_space<vmem>>, vector<128x128xbf16>,
    return
  }
  func.func @transform_0(%arg0: i32, %arg1: i32) -> (i32, i32) {
    %c0_i32 = arith.constant 0 : i32
    %c0_i32_0 = arith.constant 0 : i32
    return %arg0, %c0_i32 : i32, i32
  }
  func.func @transform_1(%arg0: i32, %arg1: i32) -> (i32, i32) {
    %c0_i32 = arith.constant 0 : i32
    %c0_i32_0 = arith.constant 0 : i32
    return %c0_i32, %arg1 : i32, i32
  }
  func.func @transform_2(%arg0: i32, %arg1: i32) -> (i32, i32) {
    %c0_i32 = arith.constant 0 : i32
    %c0_i32_0 = arith.constant 0 : i32
    return %c0_i32, %arg1 : i32, i32
  }
  func.func @transform_3(%arg0: i32, %arg1: i32) -> (i32, i32) {
    %c0_i32 = arith.constant 0 : i32
    return %arg0, %arg1 : i32, i32
  }
}

module attributes {stable_mosaic.version = 11 : i64} {
  func.func @_mm_kernel_single(%arg0: i32, %arg1: i32, %arg2: memref<128x128xbf16, #tpu.memory_space<vmem>>, %arg3: memref<128x128xbf16, #tpu.memory_space<vmem>>, %arg4: memref<1x128xf32, #tpu.memory_space<vmem>>, %arg5: memref<128x128xbf16, #tpu.memory_space<vmem>>) attributes {dimension_semantics = [#tpu.dimension_semantics<parallel>, #tpu.dimension_semantics<parallel>], iteration_bounds = array<i64: 2, 1>, scalar_prefetch = 0 : i64, scratch_operands = 0 : i64, tpu.core_type = #tpu.core_type<tc>, window_params = [{transform_indices = @transform_0, window_bounds = array<i64: 128, 128>}, {transform_indices = @transform_1, window_bounds = array<i64: 128, 128>}, {transform_indices = @transform_2, window_bounds = array<i64: 1, 128>}, {transform_indices = @transform_3, window_bounds = array<i64: 128, 128>}]} {
    %c0 = arith.constant 0 : index
    %c0_0 = arith.constant 0 : index
    %0 = vector.load %arg2[%c0, %c0_0] : memref<128x128xbf16, #tpu.memory_space<vmem>>, vector<128x128xbf16>
    %c0_1 = arith.constant 0 : index
    %c0_2 = arith.constant 0 : index
    %1 = vector.load %arg3[%c0_1, %c0_2] : memref<128x128xbf16, #tpu.memory_space<vmem>>, vector<128x128xbf16>
    %cst = arith.constant dense<0.000000e+00> : vector<128x128xf32>
    %2 = tpu.matmul %0, %1, %cst {dimension_numbers = #tpu.dot_dimension_numbers<[1], [0], [0], [1], [0, 0, 1, 1], [], []>} : vector<128x128xbf16>, vector<128x128xbf16>, vector<128x128xf32> -> vector<128x128xf32>
    %c0_3 = arith.constant 0 : index
    %c0_4 = arith.constant 0 : index
    %3 = vector.load %arg4[%c0_3, %c0_4] : memref<1x128xf32, #tpu.memory_space<vmem>>, vector<1x128xf32>
    %4 = vector.broadcast %3 : vector<1x128xf32> to vector<128x128xf32>
    %5 = arith.addf %2, %4 : vector<128x128xf32>
    %cst_5 = arith.constant 0.000000e+00 : f32
    %6 = vector.broadcast %cst_5 : f32 to vector<128x128xf32>
    %7 = arith.maximumf %5, %6 : vector<128x128xf32>
    %8 = arith.truncf %7 : vector<128x128xf32> to vector<128x128xbf16>
    %c0_6 = arith.constant 0 : index
    %c0_7 = arith.constant 0 : index
    %9 = vector.load %arg5[%c0_6, %c0_7] : memref<128x128xbf16, #tpu.memory_space<vmem>>, vector<128x128xbf16>
    tpu.vector_store %arg5[%c0_6, %c0_7], %8 {strides = array<i32>} : memref<128x128xbf16, #tpu.memory_space<vmem>>, vector<128x128xbf16>,
    return
  }
  func.func @transform_0(%arg0: i32, %arg1: i32) -> (i32, i32) {
    %c0_i32 = arith.constant 0 : i32
    %c0_i32_0 = arith.constant 0 : i32
    return %arg0, %c0_i32 : i32, i32
  }
  func.func @transform_1(%arg0: i32, %arg1: i32) -> (i32, i32) {
    %c0_i32 = arith.constant 0 : i32
    %c0_i32_0 = arith.constant 0 : i32
    return %c0_i32, %arg1 : i32, i32
  }
  func.func @transform_2(%arg0: i32, %arg1: i32) -> (i32, i32) {
    %c0_i32 = arith.constant 0 : i32
    %c0_i32_0 = arith.constant 0 : i32
    return %c0_i32, %arg1 : i32, i32
  }
  func.func @transform_3(%arg0: i32, %arg1: i32) -> (i32, i32) {
    %c0_i32 = arith.constant 0 : i32
    return %arg0, %arg1 : i32, i32
  }
}

module attributes {stable_mosaic.version = 11 : i64} {
  func.func @_mm_kernel_single(%arg0: i32, %arg1: i32, %arg2: memref<128x1152xbf16, #tpu.memory_space<vmem>>, %arg3: memref<1152x128xbf16, #tpu.memory_space<vmem>>, %arg4: memref<1x128xf32, #tpu.memory_space<vmem>>, %arg5: memref<128x128xbf16, #tpu.memory_space<vmem>>) attributes {dimension_semantics = [#tpu.dimension_semantics<parallel>, #tpu.dimension_semantics<parallel>], iteration_bounds = array<i64: 2, 1>, scalar_prefetch = 0 : i64, scratch_operands = 0 : i64, tpu.core_type = #tpu.core_type<tc>, window_params = [{transform_indices = @transform_0, window_bounds = array<i64: 128, 1152>}, {transform_indices = @transform_1, window_bounds = array<i64: 1152, 128>}, {transform_indices = @transform_2, window_bounds = array<i64: 1, 128>}, {transform_indices = @transform_3, window_bounds = array<i64: 128, 128>}]} {
    %c0 = arith.constant 0 : index
    %c0_0 = arith.constant 0 : index
    %0 = vector.load %arg2[%c0, %c0_0] : memref<128x1152xbf16, #tpu.memory_space<vmem>>, vector<128x1152xbf16>
    %c0_1 = arith.constant 0 : index
    %c0_2 = arith.constant 0 : index
    %1 = vector.load %arg3[%c0_1, %c0_2] : memref<1152x128xbf16, #tpu.memory_space<vmem>>, vector<1152x128xbf16>
    %cst = arith.constant dense<0.000000e+00> : vector<128x128xf32>
    %2 = tpu.matmul %0, %1, %cst {dimension_numbers = #tpu.dot_dimension_numbers<[1], [0], [0], [1], [0, 0, 1, 1], [], []>} : vector<128x1152xbf16>, vector<1152x128xbf16>, vector<128x128xf32> -> vector<128x128xf32>
    %c0_3 = arith.constant 0 : index
    %c0_4 = arith.constant 0 : index
    %3 = vector.load %arg4[%c0_3, %c0_4] : memref<1x128xf32, #tpu.memory_space<vmem>>, vector<1x128xf32>
    %4 = vector.broadcast %3 : vector<1x128xf32> to vector<128x128xf32>
    %5 = arith.addf %2, %4 : vector<128x128xf32>
    %cst_5 = arith.constant 0.000000e+00 : f32
    %6 = vector.broadcast %cst_5 : f32 to vector<128x128xf32>
    %7 = arith.maximumf %5, %6 : vector<128x128xf32>
    %8 = arith.truncf %7 : vector<128x128xf32> to vector<128x128xbf16>
    %c0_6 = arith.constant 0 : index
    %c0_7 = arith.constant 0 : index
    %9 = vector.load %arg5[%c0_6, %c0_7] : memref<128x128xbf16, #tpu.memory_space<vmem>>, vector<128x128xbf16>
    tpu.vector_store %arg5[%c0_6, %c0_7], %8 {strides = array<i32>} : memref<128x128xbf16, #tpu.memory_space<vmem>>, vector<128x128xbf16>,
    return
  }
  func.func @transform_0(%arg0: i32, %arg1: i32) -> (i32, i32) {
    %c0_i32 = arith.constant 0 : i32
    %c0_i32_0 = arith.constant 0 : i32
    return %arg0, %c0_i32 : i32, i32
  }
  func.func @transform_1(%arg0: i32, %arg1: i32) -> (i32, i32) {
    %c0_i32 = arith.constant 0 : i32
    %c0_i32_0 = arith.constant 0 : i32
    return %c0_i32, %arg1 : i32, i32
  }
  func.func @transform_2(%arg0: i32, %arg1: i32) -> (i32, i32) {
    %c0_i32 = arith.constant 0 : i32
    %c0_i32_0 = arith.constant 0 : i32
    return %c0_i32, %arg1 : i32, i32
  }
  func.func @transform_3(%arg0: i32, %arg1: i32) -> (i32, i32) {
    %c0_i32 = arith.constant 0 : i32
    return %arg0, %arg1 : i32, i32
  }
}

module attributes {stable_mosaic.version = 11 : i64} {
  func.func @_mm_kernel_single(%arg0: i32, %arg1: i32, %arg2: memref<128x128xbf16, #tpu.memory_space<vmem>>, %arg3: memref<128x128xbf16, #tpu.memory_space<vmem>>, %arg4: memref<1x128xf32, #tpu.memory_space<vmem>>, %arg5: memref<128x128xbf16, #tpu.memory_space<vmem>>) attributes {dimension_semantics = [#tpu.dimension_semantics<parallel>, #tpu.dimension_semantics<parallel>], iteration_bounds = array<i64: 2, 1>, scalar_prefetch = 0 : i64, scratch_operands = 0 : i64, tpu.core_type = #tpu.core_type<tc>, window_params = [{transform_indices = @transform_0, window_bounds = array<i64: 128, 128>}, {transform_indices = @transform_1, window_bounds = array<i64: 128, 128>}, {transform_indices = @transform_2, window_bounds = array<i64: 1, 128>}, {transform_indices = @transform_3, window_bounds = array<i64: 128, 128>}]} {
    %c0 = arith.constant 0 : index
    %c0_0 = arith.constant 0 : index
    %0 = vector.load %arg2[%c0, %c0_0] : memref<128x128xbf16, #tpu.memory_space<vmem>>, vector<128x128xbf16>
    %c0_1 = arith.constant 0 : index
    %c0_2 = arith.constant 0 : index
    %1 = vector.load %arg3[%c0_1, %c0_2] : memref<128x128xbf16, #tpu.memory_space<vmem>>, vector<128x128xbf16>
    %cst = arith.constant dense<0.000000e+00> : vector<128x128xf32>
    %2 = tpu.matmul %0, %1, %cst {dimension_numbers = #tpu.dot_dimension_numbers<[1], [0], [0], [1], [0, 0, 1, 1], [], []>} : vector<128x128xbf16>, vector<128x128xbf16>, vector<128x128xf32> -> vector<128x128xf32>
    %c0_3 = arith.constant 0 : index
    %c0_4 = arith.constant 0 : index
    %3 = vector.load %arg4[%c0_3, %c0_4] : memref<1x128xf32, #tpu.memory_space<vmem>>, vector<1x128xf32>
    %4 = vector.broadcast %3 : vector<1x128xf32> to vector<128x128xf32>
    %5 = arith.addf %2, %4 : vector<128x128xf32>
    %6 = arith.truncf %5 : vector<128x128xf32> to vector<128x128xbf16>
    %c0_5 = arith.constant 0 : index
    %c0_6 = arith.constant 0 : index
    %7 = vector.load %arg5[%c0_5, %c0_6] : memref<128x128xbf16, #tpu.memory_space<vmem>>, vector<128x128xbf16>
    tpu.vector_store %arg5[%c0_5, %c0_6], %6 {strides = array<i32>} : memref<128x128xbf16, #tpu.memory_space<vmem>>, vector<128x128xbf16>,
    return
  }
  func.func @transform_0(%arg0: i32, %arg1: i32) -> (i32, i32) {
    %c0_i32 = arith.constant 0 : i32
    %c0_i32_0 = arith.constant 0 : i32
    return %arg0, %c0_i32 : i32, i32
  }
  func.func @transform_1(%arg0: i32, %arg1: i32) -> (i32, i32) {
    %c0_i32 = arith.constant 0 : i32
    %c0_i32_0 = arith.constant 0 : i32
    return %c0_i32, %arg1 : i32, i32
  }
  func.func @transform_2(%arg0: i32, %arg1: i32) -> (i32, i32) {
    %c0_i32 = arith.constant 0 : i32
    %c0_i32_0 = arith.constant 0 : i32
    return %c0_i32, %arg1 : i32, i32
  }
  func.func @transform_3(%arg0: i32, %arg1: i32) -> (i32, i32) {
    %c0_i32 = arith.constant 0 : i32
    return %arg0, %arg1 : i32, i32
  }
}

module attributes {stable_mosaic.version = 11 : i64} {
  func.func @_se_tail_kernel(%arg0: memref<4x64x128xbf16, #tpu.memory_space<vmem>>, %arg1: memref<4x64x128xbf16, #tpu.memory_space<vmem>>, %arg2: memref<128x128xbf16, #tpu.memory_space<vmem>>, %arg3: memref<1x128xf32, #tpu.memory_space<vmem>>, %arg4: memref<128x128xbf16, #tpu.memory_space<vmem>>, %arg5: memref<1x128xf32, #tpu.memory_space<vmem>>, %arg6: memref<4x64x128xbf16, #tpu.memory_space<vmem>>) attributes {dimension_semantics = [], scalar_prefetch = 0 : i64, scratch_operands = 0 : i64, tpu.core_type = #tpu.core_type<tc>} {
    %c0 = arith.constant 0 : index
    %c0_0 = arith.constant 0 : index
    %c0_1 = arith.constant 0 : index
    %0 = vector.load %arg0[%c0, %c0_0, %c0_1] : memref<4x64x128xbf16, #tpu.memory_space<vmem>>, vector<4x64x128xbf16>
    %1 = arith.extf %0 : vector<4x64x128xbf16> to vector<4x64x128xf32>
    %cst = arith.constant dense<0.000000e+00> : vector<4x128xf32>
    %2 = vector.multi_reduction <add>, %1, %cst [1] : vector<4x64x128xf32> to vector<4x128xf32>
    %cst_2 = arith.constant 6.400000e+01 : f32
    %3 = vector.broadcast %cst_2 : f32 to vector<4x128xf32>
    %4 = arith.divf %2, %3 : vector<4x128xf32>
    %5 = arith.truncf %4 : vector<4x128xf32> to vector<4x128xbf16>
    %c0_3 = arith.constant 0 : index
    %c0_4 = arith.constant 0 : index
    %6 = vector.load %arg2[%c0_3, %c0_4] : memref<128x128xbf16, #tpu.memory_space<vmem>>, vector<128x128xbf16>
    %cst_5 = arith.constant dense<0.000000e+00> : vector<4x128xf32>
    %7 = tpu.matmul %5, %6, %cst_5 {dimension_numbers = #tpu.dot_dimension_numbers<[1], [0], [0], [1], [0, 0, 1, 1], [], []>} : vector<4x128xbf16>, vector<128x128xbf16>, vector<4x128xf32> -> vector<4x128xf32>
    %c0_6 = arith.constant 0 : index
    %c0_7 = arith.constant 0 : index
    %8 = vector.load %arg3[%c0_6, %c0_7] : memref<1x128xf32, #tpu.memory_space<vmem>>, vector<1x128xf32>
    %9 = vector.broadcast %8 : vector<1x128xf32> to vector<4x128xf32>
    %10 = arith.addf %7, %9 : vector<4x128xf32>
    %cst_8 = arith.constant 0.000000e+00 : f32
    %11 = vector.broadcast %cst_8 : f32 to vector<4x128xf32>
    %12 = arith.maximumf %10, %11 : vector<4x128xf32>
    %13 = arith.truncf %12 : vector<4x128xf32> to vector<4x128xbf16>
    %c0_9 = arith.constant 0 : index
    %c0_10 = arith.constant 0 : index
    %14 = vector.load %arg4[%c0_9, %c0_10] : memref<128x128xbf16, #tpu.memory_space<vmem>>, vector<128x128xbf16>
    %cst_11 = arith.constant dense<0.000000e+00> : vector<4x128xf32>
    %15 = tpu.matmul %13, %14, %cst_11 {dimension_numbers = #tpu.dot_dimension_numbers<[1], [0], [0], [1], [0, 0, 1, 1], [], []>} : vector<4x128xbf16>, vector<128x128xbf16>, vector<4x128xf32> -> vector<4x128xf32>
    %c0_12 = arith.constant 0 : index
    %c0_13 = arith.constant 0 : index
    %16 = vector.load %arg5[%c0_12, %c0_13] : memref<1x128xf32, #tpu.memory_space<vmem>>, vector<1x128xf32>
    %17 = vector.broadcast %16 : vector<1x128xf32> to vector<4x128xf32>
    %18 = arith.addf %15, %17 : vector<4x128xf32>
    %cst_14 = arith.constant 0.000000e+00 : f32
    %19 = vector.broadcast %cst_14 : f32 to vector<4x128xf32>
    %20 = arith.subf %19, %18 : vector<4x128xf32>
    %21 = math.exp %20 : vector<4x128xf32>
    %cst_15 = arith.constant 1.000000e+00 : f32
    %22 = vector.broadcast %cst_15 : f32 to vector<4x128xf32>
    %23 = arith.addf %22, %21 : vector<4x128xf32>
    %cst_16 = arith.constant 1.000000e+00 : f32
    %24 = vector.broadcast %cst_16 : f32 to vector<4x128xf32>
    %25 = arith.divf %24, %23 : vector<4x128xf32>
    %26 = vector.shape_cast %25 : vector<4x128xf32> to vector<4x1x128xf32>
    %27 = vector.broadcast %26 : vector<4x1x128xf32> to vector<4x64x128xf32>
    %28 = arith.mulf %1, %27 : vector<4x64x128xf32>
    %c0_17 = arith.constant 0 : index
    %c0_18 = arith.constant 0 : index
    %c0_19 = arith.constant 0 : index
    %29 = vector.load %arg1[%c0_17, %c0_18, %c0_19] : memref<4x64x128xbf16, #tpu.memory_space<vmem>>, vector<4x64x128xbf16>
    %30 = arith.extf %29 : vector<4x64x128xbf16> to vector<4x64x128xf32>
    %31 = arith.addf %28, %30 : vector<4x64x128xf32>
    %cst_20 = arith.constant 0.000000e+00 : f32
    %32 = vector.broadcast %cst_20 : f32 to vector<4x64x128xf32>
    %33 = arith.maximumf %31, %32 : vector<4x64x128xf32>
    %34 = arith.truncf %33 : vector<4x64x128xf32> to vector<4x64x128xbf16>
    %c0_21 = arith.constant 0 : index
    %c0_22 = arith.constant 0 : index
    %c0_23 = arith.constant 0 : index
    %35 = vector.load %arg6[%c0_21, %c0_22, %c0_23] : memref<4x64x128xbf16, #tpu.memory_space<vmem>>, vector<4x64x128xbf16>
    tpu.vector_store %arg6[%c0_21, %c0_22, %c0_23], %34 {strides = array<i32>} : memref<4x64x128xbf16, #tpu.memory_space<vmem>>, vector<4x64x128xbf16>,
    return
  }
}

module attributes {stable_mosaic.version = 11 : i64} {
  func.func @_mm_kernel_single(%arg0: i32, %arg1: i32, %arg2: memref<64x128xbf16, #tpu.memory_space<vmem>>, %arg3: memref<128x128xbf16, #tpu.memory_space<vmem>>, %arg4: memref<1x128xf32, #tpu.memory_space<vmem>>, %arg5: memref<64x128xbf16, #tpu.memory_space<vmem>>) attributes {dimension_semantics = [#tpu.dimension_semantics<parallel>, #tpu.dimension_semantics<parallel>], iteration_bounds = array<i64: 1, 1>, scalar_prefetch = 0 : i64, scratch_operands = 0 : i64, tpu.core_type = #tpu.core_type<tc>, window_params = [{transform_indices = @transform_0, window_bounds = array<i64: 64, 128>}, {transform_indices = @transform_1, window_bounds = array<i64: 128, 128>}, {transform_indices = @transform_2, window_bounds = array<i64: 1, 128>}, {transform_indices = @transform_3, window_bounds = array<i64: 64, 128>}]} {
    %c0 = arith.constant 0 : index
    %c0_0 = arith.constant 0 : index
    %0 = vector.load %arg2[%c0, %c0_0] : memref<64x128xbf16, #tpu.memory_space<vmem>>, vector<64x128xbf16>
    %c0_1 = arith.constant 0 : index
    %c0_2 = arith.constant 0 : index
    %1 = vector.load %arg3[%c0_1, %c0_2] : memref<128x128xbf16, #tpu.memory_space<vmem>>, vector<128x128xbf16>
    %cst = arith.constant dense<0.000000e+00> : vector<64x128xf32>
    %2 = tpu.matmul %0, %1, %cst {dimension_numbers = #tpu.dot_dimension_numbers<[1], [0], [0], [1], [0, 0, 1, 1], [], []>} : vector<64x128xbf16>, vector<128x128xbf16>, vector<64x128xf32> -> vector<64x128xf32>
    %c0_3 = arith.constant 0 : index
    %c0_4 = arith.constant 0 : index
    %3 = vector.load %arg4[%c0_3, %c0_4] : memref<1x128xf32, #tpu.memory_space<vmem>>, vector<1x128xf32>
    %4 = vector.broadcast %3 : vector<1x128xf32> to vector<64x128xf32>
    %5 = arith.addf %2, %4 : vector<64x128xf32>
    %6 = arith.truncf %5 : vector<64x128xf32> to vector<64x128xbf16>
    %c0_5 = arith.constant 0 : index
    %c0_6 = arith.constant 0 : index
    %7 = vector.load %arg5[%c0_5, %c0_6] : memref<64x128xbf16, #tpu.memory_space<vmem>>, vector<64x128xbf16>
    tpu.vector_store %arg5[%c0_5, %c0_6], %6 {strides = array<i32>} : memref<64x128xbf16, #tpu.memory_space<vmem>>, vector<64x128xbf16>,
    return
  }
  func.func @transform_0(%arg0: i32, %arg1: i32) -> (i32, i32) {
    %c0_i32 = arith.constant 0 : i32
    %c0_i32_0 = arith.constant 0 : i32
    return %arg0, %c0_i32 : i32, i32
  }
  func.func @transform_1(%arg0: i32, %arg1: i32) -> (i32, i32) {
    %c0_i32 = arith.constant 0 : i32
    %c0_i32_0 = arith.constant 0 : i32
    return %c0_i32, %arg1 : i32, i32
  }
  func.func @transform_2(%arg0: i32, %arg1: i32) -> (i32, i32) {
    %c0_i32 = arith.constant 0 : i32
    %c0_i32_0 = arith.constant 0 : i32
    return %c0_i32, %arg1 : i32, i32
  }
  func.func @transform_3(%arg0: i32, %arg1: i32) -> (i32, i32) {
    %c0_i32 = arith.constant 0 : i32
    return %arg0, %arg1 : i32, i32
  }
}

module attributes {stable_mosaic.version = 11 : i64} {
  func.func @_mm_kernel_single(%arg0: i32, %arg1: i32, %arg2: memref<64x1152xbf16, #tpu.memory_space<vmem>>, %arg3: memref<1152x128xbf16, #tpu.memory_space<vmem>>, %arg4: memref<1x128xf32, #tpu.memory_space<vmem>>, %arg5: memref<64x128xbf16, #tpu.memory_space<vmem>>) attributes {dimension_semantics = [#tpu.dimension_semantics<parallel>, #tpu.dimension_semantics<parallel>], iteration_bounds = array<i64: 1, 1>, scalar_prefetch = 0 : i64, scratch_operands = 0 : i64, tpu.core_type = #tpu.core_type<tc>, window_params = [{transform_indices = @transform_0, window_bounds = array<i64: 64, 1152>}, {transform_indices = @transform_1, window_bounds = array<i64: 1152, 128>}, {transform_indices = @transform_2, window_bounds = array<i64: 1, 128>}, {transform_indices = @transform_3, window_bounds = array<i64: 64, 128>}]} {
    %c0 = arith.constant 0 : index
    %c0_0 = arith.constant 0 : index
    %0 = vector.load %arg2[%c0, %c0_0] : memref<64x1152xbf16, #tpu.memory_space<vmem>>, vector<64x1152xbf16>
    %c0_1 = arith.constant 0 : index
    %c0_2 = arith.constant 0 : index
    %1 = vector.load %arg3[%c0_1, %c0_2] : memref<1152x128xbf16, #tpu.memory_space<vmem>>, vector<1152x128xbf16>
    %cst = arith.constant dense<0.000000e+00> : vector<64x128xf32>
    %2 = tpu.matmul %0, %1, %cst {dimension_numbers = #tpu.dot_dimension_numbers<[1], [0], [0], [1], [0, 0, 1, 1], [], []>} : vector<64x1152xbf16>, vector<1152x128xbf16>, vector<64x128xf32> -> vector<64x128xf32>
    %c0_3 = arith.constant 0 : index
    %c0_4 = arith.constant 0 : index
    %3 = vector.load %arg4[%c0_3, %c0_4] : memref<1x128xf32, #tpu.memory_space<vmem>>, vector<1x128xf32>
    %4 = vector.broadcast %3 : vector<1x128xf32> to vector<64x128xf32>
    %5 = arith.addf %2, %4 : vector<64x128xf32>
    %cst_5 = arith.constant 0.000000e+00 : f32
    %6 = vector.broadcast %cst_5 : f32 to vector<64x128xf32>
    %7 = arith.maximumf %5, %6 : vector<64x128xf32>
    %8 = arith.truncf %7 : vector<64x128xf32> to vector<64x128xbf16>
    %c0_6 = arith.constant 0 : index
    %c0_7 = arith.constant 0 : index
    %9 = vector.load %arg5[%c0_6, %c0_7] : memref<64x128xbf16, #tpu.memory_space<vmem>>, vector<64x128xbf16>
    tpu.vector_store %arg5[%c0_6, %c0_7], %8 {strides = array<i32>} : memref<64x128xbf16, #tpu.memory_space<vmem>>, vector<64x128xbf16>,
    return
  }
  func.func @transform_0(%arg0: i32, %arg1: i32) -> (i32, i32) {
    %c0_i32 = arith.constant 0 : i32
    %c0_i32_0 = arith.constant 0 : i32
    return %arg0, %c0_i32 : i32, i32
  }
  func.func @transform_1(%arg0: i32, %arg1: i32) -> (i32, i32) {
    %c0_i32 = arith.constant 0 : i32
    %c0_i32_0 = arith.constant 0 : i32
    return %c0_i32, %arg1 : i32, i32
  }
  func.func @transform_2(%arg0: i32, %arg1: i32) -> (i32, i32) {
    %c0_i32 = arith.constant 0 : i32
    %c0_i32_0 = arith.constant 0 : i32
    return %c0_i32, %arg1 : i32, i32
  }
  func.func @transform_3(%arg0: i32, %arg1: i32) -> (i32, i32) {
    %c0_i32 = arith.constant 0 : i32
    return %arg0, %arg1 : i32, i32
  }
}

module attributes {stable_mosaic.version = 11 : i64} {
  func.func @_se_tail_kernel(%arg0: memref<4x16x128xbf16, #tpu.memory_space<vmem>>, %arg1: memref<4x16x128xbf16, #tpu.memory_space<vmem>>, %arg2: memref<128x128xbf16, #tpu.memory_space<vmem>>, %arg3: memref<1x128xf32, #tpu.memory_space<vmem>>, %arg4: memref<128x128xbf16, #tpu.memory_space<vmem>>, %arg5: memref<1x128xf32, #tpu.memory_space<vmem>>, %arg6: memref<4x16x128xbf16, #tpu.memory_space<vmem>>) attributes {dimension_semantics = [], scalar_prefetch = 0 : i64, scratch_operands = 0 : i64, tpu.core_type = #tpu.core_type<tc>} {
    %c0 = arith.constant 0 : index
    %c0_0 = arith.constant 0 : index
    %c0_1 = arith.constant 0 : index
    %0 = vector.load %arg0[%c0, %c0_0, %c0_1] : memref<4x16x128xbf16, #tpu.memory_space<vmem>>, vector<4x16x128xbf16>
    %1 = arith.extf %0 : vector<4x16x128xbf16> to vector<4x16x128xf32>
    %cst = arith.constant dense<0.000000e+00> : vector<4x128xf32>
    %2 = vector.multi_reduction <add>, %1, %cst [1] : vector<4x16x128xf32> to vector<4x128xf32>
    %cst_2 = arith.constant 1.600000e+01 : f32
    %3 = vector.broadcast %cst_2 : f32 to vector<4x128xf32>
    %4 = arith.divf %2, %3 : vector<4x128xf32>
    %5 = arith.truncf %4 : vector<4x128xf32> to vector<4x128xbf16>
    %c0_3 = arith.constant 0 : index
    %c0_4 = arith.constant 0 : index
    %6 = vector.load %arg2[%c0_3, %c0_4] : memref<128x128xbf16, #tpu.memory_space<vmem>>, vector<128x128xbf16>
    %cst_5 = arith.constant dense<0.000000e+00> : vector<4x128xf32>
    %7 = tpu.matmul %5, %6, %cst_5 {dimension_numbers = #tpu.dot_dimension_numbers<[1], [0], [0], [1], [0, 0, 1, 1], [], []>} : vector<4x128xbf16>, vector<128x128xbf16>, vector<4x128xf32> -> vector<4x128xf32>
    %c0_6 = arith.constant 0 : index
    %c0_7 = arith.constant 0 : index
    %8 = vector.load %arg3[%c0_6, %c0_7] : memref<1x128xf32, #tpu.memory_space<vmem>>, vector<1x128xf32>
    %9 = vector.broadcast %8 : vector<1x128xf32> to vector<4x128xf32>
    %10 = arith.addf %7, %9 : vector<4x128xf32>
    %cst_8 = arith.constant 0.000000e+00 : f32
    %11 = vector.broadcast %cst_8 : f32 to vector<4x128xf32>
    %12 = arith.maximumf %10, %11 : vector<4x128xf32>
    %13 = arith.truncf %12 : vector<4x128xf32> to vector<4x128xbf16>
    %c0_9 = arith.constant 0 : index
    %c0_10 = arith.constant 0 : index
    %14 = vector.load %arg4[%c0_9, %c0_10] : memref<128x128xbf16, #tpu.memory_space<vmem>>, vector<128x128xbf16>
    %cst_11 = arith.constant dense<0.000000e+00> : vector<4x128xf32>
    %15 = tpu.matmul %13, %14, %cst_11 {dimension_numbers = #tpu.dot_dimension_numbers<[1], [0], [0], [1], [0, 0, 1, 1], [], []>} : vector<4x128xbf16>, vector<128x128xbf16>, vector<4x128xf32> -> vector<4x128xf32>
    %c0_12 = arith.constant 0 : index
    %c0_13 = arith.constant 0 : index
    %16 = vector.load %arg5[%c0_12, %c0_13] : memref<1x128xf32, #tpu.memory_space<vmem>>, vector<1x128xf32>
    %17 = vector.broadcast %16 : vector<1x128xf32> to vector<4x128xf32>
    %18 = arith.addf %15, %17 : vector<4x128xf32>
    %cst_14 = arith.constant 0.000000e+00 : f32
    %19 = vector.broadcast %cst_14 : f32 to vector<4x128xf32>
    %20 = arith.subf %19, %18 : vector<4x128xf32>
    %21 = math.exp %20 : vector<4x128xf32>
    %cst_15 = arith.constant 1.000000e+00 : f32
    %22 = vector.broadcast %cst_15 : f32 to vector<4x128xf32>
    %23 = arith.addf %22, %21 : vector<4x128xf32>
    %cst_16 = arith.constant 1.000000e+00 : f32
    %24 = vector.broadcast %cst_16 : f32 to vector<4x128xf32>
    %25 = arith.divf %24, %23 : vector<4x128xf32>
    %26 = vector.shape_cast %25 : vector<4x128xf32> to vector<4x1x128xf32>
    %27 = vector.broadcast %26 : vector<4x1x128xf32> to vector<4x16x128xf32>
    %28 = arith.mulf %1, %27 : vector<4x16x128xf32>
    %c0_17 = arith.constant 0 : index
    %c0_18 = arith.constant 0 : index
    %c0_19 = arith.constant 0 : index
    %29 = vector.load %arg1[%c0_17, %c0_18, %c0_19] : memref<4x16x128xbf16, #tpu.memory_space<vmem>>, vector<4x16x128xbf16>
    %30 = arith.extf %29 : vector<4x16x128xbf16> to vector<4x16x128xf32>
    %31 = arith.addf %28, %30 : vector<4x16x128xf32>
    %cst_20 = arith.constant 0.000000e+00 : f32
    %32 = vector.broadcast %cst_20 : f32 to vector<4x16x128xf32>
    %33 = arith.maximumf %31, %32 : vector<4x16x128xf32>
    %34 = arith.truncf %33 : vector<4x16x128xf32> to vector<4x16x128xbf16>
    %c0_21 = arith.constant 0 : index
    %c0_22 = arith.constant 0 : index
    %c0_23 = arith.constant 0 : index
    %35 = vector.load %arg6[%c0_21, %c0_22, %c0_23] : memref<4x16x128xbf16, #tpu.memory_space<vmem>>, vector<4x16x128xbf16>
    tpu.vector_store %arg6[%c0_21, %c0_22, %c0_23], %34 {strides = array<i32>} : memref<4x16x128xbf16, #tpu.memory_space<vmem>>, vector<4x16x128xbf16>,
    return
  }
}

module attributes {stable_mosaic.version = 11 : i64} {
  func.func @_mm_kernel_single(%arg0: i32, %arg1: i32, %arg2: memref<64x128xbf16, #tpu.memory_space<vmem>>, %arg3: memref<128x128xbf16, #tpu.memory_space<vmem>>, %arg4: memref<1x128xf32, #tpu.memory_space<vmem>>, %arg5: memref<64x128xbf16, #tpu.memory_space<vmem>>) attributes {dimension_semantics = [#tpu.dimension_semantics<parallel>, #tpu.dimension_semantics<parallel>], iteration_bounds = array<i64: 1, 1>, scalar_prefetch = 0 : i64, scratch_operands = 0 : i64, tpu.core_type = #tpu.core_type<tc>, window_params = [{transform_indices = @transform_0, window_bounds = array<i64: 64, 128>}, {transform_indices = @transform_1, window_bounds = array<i64: 128, 128>}, {transform_indices = @transform_2, window_bounds = array<i64: 1, 128>}, {transform_indices = @transform_3, window_bounds = array<i64: 64, 128>}]} {
    %c0 = arith.constant 0 : index
    %c0_0 = arith.constant 0 : index
    %0 = vector.load %arg2[%c0, %c0_0] : memref<64x128xbf16, #tpu.memory_space<vmem>>, vector<64x128xbf16>
    %c0_1 = arith.constant 0 : index
    %c0_2 = arith.constant 0 : index
    %1 = vector.load %arg3[%c0_1, %c0_2] : memref<128x128xbf16, #tpu.memory_space<vmem>>, vector<128x128xbf16>
    %cst = arith.constant dense<0.000000e+00> : vector<64x128xf32>
    %2 = tpu.matmul %0, %1, %cst {dimension_numbers = #tpu.dot_dimension_numbers<[1], [0], [0], [1], [0, 0, 1, 1], [], []>} : vector<64x128xbf16>, vector<128x128xbf16>, vector<64x128xf32> -> vector<64x128xf32>
    %c0_3 = arith.constant 0 : index
    %c0_4 = arith.constant 0 : index
    %3 = vector.load %arg4[%c0_3, %c0_4] : memref<1x128xf32, #tpu.memory_space<vmem>>, vector<1x128xf32>
    %4 = vector.broadcast %3 : vector<1x128xf32> to vector<64x128xf32>
    %5 = arith.addf %2, %4 : vector<64x128xf32>
    %cst_5 = arith.constant 0.000000e+00 : f32
    %6 = vector.broadcast %cst_5 : f32 to vector<64x128xf32>
    %7 = arith.maximumf %5, %6 : vector<64x128xf32>
    %8 = arith.truncf %7 : vector<64x128xf32> to vector<64x128xbf16>
    %c0_6 = arith.constant 0 : index
    %c0_7 = arith.constant 0 : index
    %9 = vector.load %arg5[%c0_6, %c0_7] : memref<64x128xbf16, #tpu.memory_space<vmem>>, vector<64x128xbf16>
    tpu.vector_store %arg5[%c0_6, %c0_7], %8 {strides = array<i32>} : memref<64x128xbf16, #tpu.memory_space<vmem>>, vector<64x128xbf16>,
    return
  }
  func.func @transform_0(%arg0: i32, %arg1: i32) -> (i32, i32) {
    %c0_i32 = arith.constant 0 : i32
    %c0_i32_0 = arith.constant 0 : i32
    return %arg0, %c0_i32 : i32, i32
  }
  func.func @transform_1(%arg0: i32, %arg1: i32) -> (i32, i32) {
    %c0_i32 = arith.constant 0 : i32
    %c0_i32_0 = arith.constant 0 : i32
    return %c0_i32, %arg1 : i32, i32
  }
  func.func @transform_2(%arg0: i32, %arg1: i32) -> (i32, i32) {
    %c0_i32 = arith.constant 0 : i32
    %c0_i32_0 = arith.constant 0 : i32
    return %c0_i32, %arg1 : i32, i32
  }
  func.func @transform_3(%arg0: i32, %arg1: i32) -> (i32, i32) {
    %c0_i32 = arith.constant 0 : i32
    return %arg0, %arg1 : i32, i32
  }
}

module attributes {stable_mosaic.version = 11 : i64} {
  func.func @_mm_kernel_single(%arg0: i32, %arg1: i32, %arg2: memref<16x1152xbf16, #tpu.memory_space<vmem>>, %arg3: memref<1152x128xbf16, #tpu.memory_space<vmem>>, %arg4: memref<1x128xf32, #tpu.memory_space<vmem>>, %arg5: memref<16x128xbf16, #tpu.memory_space<vmem>>) attributes {dimension_semantics = [#tpu.dimension_semantics<parallel>, #tpu.dimension_semantics<parallel>], iteration_bounds = array<i64: 1, 1>, scalar_prefetch = 0 : i64, scratch_operands = 0 : i64, tpu.core_type = #tpu.core_type<tc>, window_params = [{transform_indices = @transform_0, window_bounds = array<i64: 16, 1152>}, {transform_indices = @transform_1, window_bounds = array<i64: 1152, 128>}, {transform_indices = @transform_2, window_bounds = array<i64: 1, 128>}, {transform_indices = @transform_3, window_bounds = array<i64: 16, 128>}]} {
    %c0 = arith.constant 0 : index
    %c0_0 = arith.constant 0 : index
    %0 = vector.load %arg2[%c0, %c0_0] : memref<16x1152xbf16, #tpu.memory_space<vmem>>, vector<16x1152xbf16>
    %c0_1 = arith.constant 0 : index
    %c0_2 = arith.constant 0 : index
    %1 = vector.load %arg3[%c0_1, %c0_2] : memref<1152x128xbf16, #tpu.memory_space<vmem>>, vector<1152x128xbf16>
    %cst = arith.constant dense<0.000000e+00> : vector<16x128xf32>
    %2 = tpu.matmul %0, %1, %cst {dimension_numbers = #tpu.dot_dimension_numbers<[1], [0], [0], [1], [0, 0, 1, 1], [], []>} : vector<16x1152xbf16>, vector<1152x128xbf16>, vector<16x128xf32> -> vector<16x128xf32>
    %c0_3 = arith.constant 0 : index
    %c0_4 = arith.constant 0 : index
    %3 = vector.load %arg4[%c0_3, %c0_4] : memref<1x128xf32, #tpu.memory_space<vmem>>, vector<1x128xf32>
    %4 = vector.broadcast %3 : vector<1x128xf32> to vector<16x128xf32>
    %5 = arith.addf %2, %4 : vector<16x128xf32>
    %cst_5 = arith.constant 0.000000e+00 : f32
    %6 = vector.broadcast %cst_5 : f32 to vector<16x128xf32>
    %7 = arith.maximumf %5, %6 : vector<16x128xf32>
    %8 = arith.truncf %7 : vector<16x128xf32> to vector<16x128xbf16>
    %c0_6 = arith.constant 0 : index
    %c0_7 = arith.constant 0 : index
    %9 = vector.load %arg5[%c0_6, %c0_7] : memref<16x128xbf16, #tpu.memory_space<vmem>>, vector<16x128xbf16>
    tpu.vector_store %arg5[%c0_6, %c0_7], %8 {strides = array<i32>} : memref<16x128xbf16, #tpu.memory_space<vmem>>, vector<16x128xbf16>,
    return
  }
  func.func @transform_0(%arg0: i32, %arg1: i32) -> (i32, i32) {
    %c0_i32 = arith.constant 0 : i32
    %c0_i32_0 = arith.constant 0 : i32
    return %arg0, %c0_i32 : i32, i32
  }
  func.func @transform_1(%arg0: i32, %arg1: i32) -> (i32, i32) {
    %c0_i32 = arith.constant 0 : i32
    %c0_i32_0 = arith.constant 0 : i32
    return %c0_i32, %arg1 : i32, i32
  }
  func.func @transform_2(%arg0: i32, %arg1: i32) -> (i32, i32) {
    %c0_i32 = arith.constant 0 : i32
    %c0_i32_0 = arith.constant 0 : i32
    return %c0_i32, %arg1 : i32, i32
  }
  func.func @transform_3(%arg0: i32, %arg1: i32) -> (i32, i32) {
    %c0_i32 = arith.constant 0 : i32
    return %arg0, %arg1 : i32, i32
  }
}

module attributes {stable_mosaic.version = 11 : i64} {
  func.func @_se_tail_kernel(%arg0: memref<4x4x128xbf16, #tpu.memory_space<vmem>>, %arg1: memref<4x4x128xbf16, #tpu.memory_space<vmem>>, %arg2: memref<128x128xbf16, #tpu.memory_space<vmem>>, %arg3: memref<1x128xf32, #tpu.memory_space<vmem>>, %arg4: memref<128x128xbf16, #tpu.memory_space<vmem>>, %arg5: memref<1x128xf32, #tpu.memory_space<vmem>>, %arg6: memref<4x4x128xbf16, #tpu.memory_space<vmem>>) attributes {dimension_semantics = [], scalar_prefetch = 0 : i64, scratch_operands = 0 : i64, tpu.core_type = #tpu.core_type<tc>} {
    %c0 = arith.constant 0 : index
    %c0_0 = arith.constant 0 : index
    %c0_1 = arith.constant 0 : index
    %0 = vector.load %arg0[%c0, %c0_0, %c0_1] : memref<4x4x128xbf16, #tpu.memory_space<vmem>>, vector<4x4x128xbf16>
    %1 = arith.extf %0 : vector<4x4x128xbf16> to vector<4x4x128xf32>
    %cst = arith.constant dense<0.000000e+00> : vector<4x128xf32>
    %2 = vector.multi_reduction <add>, %1, %cst [1] : vector<4x4x128xf32> to vector<4x128xf32>
    %cst_2 = arith.constant 4.000000e+00 : f32
    %3 = vector.broadcast %cst_2 : f32 to vector<4x128xf32>
    %4 = arith.divf %2, %3 : vector<4x128xf32>
    %5 = arith.truncf %4 : vector<4x128xf32> to vector<4x128xbf16>
    %c0_3 = arith.constant 0 : index
    %c0_4 = arith.constant 0 : index
    %6 = vector.load %arg2[%c0_3, %c0_4] : memref<128x128xbf16, #tpu.memory_space<vmem>>, vector<128x128xbf16>
    %cst_5 = arith.constant dense<0.000000e+00> : vector<4x128xf32>
    %7 = tpu.matmul %5, %6, %cst_5 {dimension_numbers = #tpu.dot_dimension_numbers<[1], [0], [0], [1], [0, 0, 1, 1], [], []>} : vector<4x128xbf16>, vector<128x128xbf16>, vector<4x128xf32> -> vector<4x128xf32>
    %c0_6 = arith.constant 0 : index
    %c0_7 = arith.constant 0 : index
    %8 = vector.load %arg3[%c0_6, %c0_7] : memref<1x128xf32, #tpu.memory_space<vmem>>, vector<1x128xf32>
    %9 = vector.broadcast %8 : vector<1x128xf32> to vector<4x128xf32>
    %10 = arith.addf %7, %9 : vector<4x128xf32>
    %cst_8 = arith.constant 0.000000e+00 : f32
    %11 = vector.broadcast %cst_8 : f32 to vector<4x128xf32>
    %12 = arith.maximumf %10, %11 : vector<4x128xf32>
    %13 = arith.truncf %12 : vector<4x128xf32> to vector<4x128xbf16>
    %c0_9 = arith.constant 0 : index
    %c0_10 = arith.constant 0 : index
    %14 = vector.load %arg4[%c0_9, %c0_10] : memref<128x128xbf16, #tpu.memory_space<vmem>>, vector<128x128xbf16>
    %cst_11 = arith.constant dense<0.000000e+00> : vector<4x128xf32>
    %15 = tpu.matmul %13, %14, %cst_11 {dimension_numbers = #tpu.dot_dimension_numbers<[1], [0], [0], [1], [0, 0, 1, 1], [], []>} : vector<4x128xbf16>, vector<128x128xbf16>, vector<4x128xf32> -> vector<4x128xf32>
    %c0_12 = arith.constant 0 : index
    %c0_13 = arith.constant 0 : index
    %16 = vector.load %arg5[%c0_12, %c0_13] : memref<1x128xf32, #tpu.memory_space<vmem>>, vector<1x128xf32>
    %17 = vector.broadcast %16 : vector<1x128xf32> to vector<4x128xf32>
    %18 = arith.addf %15, %17 : vector<4x128xf32>
    %cst_14 = arith.constant 0.000000e+00 : f32
    %19 = vector.broadcast %cst_14 : f32 to vector<4x128xf32>
    %20 = arith.subf %19, %18 : vector<4x128xf32>
    %21 = math.exp %20 : vector<4x128xf32>
    %cst_15 = arith.constant 1.000000e+00 : f32
    %22 = vector.broadcast %cst_15 : f32 to vector<4x128xf32>
    %23 = arith.addf %22, %21 : vector<4x128xf32>
    %cst_16 = arith.constant 1.000000e+00 : f32
    %24 = vector.broadcast %cst_16 : f32 to vector<4x128xf32>
    %25 = arith.divf %24, %23 : vector<4x128xf32>
    %26 = vector.shape_cast %25 : vector<4x128xf32> to vector<4x1x128xf32>
    %27 = vector.broadcast %26 : vector<4x1x128xf32> to vector<4x4x128xf32>
    %28 = arith.mulf %1, %27 : vector<4x4x128xf32>
    %c0_17 = arith.constant 0 : index
    %c0_18 = arith.constant 0 : index
    %c0_19 = arith.constant 0 : index
    %29 = vector.load %arg1[%c0_17, %c0_18, %c0_19] : memref<4x4x128xbf16, #tpu.memory_space<vmem>>, vector<4x4x128xbf16>
    %30 = arith.extf %29 : vector<4x4x128xbf16> to vector<4x4x128xf32>
    %31 = arith.addf %28, %30 : vector<4x4x128xf32>
    %cst_20 = arith.constant 0.000000e+00 : f32
    %32 = vector.broadcast %cst_20 : f32 to vector<4x4x128xf32>
    %33 = arith.maximumf %31, %32 : vector<4x4x128xf32>
    %34 = arith.truncf %33 : vector<4x4x128xf32> to vector<4x4x128xbf16>
    %c0_21 = arith.constant 0 : index
    %c0_22 = arith.constant 0 : index
    %c0_23 = arith.constant 0 : index
    %35 = vector.load %arg6[%c0_21, %c0_22, %c0_23] : memref<4x4x128xbf16, #tpu.memory_space<vmem>>, vector<4x4x128xbf16>
    tpu.vector_store %arg6[%c0_21, %c0_22, %c0_23], %34 {strides = array<i32>} : memref<4x4x128xbf16, #tpu.memory_space<vmem>>, vector<4x4x128xbf16>,
    return
  }
}

module attributes {stable_mosaic.version = 11 : i64} {
  func.func @_mm_kernel_single(%arg0: i32, %arg1: i32, %arg2: memref<16x128xbf16, #tpu.memory_space<vmem>>, %arg3: memref<128x128xbf16, #tpu.memory_space<vmem>>, %arg4: memref<1x128xf32, #tpu.memory_space<vmem>>, %arg5: memref<16x128xbf16, #tpu.memory_space<vmem>>) attributes {dimension_semantics = [#tpu.dimension_semantics<parallel>, #tpu.dimension_semantics<parallel>], iteration_bounds = array<i64: 1, 1>, scalar_prefetch = 0 : i64, scratch_operands = 0 : i64, tpu.core_type = #tpu.core_type<tc>, window_params = [{transform_indices = @transform_0, window_bounds = array<i64: 16, 128>}, {transform_indices = @transform_1, window_bounds = array<i64: 128, 128>}, {transform_indices = @transform_2, window_bounds = array<i64: 1, 128>}, {transform_indices = @transform_3, window_bounds = array<i64: 16, 128>}]} {
    %c0 = arith.constant 0 : index
    %c0_0 = arith.constant 0 : index
    %0 = vector.load %arg2[%c0, %c0_0] : memref<16x128xbf16, #tpu.memory_space<vmem>>, vector<16x128xbf16>
    %c0_1 = arith.constant 0 : index
    %c0_2 = arith.constant 0 : index
    %1 = vector.load %arg3[%c0_1, %c0_2] : memref<128x128xbf16, #tpu.memory_space<vmem>>, vector<128x128xbf16>
    %cst = arith.constant dense<0.000000e+00> : vector<16x128xf32>
    %2 = tpu.matmul %0, %1, %cst {dimension_numbers = #tpu.dot_dimension_numbers<[1], [0], [0], [1], [0, 0, 1, 1], [], []>} : vector<16x128xbf16>, vector<128x128xbf16>, vector<16x128xf32> -> vector<16x128xf32>
    %c0_3 = arith.constant 0 : index
    %c0_4 = arith.constant 0 : index
    %3 = vector.load %arg4[%c0_3, %c0_4] : memref<1x128xf32, #tpu.memory_space<vmem>>, vector<1x128xf32>
    %4 = vector.broadcast %3 : vector<1x128xf32> to vector<16x128xf32>
    %5 = arith.addf %2, %4 : vector<16x128xf32>
    %6 = arith.truncf %5 : vector<16x128xf32> to vector<16x128xbf16>
    %c0_5 = arith.constant 0 : index
    %c0_6 = arith.constant 0 : index
    %7 = vector.load %arg5[%c0_5, %c0_6] : memref<16x128xbf16, #tpu.memory_space<vmem>>, vector<16x128xbf16>
    tpu.vector_store %arg5[%c0_5, %c0_6], %6 {strides = array<i32>} : memref<16x128xbf16, #tpu.memory_space<vmem>>, vector<16x128xbf16>,
    return
  }
  func.func @transform_0(%arg0: i32, %arg1: i32) -> (i32, i32) {
    %c0_i32 = arith.constant 0 : i32
    %c0_i32_0 = arith.constant 0 : i32
    return %arg0, %c0_i32 : i32, i32
  }
  func.func @transform_1(%arg0: i32, %arg1: i32) -> (i32, i32) {
    %c0_i32 = arith.constant 0 : i32
    %c0_i32_0 = arith.constant 0 : i32
    return %c0_i32, %arg1 : i32, i32
  }
  func.func @transform_2(%arg0: i32, %arg1: i32) -> (i32, i32) {
    %c0_i32 = arith.constant 0 : i32
    %c0_i32_0 = arith.constant 0 : i32
    return %c0_i32, %arg1 : i32, i32
  }
  func.func @transform_3(%arg0: i32, %arg1: i32) -> (i32, i32) {
    %c0_i32 = arith.constant 0 : i32
    return %arg0, %arg1 : i32, i32
  }
}

module attributes {stable_mosaic.version = 11 : i64} {
  func.func @_mm_kernel_single(%arg0: i32, %arg1: i32, %arg2: memref<16x128xbf16, #tpu.memory_space<vmem>>, %arg3: memref<128x128xbf16, #tpu.memory_space<vmem>>, %arg4: memref<1x128xf32, #tpu.memory_space<vmem>>, %arg5: memref<16x128xbf16, #tpu.memory_space<vmem>>) attributes {dimension_semantics = [#tpu.dimension_semantics<parallel>, #tpu.dimension_semantics<parallel>], iteration_bounds = array<i64: 1, 1>, scalar_prefetch = 0 : i64, scratch_operands = 0 : i64, tpu.core_type = #tpu.core_type<tc>, window_params = [{transform_indices = @transform_0, window_bounds = array<i64: 16, 128>}, {transform_indices = @transform_1, window_bounds = array<i64: 128, 128>}, {transform_indices = @transform_2, window_bounds = array<i64: 1, 128>}, {transform_indices = @transform_3, window_bounds = array<i64: 16, 128>}]} {
    %c0 = arith.constant 0 : index
    %c0_0 = arith.constant 0 : index
    %0 = vector.load %arg2[%c0, %c0_0] : memref<16x128xbf16, #tpu.memory_space<vmem>>, vector<16x128xbf16>
    %c0_1 = arith.constant 0 : index
    %c0_2 = arith.constant 0 : index
    %1 = vector.load %arg3[%c0_1, %c0_2] : memref<128x128xbf16, #tpu.memory_space<vmem>>, vector<128x128xbf16>
    %cst = arith.constant dense<0.000000e+00> : vector<16x128xf32>
    %2 = tpu.matmul %0, %1, %cst {dimension_numbers = #tpu.dot_dimension_numbers<[1], [0], [0], [1], [0, 0, 1, 1], [], []>} : vector<16x128xbf16>, vector<128x128xbf16>, vector<16x128xf32> -> vector<16x128xf32>
    %c0_3 = arith.constant 0 : index
    %c0_4 = arith.constant 0 : index
    %3 = vector.load %arg4[%c0_3, %c0_4] : memref<1x128xf32, #tpu.memory_space<vmem>>, vector<1x128xf32>
    %4 = vector.broadcast %3 : vector<1x128xf32> to vector<16x128xf32>
    %5 = arith.addf %2, %4 : vector<16x128xf32>
    %cst_5 = arith.constant 0.000000e+00 : f32
    %6 = vector.broadcast %cst_5 : f32 to vector<16x128xf32>
    %7 = arith.maximumf %5, %6 : vector<16x128xf32>
    %8 = arith.truncf %7 : vector<16x128xf32> to vector<16x128xbf16>
    %c0_6 = arith.constant 0 : index
    %c0_7 = arith.constant 0 : index
    %9 = vector.load %arg5[%c0_6, %c0_7] : memref<16x128xbf16, #tpu.memory_space<vmem>>, vector<16x128xbf16>
    tpu.vector_store %arg5[%c0_6, %c0_7], %8 {strides = array<i32>} : memref<16x128xbf16, #tpu.memory_space<vmem>>, vector<16x128xbf16>,
    return
  }
  func.func @transform_0(%arg0: i32, %arg1: i32) -> (i32, i32) {
    %c0_i32 = arith.constant 0 : i32
    %c0_i32_0 = arith.constant 0 : i32
    return %arg0, %c0_i32 : i32, i32
  }
  func.func @transform_1(%arg0: i32, %arg1: i32) -> (i32, i32) {
    %c0_i32 = arith.constant 0 : i32
    %c0_i32_0 = arith.constant 0 : i32
    return %c0_i32, %arg1 : i32, i32
  }
  func.func @transform_2(%arg0: i32, %arg1: i32) -> (i32, i32) {
    %c0_i32 = arith.constant 0 : i32
    %c0_i32_0 = arith.constant 0 : i32
    return %c0_i32, %arg1 : i32, i32
  }
  func.func @transform_3(%arg0: i32, %arg1: i32) -> (i32, i32) {
    %c0_i32 = arith.constant 0 : i32
    return %arg0, %arg1 : i32, i32
  }
}

module attributes {stable_mosaic.version = 11 : i64} {
  func.func @_mm_kernel_single(%arg0: i32, %arg1: i32, %arg2: memref<4x128xbf16, #tpu.memory_space<vmem>>, %arg3: memref<128x128xbf16, #tpu.memory_space<vmem>>, %arg4: memref<1x128xf32, #tpu.memory_space<vmem>>, %arg5: memref<4x128xbf16, #tpu.memory_space<vmem>>) attributes {dimension_semantics = [#tpu.dimension_semantics<parallel>, #tpu.dimension_semantics<parallel>], iteration_bounds = array<i64: 1, 1>, scalar_prefetch = 0 : i64, scratch_operands = 0 : i64, tpu.core_type = #tpu.core_type<tc>, window_params = [{transform_indices = @transform_0, window_bounds = array<i64: 4, 128>}, {transform_indices = @transform_1, window_bounds = array<i64: 128, 128>}, {transform_indices = @transform_2, window_bounds = array<i64: 1, 128>}, {transform_indices = @transform_3, window_bounds = array<i64: 4, 128>}]} {
    %c0 = arith.constant 0 : index
    %c0_0 = arith.constant 0 : index
    %0 = vector.load %arg2[%c0, %c0_0] : memref<4x128xbf16, #tpu.memory_space<vmem>>, vector<4x128xbf16>
    %c0_1 = arith.constant 0 : index
    %c0_2 = arith.constant 0 : index
    %1 = vector.load %arg3[%c0_1, %c0_2] : memref<128x128xbf16, #tpu.memory_space<vmem>>, vector<128x128xbf16>
    %cst = arith.constant dense<0.000000e+00> : vector<4x128xf32>
    %2 = tpu.matmul %0, %1, %cst {dimension_numbers = #tpu.dot_dimension_numbers<[1], [0], [0], [1], [0, 0, 1, 1], [], []>} : vector<4x128xbf16>, vector<128x128xbf16>, vector<4x128xf32> -> vector<4x128xf32>
    %c0_3 = arith.constant 0 : index
    %c0_4 = arith.constant 0 : index
    %3 = vector.load %arg4[%c0_3, %c0_4] : memref<1x128xf32, #tpu.memory_space<vmem>>, vector<1x128xf32>
    %4 = vector.broadcast %3 : vector<1x128xf32> to vector<4x128xf32>
    %5 = arith.addf %2, %4 : vector<4x128xf32>
    %6 = arith.truncf %5 : vector<4x128xf32> to vector<4x128xbf16>
    %c0_5 = arith.constant 0 : index
    %c0_6 = arith.constant 0 : index
    %7 = vector.load %arg5[%c0_5, %c0_6] : memref<4x128xbf16, #tpu.memory_space<vmem>>, vector<4x128xbf16>
    tpu.vector_store %arg5[%c0_5, %c0_6], %6 {strides = array<i32>} : memref<4x128xbf16, #tpu.memory_space<vmem>>, vector<4x128xbf16>,
    return
  }
  func.func @transform_0(%arg0: i32, %arg1: i32) -> (i32, i32) {
    %c0_i32 = arith.constant 0 : i32
    %c0_i32_0 = arith.constant 0 : i32
    return %arg0, %c0_i32 : i32, i32
  }
  func.func @transform_1(%arg0: i32, %arg1: i32) -> (i32, i32) {
    %c0_i32 = arith.constant 0 : i32
    %c0_i32_0 = arith.constant 0 : i32
    return %c0_i32, %arg1 : i32, i32
  }
  func.func @transform_2(%arg0: i32, %arg1: i32) -> (i32, i32) {
    %c0_i32 = arith.constant 0 : i32
    %c0_i32_0 = arith.constant 0 : i32
    return %c0_i32, %arg1 : i32, i32
  }
  func.func @transform_3(%arg0: i32, %arg1: i32) -> (i32, i32) {
    %c0_i32 = arith.constant 0 : i32
    return %arg0, %arg1 : i32, i32
  }
}

module attributes {stable_mosaic.version = 11 : i64} {
  func.func @_mm_kernel_single(%arg0: i32, %arg1: i32, %arg2: memref<4x1152xbf16, #tpu.memory_space<vmem>>, %arg3: memref<1152x128xbf16, #tpu.memory_space<vmem>>, %arg4: memref<1x128xf32, #tpu.memory_space<vmem>>, %arg5: memref<4x128xbf16, #tpu.memory_space<vmem>>) attributes {dimension_semantics = [#tpu.dimension_semantics<parallel>, #tpu.dimension_semantics<parallel>], iteration_bounds = array<i64: 1, 1>, scalar_prefetch = 0 : i64, scratch_operands = 0 : i64, tpu.core_type = #tpu.core_type<tc>, window_params = [{transform_indices = @transform_0, window_bounds = array<i64: 4, 1152>}, {transform_indices = @transform_1, window_bounds = array<i64: 1152, 128>}, {transform_indices = @transform_2, window_bounds = array<i64: 1, 128>}, {transform_indices = @transform_3, window_bounds = array<i64: 4, 128>}]} {
    %c0 = arith.constant 0 : index
    %c0_0 = arith.constant 0 : index
    %0 = vector.load %arg2[%c0, %c0_0] : memref<4x1152xbf16, #tpu.memory_space<vmem>>, vector<4x1152xbf16>
    %c0_1 = arith.constant 0 : index
    %c0_2 = arith.constant 0 : index
    %1 = vector.load %arg3[%c0_1, %c0_2] : memref<1152x128xbf16, #tpu.memory_space<vmem>>, vector<1152x128xbf16>
    %cst = arith.constant dense<0.000000e+00> : vector<4x128xf32>
    %2 = tpu.matmul %0, %1, %cst {dimension_numbers = #tpu.dot_dimension_numbers<[1], [0], [0], [1], [0, 0, 1, 1], [], []>} : vector<4x1152xbf16>, vector<1152x128xbf16>, vector<4x128xf32> -> vector<4x128xf32>
    %c0_3 = arith.constant 0 : index
    %c0_4 = arith.constant 0 : index
    %3 = vector.load %arg4[%c0_3, %c0_4] : memref<1x128xf32, #tpu.memory_space<vmem>>, vector<1x128xf32>
    %4 = vector.broadcast %3 : vector<1x128xf32> to vector<4x128xf32>
    %5 = arith.addf %2, %4 : vector<4x128xf32>
    %cst_5 = arith.constant 0.000000e+00 : f32
    %6 = vector.broadcast %cst_5 : f32 to vector<4x128xf32>
    %7 = arith.maximumf %5, %6 : vector<4x128xf32>
    %8 = arith.truncf %7 : vector<4x128xf32> to vector<4x128xbf16>
    %c0_6 = arith.constant 0 : index
    %c0_7 = arith.constant 0 : index
    %9 = vector.load %arg5[%c0_6, %c0_7] : memref<4x128xbf16, #tpu.memory_space<vmem>>, vector<4x128xbf16>
    tpu.vector_store %arg5[%c0_6, %c0_7], %8 {strides = array<i32>} : memref<4x128xbf16, #tpu.memory_space<vmem>>, vector<4x128xbf16>,
    return
  }
  func.func @transform_0(%arg0: i32, %arg1: i32) -> (i32, i32) {
    %c0_i32 = arith.constant 0 : i32
    %c0_i32_0 = arith.constant 0 : i32
    return %arg0, %c0_i32 : i32, i32
  }
  func.func @transform_1(%arg0: i32, %arg1: i32) -> (i32, i32) {
    %c0_i32 = arith.constant 0 : i32
    %c0_i32_0 = arith.constant 0 : i32
    return %c0_i32, %arg1 : i32, i32
  }
  func.func @transform_2(%arg0: i32, %arg1: i32) -> (i32, i32) {
    %c0_i32 = arith.constant 0 : i32
    %c0_i32_0 = arith.constant 0 : i32
    return %c0_i32, %arg1 : i32, i32
  }
  func.func @transform_3(%arg0: i32, %arg1: i32) -> (i32, i32) {
    %c0_i32 = arith.constant 0 : i32
    return %arg0, %arg1 : i32, i32
  }
}

module attributes {stable_mosaic.version = 11 : i64} {
  func.func @_gap_kernel(%arg0: memref<4x1x128xbf16, #tpu.memory_space<vmem>>, %arg1: memref<4x128xf32, #tpu.memory_space<vmem>>) attributes {dimension_semantics = [], scalar_prefetch = 0 : i64, scratch_operands = 0 : i64, tpu.core_type = #tpu.core_type<tc>} {
    %c0 = arith.constant 0 : index
    %c0_0 = arith.constant 0 : index
    %c0_1 = arith.constant 0 : index
    %0 = vector.load %arg0[%c0, %c0_0, %c0_1] : memref<4x1x128xbf16, #tpu.memory_space<vmem>>, vector<4x1x128xbf16>
    %1 = arith.extf %0 : vector<4x1x128xbf16> to vector<4x1x128xf32>
    %cst = arith.constant dense<0.000000e+00> : vector<4x128xf32>
    %2 = vector.multi_reduction <add>, %1, %cst [1] : vector<4x1x128xf32> to vector<4x128xf32>
    %cst_2 = arith.constant 1.000000e+00 : f32
    %3 = vector.broadcast %cst_2 : f32 to vector<4x128xf32>
    %4 = arith.divf %2, %3 : vector<4x128xf32>
    %c0_3 = arith.constant 0 : index
    %c0_4 = arith.constant 0 : index
    %5 = vector.load %arg1[%c0_3, %c0_4] : memref<4x128xf32, #tpu.memory_space<vmem>>, vector<4x128xf32>
    tpu.vector_store %arg1[%c0_3, %c0_4], %4 {strides = array<i32>} : memref<4x128xf32, #tpu.memory_space<vmem>>, vector<4x128xf32>,
    return
  }
}

module attributes {stable_mosaic.version = 11 : i64} {
  func.func @_se_tail_kernel(%arg0: memref<4x1x128xbf16, #tpu.memory_space<vmem>>, %arg1: memref<4x1x128xbf16, #tpu.memory_space<vmem>>, %arg2: memref<128x128xbf16, #tpu.memory_space<vmem>>, %arg3: memref<1x128xf32, #tpu.memory_space<vmem>>, %arg4: memref<128x128xbf16, #tpu.memory_space<vmem>>, %arg5: memref<1x128xf32, #tpu.memory_space<vmem>>, %arg6: memref<4x1x128xbf16, #tpu.memory_space<vmem>>) attributes {dimension_semantics = [], scalar_prefetch = 0 : i64, scratch_operands = 0 : i64, tpu.core_type = #tpu.core_type<tc>} {
    %c0 = arith.constant 0 : index
    %c0_0 = arith.constant 0 : index
    %c0_1 = arith.constant 0 : index
    %0 = vector.load %arg0[%c0, %c0_0, %c0_1] : memref<4x1x128xbf16, #tpu.memory_space<vmem>>, vector<4x1x128xbf16>
    %1 = arith.extf %0 : vector<4x1x128xbf16> to vector<4x1x128xf32>
    %cst = arith.constant dense<0.000000e+00> : vector<4x128xf32>
    %2 = vector.multi_reduction <add>, %1, %cst [1] : vector<4x1x128xf32> to vector<4x128xf32>
    %cst_2 = arith.constant 1.000000e+00 : f32
    %3 = vector.broadcast %cst_2 : f32 to vector<4x128xf32>
    %4 = arith.divf %2, %3 : vector<4x128xf32>
    %5 = arith.truncf %4 : vector<4x128xf32> to vector<4x128xbf16>
    %c0_3 = arith.constant 0 : index
    %c0_4 = arith.constant 0 : index
    %6 = vector.load %arg2[%c0_3, %c0_4] : memref<128x128xbf16, #tpu.memory_space<vmem>>, vector<128x128xbf16>
    %cst_5 = arith.constant dense<0.000000e+00> : vector<4x128xf32>
    %7 = tpu.matmul %5, %6, %cst_5 {dimension_numbers = #tpu.dot_dimension_numbers<[1], [0], [0], [1], [0, 0, 1, 1], [], []>} : vector<4x128xbf16>, vector<128x128xbf16>, vector<4x128xf32> -> vector<4x128xf32>
    %c0_6 = arith.constant 0 : index
    %c0_7 = arith.constant 0 : index
    %8 = vector.load %arg3[%c0_6, %c0_7] : memref<1x128xf32, #tpu.memory_space<vmem>>, vector<1x128xf32>
    %9 = vector.broadcast %8 : vector<1x128xf32> to vector<4x128xf32>
    %10 = arith.addf %7, %9 : vector<4x128xf32>
    %cst_8 = arith.constant 0.000000e+00 : f32
    %11 = vector.broadcast %cst_8 : f32 to vector<4x128xf32>
    %12 = arith.maximumf %10, %11 : vector<4x128xf32>
    %13 = arith.truncf %12 : vector<4x128xf32> to vector<4x128xbf16>
    %c0_9 = arith.constant 0 : index
    %c0_10 = arith.constant 0 : index
    %14 = vector.load %arg4[%c0_9, %c0_10] : memref<128x128xbf16, #tpu.memory_space<vmem>>, vector<128x128xbf16>
    %cst_11 = arith.constant dense<0.000000e+00> : vector<4x128xf32>
    %15 = tpu.matmul %13, %14, %cst_11 {dimension_numbers = #tpu.dot_dimension_numbers<[1], [0], [0], [1], [0, 0, 1, 1], [], []>} : vector<4x128xbf16>, vector<128x128xbf16>, vector<4x128xf32> -> vector<4x128xf32>
    %c0_12 = arith.constant 0 : index
    %c0_13 = arith.constant 0 : index
    %16 = vector.load %arg5[%c0_12, %c0_13] : memref<1x128xf32, #tpu.memory_space<vmem>>, vector<1x128xf32>
    %17 = vector.broadcast %16 : vector<1x128xf32> to vector<4x128xf32>
    %18 = arith.addf %15, %17 : vector<4x128xf32>
    %cst_14 = arith.constant 0.000000e+00 : f32
    %19 = vector.broadcast %cst_14 : f32 to vector<4x128xf32>
    %20 = arith.subf %19, %18 : vector<4x128xf32>
    %21 = math.exp %20 : vector<4x128xf32>
    %cst_15 = arith.constant 1.000000e+00 : f32
    %22 = vector.broadcast %cst_15 : f32 to vector<4x128xf32>
    %23 = arith.addf %22, %21 : vector<4x128xf32>
    %cst_16 = arith.constant 1.000000e+00 : f32
    %24 = vector.broadcast %cst_16 : f32 to vector<4x128xf32>
    %25 = arith.divf %24, %23 : vector<4x128xf32>
    %26 = vector.shape_cast %25 : vector<4x128xf32> to vector<4x1x128xf32>
    %27 = arith.mulf %1, %26 : vector<4x1x128xf32>
    %c0_17 = arith.constant 0 : index
    %c0_18 = arith.constant 0 : index
    %c0_19 = arith.constant 0 : index
    %28 = vector.load %arg1[%c0_17, %c0_18, %c0_19] : memref<4x1x128xbf16, #tpu.memory_space<vmem>>, vector<4x1x128xbf16>
    %29 = arith.extf %28 : vector<4x1x128xbf16> to vector<4x1x128xf32>
    %30 = arith.addf %27, %29 : vector<4x1x128xf32>
    %cst_20 = arith.constant 0.000000e+00 : f32
    %31 = vector.broadcast %cst_20 : f32 to vector<4x1x128xf32>
    %32 = arith.maximumf %30, %31 : vector<4x1x128xf32>
    %33 = arith.truncf %32 : vector<4x1x128xf32> to vector<4x1x128xbf16>
    %c0_21 = arith.constant 0 : index
    %c0_22 = arith.constant 0 : index
    %c0_23 = arith.constant 0 : index
    %34 = vector.load %arg6[%c0_21, %c0_22, %c0_23] : memref<4x1x128xbf16, #tpu.memory_space<vmem>>, vector<4x1x128xbf16>
    tpu.vector_store %arg6[%c0_21, %c0_22, %c0_23], %33 {strides = array<i32>} : memref<4x1x128xbf16, #tpu.memory_space<vmem>>, vector<4x1x128xbf16>,
    return
  }
}

module attributes {stable_mosaic.version = 11 : i64} {
  func.func @_mm_kernel_single(%arg0: i32, %arg1: i32, %arg2: memref<2x256xbf16, #tpu.memory_space<vmem>>, %arg3: memref<256x128xbf16, #tpu.memory_space<vmem>>, %arg4: memref<1x128xf32, #tpu.memory_space<vmem>>, %arg5: memref<2x128xf32, #tpu.memory_space<vmem>>) attributes {dimension_semantics = [#tpu.dimension_semantics<parallel>, #tpu.dimension_semantics<parallel>], iteration_bounds = array<i64: 1, 1>, scalar_prefetch = 0 : i64, scratch_operands = 0 : i64, tpu.core_type = #tpu.core_type<tc>, window_params = [{transform_indices = @transform_0, window_bounds = array<i64: 2, 256>}, {transform_indices = @transform_1, window_bounds = array<i64: 256, 128>}, {transform_indices = @transform_2, window_bounds = array<i64: 1, 128>}, {transform_indices = @transform_3, window_bounds = array<i64: 2, 128>}]} {
    %c0 = arith.constant 0 : index
    %c0_0 = arith.constant 0 : index
    %0 = vector.load %arg2[%c0, %c0_0] : memref<2x256xbf16, #tpu.memory_space<vmem>>, vector<2x256xbf16>
    %c0_1 = arith.constant 0 : index
    %c0_2 = arith.constant 0 : index
    %1 = vector.load %arg3[%c0_1, %c0_2] : memref<256x128xbf16, #tpu.memory_space<vmem>>, vector<256x128xbf16>
    %cst = arith.constant dense<0.000000e+00> : vector<2x128xf32>
    %2 = tpu.matmul %0, %1, %cst {dimension_numbers = #tpu.dot_dimension_numbers<[1], [0], [0], [1], [0, 0, 1, 1], [], []>} : vector<2x256xbf16>, vector<256x128xbf16>, vector<2x128xf32> -> vector<2x128xf32>
    %c0_3 = arith.constant 0 : index
    %c0_4 = arith.constant 0 : index
    %3 = vector.load %arg4[%c0_3, %c0_4] : memref<1x128xf32, #tpu.memory_space<vmem>>, vector<1x128xf32>
    %4 = vector.broadcast %3 : vector<1x128xf32> to vector<2x128xf32>
    %5 = arith.addf %2, %4 : vector<2x128xf32>
    %c0_5 = arith.constant 0 : index
    %c0_6 = arith.constant 0 : index
    %6 = vector.load %arg5[%c0_5, %c0_6] : memref<2x128xf32, #tpu.memory_space<vmem>>, vector<2x128xf32>
    tpu.vector_store %arg5[%c0_5, %c0_6], %5 {strides = array<i32>} : memref<2x128xf32, #tpu.memory_space<vmem>>, vector<2x128xf32>,
    return
  }
  func.func @transform_0(%arg0: i32, %arg1: i32) -> (i32, i32) {
    %c0_i32 = arith.constant 0 : i32
    %c0_i32_0 = arith.constant 0 : i32
    return %arg0, %c0_i32 : i32, i32
  }
  func.func @transform_1(%arg0: i32, %arg1: i32) -> (i32, i32) {
    %c0_i32 = arith.constant 0 : i32
    %c0_i32_0 = arith.constant 0 : i32
    return %c0_i32, %arg1 : i32, i32
  }
  func.func @transform_2(%arg0: i32, %arg1: i32) -> (i32, i32) {
    %c0_i32 = arith.constant 0 : i32
    %c0_i32_0 = arith.constant 0 : i32
    return %c0_i32, %arg1 : i32, i32
  }
  func.func @transform_3(%arg0: i32, %arg1: i32) -> (i32, i32) {
    %c0_i32 = arith.constant 0 : i32
    return %arg0, %arg1 : i32, i32
  }
}

</mosaic_0001>

<llo_original>
// kernel: _lambda_.23
$region0: #{_lambda_.23}
  #allocation0 [shape = 'u32[]', space=smem, size = 0x4, offset = 0x4, fixed_abs, tag = 'smem constant byte address 0x4 - core index']
  #allocation1 [shape = 'u32[144,128]{1,0:T(1,128)}', space=vmem, size = 0x12000, scoped, tag = 'internal scratch']
  %s0 = inlined_call_operand.vmem [shape: bf16[1024,256], index: 0, kind: input, shape index: {}]
  %s1 = inlined_call_operand.vmem [shape: bf16[256,128], index: 1, kind: input, shape index: {}]
  %s2 = inlined_call_operand.vmem [shape: f32[1,128], index: 2, kind: input, shape index: {}]
  %s3 = inlined_call_operand.vmem [shape: bf16[1024,128], index: 3, kind: output, shape index: {}]
  %s4 = sld [smem:[#allocation0]]
  $region45: #{_lambda_.23} parent=0
    _
  %s6 = ssub.s32 1, %s4
  %s7 = scalar_select 0, %s6, %s4
  loop: start=0, step=1, limit=10
  $region2: #{_lambda_.23} parent=0 // loop_pre_header
    _
  $region3: #{_lambda_.23} parent=0 // loop_header
    %s9 = sphi 0, %s13
    %p10 = scmp.ge.s32.totalorder %s9, 10
    %s16 = sphi 0, %s28
    %s17 = sphi 0, %s24
    %s18 = sphi 0, %s16
    %s19 = sphi 0, %s17
    %s20 = sphi 0, %s18
    %s21 = sphi 0, %s19
    %s31 = sphi 0, %s33
    %s34 = sphi 0, %s31
    %s35 = sphi 0, %s34
    %s51 = sphi 0, %s35
    %s57 = sphi 0, %s59
    %s60 = sphi 0, %s57
    %s61 = sphi 0, %s60
    %s77 = sphi 0, %s61
    %s83 = sphi 0, %s85
    %s86 = sphi 0, %s83
    %s87 = sphi 0, %s86
    %s103 = sphi 0, %s87
    %s111 = sphi 0, %s113
    %s114 = sphi 0, %s111
    %s115 = sphi 0, %s114
    %s131 = sphi 0, %s115
  $region4: #{_lambda_.23} parent=0 // loop_header_branch
    %12 = sbr.rel (%p10) target = $region8
  $region5: #{_lambda_.23} parent=0 // loop_body
    %s14 = ssub.s32 %s9, 1
    %s15 = ssub.s32 %s9, 2
    %s22 = sadd.s32 1, %s17
    %p23 = scmp.ge.s32.totalorder %s22, 1
    %s24 = scalar_select %p23, 0, %s22
    %s25 = sadd.s32 1, %s16
    %s26 = scalar_select %p23, %s25, %s16
    %p27 = scmp.ge.s32.totalorder %s26, 8
    %s28 = scalar_select %p27, 0, %s26
    %s29 = ssub.s32 %s16, %s28
    %p30 = scmp.eq.s32.totalorder %s29, 0
    %s32 = sadd.s32 %s31, 1
    %s33 = scalar_select %p30, %s31, %s32
    %p36 = pneg %p30
    %p37 = scmp.eq.s32.totalorder %s9, 7
    %p38 = por %p36, %p37
    %p39 = scmp.ne.s32.totalorder %s31, %s34
    %p40 = scmp.eq.s32.totalorder %s9, 0
    %p41 = por %p39, %p40
    %p42 = scmp.ne.s32.totalorder %s31, %s34
    %p43 = scmp.eq.s32.totalorder %s14, 7
    %p44 = por %p42, %p43
    %p45 = scmp.ne.s32.totalorder %s34, %s35
    %p46 = scmp.eq.s32.totalorder %s14, 0
    %p47 = por %p45, %p46
    %p48 = scmp.ne.s32.totalorder %s34, %s35
    %p49 = scmp.eq.s32.totalorder %s15, 7
    %p50 = por %p48, %p49
    %p52 = scmp.ne.s32.totalorder %s35, %s51
    %p53 = scmp.eq.s32.totalorder %s15, 0
    %p54 = por %p52, %p53
    %s55 = ssub.s32 %s17, %s24
    %p56 = scmp.eq.s32.totalorder %s55, 0
    %s58 = sadd.s32 %s57, 1
    %s59 = scalar_select %p56, %s57, %s58
    %p62 = pneg %p56
    %p63 = scmp.eq.s32.totalorder %s9, 7
    %p64 = por %p62, %p63
    %p65 = scmp.ne.s32.totalorder %s57, %s60
    %p66 = scmp.eq.s32.totalorder %s9, 0
    %p67 = por %p65, %p66
    %p68 = scmp.ne.s32.totalorder %s57, %s60
    %p69 = scmp.eq.s32.totalorder %s14, 7
    %p70 = por %p68, %p69
    %p71 = scmp.ne.s32.totalorder %s60, %s61
    %p72 = scmp.eq.s32.totalorder %s14, 0
    %p73 = por %p71, %p72
    %p74 = scmp.ne.s32.totalorder %s60, %s61
    %p75 = scmp.eq.s32.totalorder %s15, 7
    %p76 = por %p74, %p75
    %p78 = scmp.ne.s32.totalorder %s61, %s77
    %p79 = scmp.eq.s32.totalorder %s15, 0
    %p80 = por %p78, %p79
    %s81 = ssub.s32 %s17, %s24
    %p82 = scmp.eq.s32.totalorder %s81, 0
    %s84 = sadd.s32 %s83, 1
    %s85 = scalar_select %p82, %s83, %s84
    %p88 = pneg %p82
    %p89 = scmp.eq.s32.totalorder %s9, 7
    %p90 = por %p88, %p89
    %p91 = scmp.ne.s32.totalorder %s83, %s86
    %p92 = scmp.eq.s32.totalorder %s9, 0
    %p93 = por %p91, %p92
    %p94 = scmp.ne.s32.totalorder %s83, %s86
    %p95 = scmp.eq.s32.totalorder %s14, 7
    %p96 = por %p94, %p95
    %p97 = scmp.ne.s32.totalorder %s86, %s87
    %p98 = scmp.eq.s32.totalorder %s14, 0
    %p99 = por %p97, %p98
    %p100 = scmp.ne.s32.totalorder %s86, %s87
    %p101 = scmp.eq.s32.totalorder %s15, 7
    %p102 = por %p100, %p101
    %p104 = scmp.ne.s32.totalorder %s87, %s103
    %p105 = scmp.eq.s32.totalorder %s15, 0
    %p106 = por %p104, %p105
    %s107 = ssub.s32 %s16, %s28
    %s108 = ssub.s32 %s17, %s24
    %s109 = sor.u32 %s107, %s108
    %p110 = scmp.eq.s32.totalorder %s109, 0
    %s112 = sadd.s32 %s111, 1
    %s113 = scalar_select %p110, %s111, %s112
    %p116 = pneg %p110
    %p117 = scmp.eq.s32.totalorder %s9, 7
    %p118 = por %p116, %p117
    %p119 = scmp.ne.s32.totalorder %s111, %s114
    %p120 = scmp.eq.s32.totalorder %s9, 0
    %p121 = por %p119, %p120
    %p122 = scmp.ne.s32.totalorder %s111, %s114
    %p123 = scmp.eq.s32.totalorder %s14, 7
    %p124 = por %p122, %p123
    %p125 = scmp.ne.s32.totalorder %s114, %s115
    %p126 = scmp.eq.s32.totalorder %s14, 0
    %p127 = por %p125, %p126
    %p128 = scmp.ne.s32.totalorder %s114, %s115
    %p129 = scmp.eq.s32.totalorder %s15, 7
    %p130 = por %p128, %p129
    %p132 = scmp.ne.s32.totalorder %s115, %s131
    %p133 = scmp.eq.s32.totalorder %s15, 0
    %p134 = por %p132, %p133
    %p135 = scmp.le.s32.totalorder 1, %s9
    %p136 = scmp.lt.s32.totalorder %s9, 9
    %p137 = pnand %p135, %p136
    %p138 = pneg %p137
    // Predicated region
    $region9: #{_lambda_.23} parent=5 // pred_check
      _
    $region10: #{_lambda_.23} parent=5 // pred_check_branch
      %140 = sbr.rel (%p137) target = $region12
    $region11: #{_lambda_.23} parent=5 // pred_region
      %s141 = ssub.s32 %s9, 1
      // Predicated region
      $region13: #{_lambda_.23} parent=11 // pred_check
        %p142 = pneg %p73
      $region14: #{_lambda_.23} parent=11 // pred_check_branch
        %144 = sbr.rel (%p142) target = $region16
      $region15: #{_lambda_.23} parent=11 // pred_region
        %p145 = scmp.lt.s32.totalorder %s19, 0
        %s146 = scalar_select %p145, %s19, 0
        %s147 = smul.addr %s146, 4
        %s148 = scalar_lea.vmem %s1, %s147
      $region16: #{_lambda_.23} parent=11 // pred_fallthru
        _
      // Predicated region
      $region17: #{_lambda_.23} parent=11 // pred_check
        %p149 = pneg %p99
      $region18: #{_lambda_.23} parent=11 // pred_check_branch
        %151 = sbr.rel (%p149) target = $region20
      $region19: #{_lambda_.23} parent=11 // pred_region
        %p152 = scmp.lt.s32.totalorder %s19, 0
        %s153 = scalar_select %p152, %s19, 0
        %s154 = scalar_lea.vmem %s2, %s153
      $region20: #{_lambda_.23} parent=11 // pred_fallthru
        _
    $region12: #{_lambda_.23} parent=5 // pred_fallthru
      _
    %p155 = scmp.lt.s32.totalorder %s9, 8
    // Predicated region
    $region21: #{_lambda_.23} parent=5 // pred_check
      %p156 = pneg %p155
    $region22: #{_lambda_.23} parent=5 // pred_check_branch
      %158 = sbr.rel (%p156) target = $region24
    $region23: #{_lambda_.23} parent=5 // pred_region
      // Predicated region
      $region25: #{_lambda_.23} parent=23 // pred_check
        %p159 = pneg %p41
      $region26: #{_lambda_.23} parent=23 // pred_check_branch
        %161 = sbr.rel (%p159) target = $region28
      $region27: #{_lambda_.23} parent=23 // pred_region
        %s162 = smul.u32 16, %s16
        %p163 = scmp.lt.s32.totalorder %s162, 127
        %s164 = scalar_select %p163, %s162, 127
        %s165 = smul.addr %s164, 2
        %s166 = smul.addr %s165, 4
        %s167 = scalar_lea.vmem %s0, %s166
        %s168 = smul.u32 16, %s16
      $region28: #{_lambda_.23} parent=23 // pred_fallthru
        _
    $region24: #{_lambda_.23} parent=5 // pred_fallthru
      _
    %p169 = scmp.le.s32.totalorder 1, %s9
    %p170 = scmp.lt.s32.totalorder %s9, 9
    %p171 = pnand %p169, %p170
    %p172 = pneg %p171
    // Predicated region
    $region29: #{_lambda_.23} parent=5 // pred_check
      _
    $region30: #{_lambda_.23} parent=5 // pred_check_branch
      %174 = sbr.rel (%p171) target = $region32
    $region31: #{_lambda_.23} parent=5 // pred_region
      %s175 = ssub.s32 %s9, 1
      %s176 = smul.u32 16, %s18
      %p177 = scmp.lt.s32.totalorder %s176, 127
      %s178 = scalar_select %p177, %s176, 127
      %s179 = smul.addr %s178, 2
      %s180 = smul.addr %s179, 4
      %s181 = scalar_lea.vmem %s0, %s180
      %p182 = pneg %p47
      %p183 = pneg %p44
      %p184 = scmp.lt.s32.totalorder %s19, 0
      %s185 = scalar_select %p184, %s19, 0
      %s186 = smul.addr %s185, 4
      %s187 = scalar_lea.vmem %s1, %s186
      %p188 = pneg %p73
      %p189 = pneg %p70
      %p190 = scmp.lt.s32.totalorder %s19, 0
      %s191 = scalar_select %p190, %s19, 0
      %s192 = scalar_lea.vmem %s2, %s191
      %p193 = pneg %p99
      %p194 = pneg %p96
      %p195 = pneg %p127
      %p196 = pneg %p124
      %s197 = smul.u32 16, %s18
      %p198 = scmp.lt.s32.totalorder %s197, 127
      %s199 = scalar_select %p198, %s197, 127
      %p200 = scmp.lt.s32.totalorder %s19, 0
      %s201 = scalar_select %p200, %s19, 0
      %s202 = sadd.s32 %s201, %s199
      %s203 = smul.addr %s202, 4
      %s204 = scalar_lea.vmem %s3, %s203
      %s205 = smul.u32 16, %s18
      %p206 = scmp.lt.s32.totalorder %s205, 127
      %s207 = scalar_select %p206, %s205, 127
      %s208 = smul.addr %s207, 2
      %s209 = smul.addr %s208, 4
      %s210 = scalar_lea.vmem %s0, %s209
      %s211 = smul.u32 16, %s18
      %p212 = scmp.lt.s32.totalorder %s19, 0
      %s213 = scalar_select %p212, %s19, 0
      %s214 = smul.addr %s213, 4
      %s215 = scalar_lea.vmem %s1, %s214
      %p216 = scmp.lt.s32.totalorder %s19, 0
      %s217 = scalar_select %p216, %s19, 0
      %s218 = scalar_lea.vmem %s2, %s217
      %s219 = smul.u32 16, %s18
      %p220 = scmp.lt.s32.totalorder %s219, 127
      %s221 = scalar_select %p220, %s219, 127
      %p222 = scmp.lt.s32.totalorder %s19, 0
      %s223 = scalar_select %p222, %s19, 0
      %s224 = sadd.s32 %s223, %s221
      %s225 = smul.addr %s224, 4
      %s226 = scalar_lea.vmem %s3, %s225
      %s227 = smul.u32 16, %s18
      %v229 = vld [vmem:[%s210] sm:$0xff]
      %v230 = vld [vmem:[%s210 + $0x8] sm:$0xff]
      %v231 = vld [vmem:[%s210 + $0x10] sm:$0xff]
      %v232 = vld [vmem:[%s210 + $0x18] sm:$0xff]
      %v233 = vld [vmem:[%s210 + $0x20] sm:$0xff]
      %v234 = vld [vmem:[%s210 + $0x28] sm:$0xff]
      %v235 = vld [vmem:[%s210 + $0x30] sm:$0xff]
      %v236 = vld [vmem:[%s210 + $0x38] sm:$0xff]
      %v237 = vld [vmem:[%s210 + $0x40] sm:$0xff]
      %v238 = vld [vmem:[%s210 + $0x48] sm:$0xff]
      %v239 = vld [vmem:[%s210 + $0x50] sm:$0xff]
      %v240 = vld [vmem:[%s210 + $0x58] sm:$0xff]
      %v241 = vld [vmem:[%s210 + $0x60] sm:$0xff]
      %v242 = vld [vmem:[%s210 + $0x68] sm:$0xff]
      %v243 = vld [vmem:[%s210 + $0x70] sm:$0xff]
      %v244 = vld [vmem:[%s210 + $0x78] sm:$0xff]
      %v245 = vld [vmem:[%s215] sm:$0xf]
      %v246 = vld [vmem:[%s215 + $0x4] sm:$0xf]
      %v247 = vld [vmem:[%s215 + $0x8] sm:$0xf]
      %v248 = vld [vmem:[%s215 + $0xc] sm:$0xf]
      %v249 = vld [vmem:[%s215 + $0x10] sm:$0xf]
      %v250 = vld [vmem:[%s215 + $0x14] sm:$0xf]
      %v251 = vld [vmem:[%s215 + $0x18] sm:$0xf]
      %v252 = vld [vmem:[%s215 + $0x1c] sm:$0xf]
      %v253 = vld [vmem:[%s215 + $0x20] sm:$0xf]
      %v254 = vld [vmem:[%s215 + $0x24] sm:$0xf]
      %v255 = vld [vmem:[%s215 + $0x28] sm:$0xf]
      %v256 = vld [vmem:[%s215 + $0x2c] sm:$0xf]
      %v257 = vld [vmem:[%s215 + $0x30] sm:$0xf]
      %v258 = vld [vmem:[%s215 + $0x34] sm:$0xf]
      %v259 = vld [vmem:[%s215 + $0x38] sm:$0xf]
      %v260 = vld [vmem:[%s215 + $0x3c] sm:$0xf]
      %v261 = vld [vmem:[%s215 + $0x40] sm:$0xf]
      %v262 = vld [vmem:[%s215 + $0x44] sm:$0xf]
      %v263 = vld [vmem:[%s215 + $0x48] sm:$0xf]
      %v264 = vld [vmem:[%s215 + $0x4c] sm:$0xf]
      %v265 = vld [vmem:[%s215 + $0x50] sm:$0xf]
      %v266 = vld [vmem:[%s215 + $0x54] sm:$0xf]
      %v267 = vld [vmem:[%s215 + $0x58] sm:$0xf]
      %v268 = vld [vmem:[%s215 + $0x5c] sm:$0xf]
      %v269 = vld [vmem:[%s215 + $0x60] sm:$0xf]
      %v270 = vld [vmem:[%s215 + $0x64] sm:$0xf]
      %v271 = vld [vmem:[%s215 + $0x68] sm:$0xf]
      %v272 = vld [vmem:[%s215 + $0x6c] sm:$0xf]
      %v273 = vld [vmem:[%s215 + $0x70] sm:$0xf]
      %v274 = vld [vmem:[%s215 + $0x74] sm:$0xf]
      %v275 = vld [vmem:[%s215 + $0x78] sm:$0xf]
      %v276 = vld [vmem:[%s215 + $0x7c] sm:$0xf]
      %v277 = vld [vmem:[%s218] sm:$0x1]
      %v279 = vlaneseq
      %v280 = vshrl.u32 %v279, 7
      %v281 = vsub.s32 0, %v280
      %v282 = vrot.slane %v277, %v281
      %v300 = vunpack.c.l.b16 %v229
      %v301 = vunpack.c.h.b16 %v229
      %v302 = vunpack.c.l.b16 %v230
      %v303 = vunpack.c.h.b16 %v230
      %v304 = vunpack.c.l.b16 %v231
      %v305 = vunpack.c.h.b16 %v231
      %v306 = vunpack.c.l.b16 %v232
      %v307 = vunpack.c.h.b16 %v232
      %v308 = vunpack.c.l.b16 %v233
      %v309 = vunpack.c.h.b16 %v233
      %v310 = vunpack.c.l.b16 %v234
      %v311 = vunpack.c.h.b16 %v234
      %v312 = vunpack.c.l.b16 %v235
      %v313 = vunpack.c.h.b16 %v235
      %v314 = vunpack.c.l.b16 %v236
      %v315 = vunpack.c.h.b16 %v236
      %v316 = vunpack.c.l.b16 %v237
      %v317 = vunpack.c.h.b16 %v237
      %v318 = vunpack.c.l.b16 %v238
      %v319 = vunpack.c.h.b16 %v238
      %v320 = vunpack.c.l.b16 %v239
      %v321 = vunpack.c.h.b16 %v239
      %v322 = vunpack.c.l.b16 %v240
      %v323 = vunpack.c.h.b16 %v240
      %v324 = vunpack.c.l.b16 %v241
      %v325 = vunpack.c.h.b16 %v241
      %v326 = vunpack.c.l.b16 %v242
      %v327 = vunpack.c.h.b16 %v242
      %v328 = vunpack.c.l.b16 %v243
      %v329 = vunpack.c.h.b16 %v243
      %v330 = vunpack.c.l.b16 %v244
      %v331 = vunpack.c.h.b16 %v244
      %v332 = vpack.c.b16 %v302, %v300
      %v333 = vpack.c.b16 %v303, %v301
      %v334 = vpack.c.b16 %v306, %v304
      %v335 = vpack.c.b16 %v307, %v305
      %v336 = vpack.c.b16 %v310, %v308
      %v337 = vpack.c.b16 %v311, %v309
      %v338 = vpack.c.b16 %v314, %v312
      %v339 = vpack.c.b16 %v315, %v313
      %v340 = vpack.c.b16 %v318, %v316
      %v341 = vpack.c.b16 %v319, %v317
      %v342 = vpack.c.b16 %v322, %v320
      %v343 = vpack.c.b16 %v323, %v321
      %v344 = vpack.c.b16 %v326, %v324
      %v345 = vpack.c.b16 %v327, %v325
      %v346 = vpack.c.b16 %v330, %v328
      %v347 = vpack.c.b16 %v331, %v329
      %v396 = vunpack.c.l.b16 %v245
      %v397 = vunpack.c.l.b16 %v246
      %v398 = vunpack.c.l.b16 %v247
      %v399 = vunpack.c.l.b16 %v248
      %v400 = vunpack.c.l.b16 %v249
      %v401 = vunpack.c.l.b16 %v250
      %v402 = vunpack.c.l.b16 %v251
      %v403 = vunpack.c.l.b16 %v252
      %v404 = vunpack.c.l.b16 %v253
      %v405 = vunpack.c.l.b16 %v254
      %v406 = vunpack.c.l.b16 %v255
      %v407 = vunpack.c.l.b16 %v256
      %v408 = vunpack.c.l.b16 %v257
      %v409 = vunpack.c.l.b16 %v258
      %v410 = vunpack.c.l.b16 %v259
      %v411 = vunpack.c.l.b16 %v260
      %v412 = vunpack.c.l.b16 %v261
      %v413 = vunpack.c.l.b16 %v262
      %v414 = vunpack.c.l.b16 %v263
      %v415 = vunpack.c.l.b16 %v264
      %v416 = vunpack.c.l.b16 %v265
      %v417 = vunpack.c.l.b16 %v266
      %v418 = vunpack.c.l.b16 %v267
      %v419 = vunpack.c.l.b16 %v268
      %v420 = vunpack.c.l.b16 %v269
      %v421 = vunpack.c.l.b16 %v270
      %v422 = vunpack.c.l.b16 %v271
      %v423 = vunpack.c.l.b16 %v272
      %v424 = vunpack.c.l.b16 %v273
      %v425 = vunpack.c.l.b16 %v274
      %v426 = vunpack.c.l.b16 %v275
      %v427 = vunpack.c.l.b16 %v276
      %v428 = vpack.c.b16 %v397, %v396
      %v429 = vpack.c.b16 %v399, %v398
      %v430 = vpack.c.b16 %v401, %v400
      %v431 = vpack.c.b16 %v403, %v402
      %v432 = vpack.c.b16 %v405, %v404
      %v433 = vpack.c.b16 %v407, %v406
      %v434 = vpack.c.b16 %v409, %v408
      %v435 = vpack.c.b16 %v411, %v410
      %v436 = vpack.c.b16 %v413, %v412
      %v437 = vpack.c.b16 %v415, %v414
      %v438 = vpack.c.b16 %v417, %v416
      %v439 = vpack.c.b16 %v419, %v418
      %v440 = vpack.c.b16 %v421, %v420
      %v441 = vpack.c.b16 %v423, %v422
      %v442 = vpack.c.b16 %v425, %v424
      %v443 = vpack.c.b16 %v427, %v426
      %460 = vmatprep.subr.bf16.mxu0 0
      %461 = vmatpush1.bf16.msra.mxu0 %v428
      %462 = vmatprep.subr.bf16.mxu0 0
      %463 = vmatpush1.bf16.msra.mxu0 %v429
      %464 = vmatprep.subr.bf16.mxu0 0
      %465 = vmatpush1.bf16.msra.mxu0 %v430
      %466 = vmatprep.subr.bf16.mxu0 0
      %467 = vmatpush1.bf16.msra.mxu0 %v431
      %468 = vmatprep.subr.bf16.mxu0 0
      %469 = vmatpush1.bf16.msra.mxu0 %v432
      %470 = vmatprep.subr.bf16.mxu0 0
      %471 = vmatpush1.bf16.msra.mxu0 %v433
      %472 = vmatprep.subr.bf16.mxu0 0
      %473 = vmatpush1.bf16.msra.mxu0 %v434
      %474 = vmatprep.subr.bf16.mxu0 0
      %475 = vmatpush1.bf16.msra.mxu0 %v435
      %476 = vmatprep.subr.bf16.mxu0 0
      %477 = vmatpush1.bf16.msra.mxu0 %v436
      %478 = vmatprep.subr.bf16.mxu0 0
      %479 = vmatpush1.bf16.msra.mxu0 %v437
      %480 = vmatprep.subr.bf16.mxu0 0
      %481 = vmatpush1.bf16.msra.mxu0 %v438
      %482 = vmatprep.subr.bf16.mxu0 0
      %483 = vmatpush1.bf16.msra.mxu0 %v439
      %484 = vmatprep.subr.bf16.mxu0 0
      %485 = vmatpush1.bf16.msra.mxu0 %v440
      %486 = vmatprep.subr.bf16.mxu0 0
      %487 = vmatpush1.bf16.msra.mxu0 %v441
      %488 = vmatprep.subr.bf16.mxu0 0
      %489 = vmatpush1.bf16.msra.mxu0 %v442
      %490 = vmatprep.subr.bf16.mxu0 0
      %491 = vmatpush1.bf16.msra.mxu0 %v443
      %492 = vmatprep.mubr.bf16.mxu0 %v333
      %493 = vmatmul.mubr.bf16.gmra.mrb[0].mxu0 %v332
      %v494 = vpop.f32.mrb[0].mxu0
      %v495 = vadd.f32 %v282, %v494
      %v496 = vpop.f32.mrb[0].mxu0
      %v497 = vpop.f32.mrb[0].mxu0
      %v498 = vadd.f32 %v282, %v497
      %v499 = vpop.f32.mrb[0].mxu0
      %500 = vmatprep.mubr.bf16.mxu0 %v335
      %501 = vmatmul.mubr.bf16.gmra.mrb[0].mxu0 %v334
      %v502 = vpop.f32.mrb[0].mxu0
      %v503 = vadd.f32 %v282, %v502
      %v504 = vpop.f32.mrb[0].mxu0
      %v505 = vpop.f32.mrb[0].mxu0
      %v506 = vadd.f32 %v282, %v505
      %v507 = vpop.f32.mrb[0].mxu0
      %508 = vmatprep.mubr.bf16.mxu0 %v337
      %509 = vmatmul.mubr.bf16.gmra.mrb[0].mxu0 %v336
      %v510 = vpop.f32.mrb[0].mxu0
      %v511 = vadd.f32 %v282, %v510
      %v512 = vpop.f32.mrb[0].mxu0
      %v513 = vpop.f32.mrb[0].mxu0
      %v514 = vadd.f32 %v282, %v513
      %v515 = vpop.f32.mrb[0].mxu0
      %516 = vmatprep.mubr.bf16.mxu0 %v339
      %517 = vmatmul.mubr.bf16.gmra.mrb[0].mxu0 %v338
      %v518 = vpop.f32.mrb[0].mxu0
      %v519 = vadd.f32 %v282, %v518
      %v520 = vpop.f32.mrb[0].mxu0
      %v521 = vpop.f32.mrb[0].mxu0
      %v522 = vadd.f32 %v282, %v521
      %v523 = vpop.f32.mrb[0].mxu0
      %524 = vmatprep.mubr.bf16.mxu0 %v341
      %525 = vmatmul.mubr.bf16.gmra.mrb[0].mxu0 %v340
      %v526 = vpop.f32.mrb[0].mxu0
      %v527 = vadd.f32 %v282, %v526
      %v528 = vpop.f32.mrb[0].mxu0
      %v529 = vpop.f32.mrb[0].mxu0
      %v530 = vadd.f32 %v282, %v529
      %v531 = vpop.f32.mrb[0].mxu0
      %532 = vmatprep.mubr.bf16.mxu0 %v343
      %533 = vmatmul.mubr.bf16.gmra.mrb[0].mxu0 %v342
      %v534 = vpop.f32.mrb[0].mxu0
      %v535 = vadd.f32 %v282, %v534
      %v536 = vpop.f32.mrb[0].mxu0
      %v537 = vpop.f32.mrb[0].mxu0
      %v538 = vadd.f32 %v282, %v537
      %v539 = vpop.f32.mrb[0].mxu0
      %540 = vmatprep.mubr.bf16.mxu0 %v345
      %541 = vmatmul.mubr.bf16.gmra.mrb[0].mxu0 %v344
      %v542 = vpop.f32.mrb[0].mxu0
      %v543 = vadd.f32 %v282, %v542
      %v544 = vpop.f32.mrb[0].mxu0
      %v545 = vpop.f32.mrb[0].mxu0
      %v546 = vadd.f32 %v282, %v545
      %v547 = vpop.f32.mrb[0].mxu0
      %548 = vmatprep.mubr.bf16.mxu0 %v347
      %549 = vmatmul.mubr.bf16.gmra.mrb[0].mxu0 %v346
      %v550 = vpop.f32.mrb[0].mxu0
      %v551 = vadd.f32 %v282, %v550
      %v552 = vpop.f32.mrb[0].mxu0
      %v553 = vpop.f32.mrb[0].mxu0
      %v554 = vadd.f32 %v282, %v553
      %v555 = vpop.f32.mrb[0].mxu0
      %556 = vdwg.mxu0
      %v557 = vmax.f32 %v495, 0.0
      %v558 = vmax.f32 %v498, 0.0
      %v559 = vmax.f32 %v503, 0.0
      %v560 = vmax.f32 %v506, 0.0
      %v561 = vmax.f32 %v511, 0.0
      %v562 = vmax.f32 %v514, 0.0
      %v563 = vmax.f32 %v519, 0.0
      %v564 = vmax.f32 %v522, 0.0
      %v565 = vmax.f32 %v527, 0.0
      %v566 = vmax.f32 %v530, 0.0
      %v567 = vmax.f32 %v535, 0.0
      %v568 = vmax.f32 %v538, 0.0
      %v569 = vmax.f32 %v543, 0.0
      %v570 = vmax.f32 %v546, 0.0
      %v571 = vmax.f32 %v551, 0.0
      %v572 = vmax.f32 %v554, 0.0
      %v573 = vpack.c.bf16 %v558, %v557
      %v574 = vpack.c.bf16 %v560, %v559
      %v575 = vpack.c.bf16 %v562, %v561
      %v576 = vpack.c.bf16 %v564, %v563
      %v577 = vpack.c.bf16 %v566, %v565
      %v578 = vpack.c.bf16 %v568, %v567
      %v579 = vpack.c.bf16 %v570, %v569
      %v580 = vpack.c.bf16 %v572, %v571
      %v589 = vunpack.c.l.b16 %v573
      %v590 = vunpack.c.h.b16 %v573
      %v591 = vunpack.c.l.b16 %v574
      %v592 = vunpack.c.h.b16 %v574
      %v593 = vunpack.c.l.b16 %v575
      %v594 = vunpack.c.h.b16 %v575
      %v595 = vunpack.c.l.b16 %v576
      %v596 = vunpack.c.h.b16 %v576
      %v597 = vunpack.c.l.b16 %v577
      %v598 = vunpack.c.h.b16 %v577
      %v599 = vunpack.c.l.b16 %v578
      %v600 = vunpack.c.h.b16 %v578
      %v601 = vunpack.c.l.b16 %v579
      %v602 = vunpack.c.h.b16 %v579
      %v603 = vunpack.c.l.b16 %v580
      %v604 = vunpack.c.h.b16 %v580
      %v605 = vpack.c.b16 %v589, %v589
      %v606 = vpack.c.b16 %v590, %v590
      %v607 = vpack.c.b16 %v591, %v591
      %v608 = vpack.c.b16 %v592, %v592
      %v609 = vpack.c.b16 %v593, %v593
      %v610 = vpack.c.b16 %v594, %v594
      %v611 = vpack.c.b16 %v595, %v595
      %v612 = vpack.c.b16 %v596, %v596
      %v613 = vpack.c.b16 %v597, %v597
      %v614 = vpack.c.b16 %v598, %v598
      %v615 = vpack.c.b16 %v599, %v599
      %v616 = vpack.c.b16 %v600, %v600
      %v617 = vpack.c.b16 %v601, %v601
      %v618 = vpack.c.b16 %v602, %v602
      %v619 = vpack.c.b16 %v603, %v603
      %v620 = vpack.c.b16 %v604, %v604
      %637 = vst [vmem:[%s226] sm:$0xf] %v605
      %638 = vst [vmem:[%s226 + $0x4] sm:$0xf] %v606
      %639 = vst [vmem:[%s226 + $0x8] sm:$0xf] %v607
      %640 = vst [vmem:[%s226 + $0xc] sm:$0xf] %v608
      %641 = vst [vmem:[%s226 + $0x10] sm:$0xf] %v609
      %642 = vst [vmem:[%s226 + $0x14] sm:$0xf] %v610
      %643 = vst [vmem:[%s226 + $0x18] sm:$0xf] %v611
      %644 = vst [vmem:[%s226 + $0x1c] sm:$0xf] %v612
      %645 = vst [vmem:[%s226 + $0x20] sm:$0xf] %v613
      %646 = vst [vmem:[%s226 + $0x24] sm:$0xf] %v614
      %647 = vst [vmem:[%s226 + $0x28] sm:$0xf] %v615
      %648 = vst [vmem:[%s226 + $0x2c] sm:$0xf] %v616
      %649 = vst [vmem:[%s226 + $0x30] sm:$0xf] %v617
      %650 = vst [vmem:[%s226 + $0x34] sm:$0xf] %v618
      %651 = vst [vmem:[%s226 + $0x38] sm:$0xf] %v619
      %652 = vst [vmem:[%s226 + $0x3c] sm:$0xf] %v620
      %s653 = smul.u32 16, %s18
      %p654 = scmp.lt.s32.totalorder %s653, 127
      %s655 = scalar_select %p654, %s653, 127
      %p656 = scmp.lt.s32.totalorder %s19, 0
      %s657 = scalar_select %p656, %s19, 0
      %s658 = sadd.s32 %s657, %s655
      %s659 = smul.addr %s658, 4
      %s660 = scalar_lea.vmem %s3, %s659
      // Predicated region
      $region33: #{_lambda_.23} parent=31 // pred_check
        %p661 = pneg %p124
      $region34: #{_lambda_.23} parent=31 // pred_check_branch
        %663 = sbr.rel (%p661) target = $region36
      $region35: #{_lambda_.23} parent=31 // pred_region
        %s664 = smul.u32 16, %s18
      $region36: #{_lambda_.23} parent=31 // pred_fallthru
        _
    $region32: #{_lambda_.23} parent=5 // pred_fallthru
      _
    %p665 = scmp.le.s32.totalorder 2, %s9
    // Predicated region
    $region37: #{_lambda_.23} parent=5 // pred_check
      %p666 = pneg %p665
    $region38: #{_lambda_.23} parent=5 // pred_check_branch
      %668 = sbr.rel (%p666) target = $region40
    $region39: #{_lambda_.23} parent=5 // pred_region
      %s669 = ssub.s32 %s9, 2
      // Predicated region
      $region41: #{_lambda_.23} parent=39 // pred_check
        %p670 = pneg %p130
      $region42: #{_lambda_.23} parent=39 // pred_check_branch
        %672 = sbr.rel (%p670) target = $region44
      $region43: #{_lambda_.23} parent=39 // pred_region
        %s673 = smul.u32 16, %s20
        %p674 = scmp.lt.s32.totalorder %s673, 127
        %s675 = scalar_select %p674, %s673, 127
        %p676 = scmp.lt.s32.totalorder %s21, 0
        %s677 = scalar_select %p676, %s21, 0
        %s678 = sadd.s32 %s677, %s675
        %s679 = smul.addr %s678, 4
        %s680 = scalar_lea.vmem %s3, %s679
      $region44: #{_lambda_.23} parent=39 // pred_fallthru
        _
    $region40: #{_lambda_.23} parent=5 // pred_fallthru
      _
  $region6: #{_lambda_.23} parent=0 // loop_footer
    %s13 = sadd.s32 1, %s9
  $region7: #{_lambda_.23} parent=0 // loop_footer_branch
    %8 = sbr.rel target = $region3
  $region8: #{_lambda_.23} parent=0 // loop_exit
    _

// kernel: _lambda_.24
$region0: #{_lambda_.24}
  #allocation0 [shape = 'u32[]', space=smem, size = 0x4, offset = 0x4, fixed_abs, tag = 'smem constant byte address 0x4 - core index']
  #allocation1 [shape = 'u32[144,128]{1,0:T(1,128)}', space=vmem, size = 0x12000, scoped, tag = 'internal scratch']
  %s0 = inlined_call_operand.vmem [shape: bf16[256,128], index: 0, kind: input, shape index: {}]
  %s1 = inlined_call_operand.vmem [shape: bf16[128,128], index: 1, kind: input, shape index: {}]
  %s2 = inlined_call_operand.vmem [shape: f32[1,128], index: 2, kind: input, shape index: {}]
  %s3 = inlined_call_operand.vmem [shape: bf16[256,128], index: 3, kind: output, shape index: {}]
  %s4 = sld [smem:[#allocation0]]
  $region45: #{_lambda_.24} parent=0
    _
  %s6 = ssub.s32 1, %s4
  %s7 = scalar_select 0, %s6, %s4
  loop: start=0, step=1, limit=4
  $region2: #{_lambda_.24} parent=0 // loop_pre_header
    _
  $region3: #{_lambda_.24} parent=0 // loop_header
    %s9 = sphi 0, %s13
    %p10 = scmp.ge.s32.totalorder %s9, 4
    %s16 = sphi 0, %s28
    %s17 = sphi 0, %s24
    %s18 = sphi 0, %s16
    %s19 = sphi 0, %s17
    %s20 = sphi 0, %s18
    %s21 = sphi 0, %s19
    %s31 = sphi 0, %s33
    %s34 = sphi 0, %s31
    %s35 = sphi 0, %s34
    %s51 = sphi 0, %s35
    %s57 = sphi 0, %s59
    %s60 = sphi 0, %s57
    %s61 = sphi 0, %s60
    %s77 = sphi 0, %s61
    %s83 = sphi 0, %s85
    %s86 = sphi 0, %s83
    %s87 = sphi 0, %s86
    %s103 = sphi 0, %s87
    %s111 = sphi 0, %s113
    %s114 = sphi 0, %s111
    %s115 = sphi 0, %s114
    %s131 = sphi 0, %s115
  $region4: #{_lambda_.24} parent=0 // loop_header_branch
    %12 = sbr.rel (%p10) target = $region8
  $region5: #{_lambda_.24} parent=0 // loop_body
    %s14 = ssub.s32 %s9, 1
    %s15 = ssub.s32 %s9, 2
    %s22 = sadd.s32 1, %s17
    %p23 = scmp.ge.s32.totalorder %s22, 1
    %s24 = scalar_select %p23, 0, %s22
    %s25 = sadd.s32 1, %s16
    %s26 = scalar_select %p23, %s25, %s16
    %p27 = scmp.ge.s32.totalorder %s26, 2
    %s28 = scalar_select %p27, 0, %s26
    %s29 = ssub.s32 %s16, %s28
    %p30 = scmp.eq.s32.totalorder %s29, 0
    %s32 = sadd.s32 %s31, 1
    %s33 = scalar_select %p30, %s31, %s32
    %p36 = pneg %p30
    %p37 = scmp.eq.s32.totalorder %s9, 1
    %p38 = por %p36, %p37
    %p39 = scmp.ne.s32.totalorder %s31, %s34
    %p40 = scmp.eq.s32.totalorder %s9, 0
    %p41 = por %p39, %p40
    %p42 = scmp.ne.s32.totalorder %s31, %s34
    %p43 = scmp.eq.s32.totalorder %s14, 1
    %p44 = por %p42, %p43
    %p45 = scmp.ne.s32.totalorder %s34, %s35
    %p46 = scmp.eq.s32.totalorder %s14, 0
    %p47 = por %p45, %p46
    %p48 = scmp.ne.s32.totalorder %s34, %s35
    %p49 = scmp.eq.s32.totalorder %s15, 1
    %p50 = por %p48, %p49
    %p52 = scmp.ne.s32.totalorder %s35, %s51
    %p53 = scmp.eq.s32.totalorder %s15, 0
    %p54 = por %p52, %p53
    %s55 = ssub.s32 %s17, %s24
    %p56 = scmp.eq.s32.totalorder %s55, 0
    %s58 = sadd.s32 %s57, 1
    %s59 = scalar_select %p56, %s57, %s58
    %p62 = pneg %p56
    %p63 = scmp.eq.s32.totalorder %s9, 1
    %p64 = por %p62, %p63
    %p65 = scmp.ne.s32.totalorder %s57, %s60
    %p66 = scmp.eq.s32.totalorder %s9, 0
    %p67 = por %p65, %p66
    %p68 = scmp.ne.s32.totalorder %s57, %s60
    %p69 = scmp.eq.s32.totalorder %s14, 1
    %p70 = por %p68, %p69
    %p71 = scmp.ne.s32.totalorder %s60, %s61
    %p72 = scmp.eq.s32.totalorder %s14, 0
    %p73 = por %p71, %p72
    %p74 = scmp.ne.s32.totalorder %s60, %s61
    %p75 = scmp.eq.s32.totalorder %s15, 1
    %p76 = por %p74, %p75
    %p78 = scmp.ne.s32.totalorder %s61, %s77
    %p79 = scmp.eq.s32.totalorder %s15, 0
    %p80 = por %p78, %p79
    %s81 = ssub.s32 %s17, %s24
    %p82 = scmp.eq.s32.totalorder %s81, 0
    %s84 = sadd.s32 %s83, 1
    %s85 = scalar_select %p82, %s83, %s84
    %p88 = pneg %p82
    %p89 = scmp.eq.s32.totalorder %s9, 1
    %p90 = por %p88, %p89
    %p91 = scmp.ne.s32.totalorder %s83, %s86
    %p92 = scmp.eq.s32.totalorder %s9, 0
    %p93 = por %p91, %p92
    %p94 = scmp.ne.s32.totalorder %s83, %s86
    %p95 = scmp.eq.s32.totalorder %s14, 1
    %p96 = por %p94, %p95
    %p97 = scmp.ne.s32.totalorder %s86, %s87
    %p98 = scmp.eq.s32.totalorder %s14, 0
    %p99 = por %p97, %p98
    %p100 = scmp.ne.s32.totalorder %s86, %s87
    %p101 = scmp.eq.s32.totalorder %s15, 1
    %p102 = por %p100, %p101
    %p104 = scmp.ne.s32.totalorder %s87, %s103
    %p105 = scmp.eq.s32.totalorder %s15, 0
    %p106 = por %p104, %p105
    %s107 = ssub.s32 %s16, %s28
    %s108 = ssub.s32 %s17, %s24
    %s109 = sor.u32 %s107, %s108
    %p110 = scmp.eq.s32.totalorder %s109, 0
    %s112 = sadd.s32 %s111, 1
    %s113 = scalar_select %p110, %s111, %s112
    %p116 = pneg %p110
    %p117 = scmp.eq.s32.totalorder %s9, 1
    %p118 = por %p116, %p117
    %p119 = scmp.ne.s32.totalorder %s111, %s114
    %p120 = scmp.eq.s32.totalorder %s9, 0
    %p121 = por %p119, %p120
    %p122 = scmp.ne.s32.totalorder %s111, %s114
    %p123 = scmp.eq.s32.totalorder %s14, 1
    %p124 = por %p122, %p123
    %p125 = scmp.ne.s32.totalorder %s114, %s115
    %p126 = scmp.eq.s32.totalorder %s14, 0
    %p127 = por %p125, %p126
    %p128 = scmp.ne.s32.totalorder %s114, %s115
    %p129 = scmp.eq.s32.totalorder %s15, 1
    %p130 = por %p128, %p129
    %p132 = scmp.ne.s32.totalorder %s115, %s131
    %p133 = scmp.eq.s32.totalorder %s15, 0
    %p134 = por %p132, %p133
    %p135 = scmp.le.s32.totalorder 1, %s9
    %p136 = scmp.lt.s32.totalorder %s9, 3
    %p137 = pnand %p135, %p136
    %p138 = pneg %p137
    // Predicated region
    $region9: #{_lambda_.24} parent=5 // pred_check
      _
    $region10: #{_lambda_.24} parent=5 // pred_check_branch
      %140 = sbr.rel (%p137) target = $region12
    $region11: #{_lambda_.24} parent=5 // pred_region
      %s141 = ssub.s32 %s9, 1
      // Predicated region
      $region13: #{_lambda_.24} parent=11 // pred_check
        %p142 = pneg %p73
      $region14: #{_lambda_.24} parent=11 // pred_check_branch
        %144 = sbr.rel (%p142) target = $region16
      $region15: #{_lambda_.24} parent=11 // pred_region
        %p145 = scmp.lt.s32.totalorder %s19, 0
        %s146 = scalar_select %p145, %s19, 0
        %s147 = smul.addr %s146, 4
        %s148 = scalar_lea.vmem %s1, %s147
      $region16: #{_lambda_.24} parent=11 // pred_fallthru
        _
      // Predicated region
      $region17: #{_lambda_.24} parent=11 // pred_check
        %p149 = pneg %p99
      $region18: #{_lambda_.24} parent=11 // pred_check_branch
        %151 = sbr.rel (%p149) target = $region20
      $region19: #{_lambda_.24} parent=11 // pred_region
        %p152 = scmp.lt.s32.totalorder %s19, 0
        %s153 = scalar_select %p152, %s19, 0
        %s154 = scalar_lea.vmem %s2, %s153
      $region20: #{_lambda_.24} parent=11 // pred_fallthru
        _
    $region12: #{_lambda_.24} parent=5 // pred_fallthru
      _
    %p155 = scmp.lt.s32.totalorder %s9, 2
    // Predicated region
    $region21: #{_lambda_.24} parent=5 // pred_check
      %p156 = pneg %p155
    $region22: #{_lambda_.24} parent=5 // pred_check_branch
      %158 = sbr.rel (%p156) target = $region24
    $region23: #{_lambda_.24} parent=5 // pred_region
      // Predicated region
      $region25: #{_lambda_.24} parent=23 // pred_check
        %p159 = pneg %p41
      $region26: #{_lambda_.24} parent=23 // pred_check_branch
        %161 = sbr.rel (%p159) target = $region28
      $region27: #{_lambda_.24} parent=23 // pred_region
        %s162 = smul.u32 16, %s16
        %p163 = scmp.lt.s32.totalorder %s162, 31
        %s164 = scalar_select %p163, %s162, 31
        %s165 = smul.addr %s164, 4
        %s166 = scalar_lea.vmem %s0, %s165
        %s167 = smul.u32 16, %s16
      $region28: #{_lambda_.24} parent=23 // pred_fallthru
        _
    $region24: #{_lambda_.24} parent=5 // pred_fallthru
      _
    %p168 = scmp.le.s32.totalorder 1, %s9
    %p169 = scmp.lt.s32.totalorder %s9, 3
    %p170 = pnand %p168, %p169
    %p171 = pneg %p170
    // Predicated region
    $region29: #{_lambda_.24} parent=5 // pred_check
      _
    $region30: #{_lambda_.24} parent=5 // pred_check_branch
      %173 = sbr.rel (%p170) target = $region32
    $region31: #{_lambda_.24} parent=5 // pred_region
      %s174 = ssub.s32 %s9, 1
      %s175 = smul.u32 16, %s18
      %p176 = scmp.lt.s32.totalorder %s175, 31
      %s177 = scalar_select %p176, %s175, 31
      %s178 = smul.addr %s177, 4
      %s179 = scalar_lea.vmem %s0, %s178
      %p180 = pneg %p47
      %p181 = pneg %p44
      %p182 = scmp.lt.s32.totalorder %s19, 0
      %s183 = scalar_select %p182, %s19, 0
      %s184 = smul.addr %s183, 4
      %s185 = scalar_lea.vmem %s1, %s184
      %p186 = pneg %p73
      %p187 = pneg %p70
      %p188 = scmp.lt.s32.totalorder %s19, 0
      %s189 = scalar_select %p188, %s19, 0
      %s190 = scalar_lea.vmem %s2, %s189
      %p191 = pneg %p99
      %p192 = pneg %p96
      %p193 = pneg %p127
      %p194 = pneg %p124
      %s195 = smul.u32 16, %s18
      %p196 = scmp.lt.s32.totalorder %s195, 31
      %s197 = scalar_select %p196, %s195, 31
      %p198 = scmp.lt.s32.totalorder %s19, 0
      %s199 = scalar_select %p198, %s19, 0
      %s200 = sadd.s32 %s199, %s197
      %s201 = smul.addr %s200, 4
      %s202 = scalar_lea.vmem %s3, %s201
      %s203 = smul.u32 16, %s18
      %p204 = scmp.lt.s32.totalorder %s203, 31
      %s205 = scalar_select %p204, %s203, 31
      %s206 = smul.addr %s205, 4
      %s207 = scalar_lea.vmem %s0, %s206
      %s208 = smul.u32 16, %s18
      %p209 = scmp.lt.s32.totalorder %s19, 0
      %s210 = scalar_select %p209, %s19, 0
      %s211 = smul.addr %s210, 4
      %s212 = scalar_lea.vmem %s1, %s211
      %p213 = scmp.lt.s32.totalorder %s19, 0
      %s214 = scalar_select %p213, %s19, 0
      %s215 = scalar_lea.vmem %s2, %s214
      %s216 = smul.u32 16, %s18
      %p217 = scmp.lt.s32.totalorder %s216, 31
      %s218 = scalar_select %p217, %s216, 31
      %p219 = scmp.lt.s32.totalorder %s19, 0
      %s220 = scalar_select %p219, %s19, 0
      %s221 = sadd.s32 %s220, %s218
      %s222 = smul.addr %s221, 4
      %s223 = scalar_lea.vmem %s3, %s222
      %s224 = smul.u32 16, %s18
      %v226 = vld [vmem:[%s207] sm:$0xf]
      %v227 = vld [vmem:[%s207 + $0x4] sm:$0xf]
      %v228 = vld [vmem:[%s207 + $0x8] sm:$0xf]
      %v229 = vld [vmem:[%s207 + $0xc] sm:$0xf]
      %v230 = vld [vmem:[%s207 + $0x10] sm:$0xf]
      %v231 = vld [vmem:[%s207 + $0x14] sm:$0xf]
      %v232 = vld [vmem:[%s207 + $0x18] sm:$0xf]
      %v233 = vld [vmem:[%s207 + $0x1c] sm:$0xf]
      %v234 = vld [vmem:[%s207 + $0x20] sm:$0xf]
      %v235 = vld [vmem:[%s207 + $0x24] sm:$0xf]
      %v236 = vld [vmem:[%s207 + $0x28] sm:$0xf]
      %v237 = vld [vmem:[%s207 + $0x2c] sm:$0xf]
      %v238 = vld [vmem:[%s207 + $0x30] sm:$0xf]
      %v239 = vld [vmem:[%s207 + $0x34] sm:$0xf]
      %v240 = vld [vmem:[%s207 + $0x38] sm:$0xf]
      %v241 = vld [vmem:[%s207 + $0x3c] sm:$0xf]
      %v242 = vld [vmem:[%s212] sm:$0xf]
      %v243 = vld [vmem:[%s212 + $0x4] sm:$0xf]
      %v244 = vld [vmem:[%s212 + $0x8] sm:$0xf]
      %v245 = vld [vmem:[%s212 + $0xc] sm:$0xf]
      %v246 = vld [vmem:[%s212 + $0x10] sm:$0xf]
      %v247 = vld [vmem:[%s212 + $0x14] sm:$0xf]
      %v248 = vld [vmem:[%s212 + $0x18] sm:$0xf]
      %v249 = vld [vmem:[%s212 + $0x1c] sm:$0xf]
      %v250 = vld [vmem:[%s212 + $0x20] sm:$0xf]
      %v251 = vld [vmem:[%s212 + $0x24] sm:$0xf]
      %v252 = vld [vmem:[%s212 + $0x28] sm:$0xf]
      %v253 = vld [vmem:[%s212 + $0x2c] sm:$0xf]
      %v254 = vld [vmem:[%s212 + $0x30] sm:$0xf]
      %v255 = vld [vmem:[%s212 + $0x34] sm:$0xf]
      %v256 = vld [vmem:[%s212 + $0x38] sm:$0xf]
      %v257 = vld [vmem:[%s212 + $0x3c] sm:$0xf]
      %v258 = vld [vmem:[%s215] sm:$0x1]
      %v260 = vlaneseq
      %v261 = vshrl.u32 %v260, 7
      %v262 = vsub.s32 0, %v261
      %v263 = vrot.slane %v258, %v262
      %v281 = vunpack.c.l.b16 %v226
      %v282 = vunpack.c.l.b16 %v227
      %v283 = vunpack.c.l.b16 %v228
      %v284 = vunpack.c.l.b16 %v229
      %v285 = vunpack.c.l.b16 %v230
      %v286 = vunpack.c.l.b16 %v231
      %v287 = vunpack.c.l.b16 %v232
      %v288 = vunpack.c.l.b16 %v233
      %v289 = vunpack.c.l.b16 %v234
      %v290 = vunpack.c.l.b16 %v235
      %v291 = vunpack.c.l.b16 %v236
      %v292 = vunpack.c.l.b16 %v237
      %v293 = vunpack.c.l.b16 %v238
      %v294 = vunpack.c.l.b16 %v239
      %v295 = vunpack.c.l.b16 %v240
      %v296 = vunpack.c.l.b16 %v241
      %v297 = vpack.c.b16 %v282, %v281
      %v298 = vpack.c.b16 %v284, %v283
      %v299 = vpack.c.b16 %v286, %v285
      %v300 = vpack.c.b16 %v288, %v287
      %v301 = vpack.c.b16 %v290, %v289
      %v302 = vpack.c.b16 %v292, %v291
      %v303 = vpack.c.b16 %v294, %v293
      %v304 = vpack.c.b16 %v296, %v295
      %v329 = vunpack.c.l.b16 %v242
      %v330 = vunpack.c.l.b16 %v243
      %v331 = vunpack.c.l.b16 %v244
      %v332 = vunpack.c.l.b16 %v245
      %v333 = vunpack.c.l.b16 %v246
      %v334 = vunpack.c.l.b16 %v247
      %v335 = vunpack.c.l.b16 %v248
      %v336 = vunpack.c.l.b16 %v249
      %v337 = vunpack.c.l.b16 %v250
      %v338 = vunpack.c.l.b16 %v251
      %v339 = vunpack.c.l.b16 %v252
      %v340 = vunpack.c.l.b16 %v253
      %v341 = vunpack.c.l.b16 %v254
      %v342 = vunpack.c.l.b16 %v255
      %v343 = vunpack.c.l.b16 %v256
      %v344 = vunpack.c.l.b16 %v257
      %v345 = vpack.c.b16 %v330, %v329
      %v346 = vpack.c.b16 %v332, %v331
      %v347 = vpack.c.b16 %v334, %v333
      %v348 = vpack.c.b16 %v336, %v335
      %v349 = vpack.c.b16 %v338, %v337
      %v350 = vpack.c.b16 %v340, %v339
      %v351 = vpack.c.b16 %v342, %v341
      %v352 = vpack.c.b16 %v344, %v343
      %361 = vmatprep.subr.bf16.mxu0 0
      %362 = vmatpush1.bf16.msra.mxu0 %v345
      %363 = vmatprep.subr.bf16.mxu0 0
      %364 = vmatpush1.bf16.msra.mxu0 %v346
      %365 = vmatprep.subr.bf16.mxu0 0
      %366 = vmatpush1.bf16.msra.mxu0 %v347
      %367 = vmatprep.subr.bf16.mxu0 0
      %368 = vmatpush1.bf16.msra.mxu0 %v348
      %369 = vmatprep.subr.bf16.mxu0 0
      %370 = vmatpush1.bf16.msra.mxu0 %v349
      %371 = vmatprep.subr.bf16.mxu0 0
      %372 = vmatpush1.bf16.msra.mxu0 %v350
      %373 = vmatprep.subr.bf16.mxu0 0
      %374 = vmatpush1.bf16.msra.mxu0 %v351
      %375 = vmatprep.subr.bf16.mxu0 0
      %376 = vmatpush1.bf16.msra.mxu0 %v352
      %377 = vmatprep.subr.bf16.mxu0 0
      %378 = vmatpush1.bf16.msra.mxu0 0
      %379 = vmatprep.subr.bf16.mxu0 0
      %380 = vmatpush1.bf16.msra.mxu0 0
      %381 = vmatprep.subr.bf16.mxu0 0
      %382 = vmatpush1.bf16.msra.mxu0 0
      %383 = vmatprep.subr.bf16.mxu0 0
      %384 = vmatpush1.bf16.msra.mxu0 0
      %385 = vmatprep.subr.bf16.mxu0 0
      %386 = vmatpush1.bf16.msra.mxu0 0
      %387 = vmatprep.subr.bf16.mxu0 0
      %388 = vmatpush1.bf16.msra.mxu0 0
      %389 = vmatprep.subr.bf16.mxu0 0
      %390 = vmatpush1.bf16.msra.mxu0 0
      %391 = vmatprep.subr.bf16.mxu0 0
      %392 = vmatpush1.bf16.msra.mxu0 0
      %393 = vmatprep.mubr.bf16.mxu0 0
      %394 = vmatmul.mubr.bf16.gmra.mrb[0].mxu0 %v297
      %v395 = vpop.f32.mrb[0].mxu0
      %v396 = vadd.f32 %v263, %v395
      %v397 = vpop.f32.mrb[0].mxu0
      %v398 = vpop.f32.mrb[0].mxu0
      %v399 = vadd.f32 %v263, %v398
      %v400 = vpop.f32.mrb[0].mxu0
      %401 = vmatprep.mubr.bf16.mxu0 0
      %402 = vmatmul.mubr.bf16.gmra.mrb[0].mxu0 %v298
      %v403 = vpop.f32.mrb[0].mxu0
      %v404 = vadd.f32 %v263, %v403
      %v405 = vpop.f32.mrb[0].mxu0
      %v406 = vpop.f32.mrb[0].mxu0
      %v407 = vadd.f32 %v263, %v406
      %v408 = vpop.f32.mrb[0].mxu0
      %409 = vmatprep.mubr.bf16.mxu0 0
      %410 = vmatmul.mubr.bf16.gmra.mrb[0].mxu0 %v299
      %v411 = vpop.f32.mrb[0].mxu0
      %v412 = vadd.f32 %v263, %v411
      %v413 = vpop.f32.mrb[0].mxu0
      %v414 = vpop.f32.mrb[0].mxu0
      %v415 = vadd.f32 %v263, %v414
      %v416 = vpop.f32.mrb[0].mxu0
      %417 = vmatprep.mubr.bf16.mxu0 0
      %418 = vmatmul.mubr.bf16.gmra.mrb[0].mxu0 %v300
      %v419 = vpop.f32.mrb[0].mxu0
      %v420 = vadd.f32 %v263, %v419
      %v421 = vpop.f32.mrb[0].mxu0
      %v422 = vpop.f32.mrb[0].mxu0
      %v423 = vadd.f32 %v263, %v422
      %v424 = vpop.f32.mrb[0].mxu0
      %425 = vmatprep.mubr.bf16.mxu0 0
      %426 = vmatmul.mubr.bf16.gmra.mrb[0].mxu0 %v301
      %v427 = vpop.f32.mrb[0].mxu0
      %v428 = vadd.f32 %v263, %v427
      %v429 = vpop.f32.mrb[0].mxu0
      %v430 = vpop.f32.mrb[0].mxu0
      %v431 = vadd.f32 %v263, %v430
      %v432 = vpop.f32.mrb[0].mxu0
      %433 = vmatprep.mubr.bf16.mxu0 0
      %434 = vmatmul.mubr.bf16.gmra.mrb[0].mxu0 %v302
      %v435 = vpop.f32.mrb[0].mxu0
      %v436 = vadd.f32 %v263, %v435
      %v437 = vpop.f32.mrb[0].mxu0
      %v438 = vpop.f32.mrb[0].mxu0
      %v439 = vadd.f32 %v263, %v438
      %v440 = vpop.f32.mrb[0].mxu0
      %441 = vmatprep.mubr.bf16.mxu0 0
      %442 = vmatmul.mubr.bf16.gmra.mrb[0].mxu0 %v303
      %v443 = vpop.f32.mrb[0].mxu0
      %v444 = vadd.f32 %v263, %v443
      %v445 = vpop.f32.mrb[0].mxu0
      %v446 = vpop.f32.mrb[0].mxu0
      %v447 = vadd.f32 %v263, %v446
      %v448 = vpop.f32.mrb[0].mxu0
      %449 = vmatprep.mubr.bf16.mxu0 0
      %450 = vmatmul.mubr.bf16.gmra.mrb[0].mxu0 %v304
      %v451 = vpop.f32.mrb[0].mxu0
      %v452 = vadd.f32 %v263, %v451
      %v453 = vpop.f32.mrb[0].mxu0
      %v454 = vpop.f32.mrb[0].mxu0
      %v455 = vadd.f32 %v263, %v454
      %v456 = vpop.f32.mrb[0].mxu0
      %457 = vdwg.mxu0
      %v458 = vmax.f32 %v396, 0.0
      %v459 = vmax.f32 %v399, 0.0
      %v460 = vmax.f32 %v404, 0.0
      %v461 = vmax.f32 %v407, 0.0
      %v462 = vmax.f32 %v412, 0.0
      %v463 = vmax.f32 %v415, 0.0
      %v464 = vmax.f32 %v420, 0.0
      %v465 = vmax.f32 %v423, 0.0
      %v466 = vmax.f32 %v428, 0.0
      %v467 = vmax.f32 %v431, 0.0
      %v468 = vmax.f32 %v436, 0.0
      %v469 = vmax.f32 %v439, 0.0
      %v470 = vmax.f32 %v444, 0.0
      %v471 = vmax.f32 %v447, 0.0
      %v472 = vmax.f32 %v452, 0.0
      %v473 = vmax.f32 %v455, 0.0
      %v474 = vpack.c.bf16 %v459, %v458
      %v475 = vpack.c.bf16 %v461, %v460
      %v476 = vpack.c.bf16 %v463, %v462
      %v477 = vpack.c.bf16 %v465, %v464
      %v478 = vpack.c.bf16 %v467, %v466
      %v479 = vpack.c.bf16 %v469, %v468
      %v480 = vpack.c.bf16 %v471, %v470
      %v481 = vpack.c.bf16 %v473, %v472
      %v490 = vunpack.c.l.b16 %v474
      %v491 = vunpack.c.h.b16 %v474
      %v492 = vunpack.c.l.b16 %v475
      %v493 = vunpack.c.h.b16 %v475
      %v494 = vunpack.c.l.b16 %v476
      %v495 = vunpack.c.h.b16 %v476
      %v496 = vunpack.c.l.b16 %v477
      %v497 = vunpack.c.h.b16 %v477
      %v498 = vunpack.c.l.b16 %v478
      %v499 = vunpack.c.h.b16 %v478
      %v500 = vunpack.c.l.b16 %v479
      %v501 = vunpack.c.h.b16 %v479
      %v502 = vunpack.c.l.b16 %v480
      %v503 = vunpack.c.h.b16 %v480
      %v504 = vunpack.c.l.b16 %v481
      %v505 = vunpack.c.h.b16 %v481
      %v506 = vpack.c.b16 %v490, %v490
      %v507 = vpack.c.b16 %v491, %v491
      %v508 = vpack.c.b16 %v492, %v492
      %v509 = vpack.c.b16 %v493, %v493
      %v510 = vpack.c.b16 %v494, %v494
      %v511 = vpack.c.b16 %v495, %v495
      %v512 = vpack.c.b16 %v496, %v496
      %v513 = vpack.c.b16 %v497, %v497
      %v514 = vpack.c.b16 %v498, %v498
      %v515 = vpack.c.b16 %v499, %v499
      %v516 = vpack.c.b16 %v500, %v500
      %v517 = vpack.c.b16 %v501, %v501
      %v518 = vpack.c.b16 %v502, %v502
      %v519 = vpack.c.b16 %v503, %v503
      %v520 = vpack.c.b16 %v504, %v504
      %v521 = vpack.c.b16 %v505, %v505
      %538 = vst [vmem:[%s223] sm:$0xf] %v506
      %539 = vst [vmem:[%s223 + $0x4] sm:$0xf] %v507
      %540 = vst [vmem:[%s223 + $0x8] sm:$0xf] %v508
      %541 = vst [vmem:[%s223 + $0xc] sm:$0xf] %v509
      %542 = vst [vmem:[%s223 + $0x10] sm:$0xf] %v510
      %543 = vst [vmem:[%s223 + $0x14] sm:$0xf] %v511
      %544 = vst [vmem:[%s223 + $0x18] sm:$0xf] %v512
      %545 = vst [vmem:[%s223 + $0x1c] sm:$0xf] %v513
      %546 = vst [vmem:[%s223 + $0x20] sm:$0xf] %v514
      %547 = vst [vmem:[%s223 + $0x24] sm:$0xf] %v515
      %548 = vst [vmem:[%s223 + $0x28] sm:$0xf] %v516
      %549 = vst [vmem:[%s223 + $0x2c] sm:$0xf] %v517
      %550 = vst [vmem:[%s223 + $0x30] sm:$0xf] %v518
      %551 = vst [vmem:[%s223 + $0x34] sm:$0xf] %v519
      %552 = vst [vmem:[%s223 + $0x38] sm:$0xf] %v520
      %553 = vst [vmem:[%s223 + $0x3c] sm:$0xf] %v521
      %s554 = smul.u32 16, %s18
      %p555 = scmp.lt.s32.totalorder %s554, 31
      %s556 = scalar_select %p555, %s554, 31
      %p557 = scmp.lt.s32.totalorder %s19, 0
      %s558 = scalar_select %p557, %s19, 0
      %s559 = sadd.s32 %s558, %s556
      %s560 = smul.addr %s559, 4
      %s561 = scalar_lea.vmem %s3, %s560
      // Predicated region
      $region33: #{_lambda_.24} parent=31 // pred_check
        %p562 = pneg %p124
      $region34: #{_lambda_.24} parent=31 // pred_check_branch
        %564 = sbr.rel (%p562) target = $region36
      $region35: #{_lambda_.24} parent=31 // pred_region
        %s565 = smul.u32 16, %s18
      $region36: #{_lambda_.24} parent=31 // pred_fallthru
        _
    $region32: #{_lambda_.24} parent=5 // pred_fallthru
      _
    %p566 = scmp.le.s32.totalorder 2, %s9
    // Predicated region
    $region37: #{_lambda_.24} parent=5 // pred_check
      %p567 = pneg %p566
    $region38: #{_lambda_.24} parent=5 // pred_check_branch
      %569 = sbr.rel (%p567) target = $region40
    $region39: #{_lambda_.24} parent=5 // pred_region
      %s570 = ssub.s32 %s9, 2
      // Predicated region
      $region41: #{_lambda_.24} parent=39 // pred_check
        %p571 = pneg %p130
      $region42: #{_lambda_.24} parent=39 // pred_check_branch
        %573 = sbr.rel (%p571) target = $region44
      $region43: #{_lambda_.24} parent=39 // pred_region
        %s574 = smul.u32 16, %s20
        %p575 = scmp.lt.s32.totalorder %s574, 31
        %s576 = scalar_select %p575, %s574, 31
        %p577 = scmp.lt.s32.totalorder %s21, 0
        %s578 = scalar_select %p577, %s21, 0
        %s579 = sadd.s32 %s578, %s576
        %s580 = smul.addr %s579, 4
        %s581 = scalar_lea.vmem %s3, %s580
      $region44: #{_lambda_.24} parent=39 // pred_fallthru
        _
    $region40: #{_lambda_.24} parent=5 // pred_fallthru
      _
  $region6: #{_lambda_.24} parent=0 // loop_footer
    %s13 = sadd.s32 1, %s9
  $region7: #{_lambda_.24} parent=0 // loop_footer_branch
    %8 = sbr.rel target = $region3
  $region8: #{_lambda_.24} parent=0 // loop_exit
    _

// kernel: _lambda_.26
$region0: #{_lambda_.26}
  #allocation0 [shape = 'u32[]', space=smem, size = 0x4, offset = 0x4, fixed_abs, tag = 'smem constant byte address 0x4 - core index']
  #allocation1 [shape = 'u32[144,128]{1,0:T(1,128)}', space=vmem, size = 0x12000, scoped, tag = 'internal scratch']
  %s0 = inlined_call_operand.vmem [shape: bf16[256,128], index: 0, kind: input, shape index: {}]
  %s1 = inlined_call_operand.vmem [shape: bf16[128,128], index: 1, kind: input, shape index: {}]
  %s2 = inlined_call_operand.vmem [shape: f32[1,128], index: 2, kind: input, shape index: {}]
  %s3 = inlined_call_operand.vmem [shape: bf16[256,128], index: 3, kind: output, shape index: {}]
  %s4 = sld [smem:[#allocation0]]
  $region45: #{_lambda_.26} parent=0
    _
  %s6 = ssub.s32 1, %s4
  %s7 = scalar_select 0, %s6, %s4
  loop: start=0, step=1, limit=4
  $region2: #{_lambda_.26} parent=0 // loop_pre_header
    _
  $region3: #{_lambda_.26} parent=0 // loop_header
    %s9 = sphi 0, %s13
    %p10 = scmp.ge.s32.totalorder %s9, 4
    %s16 = sphi 0, %s28
    %s17 = sphi 0, %s24
    %s18 = sphi 0, %s16
    %s19 = sphi 0, %s17
    %s20 = sphi 0, %s18
    %s21 = sphi 0, %s19
    %s31 = sphi 0, %s33
    %s34 = sphi 0, %s31
    %s35 = sphi 0, %s34
    %s51 = sphi 0, %s35
    %s57 = sphi 0, %s59
    %s60 = sphi 0, %s57
    %s61 = sphi 0, %s60
    %s77 = sphi 0, %s61
    %s83 = sphi 0, %s85
    %s86 = sphi 0, %s83
    %s87 = sphi 0, %s86
    %s103 = sphi 0, %s87
    %s111 = sphi 0, %s113
    %s114 = sphi 0, %s111
    %s115 = sphi 0, %s114
    %s131 = sphi 0, %s115
  $region4: #{_lambda_.26} parent=0 // loop_header_branch
    %12 = sbr.rel (%p10) target = $region8
  $region5: #{_lambda_.26} parent=0 // loop_body
    %s14 = ssub.s32 %s9, 1
    %s15 = ssub.s32 %s9, 2
    %s22 = sadd.s32 1, %s17
    %p23 = scmp.ge.s32.totalorder %s22, 1
    %s24 = scalar_select %p23, 0, %s22
    %s25 = sadd.s32 1, %s16
    %s26 = scalar_select %p23, %s25, %s16
    %p27 = scmp.ge.s32.totalorder %s26, 2
    %s28 = scalar_select %p27, 0, %s26
    %s29 = ssub.s32 %s16, %s28
    %p30 = scmp.eq.s32.totalorder %s29, 0
    %s32 = sadd.s32 %s31, 1
    %s33 = scalar_select %p30, %s31, %s32
    %p36 = pneg %p30
    %p37 = scmp.eq.s32.totalorder %s9, 1
    %p38 = por %p36, %p37
    %p39 = scmp.ne.s32.totalorder %s31, %s34
    %p40 = scmp.eq.s32.totalorder %s9, 0
    %p41 = por %p39, %p40
    %p42 = scmp.ne.s32.totalorder %s31, %s34
    %p43 = scmp.eq.s32.totalorder %s14, 1
    %p44 = por %p42, %p43
    %p45 = scmp.ne.s32.totalorder %s34, %s35
    %p46 = scmp.eq.s32.totalorder %s14, 0
    %p47 = por %p45, %p46
    %p48 = scmp.ne.s32.totalorder %s34, %s35
    %p49 = scmp.eq.s32.totalorder %s15, 1
    %p50 = por %p48, %p49
    %p52 = scmp.ne.s32.totalorder %s35, %s51
    %p53 = scmp.eq.s32.totalorder %s15, 0
    %p54 = por %p52, %p53
    %s55 = ssub.s32 %s17, %s24
    %p56 = scmp.eq.s32.totalorder %s55, 0
    %s58 = sadd.s32 %s57, 1
    %s59 = scalar_select %p56, %s57, %s58
    %p62 = pneg %p56
    %p63 = scmp.eq.s32.totalorder %s9, 1
    %p64 = por %p62, %p63
    %p65 = scmp.ne.s32.totalorder %s57, %s60
    %p66 = scmp.eq.s32.totalorder %s9, 0
    %p67 = por %p65, %p66
    %p68 = scmp.ne.s32.totalorder %s57, %s60
    %p69 = scmp.eq.s32.totalorder %s14, 1
    %p70 = por %p68, %p69
    %p71 = scmp.ne.s32.totalorder %s60, %s61
    %p72 = scmp.eq.s32.totalorder %s14, 0
    %p73 = por %p71, %p72
    %p74 = scmp.ne.s32.totalorder %s60, %s61
    %p75 = scmp.eq.s32.totalorder %s15, 1
    %p76 = por %p74, %p75
    %p78 = scmp.ne.s32.totalorder %s61, %s77
    %p79 = scmp.eq.s32.totalorder %s15, 0
    %p80 = por %p78, %p79
    %s81 = ssub.s32 %s17, %s24
    %p82 = scmp.eq.s32.totalorder %s81, 0
    %s84 = sadd.s32 %s83, 1
    %s85 = scalar_select %p82, %s83, %s84
    %p88 = pneg %p82
    %p89 = scmp.eq.s32.totalorder %s9, 1
    %p90 = por %p88, %p89
    %p91 = scmp.ne.s32.totalorder %s83, %s86
    %p92 = scmp.eq.s32.totalorder %s9, 0
    %p93 = por %p91, %p92
    %p94 = scmp.ne.s32.totalorder %s83, %s86
    %p95 = scmp.eq.s32.totalorder %s14, 1
    %p96 = por %p94, %p95
    %p97 = scmp.ne.s32.totalorder %s86, %s87
    %p98 = scmp.eq.s32.totalorder %s14, 0
    %p99 = por %p97, %p98
    %p100 = scmp.ne.s32.totalorder %s86, %s87
    %p101 = scmp.eq.s32.totalorder %s15, 1
    %p102 = por %p100, %p101
    %p104 = scmp.ne.s32.totalorder %s87, %s103
    %p105 = scmp.eq.s32.totalorder %s15, 0
    %p106 = por %p104, %p105
    %s107 = ssub.s32 %s16, %s28
    %s108 = ssub.s32 %s17, %s24
    %s109 = sor.u32 %s107, %s108
    %p110 = scmp.eq.s32.totalorder %s109, 0
    %s112 = sadd.s32 %s111, 1
    %s113 = scalar_select %p110, %s111, %s112
    %p116 = pneg %p110
    %p117 = scmp.eq.s32.totalorder %s9, 1
    %p118 = por %p116, %p117
    %p119 = scmp.ne.s32.totalorder %s111, %s114
    %p120 = scmp.eq.s32.totalorder %s9, 0
    %p121 = por %p119, %p120
    %p122 = scmp.ne.s32.totalorder %s111, %s114
    %p123 = scmp.eq.s32.totalorder %s14, 1
    %p124 = por %p122, %p123
    %p125 = scmp.ne.s32.totalorder %s114, %s115
    %p126 = scmp.eq.s32.totalorder %s14, 0
    %p127 = por %p125, %p126
    %p128 = scmp.ne.s32.totalorder %s114, %s115
    %p129 = scmp.eq.s32.totalorder %s15, 1
    %p130 = por %p128, %p129
    %p132 = scmp.ne.s32.totalorder %s115, %s131
    %p133 = scmp.eq.s32.totalorder %s15, 0
    %p134 = por %p132, %p133
    %p135 = scmp.le.s32.totalorder 1, %s9
    %p136 = scmp.lt.s32.totalorder %s9, 3
    %p137 = pnand %p135, %p136
    %p138 = pneg %p137
    // Predicated region
    $region9: #{_lambda_.26} parent=5 // pred_check
      _
    $region10: #{_lambda_.26} parent=5 // pred_check_branch
      %140 = sbr.rel (%p137) target = $region12
    $region11: #{_lambda_.26} parent=5 // pred_region
      %s141 = ssub.s32 %s9, 1
      // Predicated region
      $region13: #{_lambda_.26} parent=11 // pred_check
        %p142 = pneg %p73
      $region14: #{_lambda_.26} parent=11 // pred_check_branch
        %144 = sbr.rel (%p142) target = $region16
      $region15: #{_lambda_.26} parent=11 // pred_region
        %p145 = scmp.lt.s32.totalorder %s19, 0
        %s146 = scalar_select %p145, %s19, 0
        %s147 = smul.addr %s146, 4
        %s148 = scalar_lea.vmem %s1, %s147
      $region16: #{_lambda_.26} parent=11 // pred_fallthru
        _
      // Predicated region
      $region17: #{_lambda_.26} parent=11 // pred_check
        %p149 = pneg %p99
      $region18: #{_lambda_.26} parent=11 // pred_check_branch
        %151 = sbr.rel (%p149) target = $region20
      $region19: #{_lambda_.26} parent=11 // pred_region
        %p152 = scmp.lt.s32.totalorder %s19, 0
        %s153 = scalar_select %p152, %s19, 0
        %s154 = scalar_lea.vmem %s2, %s153
      $region20: #{_lambda_.26} parent=11 // pred_fallthru
        _
    $region12: #{_lambda_.26} parent=5 // pred_fallthru
      _
    %p155 = scmp.lt.s32.totalorder %s9, 2
    // Predicated region
    $region21: #{_lambda_.26} parent=5 // pred_check
      %p156 = pneg %p155
    $region22: #{_lambda_.26} parent=5 // pred_check_branch
      %158 = sbr.rel (%p156) target = $region24
    $region23: #{_lambda_.26} parent=5 // pred_region
      // Predicated region
      $region25: #{_lambda_.26} parent=23 // pred_check
        %p159 = pneg %p41
      $region26: #{_lambda_.26} parent=23 // pred_check_branch
        %161 = sbr.rel (%p159) target = $region28
      $region27: #{_lambda_.26} parent=23 // pred_region
        %s162 = smul.u32 16, %s16
        %p163 = scmp.lt.s32.totalorder %s162, 31
        %s164 = scalar_select %p163, %s162, 31
        %s165 = smul.addr %s164, 4
        %s166 = scalar_lea.vmem %s0, %s165
        %s167 = smul.u32 16, %s16
      $region28: #{_lambda_.26} parent=23 // pred_fallthru
        _
    $region24: #{_lambda_.26} parent=5 // pred_fallthru
      _
    %p168 = scmp.le.s32.totalorder 1, %s9
    %p169 = scmp.lt.s32.totalorder %s9, 3
    %p170 = pnand %p168, %p169
    %p171 = pneg %p170
    // Predicated region
    $region29: #{_lambda_.26} parent=5 // pred_check
      _
    $region30: #{_lambda_.26} parent=5 // pred_check_branch
      %173 = sbr.rel (%p170) target = $region32
    $region31: #{_lambda_.26} parent=5 // pred_region
      %s174 = ssub.s32 %s9, 1
      %s175 = smul.u32 16, %s18
      %p176 = scmp.lt.s32.totalorder %s175, 31
      %s177 = scalar_select %p176, %s175, 31
      %s178 = smul.addr %s177, 4
      %s179 = scalar_lea.vmem %s0, %s178
      %p180 = pneg %p47
      %p181 = pneg %p44
      %p182 = scmp.lt.s32.totalorder %s19, 0
      %s183 = scalar_select %p182, %s19, 0
      %s184 = smul.addr %s183, 4
      %s185 = scalar_lea.vmem %s1, %s184
      %p186 = pneg %p73
      %p187 = pneg %p70
      %p188 = scmp.lt.s32.totalorder %s19, 0
      %s189 = scalar_select %p188, %s19, 0
      %s190 = scalar_lea.vmem %s2, %s189
      %p191 = pneg %p99
      %p192 = pneg %p96
      %p193 = pneg %p127
      %p194 = pneg %p124
      %s195 = smul.u32 16, %s18
      %p196 = scmp.lt.s32.totalorder %s195, 31
      %s197 = scalar_select %p196, %s195, 31
      %p198 = scmp.lt.s32.totalorder %s19, 0
      %s199 = scalar_select %p198, %s19, 0
      %s200 = sadd.s32 %s199, %s197
      %s201 = smul.addr %s200, 4
      %s202 = scalar_lea.vmem %s3, %s201
      %s203 = smul.u32 16, %s18
      %p204 = scmp.lt.s32.totalorder %s203, 31
      %s205 = scalar_select %p204, %s203, 31
      %s206 = smul.addr %s205, 4
      %s207 = scalar_lea.vmem %s0, %s206
      %s208 = smul.u32 16, %s18
      %p209 = scmp.lt.s32.totalorder %s19, 0
      %s210 = scalar_select %p209, %s19, 0
      %s211 = smul.addr %s210, 4
      %s212 = scalar_lea.vmem %s1, %s211
      %p213 = scmp.lt.s32.totalorder %s19, 0
      %s214 = scalar_select %p213, %s19, 0
      %s215 = scalar_lea.vmem %s2, %s214
      %s216 = smul.u32 16, %s18
      %p217 = scmp.lt.s32.totalorder %s216, 31
      %s218 = scalar_select %p217, %s216, 31
      %p219 = scmp.lt.s32.totalorder %s19, 0
      %s220 = scalar_select %p219, %s19, 0
      %s221 = sadd.s32 %s220, %s218
      %s222 = smul.addr %s221, 4
      %s223 = scalar_lea.vmem %s3, %s222
      %s224 = smul.u32 16, %s18
      %v226 = vld [vmem:[%s207] sm:$0xf]
      %v227 = vld [vmem:[%s207 + $0x4] sm:$0xf]
      %v228 = vld [vmem:[%s207 + $0x8] sm:$0xf]
      %v229 = vld [vmem:[%s207 + $0xc] sm:$0xf]
      %v230 = vld [vmem:[%s207 + $0x10] sm:$0xf]
      %v231 = vld [vmem:[%s207 + $0x14] sm:$0xf]
      %v232 = vld [vmem:[%s207 + $0x18] sm:$0xf]
      %v233 = vld [vmem:[%s207 + $0x1c] sm:$0xf]
      %v234 = vld [vmem:[%s207 + $0x20] sm:$0xf]
      %v235 = vld [vmem:[%s207 + $0x24] sm:$0xf]
      %v236 = vld [vmem:[%s207 + $0x28] sm:$0xf]
      %v237 = vld [vmem:[%s207 + $0x2c] sm:$0xf]
      %v238 = vld [vmem:[%s207 + $0x30] sm:$0xf]
      %v239 = vld [vmem:[%s207 + $0x34] sm:$0xf]
      %v240 = vld [vmem:[%s207 + $0x38] sm:$0xf]
      %v241 = vld [vmem:[%s207 + $0x3c] sm:$0xf]
      %v242 = vld [vmem:[%s212] sm:$0xf]
      %v243 = vld [vmem:[%s212 + $0x4] sm:$0xf]
      %v244 = vld [vmem:[%s212 + $0x8] sm:$0xf]
      %v245 = vld [vmem:[%s212 + $0xc] sm:$0xf]
      %v246 = vld [vmem:[%s212 + $0x10] sm:$0xf]
      %v247 = vld [vmem:[%s212 + $0x14] sm:$0xf]
      %v248 = vld [vmem:[%s212 + $0x18] sm:$0xf]
      %v249 = vld [vmem:[%s212 + $0x1c] sm:$0xf]
      %v250 = vld [vmem:[%s212 + $0x20] sm:$0xf]
      %v251 = vld [vmem:[%s212 + $0x24] sm:$0xf]
      %v252 = vld [vmem:[%s212 + $0x28] sm:$0xf]
      %v253 = vld [vmem:[%s212 + $0x2c] sm:$0xf]
      %v254 = vld [vmem:[%s212 + $0x30] sm:$0xf]
      %v255 = vld [vmem:[%s212 + $0x34] sm:$0xf]
      %v256 = vld [vmem:[%s212 + $0x38] sm:$0xf]
      %v257 = vld [vmem:[%s212 + $0x3c] sm:$0xf]
      %v258 = vld [vmem:[%s215] sm:$0x1]
      %v260 = vlaneseq
      %v261 = vshrl.u32 %v260, 7
      %v262 = vsub.s32 0, %v261
      %v263 = vrot.slane %v258, %v262
      %v281 = vunpack.c.l.b16 %v226
      %v282 = vunpack.c.l.b16 %v227
      %v283 = vunpack.c.l.b16 %v228
      %v284 = vunpack.c.l.b16 %v229
      %v285 = vunpack.c.l.b16 %v230
      %v286 = vunpack.c.l.b16 %v231
      %v287 = vunpack.c.l.b16 %v232
      %v288 = vunpack.c.l.b16 %v233
      %v289 = vunpack.c.l.b16 %v234
      %v290 = vunpack.c.l.b16 %v235
      %v291 = vunpack.c.l.b16 %v236
      %v292 = vunpack.c.l.b16 %v237
      %v293 = vunpack.c.l.b16 %v238
      %v294 = vunpack.c.l.b16 %v239
      %v295 = vunpack.c.l.b16 %v240
      %v296 = vunpack.c.l.b16 %v241
      %v297 = vpack.c.b16 %v282, %v281
      %v298 = vpack.c.b16 %v284, %v283
      %v299 = vpack.c.b16 %v286, %v285
      %v300 = vpack.c.b16 %v288, %v287
      %v301 = vpack.c.b16 %v290, %v289
      %v302 = vpack.c.b16 %v292, %v291
      %v303 = vpack.c.b16 %v294, %v293
      %v304 = vpack.c.b16 %v296, %v295
      %v329 = vunpack.c.l.b16 %v242
      %v330 = vunpack.c.l.b16 %v243
      %v331 = vunpack.c.l.b16 %v244
      %v332 = vunpack.c.l.b16 %v245
      %v333 = vunpack.c.l.b16 %v246
      %v334 = vunpack.c.l.b16 %v247
      %v335 = vunpack.c.l.b16 %v248
      %v336 = vunpack.c.l.b16 %v249
      %v337 = vunpack.c.l.b16 %v250
      %v338 = vunpack.c.l.b16 %v251
      %v339 = vunpack.c.l.b16 %v252
      %v340 = vunpack.c.l.b16 %v253
      %v341 = vunpack.c.l.b16 %v254
      %v342 = vunpack.c.l.b16 %v255
      %v343 = vunpack.c.l.b16 %v256
      %v344 = vunpack.c.l.b16 %v257
      %v345 = vpack.c.b16 %v330, %v329
      %v346 = vpack.c.b16 %v332, %v331
      %v347 = vpack.c.b16 %v334, %v333
      %v348 = vpack.c.b16 %v336, %v335
      %v349 = vpack.c.b16 %v338, %v337
      %v350 = vpack.c.b16 %v340, %v339
      %v351 = vpack.c.b16 %v342, %v341
      %v352 = vpack.c.b16 %v344, %v343
      %361 = vmatprep.subr.bf16.mxu0 0
      %362 = vmatpush1.bf16.msra.mxu0 %v345
      %363 = vmatprep.subr.bf16.mxu0 0
      %364 = vmatpush1.bf16.msra.mxu0 %v346
      %365 = vmatprep.subr.bf16.mxu0 0
      %366 = vmatpush1.bf16.msra.mxu0 %v347
      %367 = vmatprep.subr.bf16.mxu0 0
      %368 = vmatpush1.bf16.msra.mxu0 %v348
      %369 = vmatprep.subr.bf16.mxu0 0
      %370 = vmatpush1.bf16.msra.mxu0 %v349
      %371 = vmatprep.subr.bf16.mxu0 0
      %372 = vmatpush1.bf16.msra.mxu0 %v350
      %373 = vmatprep.subr.bf16.mxu0 0
      %374 = vmatpush1.bf16.msra.mxu0 %v351
      %375 = vmatprep.subr.bf16.mxu0 0
      %376 = vmatpush1.bf16.msra.mxu0 %v352
      %377 = vmatprep.subr.bf16.mxu0 0
      %378 = vmatpush1.bf16.msra.mxu0 0
      %379 = vmatprep.subr.bf16.mxu0 0
      %380 = vmatpush1.bf16.msra.mxu0 0
      %381 = vmatprep.subr.bf16.mxu0 0
      %382 = vmatpush1.bf16.msra.mxu0 0
      %383 = vmatprep.subr.bf16.mxu0 0
      %384 = vmatpush1.bf16.msra.mxu0 0
      %385 = vmatprep.subr.bf16.mxu0 0
      %386 = vmatpush1.bf16.msra.mxu0 0
      %387 = vmatprep.subr.bf16.mxu0 0
      %388 = vmatpush1.bf16.msra.mxu0 0
      %389 = vmatprep.subr.bf16.mxu0 0
      %390 = vmatpush1.bf16.msra.mxu0 0
      %391 = vmatprep.subr.bf16.mxu0 0
      %392 = vmatpush1.bf16.msra.mxu0 0
      %393 = vmatprep.mubr.bf16.mxu0 0
      %394 = vmatmul.mubr.bf16.gmra.mrb[0].mxu0 %v297
      %v395 = vpop.f32.mrb[0].mxu0
      %v396 = vadd.f32 %v263, %v395
      %v397 = vpop.f32.mrb[0].mxu0
      %v398 = vpop.f32.mrb[0].mxu0
      %v399 = vadd.f32 %v263, %v398
      %v400 = vpop.f32.mrb[0].mxu0
      %401 = vmatprep.mubr.bf16.mxu0 0
      %402 = vmatmul.mubr.bf16.gmra.mrb[0].mxu0 %v298
      %v403 = vpop.f32.mrb[0].mxu0
      %v404 = vadd.f32 %v263, %v403
      %v405 = vpop.f32.mrb[0].mxu0
      %v406 = vpop.f32.mrb[0].mxu0
      %v407 = vadd.f32 %v263, %v406
      %v408 = vpop.f32.mrb[0].mxu0
      %409 = vmatprep.mubr.bf16.mxu0 0
      %410 = vmatmul.mubr.bf16.gmra.mrb[0].mxu0 %v299
      %v411 = vpop.f32.mrb[0].mxu0
      %v412 = vadd.f32 %v263, %v411
      %v413 = vpop.f32.mrb[0].mxu0
      %v414 = vpop.f32.mrb[0].mxu0
      %v415 = vadd.f32 %v263, %v414
      %v416 = vpop.f32.mrb[0].mxu0
      %417 = vmatprep.mubr.bf16.mxu0 0
      %418 = vmatmul.mubr.bf16.gmra.mrb[0].mxu0 %v300
      %v419 = vpop.f32.mrb[0].mxu0
      %v420 = vadd.f32 %v263, %v419
      %v421 = vpop.f32.mrb[0].mxu0
      %v422 = vpop.f32.mrb[0].mxu0
      %v423 = vadd.f32 %v263, %v422
      %v424 = vpop.f32.mrb[0].mxu0
      %425 = vmatprep.mubr.bf16.mxu0 0
      %426 = vmatmul.mubr.bf16.gmra.mrb[0].mxu0 %v301
      %v427 = vpop.f32.mrb[0].mxu0
      %v428 = vadd.f32 %v263, %v427
      %v429 = vpop.f32.mrb[0].mxu0
      %v430 = vpop.f32.mrb[0].mxu0
      %v431 = vadd.f32 %v263, %v430
      %v432 = vpop.f32.mrb[0].mxu0
      %433 = vmatprep.mubr.bf16.mxu0 0
      %434 = vmatmul.mubr.bf16.gmra.mrb[0].mxu0 %v302
      %v435 = vpop.f32.mrb[0].mxu0
      %v436 = vadd.f32 %v263, %v435
      %v437 = vpop.f32.mrb[0].mxu0
      %v438 = vpop.f32.mrb[0].mxu0
      %v439 = vadd.f32 %v263, %v438
      %v440 = vpop.f32.mrb[0].mxu0
      %441 = vmatprep.mubr.bf16.mxu0 0
      %442 = vmatmul.mubr.bf16.gmra.mrb[0].mxu0 %v303
      %v443 = vpop.f32.mrb[0].mxu0
      %v444 = vadd.f32 %v263, %v443
      %v445 = vpop.f32.mrb[0].mxu0
      %v446 = vpop.f32.mrb[0].mxu0
      %v447 = vadd.f32 %v263, %v446
      %v448 = vpop.f32.mrb[0].mxu0
      %449 = vmatprep.mubr.bf16.mxu0 0
      %450 = vmatmul.mubr.bf16.gmra.mrb[0].mxu0 %v304
      %v451 = vpop.f32.mrb[0].mxu0
      %v452 = vadd.f32 %v263, %v451
      %v453 = vpop.f32.mrb[0].mxu0
      %v454 = vpop.f32.mrb[0].mxu0
      %v455 = vadd.f32 %v263, %v454
      %v456 = vpop.f32.mrb[0].mxu0
      %457 = vdwg.mxu0
      %v458 = vpack.c.bf16 %v399, %v396
      %v459 = vpack.c.bf16 %v407, %v404
      %v460 = vpack.c.bf16 %v415, %v412
      %v461 = vpack.c.bf16 %v423, %v420
      %v462 = vpack.c.bf16 %v431, %v428
      %v463 = vpack.c.bf16 %v439, %v436
      %v464 = vpack.c.bf16 %v447, %v444
      %v465 = vpack.c.bf16 %v455, %v452
      %v474 = vunpack.c.l.b16 %v458
      %v475 = vunpack.c.h.b16 %v458
      %v476 = vunpack.c.l.b16 %v459
      %v477 = vunpack.c.h.b16 %v459
      %v478 = vunpack.c.l.b16 %v460
      %v479 = vunpack.c.h.b16 %v460
      %v480 = vunpack.c.l.b16 %v461
      %v481 = vunpack.c.h.b16 %v461
      %v482 = vunpack.c.l.b16 %v462
      %v483 = vunpack.c.h.b16 %v462
      %v484 = vunpack.c.l.b16 %v463
      %v485 = vunpack.c.h.b16 %v463
      %v486 = vunpack.c.l.b16 %v464
      %v487 = vunpack.c.h.b16 %v464
      %v488 = vunpack.c.l.b16 %v465
      %v489 = vunpack.c.h.b16 %v465
      %v490 = vpack.c.b16 %v474, %v474
      %v491 = vpack.c.b16 %v475, %v475
      %v492 = vpack.c.b16 %v476, %v476
      %v493 = vpack.c.b16 %v477, %v477
      %v494 = vpack.c.b16 %v478, %v478
      %v495 = vpack.c.b16 %v479, %v479
      %v496 = vpack.c.b16 %v480, %v480
      %v497 = vpack.c.b16 %v481, %v481
      %v498 = vpack.c.b16 %v482, %v482
      %v499 = vpack.c.b16 %v483, %v483
      %v500 = vpack.c.b16 %v484, %v484
      %v501 = vpack.c.b16 %v485, %v485
      %v502 = vpack.c.b16 %v486, %v486
      %v503 = vpack.c.b16 %v487, %v487
      %v504 = vpack.c.b16 %v488, %v488
      %v505 = vpack.c.b16 %v489, %v489
      %522 = vst [vmem:[%s223] sm:$0xf] %v490
      %523 = vst [vmem:[%s223 + $0x4] sm:$0xf] %v491
      %524 = vst [vmem:[%s223 + $0x8] sm:$0xf] %v492
      %525 = vst [vmem:[%s223 + $0xc] sm:$0xf] %v493
      %526 = vst [vmem:[%s223 + $0x10] sm:$0xf] %v494
      %527 = vst [vmem:[%s223 + $0x14] sm:$0xf] %v495
      %528 = vst [vmem:[%s223 + $0x18] sm:$0xf] %v496
      %529 = vst [vmem:[%s223 + $0x1c] sm:$0xf] %v497
      %530 = vst [vmem:[%s223 + $0x20] sm:$0xf] %v498
      %531 = vst [vmem:[%s223 + $0x24] sm:$0xf] %v499
      %532 = vst [vmem:[%s223 + $0x28] sm:$0xf] %v500
      %533 = vst [vmem:[%s223 + $0x2c] sm:$0xf] %v501
      %534 = vst [vmem:[%s223 + $0x30] sm:$0xf] %v502
      %535 = vst [vmem:[%s223 + $0x34] sm:$0xf] %v503
      %536 = vst [vmem:[%s223 + $0x38] sm:$0xf] %v504
      %537 = vst [vmem:[%s223 + $0x3c] sm:$0xf] %v505
      %s538 = smul.u32 16, %s18
      %p539 = scmp.lt.s32.totalorder %s538, 31
      %s540 = scalar_select %p539, %s538, 31
      %p541 = scmp.lt.s32.totalorder %s19, 0
      %s542 = scalar_select %p541, %s19, 0
      %s543 = sadd.s32 %s542, %s540
      %s544 = smul.addr %s543, 4
      %s545 = scalar_lea.vmem %s3, %s544
      // Predicated region
      $region33: #{_lambda_.26} parent=31 // pred_check
        %p546 = pneg %p124
      $region34: #{_lambda_.26} parent=31 // pred_check_branch
        %548 = sbr.rel (%p546) target = $region36
      $region35: #{_lambda_.26} parent=31 // pred_region
        %s549 = smul.u32 16, %s18
      $region36: #{_lambda_.26} parent=31 // pred_fallthru
        _
    $region32: #{_lambda_.26} parent=5 // pred_fallthru
      _
    %p550 = scmp.le.s32.totalorder 2, %s9
    // Predicated region
    $region37: #{_lambda_.26} parent=5 // pred_check
      %p551 = pneg %p550
    $region38: #{_lambda_.26} parent=5 // pred_check_branch
      %553 = sbr.rel (%p551) target = $region40
    $region39: #{_lambda_.26} parent=5 // pred_region
      %s554 = ssub.s32 %s9, 2
      // Predicated region
      $region41: #{_lambda_.26} parent=39 // pred_check
        %p555 = pneg %p130
      $region42: #{_lambda_.26} parent=39 // pred_check_branch
        %557 = sbr.rel (%p555) target = $region44
      $region43: #{_lambda_.26} parent=39 // pred_region
        %s558 = smul.u32 16, %s20
        %p559 = scmp.lt.s32.totalorder %s558, 31
        %s560 = scalar_select %p559, %s558, 31
        %p561 = scmp.lt.s32.totalorder %s21, 0
        %s562 = scalar_select %p561, %s21, 0
        %s563 = sadd.s32 %s562, %s560
        %s564 = smul.addr %s563, 4
        %s565 = scalar_lea.vmem %s3, %s564
      $region44: #{_lambda_.26} parent=39 // pred_fallthru
        _
    $region40: #{_lambda_.26} parent=5 // pred_fallthru
      _
  $region6: #{_lambda_.26} parent=0 // loop_footer
    %s13 = sadd.s32 1, %s9
  $region7: #{_lambda_.26} parent=0 // loop_footer_branch
    %8 = sbr.rel target = $region3
  $region8: #{_lambda_.26} parent=0 // loop_exit
    _

// kernel: _lambda_.28
$region0: #{_lambda_.28}
  #allocation0 [shape = 'u32[]', space=smem, size = 0x4, offset = 0x4, fixed_abs, tag = 'smem constant byte address 0x4 - core index']
  #allocation1 [shape = 'u32[144,128]{1,0:T(1,128)}', space=vmem, size = 0x12000, scoped, tag = 'internal scratch']
  %s0 = inlined_call_operand.vmem [shape: bf16[4,64,128], index: 0, kind: input, shape index: {}]
  %s1 = inlined_call_operand.vmem [shape: bf16[4,64,128], index: 1, kind: input, shape index: {}]
  %s2 = inlined_call_operand.vmem [shape: bf16[128,128], index: 2, kind: input, shape index: {}]
  %s3 = inlined_call_operand.vmem [shape: f32[1,128], index: 3, kind: input, shape index: {}, may-alias: {3,5}]
  %s4 = inlined_call_operand.vmem [shape: bf16[128,128], index: 4, kind: input, shape index: {}]
  %s5 = inlined_call_operand.vmem [shape: f32[1,128], index: 5, kind: input, shape index: {}, may-alias: {3,5}]
  %s6 = inlined_call_operand.vmem [shape: bf16[4,64,128], index: 6, kind: output, shape index: {}]
  %s7 = sld [smem:[#allocation0]]
  $region34: #{_lambda_.28} parent=0
    _
  %s9 = ssub.s32 1, %s7
  %s10 = scalar_select 0, %s9, %s7
  // Predicated region
  $region2: #{_lambda_.28} parent=0 // pred_check
    _
  $region3: #{_lambda_.28} parent=0 // pred_check_branch
    %12 = sbr.rel (0) target = $region5
  $region4: #{_lambda_.28} parent=0 // pred_region
    _
  $region5: #{_lambda_.28} parent=0 // pred_fallthru
    _
  // Predicated region
  $region6: #{_lambda_.28} parent=0 // pred_check
    _
  $region7: #{_lambda_.28} parent=0 // pred_check_branch
    %14 = sbr.rel (0) target = $region9
  $region8: #{_lambda_.28} parent=0 // pred_region
    _
  $region9: #{_lambda_.28} parent=0 // pred_fallthru
    _
  // Predicated region
  $region10: #{_lambda_.28} parent=0 // pred_check
    _
  $region11: #{_lambda_.28} parent=0 // pred_check_branch
    %16 = sbr.rel (0) target = $region13
  $region12: #{_lambda_.28} parent=0 // pred_region
    _
  $region13: #{_lambda_.28} parent=0 // pred_fallthru
    _
  // Predicated region
  $region14: #{_lambda_.28} parent=0 // pred_check
    _
  $region15: #{_lambda_.28} parent=0 // pred_check_branch
    %18 = sbr.rel (0) target = $region17
  $region16: #{_lambda_.28} parent=0 // pred_region
    _
  $region17: #{_lambda_.28} parent=0 // pred_fallthru
    _
  // Predicated region
  $region18: #{_lambda_.28} parent=0 // pred_check
    _
  $region19: #{_lambda_.28} parent=0 // pred_check_branch
    %20 = sbr.rel (0) target = $region21
  $region20: #{_lambda_.28} parent=0 // pred_region
    _
  $region21: #{_lambda_.28} parent=0 // pred_fallthru
    _
  // Predicated region
  $region22: #{_lambda_.28} parent=0 // pred_check
    _
  $region23: #{_lambda_.28} parent=0 // pred_check_branch
    %22 = sbr.rel (0) target = $region25
  $region24: #{_lambda_.28} parent=0 // pred_region
    _
  $region25: #{_lambda_.28} parent=0 // pred_fallthru
    _
  %v24 = vld [vmem:[%s0] sm:$0xf]
  %v25 = vld [vmem:[%s0 + $0x4] sm:$0xf]
  %v26 = vld [vmem:[%s0 + $0x8] sm:$0xf]
  %v27 = vld [vmem:[%s0 + $0xc] sm:$0xf]
  %v28 = vld [vmem:[%s0 + $0x10] sm:$0xf]
  %v29 = vld [vmem:[%s0 + $0x14] sm:$0xf]
  %v30 = vld [vmem:[%s0 + $0x18] sm:$0xf]
  %v31 = vld [vmem:[%s0 + $0x1c] sm:$0xf]
  %v32 = vld [vmem:[%s0 + $0x20] sm:$0xf]
  %v33 = vld [vmem:[%s0 + $0x24] sm:$0xf]
  %v34 = vld [vmem:[%s0 + $0x28] sm:$0xf]
  %v35 = vld [vmem:[%s0 + $0x2c] sm:$0xf]
  %v36 = vld [vmem:[%s0 + $0x30] sm:$0xf]
  %v37 = vld [vmem:[%s0 + $0x34] sm:$0xf]
  %v38 = vld [vmem:[%s0 + $0x38] sm:$0xf]
  %v39 = vld [vmem:[%s0 + $0x3c] sm:$0xf]
  %v40 = vld [vmem:[%s0 + $0x40] sm:$0xf]
  %v41 = vld [vmem:[%s0 + $0x44] sm:$0xf]
  %v42 = vld [vmem:[%s0 + $0x48] sm:$0xf]
  %v43 = vld [vmem:[%s0 + $0x4c] sm:$0xf]
  %v44 = vld [vmem:[%s0 + $0x50] sm:$0xf]
  %v45 = vld [vmem:[%s0 + $0x54] sm:$0xf]
  %v46 = vld [vmem:[%s0 + $0x58] sm:$0xf]
  %v47 = vld [vmem:[%s0 + $0x5c] sm:$0xf]
  %v48 = vld [vmem:[%s0 + $0x60] sm:$0xf]
  %v49 = vld [vmem:[%s0 + $0x64] sm:$0xf]
  %v50 = vld [vmem:[%s0 + $0x68] sm:$0xf]
  %v51 = vld [vmem:[%s0 + $0x6c] sm:$0xf]
  %v52 = vld [vmem:[%s0 + $0x70] sm:$0xf]
  %v53 = vld [vmem:[%s0 + $0x74] sm:$0xf]
  %v54 = vld [vmem:[%s0 + $0x78] sm:$0xf]
  %v55 = vld [vmem:[%s0 + $0x7c] sm:$0xf]
  %v56 = vunpack.c.l.bf16 %v24
  %v57 = vunpack.c.l.bf16 %v25
  %v58 = vunpack.c.l.bf16 %v26
  %v59 = vunpack.c.l.bf16 %v27
  %v60 = vunpack.c.l.bf16 %v28
  %v61 = vunpack.c.l.bf16 %v29
  %v62 = vunpack.c.l.bf16 %v30
  %v63 = vunpack.c.l.bf16 %v31
  %v64 = vunpack.c.l.bf16 %v32
  %v65 = vunpack.c.l.bf16 %v33
  %v66 = vunpack.c.l.bf16 %v34
  %v67 = vunpack.c.l.bf16 %v35
  %v68 = vunpack.c.l.bf16 %v36
  %v69 = vunpack.c.l.bf16 %v37
  %v70 = vunpack.c.l.bf16 %v38
  %v71 = vunpack.c.l.bf16 %v39
  %v72 = vunpack.c.l.bf16 %v40
  %v73 = vunpack.c.l.bf16 %v41
  %v74 = vunpack.c.l.bf16 %v42
  %v75 = vunpack.c.l.bf16 %v43
  %v76 = vunpack.c.l.bf16 %v44
  %v77 = vunpack.c.l.bf16 %v45
  %v78 = vunpack.c.l.bf16 %v46
  %v79 = vunpack.c.l.bf16 %v47
  %v80 = vunpack.c.l.bf16 %v48
  %v81 = vunpack.c.l.bf16 %v49
  %v82 = vunpack.c.l.bf16 %v50
  %v83 = vunpack.c.l.bf16 %v51
  %v84 = vunpack.c.l.bf16 %v52
  %v85 = vunpack.c.l.bf16 %v53
  %v86 = vunpack.c.l.bf16 %v54
  %v87 = vunpack.c.l.bf16 %v55
  %v88 = vadd.f32 %v56, %v57
  %v89 = vadd.f32 %v88, %v58
  %v90 = vadd.f32 %v89, %v59
  %v91 = vadd.f32 %v90, %v60
  %v92 = vadd.f32 %v91, %v61
  %v93 = vadd.f32 %v92, %v62
  %v94 = vadd.f32 %v93, %v63
  %v95 = vrot.slane %v94, 4
  %v96 = vadd.f32 %v94, %v95
  %v97 = vrot.slane %v96, 2
  %v98 = vadd.f32 %v96, %v97
  %v99 = vrot.slane %v98, 1
  %v100 = vadd.f32 %v98, %v99
  %v101 = vadd.f32 %v64, %v65
  %v102 = vadd.f32 %v101, %v66
  %v103 = vadd.f32 %v102, %v67
  %v104 = vadd.f32 %v103, %v68
  %v105 = vadd.f32 %v104, %v69
  %v106 = vadd.f32 %v105, %v70
  %v107 = vadd.f32 %v106, %v71
  %v108 = vrot.slane %v107, 4
  %v109 = vadd.f32 %v107, %v108
  %v110 = vrot.slane %v109, 2
  %v111 = vadd.f32 %v109, %v110
  %v112 = vrot.slane %v111, 1
  %v113 = vadd.f32 %v111, %v112
  %v114 = vadd.f32 %v72, %v73
  %v115 = vadd.f32 %v114, %v74
  %v116 = vadd.f32 %v115, %v75
  %v117 = vadd.f32 %v116, %v76
  %v118 = vadd.f32 %v117, %v77
  %v119 = vadd.f32 %v118, %v78
  %v120 = vadd.f32 %v119, %v79
  %v121 = vrot.slane %v120, 4
  %v122 = vadd.f32 %v120, %v121
  %v123 = vrot.slane %v122, 2
  %v124 = vadd.f32 %v122, %v123
  %v125 = vrot.slane %v124, 1
  %v126 = vadd.f32 %v124, %v125
  %v127 = vadd.f32 %v80, %v81
  %v128 = vadd.f32 %v127, %v82
  %v129 = vadd.f32 %v128, %v83
  %v130 = vadd.f32 %v129, %v84
  %v131 = vadd.f32 %v130, %v85
  %v132 = vadd.f32 %v131, %v86
  %v133 = vadd.f32 %v132, %v87
  %v134 = vrot.slane %v133, 4
  %v135 = vadd.f32 %v133, %v134
  %v136 = vrot.slane %v135, 2
  %v137 = vadd.f32 %v135, %v136
  %v138 = vrot.slane %v137, 1
  %v139 = vadd.f32 %v137, %v138
  %v140 = vrcp.pop 64.0
  %v141 = vmul.f32 %v100, %v140
  %v142 = vmul.f32 %v113, %v140
  %v143 = vmul.f32 %v126, %v140
  %v144 = vmul.f32 %v139, %v140
  %v145 = vpack.c.bf16 %v141, %v141
  %v146 = vpack.c.bf16 %v142, %v142
  %v147 = vpack.c.bf16 %v143, %v143
  %v148 = vpack.c.bf16 %v144, %v144
  %v149 = vld [vmem:[%s2] sm:$0xf]
  %v150 = vld [vmem:[%s2 + $0x4] sm:$0xf]
  %v151 = vld [vmem:[%s2 + $0x8] sm:$0xf]
  %v152 = vld [vmem:[%s2 + $0xc] sm:$0xf]
  %v153 = vld [vmem:[%s2 + $0x10] sm:$0xf]
  %v154 = vld [vmem:[%s2 + $0x14] sm:$0xf]
  %v155 = vld [vmem:[%s2 + $0x18] sm:$0xf]
  %v156 = vld [vmem:[%s2 + $0x1c] sm:$0xf]
  %v157 = vld [vmem:[%s2 + $0x20] sm:$0xf]
  %v158 = vld [vmem:[%s2 + $0x24] sm:$0xf]
  %v159 = vld [vmem:[%s2 + $0x28] sm:$0xf]
  %v160 = vld [vmem:[%s2 + $0x2c] sm:$0xf]
  %v161 = vld [vmem:[%s2 + $0x30] sm:$0xf]
  %v162 = vld [vmem:[%s2 + $0x34] sm:$0xf]
  %v163 = vld [vmem:[%s2 + $0x38] sm:$0xf]
  %v164 = vld [vmem:[%s2 + $0x3c] sm:$0xf]
  %v165 = vld [vmem:[%s3] sm:$0x1]
  %v167 = vlaneseq
  %v168 = vshrl.u32 %v167, 7
  %v169 = vsub.s32 0, %v168
  %v170 = vrot.slane %v165, %v169
  %v176 = vunpack.c.l.b16 %v145
  %v177 = vunpack.c.l.b16 %v146
  %v178 = vunpack.c.l.b16 %v147
  %v179 = vunpack.c.l.b16 %v148
  %vm180 = vcmask 1041409
  %v181 = vsel %vm180, %v177, %v176
  %vm182 = vcmask 1042434
  %v183 = vsel %vm182, %v178, %v181
  %vm184 = vcmask 1043459
  %v185 = vsel %vm184, %v179, %v183
  %v186 = vpack.c.b16 %v185, %v185
  %v204 = vunpack.c.l.b16 %v149
  %v205 = vunpack.c.l.b16 %v150
  %v206 = vunpack.c.l.b16 %v151
  %v207 = vunpack.c.l.b16 %v152
  %v208 = vunpack.c.l.b16 %v153
  %v209 = vunpack.c.l.b16 %v154
  %v210 = vunpack.c.l.b16 %v155
  %v211 = vunpack.c.l.b16 %v156
  %v212 = vunpack.c.l.b16 %v157
  %v213 = vunpack.c.l.b16 %v158
  %v214 = vunpack.c.l.b16 %v159
  %v215 = vunpack.c.l.b16 %v160
  %v216 = vunpack.c.l.b16 %v161
  %v217 = vunpack.c.l.b16 %v162
  %v218 = vunpack.c.l.b16 %v163
  %v219 = vunpack.c.l.b16 %v164
  %v220 = vpack.c.b16 %v205, %v204
  %v221 = vpack.c.b16 %v207, %v206
  %v222 = vpack.c.b16 %v209, %v208
  %v223 = vpack.c.b16 %v211, %v210
  %v224 = vpack.c.b16 %v213, %v212
  %v225 = vpack.c.b16 %v215, %v214
  %v226 = vpack.c.b16 %v217, %v216
  %v227 = vpack.c.b16 %v219, %v218
  %236 = vmatprep.subr.bf16.mxu0 0
  %237 = vmatpush1.bf16.msra.mxu0 %v220
  %238 = vmatprep.subr.bf16.mxu0 0
  %239 = vmatpush1.bf16.msra.mxu0 %v221
  %240 = vmatprep.subr.bf16.mxu0 0
  %241 = vmatpush1.bf16.msra.mxu0 %v222
  %242 = vmatprep.subr.bf16.mxu0 0
  %243 = vmatpush1.bf16.msra.mxu0 %v223
  %244 = vmatprep.subr.bf16.mxu0 0
  %245 = vmatpush1.bf16.msra.mxu0 %v224
  %246 = vmatprep.subr.bf16.mxu0 0
  %247 = vmatpush1.bf16.msra.mxu0 %v225
  %248 = vmatprep.subr.bf16.mxu0 0
  %249 = vmatpush1.bf16.msra.mxu0 %v226
  %250 = vmatprep.subr.bf16.mxu0 0
  %251 = vmatpush1.bf16.msra.mxu0 %v227
  %252 = vmatprep.subr.bf16.mxu0 0
  %253 = vmatpush1.bf16.msra.mxu0 0
  %254 = vmatprep.subr.bf16.mxu0 0
  %255 = vmatpush1.bf16.msra.mxu0 0
  %256 = vmatprep.subr.bf16.mxu0 0
  %257 = vmatpush1.bf16.msra.mxu0 0
  %258 = vmatprep.subr.bf16.mxu0 0
  %259 = vmatpush1.bf16.msra.mxu0 0
  %260 = vmatprep.subr.bf16.mxu0 0
  %261 = vmatpush1.bf16.msra.mxu0 0
  %262 = vmatprep.subr.bf16.mxu0 0
  %263 = vmatpush1.bf16.msra.mxu0 0
  %264 = vmatprep.subr.bf16.mxu0 0
  %265 = vmatpush1.bf16.msra.mxu0 0
  %266 = vmatprep.subr.bf16.mxu0 0
  %267 = vmatpush1.bf16.msra.mxu0 0
  %268 = vmatprep.mubr.bf16.mxu0 0
  %269 = vmatmul.mubr.bf16.gmra.mrb[0].mxu0 %v186
  %v270 = vpop.f32.mrb[0].mxu0
  %v271 = vadd.f32 %v170, %v270
  %v272 = vpop.f32.mrb[0].mxu0
  %v273 = vpop.f32.mrb[0].mxu0
  %v274 = vpop.f32.mrb[0].mxu0
  %275 = vdwg.mxu0
  %v276 = vmax.f32 %v271, 0.0
  %v277 = vpack.c.bf16 %v276, %v276
  %v278 = vld [vmem:[%s4] sm:$0xf]
  %v279 = vld [vmem:[%s4 + $0x4] sm:$0xf]
  %v280 = vld [vmem:[%s4 + $0x8] sm:$0xf]
  %v281 = vld [vmem:[%s4 + $0xc] sm:$0xf]
  %v282 = vld [vmem:[%s4 + $0x10] sm:$0xf]
  %v283 = vld [vmem:[%s4 + $0x14] sm:$0xf]
  %v284 = vld [vmem:[%s4 + $0x18] sm:$0xf]
  %v285 = vld [vmem:[%s4 + $0x1c] sm:$0xf]
  %v286 = vld [vmem:[%s4 + $0x20] sm:$0xf]
  %v287 = vld [vmem:[%s4 + $0x24] sm:$0xf]
  %v288 = vld [vmem:[%s4 + $0x28] sm:$0xf]
  %v289 = vld [vmem:[%s4 + $0x2c] sm:$0xf]
  %v290 = vld [vmem:[%s4 + $0x30] sm:$0xf]
  %v291 = vld [vmem:[%s4 + $0x34] sm:$0xf]
  %v292 = vld [vmem:[%s4 + $0x38] sm:$0xf]
  %v293 = vld [vmem:[%s4 + $0x3c] sm:$0xf]
  %v294 = vld [vmem:[%s5] sm:$0x1]
  %v296 = vlaneseq
  %v297 = vshrl.u32 %v296, 7
  %v298 = vsub.s32 0, %v297
  %v299 = vrot.slane %v294, %v298
  %v317 = vunpack.c.l.b16 %v278
  %v318 = vunpack.c.l.b16 %v279
  %v319 = vunpack.c.l.b16 %v280
  %v320 = vunpack.c.l.b16 %v281
  %v321 = vunpack.c.l.b16 %v282
  %v322 = vunpack.c.l.b16 %v283
  %v323 = vunpack.c.l.b16 %v284
  %v324 = vunpack.c.l.b16 %v285
  %v325 = vunpack.c.l.b16 %v286
  %v326 = vunpack.c.l.b16 %v287
  %v327 = vunpack.c.l.b16 %v288
  %v328 = vunpack.c.l.b16 %v289
  %v329 = vunpack.c.l.b16 %v290
  %v330 = vunpack.c.l.b16 %v291
  %v331 = vunpack.c.l.b16 %v292
  %v332 = vunpack.c.l.b16 %v293
  %v333 = vpack.c.b16 %v318, %v317
  %v334 = vpack.c.b16 %v320, %v319
  %v335 = vpack.c.b16 %v322, %v321
  %v336 = vpack.c.b16 %v324, %v323
  %v337 = vpack.c.b16 %v326, %v325
  %v338 = vpack.c.b16 %v328, %v327
  %v339 = vpack.c.b16 %v330, %v329
  %v340 = vpack.c.b16 %v332, %v331
  %349 = vmatprep.subr.bf16.mxu0 0
  %350 = vmatpush1.bf16.msra.mxu0 %v333
  %351 = vmatprep.subr.bf16.mxu0 0
  %352 = vmatpush1.bf16.msra.mxu0 %v334
  %353 = vmatprep.subr.bf16.mxu0 0
  %354 = vmatpush1.bf16.msra.mxu0 %v335
  %355 = vmatprep.subr.bf16.mxu0 0
  %356 = vmatpush1.bf16.msra.mxu0 %v336
  %357 = vmatprep.subr.bf16.mxu0 0
  %358 = vmatpush1.bf16.msra.mxu0 %v337
  %359 = vmatprep.subr.bf16.mxu0 0
  %360 = vmatpush1.bf16.msra.mxu0 %v338
  %361 = vmatprep.subr.bf16.mxu0 0
  %362 = vmatpush1.bf16.msra.mxu0 %v339
  %363 = vmatprep.subr.bf16.mxu0 0
  %364 = vmatpush1.bf16.msra.mxu0 %v340
  %365 = vmatprep.subr.bf16.mxu0 0
  %366 = vmatpush1.bf16.msra.mxu0 0
  %367 = vmatprep.subr.bf16.mxu0 0
  %368 = vmatpush1.bf16.msra.mxu0 0
  %369 = vmatprep.subr.bf16.mxu0 0
  %370 = vmatpush1.bf16.msra.mxu0 0
  %371 = vmatprep.subr.bf16.mxu0 0
  %372 = vmatpush1.bf16.msra.mxu0 0
  %373 = vmatprep.subr.bf16.mxu0 0
  %374 = vmatpush1.bf16.msra.mxu0 0
  %375 = vmatprep.subr.bf16.mxu0 0
  %376 = vmatpush1.bf16.msra.mxu0 0
  %377 = vmatprep.subr.bf16.mxu0 0
  %378 = vmatpush1.bf16.msra.mxu0 0
  %379 = vmatprep.subr.bf16.mxu0 0
  %380 = vmatpush1.bf16.msra.mxu0 0
  %381 = vmatprep.mubr.bf16.mxu0 0
  %382 = vmatmul.mubr.bf16.gmra.mrb[0].mxu0 %v277
  %v383 = vpop.f32.mrb[0].mxu0
  %v384 = vadd.f32 %v299, %v383
  %v385 = vpop.f32.mrb[0].mxu0
  %v386 = vpop.f32.mrb[0].mxu0
  %v387 = vpop.f32.mrb[0].mxu0
  %388 = vdwg.mxu0
  %v389 = vsub.f32 0.0, %v384
  %v390 = vmul.f32 %v389, 1.442695
  %v391 = vpow.pop %v390
  %v392 = vadd.f32 %v391, 1.0
  %v393 = vrcp.pop %v392
  %v394 = vmul.f32 1.0, %v393
  %v397 = vunpack.c.l.s4 1966171168
  %v398 = vunpack.c.0.s8 %v397
  %v399 = vlaneseq
  %v400 = vshrl.u32 %v399, 7
  %v401 = vsub.s32 %v398, %v400
  %v402 = vrot.slane %v394, %v401
  %v403 = vcombine.high %v402, %v402
  %v405 = vunpack.c.l.s4 1966171168
  %v406 = vunpack.c.0.s8 %v405
  %v407 = vlaneseq
  %v408 = vshrl.u32 %v407, 7
  %v409 = vsub.s32 %v406, %v408
  %v410 = vrot.slane %v402, %v409
  %v412 = vunpack.c.l.s4 1966171168
  %v413 = vunpack.c.0.s8 %v412
  %v414 = vlaneseq
  %v415 = vshrl.u32 %v414, 7
  %v416 = vsub.s32 %v413, %v415
  %v417 = vrot.slane %v403, %v416
  %v418 = vcombine.high %v410, %v410
  %v419 = vcombine.high %v417, %v417
  %v420 = vlaneseq
  %v421 = vshrl.u32 %v420, 7
  %v422 = vsub.s32 0, %v421
  %v423 = vrot.slane %v410, %v422
  %v424 = vlaneseq
  %v425 = vshrl.u32 %v424, 7
  %v426 = vsub.s32 0, %v425
  %v427 = vrot.slane %v417, %v426
  %v428 = vlaneseq
  %v429 = vshrl.u32 %v428, 7
  %v430 = vsub.s32 0, %v429
  %v431 = vrot.slane %v418, %v430
  %v432 = vlaneseq
  %v433 = vshrl.u32 %v432, 7
  %v434 = vsub.s32 0, %v433
  %v435 = vrot.slane %v419, %v434
  %v440 = vmul.f32 %v56, %v423
  %v441 = vmul.f32 %v57, %v423
  %v442 = vmul.f32 %v58, %v423
  %v443 = vmul.f32 %v59, %v423
  %v444 = vmul.f32 %v60, %v423
  %v445 = vmul.f32 %v61, %v423
  %v446 = vmul.f32 %v62, %v423
  %v447 = vmul.f32 %v63, %v423
  %v448 = vmul.f32 %v64, %v427
  %v449 = vmul.f32 %v65, %v427
  %v450 = vmul.f32 %v66, %v427
  %v451 = vmul.f32 %v67, %v427
  %v452 = vmul.f32 %v68, %v427
  %v453 = vmul.f32 %v69, %v427
  %v454 = vmul.f32 %v70, %v427
  %v455 = vmul.f32 %v71, %v427
  %v456 = vmul.f32 %v72, %v431
  %v457 = vmul.f32 %v73, %v431
  %v458 = vmul.f32 %v74, %v431
  %v459 = vmul.f32 %v75, %v431
  %v460 = vmul.f32 %v76, %v431
  %v461 = vmul.f32 %v77, %v431
  %v462 = vmul.f32 %v78, %v431
  %v463 = vmul.f32 %v79, %v431
  %v464 = vmul.f32 %v80, %v435
  %v465 = vmul.f32 %v81, %v435
  %v466 = vmul.f32 %v82, %v435
  %v467 = vmul.f32 %v83, %v435
  %v468 = vmul.f32 %v84, %v435
  %v469 = vmul.f32 %v85, %v435
  %v470 = vmul.f32 %v86, %v435
  %v471 = vmul.f32 %v87, %v435
  %v472 = vld [vmem:[%s1] sm:$0xf]
  %v473 = vld [vmem:[%s1 + $0x4] sm:$0xf]
  %v474 = vld [vmem:[%s1 + $0x8] sm:$0xf]
  %v475 = vld [vmem:[%s1 + $0xc] sm:$0xf]
  %v476 = vld [vmem:[%s1 + $0x10] sm:$0xf]
  %v477 = vld [vmem:[%s1 + $0x14] sm:$0xf]
  %v478 = vld [vmem:[%s1 + $0x18] sm:$0xf]
  %v479 = vld [vmem:[%s1 + $0x1c] sm:$0xf]
  %v480 = vld [vmem:[%s1 + $0x20] sm:$0xf]
  %v481 = vld [vmem:[%s1 + $0x24] sm:$0xf]
  %v482 = vld [vmem:[%s1 + $0x28] sm:$0xf]
  %v483 = vld [vmem:[%s1 + $0x2c] sm:$0xf]
  %v484 = vld [vmem:[%s1 + $0x30] sm:$0xf]
  %v485 = vld [vmem:[%s1 + $0x34] sm:$0xf]
  %v486 = vld [vmem:[%s1 + $0x38] sm:$0xf]
  %v487 = vld [vmem:[%s1 + $0x3c] sm:$0xf]
  %v488 = vld [vmem:[%s1 + $0x40] sm:$0xf]
  %v489 = vld [vmem:[%s1 + $0x44] sm:$0xf]
  %v490 = vld [vmem:[%s1 + $0x48] sm:$0xf]
  %v491 = vld [vmem:[%s1 + $0x4c] sm:$0xf]
  %v492 = vld [vmem:[%s1 + $0x50] sm:$0xf]
  %v493 = vld [vmem:[%s1 + $0x54] sm:$0xf]
  %v494 = vld [vmem:[%s1 + $0x58] sm:$0xf]
  %v495 = vld [vmem:[%s1 + $0x5c] sm:$0xf]
  %v496 = vld [vmem:[%s1 + $0x60] sm:$0xf]
  %v497 = vld [vmem:[%s1 + $0x64] sm:$0xf]
  %v498 = vld [vmem:[%s1 + $0x68] sm:$0xf]
  %v499 = vld [vmem:[%s1 + $0x6c] sm:$0xf]
  %v500 = vld [vmem:[%s1 + $0x70] sm:$0xf]
  %v501 = vld [vmem:[%s1 + $0x74] sm:$0xf]
  %v502 = vld [vmem:[%s1 + $0x78] sm:$0xf]
  %v503 = vld [vmem:[%s1 + $0x7c] sm:$0xf]
  %v504 = vunpack.c.l.bf16 %v472
  %v505 = vunpack.c.l.bf16 %v473
  %v506 = vunpack.c.l.bf16 %v474
  %v507 = vunpack.c.l.bf16 %v475
  %v508 = vunpack.c.l.bf16 %v476
  %v509 = vunpack.c.l.bf16 %v477
  %v510 = vunpack.c.l.bf16 %v478
  %v511 = vunpack.c.l.bf16 %v479
  %v512 = vunpack.c.l.bf16 %v480
  %v513 = vunpack.c.l.bf16 %v481
  %v514 = vunpack.c.l.bf16 %v482
  %v515 = vunpack.c.l.bf16 %v483
  %v516 = vunpack.c.l.bf16 %v484
  %v517 = vunpack.c.l.bf16 %v485
  %v518 = vunpack.c.l.bf16 %v486
  %v519 = vunpack.c.l.bf16 %v487
  %v520 = vunpack.c.l.bf16 %v488
  %v521 = vunpack.c.l.bf16 %v489
  %v522 = vunpack.c.l.bf16 %v490
  %v523 = vunpack.c.l.bf16 %v491
  %v524 = vunpack.c.l.bf16 %v492
  %v525 = vunpack.c.l.bf16 %v493
  %v526 = vunpack.c.l.bf16 %v494
  %v527 = vunpack.c.l.bf16 %v495
  %v528 = vunpack.c.l.bf16 %v496
  %v529 = vunpack.c.l.bf16 %v497
  %v530 = vunpack.c.l.bf16 %v498
  %v531 = vunpack.c.l.bf16 %v499
  %v532 = vunpack.c.l.bf16 %v500
  %v533 = vunpack.c.l.bf16 %v501
  %v534 = vunpack.c.l.bf16 %v502
  %v535 = vunpack.c.l.bf16 %v503
  %v536 = vadd.f32 %v440, %v504
  %v537 = vadd.f32 %v441, %v505
  %v538 = vadd.f32 %v442, %v506
  %v539 = vadd.f32 %v443, %v507
  %v540 = vadd.f32 %v444, %v508
  %v541 = vadd.f32 %v445, %v509
  %v542 = vadd.f32 %v446, %v510
  %v543 = vadd.f32 %v447, %v511
  %v544 = vadd.f32 %v448, %v512
  %v545 = vadd.f32 %v449, %v513
  %v546 = vadd.f32 %v450, %v514
  %v547 = vadd.f32 %v451, %v515
  %v548 = vadd.f32 %v452, %v516
  %v549 = vadd.f32 %v453, %v517
  %v550 = vadd.f32 %v454, %v518
  %v551 = vadd.f32 %v455, %v519
  %v552 = vadd.f32 %v456, %v520
  %v553 = vadd.f32 %v457, %v521
  %v554 = vadd.f32 %v458, %v522
  %v555 = vadd.f32 %v459, %v523
  %v556 = vadd.f32 %v460, %v524
  %v557 = vadd.f32 %v461, %v525
  %v558 = vadd.f32 %v462, %v526
  %v559 = vadd.f32 %v463, %v527
  %v560 = vadd.f32 %v464, %v528
  %v561 = vadd.f32 %v465, %v529
  %v562 = vadd.f32 %v466, %v530
  %v563 = vadd.f32 %v467, %v531
  %v564 = vadd.f32 %v468, %v532
  %v565 = vadd.f32 %v469, %v533
  %v566 = vadd.f32 %v470, %v534
  %v567 = vadd.f32 %v471, %v535
  %v568 = vmax.f32 %v536, 0.0
  %v569 = vmax.f32 %v537, 0.0
  %v570 = vmax.f32 %v538, 0.0
  %v571 = vmax.f32 %v539, 0.0
  %v572 = vmax.f32 %v540, 0.0
  %v573 = vmax.f32 %v541, 0.0
  %v574 = vmax.f32 %v542, 0.0
  %v575 = vmax.f32 %v543, 0.0
  %v576 = vmax.f32 %v544, 0.0
  %v577 = vmax.f32 %v545, 0.0
  %v578 = vmax.f32 %v546, 0.0
  %v579 = vmax.f32 %v547, 0.0
  %v580 = vmax.f32 %v548, 0.0
  %v581 = vmax.f32 %v549, 0.0
  %v582 = vmax.f32 %v550, 0.0
  %v583 = vmax.f32 %v551, 0.0
  %v584 = vmax.f32 %v552, 0.0
  %v585 = vmax.f32 %v553, 0.0
  %v586 = vmax.f32 %v554, 0.0
  %v587 = vmax.f32 %v555, 0.0
  %v588 = vmax.f32 %v556, 0.0
  %v589 = vmax.f32 %v557, 0.0
  %v590 = vmax.f32 %v558, 0.0
  %v591 = vmax.f32 %v559, 0.0
  %v592 = vmax.f32 %v560, 0.0
  %v593 = vmax.f32 %v561, 0.0
  %v594 = vmax.f32 %v562, 0.0
  %v595 = vmax.f32 %v563, 0.0
  %v596 = vmax.f32 %v564, 0.0
  %v597 = vmax.f32 %v565, 0.0
  %v598 = vmax.f32 %v566, 0.0
  %v599 = vmax.f32 %v567, 0.0
  %v600 = vpack.c.bf16 %v569, %v568
  %v601 = vpack.c.bf16 %v571, %v570
  %v602 = vpack.c.bf16 %v573, %v572
  %v603 = vpack.c.bf16 %v575, %v574
  %v604 = vpack.c.bf16 %v577, %v576
  %v605 = vpack.c.bf16 %v579, %v578
  %v606 = vpack.c.bf16 %v581, %v580
  %v607 = vpack.c.bf16 %v583, %v582
  %v608 = vpack.c.bf16 %v585, %v584
  %v609 = vpack.c.bf16 %v587, %v586
  %v610 = vpack.c.bf16 %v589, %v588
  %v611 = vpack.c.bf16 %v591, %v590
  %v612 = vpack.c.bf16 %v593, %v592
  %v613 = vpack.c.bf16 %v595, %v594
  %v614 = vpack.c.bf16 %v597, %v596
  %v615 = vpack.c.bf16 %v599, %v598
  %v632 = vunpack.c.l.b16 %v600
  %v633 = vunpack.c.h.b16 %v600
  %v634 = vunpack.c.l.b16 %v601
  %v635 = vunpack.c.h.b16 %v601
  %v636 = vunpack.c.l.b16 %v602
  %v637 = vunpack.c.h.b16 %v602
  %v638 = vunpack.c.l.b16 %v603
  %v639 = vunpack.c.h.b16 %v603
  %v640 = vunpack.c.l.b16 %v604
  %v641 = vunpack.c.h.b16 %v604
  %v642 = vunpack.c.l.b16 %v605
  %v643 = vunpack.c.h.b16 %v605
  %v644 = vunpack.c.l.b16 %v606
  %v645 = vunpack.c.h.b16 %v606
  %v646 = vunpack.c.l.b16 %v607
  %v647 = vunpack.c.h.b16 %v607
  %v648 = vunpack.c.l.b16 %v608
  %v649 = vunpack.c.h.b16 %v608
  %v650 = vunpack.c.l.b16 %v609
  %v651 = vunpack.c.h.b16 %v609
  %v652 = vunpack.c.l.b16 %v610
  %v653 = vunpack.c.h.b16 %v610
  %v654 = vunpack.c.l.b16 %v611
  %v655 = vunpack.c.h.b16 %v611
  %v656 = vunpack.c.l.b16 %v612
  %v657 = vunpack.c.h.b16 %v612
  %v658 = vunpack.c.l.b16 %v613
  %v659 = vunpack.c.h.b16 %v613
  %v660 = vunpack.c.l.b16 %v614
  %v661 = vunpack.c.h.b16 %v614
  %v662 = vunpack.c.l.b16 %v615
  %v663 = vunpack.c.h.b16 %v615
  %v664 = vpack.c.b16 %v632, %v632
  %v665 = vpack.c.b16 %v633, %v633
  %v666 = vpack.c.b16 %v634, %v634
  %v667 = vpack.c.b16 %v635, %v635
  %v668 = vpack.c.b16 %v636, %v636
  %v669 = vpack.c.b16 %v637, %v637
  %v670 = vpack.c.b16 %v638, %v638
  %v671 = vpack.c.b16 %v639, %v639
  %v672 = vpack.c.b16 %v640, %v640
  %v673 = vpack.c.b16 %v641, %v641
  %v674 = vpack.c.b16 %v642, %v642
  %v675 = vpack.c.b16 %v643, %v643
  %v676 = vpack.c.b16 %v644, %v644
  %v677 = vpack.c.b16 %v645, %v645
  %v678 = vpack.c.b16 %v646, %v646
  %v679 = vpack.c.b16 %v647, %v647
  %v680 = vpack.c.b16 %v648, %v648
  %v681 = vpack.c.b16 %v649, %v649
  %v682 = vpack.c.b16 %v650, %v650
  %v683 = vpack.c.b16 %v651, %v651
  %v684 = vpack.c.b16 %v652, %v652
  %v685 = vpack.c.b16 %v653, %v653
  %v686 = vpack.c.b16 %v654, %v654
  %v687 = vpack.c.b16 %v655, %v655
  %v688 = vpack.c.b16 %v656, %v656
  %v689 = vpack.c.b16 %v657, %v657
  %v690 = vpack.c.b16 %v658, %v658
  %v691 = vpack.c.b16 %v659, %v659
  %v692 = vpack.c.b16 %v660, %v660
  %v693 = vpack.c.b16 %v661, %v661
  %v694 = vpack.c.b16 %v662, %v662
  %v695 = vpack.c.b16 %v663, %v663
  %728 = vst [vmem:[%s6] sm:$0xf] %v664
  %729 = vst [vmem:[%s6 + $0x4] sm:$0xf] %v665
  %730 = vst [vmem:[%s6 + $0x8] sm:$0xf] %v666
  %731 = vst [vmem:[%s6 + $0xc] sm:$0xf] %v667
  %732 = vst [vmem:[%s6 + $0x10] sm:$0xf] %v668
  %733 = vst [vmem:[%s6 + $0x14] sm:$0xf] %v669
  %734 = vst [vmem:[%s6 + $0x18] sm:$0xf] %v670
  %735 = vst [vmem:[%s6 + $0x1c] sm:$0xf] %v671
  %736 = vst [vmem:[%s6 + $0x20] sm:$0xf] %v672
  %737 = vst [vmem:[%s6 + $0x24] sm:$0xf] %v673
  %738 = vst [vmem:[%s6 + $0x28] sm:$0xf] %v674
  %739 = vst [vmem:[%s6 + $0x2c] sm:$0xf] %v675
  %740 = vst [vmem:[%s6 + $0x30] sm:$0xf] %v676
  %741 = vst [vmem:[%s6 + $0x34] sm:$0xf] %v677
  %742 = vst [vmem:[%s6 + $0x38] sm:$0xf] %v678
  %743 = vst [vmem:[%s6 + $0x3c] sm:$0xf] %v679
  %744 = vst [vmem:[%s6 + $0x40] sm:$0xf] %v680
  %745 = vst [vmem:[%s6 + $0x44] sm:$0xf] %v681
  %746 = vst [vmem:[%s6 + $0x48] sm:$0xf] %v682
  %747 = vst [vmem:[%s6 + $0x4c] sm:$0xf] %v683
  %748 = vst [vmem:[%s6 + $0x50] sm:$0xf] %v684
  %749 = vst [vmem:[%s6 + $0x54] sm:$0xf] %v685
  %750 = vst [vmem:[%s6 + $0x58] sm:$0xf] %v686
  %751 = vst [vmem:[%s6 + $0x5c] sm:$0xf] %v687
  %752 = vst [vmem:[%s6 + $0x60] sm:$0xf] %v688
  %753 = vst [vmem:[%s6 + $0x64] sm:$0xf] %v689
  %754 = vst [vmem:[%s6 + $0x68] sm:$0xf] %v690
  %755 = vst [vmem:[%s6 + $0x6c] sm:$0xf] %v691
  %756 = vst [vmem:[%s6 + $0x70] sm:$0xf] %v692
  %757 = vst [vmem:[%s6 + $0x74] sm:$0xf] %v693
  %758 = vst [vmem:[%s6 + $0x78] sm:$0xf] %v694
  %759 = vst [vmem:[%s6 + $0x7c] sm:$0xf] %v695
  // Predicated region
  $region26: #{_lambda_.28} parent=0 // pred_check
    _
  $region27: #{_lambda_.28} parent=0 // pred_check_branch
    %761 = sbr.rel (0) target = $region29
  $region28: #{_lambda_.28} parent=0 // pred_region
    _
  $region29: #{_lambda_.28} parent=0 // pred_fallthru
    _
  // Predicated region
  $region30: #{_lambda_.28} parent=0 // pred_check
    _
  $region31: #{_lambda_.28} parent=0 // pred_check_branch
    %763 = sbr.rel (0) target = $region33
  $region32: #{_lambda_.28} parent=0 // pred_region
    _
  $region33: #{_lambda_.28} parent=0 // pred_fallthru
    _

// kernel: _lambda_.25
$region0: #{_lambda_.25}
  #allocation0 [shape = 'u32[]', space=smem, size = 0x4, offset = 0x4, fixed_abs, tag = 'smem constant byte address 0x4 - core index']
  #allocation1 [shape = 'u32[144,128]{1,0:T(1,128)}', space=vmem, size = 0x12000, scoped, tag = 'internal scratch']
  %s0 = inlined_call_operand.vmem [shape: bf16[256,1152], index: 0, kind: input, shape index: {}]
  %s1 = inlined_call_operand.vmem [shape: bf16[1152,128], index: 1, kind: input, shape index: {}]
  %s2 = inlined_call_operand.vmem [shape: f32[1,128], index: 2, kind: input, shape index: {}]
  %s3 = inlined_call_operand.vmem [shape: bf16[256,128], index: 3, kind: output, shape index: {}]
  %s4 = sld [smem:[#allocation0]]
  $region45: #{_lambda_.25} parent=0
    _
  %s6 = ssub.s32 1, %s4
  %s7 = scalar_select 0, %s6, %s4
  loop: start=0, step=1, limit=4
  $region2: #{_lambda_.25} parent=0 // loop_pre_header
    _
  $region3: #{_lambda_.25} parent=0 // loop_header
    %s9 = sphi 0, %s13
    %p10 = scmp.ge.s32.totalorder %s9, 4
    %s16 = sphi 0, %s28
    %s17 = sphi 0, %s24
    %s18 = sphi 0, %s16
    %s19 = sphi 0, %s17
    %s20 = sphi 0, %s18
    %s21 = sphi 0, %s19
    %s31 = sphi 0, %s33
    %s34 = sphi 0, %s31
    %s35 = sphi 0, %s34
    %s51 = sphi 0, %s35
    %s57 = sphi 0, %s59
    %s60 = sphi 0, %s57
    %s61 = sphi 0, %s60
    %s77 = sphi 0, %s61
    %s83 = sphi 0, %s85
    %s86 = sphi 0, %s83
    %s87 = sphi 0, %s86
    %s103 = sphi 0, %s87
    %s111 = sphi 0, %s113
    %s114 = sphi 0, %s111
    %s115 = sphi 0, %s114
    %s131 = sphi 0, %s115
  $region4: #{_lambda_.25} parent=0 // loop_header_branch
    %12 = sbr.rel (%p10) target = $region8
  $region5: #{_lambda_.25} parent=0 // loop_body
    %s14 = ssub.s32 %s9, 1
    %s15 = ssub.s32 %s9, 2
    %s22 = sadd.s32 1, %s17
    %p23 = scmp.ge.s32.totalorder %s22, 1
    %s24 = scalar_select %p23, 0, %s22
    %s25 = sadd.s32 1, %s16
    %s26 = scalar_select %p23, %s25, %s16
    %p27 = scmp.ge.s32.totalorder %s26, 2
    %s28 = scalar_select %p27, 0, %s26
    %s29 = ssub.s32 %s16, %s28
    %p30 = scmp.eq.s32.totalorder %s29, 0
    %s32 = sadd.s32 %s31, 1
    %s33 = scalar_select %p30, %s31, %s32
    %p36 = pneg %p30
    %p37 = scmp.eq.s32.totalorder %s9, 1
    %p38 = por %p36, %p37
    %p39 = scmp.ne.s32.totalorder %s31, %s34
    %p40 = scmp.eq.s32.totalorder %s9, 0
    %p41 = por %p39, %p40
    %p42 = scmp.ne.s32.totalorder %s31, %s34
    %p43 = scmp.eq.s32.totalorder %s14, 1
    %p44 = por %p42, %p43
    %p45 = scmp.ne.s32.totalorder %s34, %s35
    %p46 = scmp.eq.s32.totalorder %s14, 0
    %p47 = por %p45, %p46
    %p48 = scmp.ne.s32.totalorder %s34, %s35
    %p49 = scmp.eq.s32.totalorder %s15, 1
    %p50 = por %p48, %p49
    %p52 = scmp.ne.s32.totalorder %s35, %s51
    %p53 = scmp.eq.s32.totalorder %s15, 0
    %p54 = por %p52, %p53
    %s55 = ssub.s32 %s17, %s24
    %p56 = scmp.eq.s32.totalorder %s55, 0
    %s58 = sadd.s32 %s57, 1
    %s59 = scalar_select %p56, %s57, %s58
    %p62 = pneg %p56
    %p63 = scmp.eq.s32.totalorder %s9, 1
    %p64 = por %p62, %p63
    %p65 = scmp.ne.s32.totalorder %s57, %s60
    %p66 = scmp.eq.s32.totalorder %s9, 0
    %p67 = por %p65, %p66
    %p68 = scmp.ne.s32.totalorder %s57, %s60
    %p69 = scmp.eq.s32.totalorder %s14, 1
    %p70 = por %p68, %p69
    %p71 = scmp.ne.s32.totalorder %s60, %s61
    %p72 = scmp.eq.s32.totalorder %s14, 0
    %p73 = por %p71, %p72
    %p74 = scmp.ne.s32.totalorder %s60, %s61
    %p75 = scmp.eq.s32.totalorder %s15, 1
    %p76 = por %p74, %p75
    %p78 = scmp.ne.s32.totalorder %s61, %s77
    %p79 = scmp.eq.s32.totalorder %s15, 0
    %p80 = por %p78, %p79
    %s81 = ssub.s32 %s17, %s24
    %p82 = scmp.eq.s32.totalorder %s81, 0
    %s84 = sadd.s32 %s83, 1
    %s85 = scalar_select %p82, %s83, %s84
    %p88 = pneg %p82
    %p89 = scmp.eq.s32.totalorder %s9, 1
    %p90 = por %p88, %p89
    %p91 = scmp.ne.s32.totalorder %s83, %s86
    %p92 = scmp.eq.s32.totalorder %s9, 0
    %p93 = por %p91, %p92
    %p94 = scmp.ne.s32.totalorder %s83, %s86
    %p95 = scmp.eq.s32.totalorder %s14, 1
    %p96 = por %p94, %p95
    %p97 = scmp.ne.s32.totalorder %s86, %s87
    %p98 = scmp.eq.s32.totalorder %s14, 0
    %p99 = por %p97, %p98
    %p100 = scmp.ne.s32.totalorder %s86, %s87
    %p101 = scmp.eq.s32.totalorder %s15, 1
    %p102 = por %p100, %p101
    %p104 = scmp.ne.s32.totalorder %s87, %s103
    %p105 = scmp.eq.s32.totalorder %s15, 0
    %p106 = por %p104, %p105
    %s107 = ssub.s32 %s16, %s28
    %s108 = ssub.s32 %s17, %s24
    %s109 = sor.u32 %s107, %s108
    %p110 = scmp.eq.s32.totalorder %s109, 0
    %s112 = sadd.s32 %s111, 1
    %s113 = scalar_select %p110, %s111, %s112
    %p116 = pneg %p110
    %p117 = scmp.eq.s32.totalorder %s9, 1
    %p118 = por %p116, %p117
    %p119 = scmp.ne.s32.totalorder %s111, %s114
    %p120 = scmp.eq.s32.totalorder %s9, 0
    %p121 = por %p119, %p120
    %p122 = scmp.ne.s32.totalorder %s111, %s114
    %p123 = scmp.eq.s32.totalorder %s14, 1
    %p124 = por %p122, %p123
    %p125 = scmp.ne.s32.totalorder %s114, %s115
    %p126 = scmp.eq.s32.totalorder %s14, 0
    %p127 = por %p125, %p126
    %p128 = scmp.ne.s32.totalorder %s114, %s115
    %p129 = scmp.eq.s32.totalorder %s15, 1
    %p130 = por %p128, %p129
    %p132 = scmp.ne.s32.totalorder %s115, %s131
    %p133 = scmp.eq.s32.totalorder %s15, 0
    %p134 = por %p132, %p133
    %p135 = scmp.le.s32.totalorder 1, %s9
    %p136 = scmp.lt.s32.totalorder %s9, 3
    %p137 = pnand %p135, %p136
    %p138 = pneg %p137
    // Predicated region
    $region9: #{_lambda_.25} parent=5 // pred_check
      _
    $region10: #{_lambda_.25} parent=5 // pred_check_branch
      %140 = sbr.rel (%p137) target = $region12
    $region11: #{_lambda_.25} parent=5 // pred_region
      %s141 = ssub.s32 %s9, 1
      // Predicated region
      $region13: #{_lambda_.25} parent=11 // pred_check
        %p142 = pneg %p73
      $region14: #{_lambda_.25} parent=11 // pred_check_branch
        %144 = sbr.rel (%p142) target = $region16
      $region15: #{_lambda_.25} parent=11 // pred_region
        %p145 = scmp.lt.s32.totalorder %s19, 0
        %s146 = scalar_select %p145, %s19, 0
        %s147 = smul.addr %s146, 4
        %s148 = scalar_lea.vmem %s1, %s147
      $region16: #{_lambda_.25} parent=11 // pred_fallthru
        _
      // Predicated region
      $region17: #{_lambda_.25} parent=11 // pred_check
        %p149 = pneg %p99
      $region18: #{_lambda_.25} parent=11 // pred_check_branch
        %151 = sbr.rel (%p149) target = $region20
      $region19: #{_lambda_.25} parent=11 // pred_region
        %p152 = scmp.lt.s32.totalorder %s19, 0
        %s153 = scalar_select %p152, %s19, 0
        %s154 = scalar_lea.vmem %s2, %s153
      $region20: #{_lambda_.25} parent=11 // pred_fallthru
        _
    $region12: #{_lambda_.25} parent=5 // pred_fallthru
      _
    %p155 = scmp.lt.s32.totalorder %s9, 2
    // Predicated region
    $region21: #{_lambda_.25} parent=5 // pred_check
      %p156 = pneg %p155
    $region22: #{_lambda_.25} parent=5 // pred_check_branch
      %158 = sbr.rel (%p156) target = $region24
    $region23: #{_lambda_.25} parent=5 // pred_region
      // Predicated region
      $region25: #{_lambda_.25} parent=23 // pred_check
        %p159 = pneg %p41
      $region26: #{_lambda_.25} parent=23 // pred_check_branch
        %161 = sbr.rel (%p159) target = $region28
      $region27: #{_lambda_.25} parent=23 // pred_region
        %s162 = smul.u32 16, %s16
        %p163 = scmp.lt.s32.totalorder %s162, 31
        %s164 = scalar_select %p163, %s162, 31
        %s165 = smul.addr %s164, 9
        %s166 = smul.addr %s165, 4
        %s167 = scalar_lea.vmem %s0, %s166
        %s168 = smul.u32 16, %s16
      $region28: #{_lambda_.25} parent=23 // pred_fallthru
        _
    $region24: #{_lambda_.25} parent=5 // pred_fallthru
      _
    %p169 = scmp.le.s32.totalorder 1, %s9
    %p170 = scmp.lt.s32.totalorder %s9, 3
    %p171 = pnand %p169, %p170
    %p172 = pneg %p171
    // Predicated region
    $region29: #{_lambda_.25} parent=5 // pred_check
      _
    $region30: #{_lambda_.25} parent=5 // pred_check_branch
      %174 = sbr.rel (%p171) target = $region32
    $region31: #{_lambda_.25} parent=5 // pred_region
      %s175 = ssub.s32 %s9, 1
      %s176 = smul.u32 16, %s18
      %p177 = scmp.lt.s32.totalorder %s176, 31
      %s178 = scalar_select %p177, %s176, 31
      %s179 = smul.addr %s178, 9
      %s180 = smul.addr %s179, 4
      %s181 = scalar_lea.vmem %s0, %s180
      %p182 = pneg %p47
      %p183 = pneg %p44
      %p184 = scmp.lt.s32.totalorder %s19, 0
      %s185 = scalar_select %p184, %s19, 0
      %s186 = smul.addr %s185, 4
      %s187 = scalar_lea.vmem %s1, %s186
      %p188 = pneg %p73
      %p189 = pneg %p70
      %p190 = scmp.lt.s32.totalorder %s19, 0
      %s191 = scalar_select %p190, %s19, 0
      %s192 = scalar_lea.vmem %s2, %s191
      %p193 = pneg %p99
      %p194 = pneg %p96
      %p195 = pneg %p127
      %p196 = pneg %p124
      %s197 = smul.u32 16, %s18
      %p198 = scmp.lt.s32.totalorder %s197, 31
      %s199 = scalar_select %p198, %s197, 31
      %p200 = scmp.lt.s32.totalorder %s19, 0
      %s201 = scalar_select %p200, %s19, 0
      %s202 = sadd.s32 %s201, %s199
      %s203 = smul.addr %s202, 4
      %s204 = scalar_lea.vmem %s3, %s203
      %s205 = smul.u32 16, %s18
      %p206 = scmp.lt.s32.totalorder %s205, 31
      %s207 = scalar_select %p206, %s205, 31
      %s208 = smul.addr %s207, 9
      %s209 = smul.addr %s208, 4
      %s210 = scalar_lea.vmem %s0, %s209
      %s211 = smul.u32 16, %s18
      %p212 = scmp.lt.s32.totalorder %s19, 0
      %s213 = scalar_select %p212, %s19, 0
      %s214 = smul.addr %s213, 4
      %s215 = scalar_lea.vmem %s1, %s214
      %p216 = scmp.lt.s32.totalorder %s19, 0
      %s217 = scalar_select %p216, %s19, 0
      %s218 = scalar_lea.vmem %s2, %s217
      %s219 = smul.u32 16, %s18
      %p220 = scmp.lt.s32.totalorder %s219, 31
      %s221 = scalar_select %p220, %s219, 31
      %p222 = scmp.lt.s32.totalorder %s19, 0
      %s223 = scalar_select %p222, %s19, 0
      %s224 = sadd.s32 %s223, %s221
      %s225 = smul.addr %s224, 4
      %s226 = scalar_lea.vmem %s3, %s225
      %s227 = smul.u32 16, %s18
      %v229 = vld [vmem:[%s210] sm:$0xff]
      %v230 = vld [vmem:[%s210 + $0x8] sm:$0xff]
      %v231 = vld [vmem:[%s210 + $0x10] sm:$0xff]
      %v232 = vld [vmem:[%s210 + $0x18] sm:$0xff]
      %v233 = vld [vmem:[%s210 + $0x20] sm:$0xf]
      %v234 = vld [vmem:[%s210 + $0x24] sm:$0xff]
      %v235 = vld [vmem:[%s210 + $0x2c] sm:$0xff]
      %v236 = vld [vmem:[%s210 + $0x34] sm:$0xff]
      %v237 = vld [vmem:[%s210 + $0x3c] sm:$0xff]
      %v238 = vld [vmem:[%s210 + $0x44] sm:$0xf]
      %v239 = vld [vmem:[%s210 + $0x48] sm:$0xff]
      %v240 = vld [vmem:[%s210 + $0x50] sm:$0xff]
      %v241 = vld [vmem:[%s210 + $0x58] sm:$0xff]
      %v242 = vld [vmem:[%s210 + $0x60] sm:$0xff]
      %v243 = vld [vmem:[%s210 + $0x68] sm:$0xf]
      %v244 = vld [vmem:[%s210 + $0x6c] sm:$0xff]
      %v245 = vld [vmem:[%s210 + $0x74] sm:$0xff]
      %v246 = vld [vmem:[%s210 + $0x7c] sm:$0xff]
      %v247 = vld [vmem:[%s210 + $0x84] sm:$0xff]
      %v248 = vld [vmem:[%s210 + $0x8c] sm:$0xf]
      %v249 = vld [vmem:[%s210 + $0x90] sm:$0xff]
      %v250 = vld [vmem:[%s210 + $0x98] sm:$0xff]
      %v251 = vld [vmem:[%s210 + $0xa0] sm:$0xff]
      %v252 = vld [vmem:[%s210 + $0xa8] sm:$0xff]
      %v253 = vld [vmem:[%s210 + $0xb0] sm:$0xf]
      %v254 = vld [vmem:[%s210 + $0xb4] sm:$0xff]
      %v255 = vld [vmem:[%s210 + $0xbc] sm:$0xff]
      %v256 = vld [vmem:[%s210 + $0xc4] sm:$0xff]
      %v257 = vld [vmem:[%s210 + $0xcc] sm:$0xff]
      %v258 = vld [vmem:[%s210 + $0xd4] sm:$0xf]
      %v259 = vld [vmem:[%s210 + $0xd8] sm:$0xff]
      %v260 = vld [vmem:[%s210 + $0xe0] sm:$0xff]
      %v261 = vld [vmem:[%s210 + $0xe8] sm:$0xff]
      %v262 = vld [vmem:[%s210 + $0xf0] sm:$0xff]
      %v263 = vld [vmem:[%s210 + $0xf8] sm:$0xf]
      %v264 = vld [vmem:[%s210 + $0xfc] sm:$0xff]
      %v265 = vld [vmem:[%s210 + $0x104] sm:$0xff]
      %v266 = vld [vmem:[%s210 + $0x10c] sm:$0xff]
      %v267 = vld [vmem:[%s210 + $0x114] sm:$0xff]
      %v268 = vld [vmem:[%s210 + $0x11c] sm:$0xf]
      %v269 = vld [vmem:[%s210 + $0x120] sm:$0xff]
      %v270 = vld [vmem:[%s210 + $0x128] sm:$0xff]
      %v271 = vld [vmem:[%s210 + $0x130] sm:$0xff]
      %v272 = vld [vmem:[%s210 + $0x138] sm:$0xff]
      %v273 = vld [vmem:[%s210 + $0x140] sm:$0xf]
      %v274 = vld [vmem:[%s210 + $0x144] sm:$0xff]
      %v275 = vld [vmem:[%s210 + $0x14c] sm:$0xff]
      %v276 = vld [vmem:[%s210 + $0x154] sm:$0xff]
      %v277 = vld [vmem:[%s210 + $0x15c] sm:$0xff]
      %v278 = vld [vmem:[%s210 + $0x164] sm:$0xf]
      %v279 = vld [vmem:[%s210 + $0x168] sm:$0xff]
      %v280 = vld [vmem:[%s210 + $0x170] sm:$0xff]
      %v281 = vld [vmem:[%s210 + $0x178] sm:$0xff]
      %v282 = vld [vmem:[%s210 + $0x180] sm:$0xff]
      %v283 = vld [vmem:[%s210 + $0x188] sm:$0xf]
      %v284 = vld [vmem:[%s210 + $0x18c] sm:$0xff]
      %v285 = vld [vmem:[%s210 + $0x194] sm:$0xff]
      %v286 = vld [vmem:[%s210 + $0x19c] sm:$0xff]
      %v287 = vld [vmem:[%s210 + $0x1a4] sm:$0xff]
      %v288 = vld [vmem:[%s210 + $0x1ac] sm:$0xf]
      %v289 = vld [vmem:[%s210 + $0x1b0] sm:$0xff]
      %v290 = vld [vmem:[%s210 + $0x1b8] sm:$0xff]
      %v291 = vld [vmem:[%s210 + $0x1c0] sm:$0xff]
      %v292 = vld [vmem:[%s210 + $0x1c8] sm:$0xff]
      %v293 = vld [vmem:[%s210 + $0x1d0] sm:$0xf]
      %v294 = vld [vmem:[%s210 + $0x1d4] sm:$0xff]
      %v295 = vld [vmem:[%s210 + $0x1dc] sm:$0xff]
      %v296 = vld [vmem:[%s210 + $0x1e4] sm:$0xff]
      %v297 = vld [vmem:[%s210 + $0x1ec] sm:$0xff]
      %v298 = vld [vmem:[%s210 + $0x1f4] sm:$0xf]
      %v299 = vld [vmem:[%s210 + $0x1f8] sm:$0xff]
      %v300 = vld [vmem:[%s210 + $0x200] sm:$0xff]
      %v301 = vld [vmem:[%s210 + $0x208] sm:$0xff]
      %v302 = vld [vmem:[%s210 + $0x210] sm:$0xff]
      %v303 = vld [vmem:[%s210 + $0x218] sm:$0xf]
      %v304 = vld [vmem:[%s210 + $0x21c] sm:$0xff]
      %v305 = vld [vmem:[%s210 + $0x224] sm:$0xff]
      %v306 = vld [vmem:[%s210 + $0x22c] sm:$0xff]
      %v307 = vld [vmem:[%s210 + $0x234] sm:$0xff]
      %v308 = vld [vmem:[%s210 + $0x23c] sm:$0xf]
      %v309 = vld [vmem:[%s215] sm:$0xf]
      %v310 = vld [vmem:[%s215 + $0x4] sm:$0xf]
      %v311 = vld [vmem:[%s215 + $0x8] sm:$0xf]
      %v312 = vld [vmem:[%s215 + $0xc] sm:$0xf]
      %v313 = vld [vmem:[%s215 + $0x10] sm:$0xf]
      %v314 = vld [vmem:[%s215 + $0x14] sm:$0xf]
      %v315 = vld [vmem:[%s215 + $0x18] sm:$0xf]
      %v316 = vld [vmem:[%s215 + $0x1c] sm:$0xf]
      %v317 = vld [vmem:[%s215 + $0x20] sm:$0xf]
      %v318 = vld [vmem:[%s215 + $0x24] sm:$0xf]
      %v319 = vld [vmem:[%s215 + $0x28] sm:$0xf]
      %v320 = vld [vmem:[%s215 + $0x2c] sm:$0xf]
      %v321 = vld [vmem:[%s215 + $0x30] sm:$0xf]
      %v322 = vld [vmem:[%s215 + $0x34] sm:$0xf]
      %v323 = vld [vmem:[%s215 + $0x38] sm:$0xf]
      %v324 = vld [vmem:[%s215 + $0x3c] sm:$0xf]
      %v325 = vld [vmem:[%s215 + $0x40] sm:$0xf]
      %v326 = vld [vmem:[%s215 + $0x44] sm:$0xf]
      %v327 = vld [vmem:[%s215 + $0x48] sm:$0xf]
      %v328 = vld [vmem:[%s215 + $0x4c] sm:$0xf]
      %v329 = vld [vmem:[%s215 + $0x50] sm:$0xf]
      %v330 = vld [vmem:[%s215 + $0x54] sm:$0xf]
      %v331 = vld [vmem:[%s215 + $0x58] sm:$0xf]
      %v332 = vld [vmem:[%s215 + $0x5c] sm:$0xf]
      %v333 = vld [vmem:[%s215 + $0x60] sm:$0xf]
      %v334 = vld [vmem:[%s215 + $0x64] sm:$0xf]
      %v335 = vld [vmem:[%s215 + $0x68] sm:$0xf]
      %v336 = vld [vmem:[%s215 + $0x6c] sm:$0xf]
      %v337 = vld [vmem:[%s215 + $0x70] sm:$0xf]
      %v338 = vld [vmem:[%s215 + $0x74] sm:$0xf]
      %v339 = vld [vmem:[%s215 + $0x78] sm:$0xf]
      %v340 = vld [vmem:[%s215 + $0x7c] sm:$0xf]
      %v341 = vld [vmem:[%s215 + $0x80] sm:$0xf]
      %v342 = vld [vmem:[%s215 + $0x84] sm:$0xf]
      %v343 = vld [vmem:[%s215 + $0x88] sm:$0xf]
      %v344 = vld [vmem:[%s215 + $0x8c] sm:$0xf]
      %v345 = vld [vmem:[%s215 + $0x90] sm:$0xf]
      %v346 = vld [vmem:[%s215 + $0x94] sm:$0xf]
      %v347 = vld [vmem:[%s215 + $0x98] sm:$0xf]
      %v348 = vld [vmem:[%s215 + $0x9c] sm:$0xf]
      %v349 = vld [vmem:[%s215 + $0xa0] sm:$0xf]
      %v350 = vld [vmem:[%s215 + $0xa4] sm:$0xf]
      %v351 = vld [vmem:[%s215 + $0xa8] sm:$0xf]
      %v352 = vld [vmem:[%s215 + $0xac] sm:$0xf]
      %v353 = vld [vmem:[%s215 + $0xb0] sm:$0xf]
      %v354 = vld [vmem:[%s215 + $0xb4] sm:$0xf]
      %v355 = vld [vmem:[%s215 + $0xb8] sm:$0xf]
      %v356 = vld [vmem:[%s215 + $0xbc] sm:$0xf]
      %v357 = vld [vmem:[%s215 + $0xc0] sm:$0xf]
      %v358 = vld [vmem:[%s215 + $0xc4] sm:$0xf]
      %v359 = vld [vmem:[%s215 + $0xc8] sm:$0xf]
      %v360 = vld [vmem:[%s215 + $0xcc] sm:$0xf]
      %v361 = vld [vmem:[%s215 + $0xd0] sm:$0xf]
      %v362 = vld [vmem:[%s215 + $0xd4] sm:$0xf]
      %v363 = vld [vmem:[%s215 + $0xd8] sm:$0xf]
      %v364 = vld [vmem:[%s215 + $0xdc] sm:$0xf]
      %v365 = vld [vmem:[%s215 + $0xe0] sm:$0xf]
      %v366 = vld [vmem:[%s215 + $0xe4] sm:$0xf]
      %v367 = vld [vmem:[%s215 + $0xe8] sm:$0xf]
      %v368 = vld [vmem:[%s215 + $0xec] sm:$0xf]
      %v369 = vld [vmem:[%s215 + $0xf0] sm:$0xf]
      %v370 = vld [vmem:[%s215 + $0xf4] sm:$0xf]
      %v371 = vld [vmem:[%s215 + $0xf8] sm:$0xf]
      %v372 = vld [vmem:[%s215 + $0xfc] sm:$0xf]
      %v373 = vld [vmem:[%s215 + $0x100] sm:$0xf]
      %v374 = vld [vmem:[%s215 + $0x104] sm:$0xf]
      %v375 = vld [vmem:[%s215 + $0x108] sm:$0xf]
      %v376 = vld [vmem:[%s215 + $0x10c] sm:$0xf]
      %v377 = vld [vmem:[%s215 + $0x110] sm:$0xf]
      %v378 = vld [vmem:[%s215 + $0x114] sm:$0xf]
      %v379 = vld [vmem:[%s215 + $0x118] sm:$0xf]
      %v380 = vld [vmem:[%s215 + $0x11c] sm:$0xf]
      %v381 = vld [vmem:[%s215 + $0x120] sm:$0xf]
      %v382 = vld [vmem:[%s215 + $0x124] sm:$0xf]
      %v383 = vld [vmem:[%s215 + $0x128] sm:$0xf]
      %v384 = vld [vmem:[%s215 + $0x12c] sm:$0xf]
      %v385 = vld [vmem:[%s215 + $0x130] sm:$0xf]
      %v386 = vld [vmem:[%s215 + $0x134] sm:$0xf]
      %v387 = vld [vmem:[%s215 + $0x138] sm:$0xf]
      %v388 = vld [vmem:[%s215 + $0x13c] sm:$0xf]
      %v389 = vld [vmem:[%s215 + $0x140] sm:$0xf]
      %v390 = vld [vmem:[%s215 + $0x144] sm:$0xf]
      %v391 = vld [vmem:[%s215 + $0x148] sm:$0xf]
      %v392 = vld [vmem:[%s215 + $0x14c] sm:$0xf]
      %v393 = vld [vmem:[%s215 + $0x150] sm:$0xf]
      %v394 = vld [vmem:[%s215 + $0x154] sm:$0xf]
      %v395 = vld [vmem:[%s215 + $0x158] sm:$0xf]
      %v396 = vld [vmem:[%s215 + $0x15c] sm:$0xf]
      %v397 = vld [vmem:[%s215 + $0x160] sm:$0xf]
      %v398 = vld [vmem:[%s215 + $0x164] sm:$0xf]
      %v399 = vld [vmem:[%s215 + $0x168] sm:$0xf]
      %v400 = vld [vmem:[%s215 + $0x16c] sm:$0xf]
      %v401 = vld [vmem:[%s215 + $0x170] sm:$0xf]
      %v402 = vld [vmem:[%s215 + $0x174] sm:$0xf]
      %v403 = vld [vmem:[%s215 + $0x178] sm:$0xf]
      %v404 = vld [vmem:[%s215 + $0x17c] sm:$0xf]
      %v405 = vld [vmem:[%s215 + $0x180] sm:$0xf]
      %v406 = vld [vmem:[%s215 + $0x184] sm:$0xf]
      %v407 = vld [vmem:[%s215 + $0x188] sm:$0xf]
      %v408 = vld [vmem:[%s215 + $0x18c] sm:$0xf]
      %v409 = vld [vmem:[%s215 + $0x190] sm:$0xf]
      %v410 = vld [vmem:[%s215 + $0x194] sm:$0xf]
      %v411 = vld [vmem:[%s215 + $0x198] sm:$0xf]
      %v412 = vld [vmem:[%s215 + $0x19c] sm:$0xf]
      %v413 = vld [vmem:[%s215 + $0x1a0] sm:$0xf]
      %v414 = vld [vmem:[%s215 + $0x1a4] sm:$0xf]
      %v415 = vld [vmem:[%s215 + $0x1a8] sm:$0xf]
      %v416 = vld [vmem:[%s215 + $0x1ac] sm:$0xf]
      %v417 = vld [vmem:[%s215 + $0x1b0] sm:$0xf]
      %v418 = vld [vmem:[%s215 + $0x1b4] sm:$0xf]
      %v419 = vld [vmem:[%s215 + $0x1b8] sm:$0xf]
      %v420 = vld [vmem:[%s215 + $0x1bc] sm:$0xf]
      %v421 = vld [vmem:[%s215 + $0x1c0] sm:$0xf]
      %v422 = vld [vmem:[%s215 + $0x1c4] sm:$0xf]
      %v423 = vld [vmem:[%s215 + $0x1c8] sm:$0xf]
      %v424 = vld [vmem:[%s215 + $0x1cc] sm:$0xf]
      %v425 = vld [vmem:[%s215 + $0x1d0] sm:$0xf]
      %v426 = vld [vmem:[%s215 + $0x1d4] sm:$0xf]
      %v427 = vld [vmem:[%s215 + $0x1d8] sm:$0xf]
      %v428 = vld [vmem:[%s215 + $0x1dc] sm:$0xf]
      %v429 = vld [vmem:[%s215 + $0x1e0] sm:$0xf]
      %v430 = vld [vmem:[%s215 + $0x1e4] sm:$0xf]
      %v431 = vld [vmem:[%s215 + $0x1e8] sm:$0xf]
      %v432 = vld [vmem:[%s215 + $0x1ec] sm:$0xf]
      %v433 = vld [vmem:[%s215 + $0x1f0] sm:$0xf]
      %v434 = vld [vmem:[%s215 + $0x1f4] sm:$0xf]
      %v435 = vld [vmem:[%s215 + $0x1f8] sm:$0xf]
      %v436 = vld [vmem:[%s215 + $0x1fc] sm:$0xf]
      %v437 = vld [vmem:[%s215 + $0x200] sm:$0xf]
      %v438 = vld [vmem:[%s215 + $0x204] sm:$0xf]
      %v439 = vld [vmem:[%s215 + $0x208] sm:$0xf]
      %v440 = vld [vmem:[%s215 + $0x20c] sm:$0xf]
      %v441 = vld [vmem:[%s215 + $0x210] sm:$0xf]
      %v442 = vld [vmem:[%s215 + $0x214] sm:$0xf]
      %v443 = vld [vmem:[%s215 + $0x218] sm:$0xf]
      %v444 = vld [vmem:[%s215 + $0x21c] sm:$0xf]
      %v445 = vld [vmem:[%s215 + $0x220] sm:$0xf]
      %v446 = vld [vmem:[%s215 + $0x224] sm:$0xf]
      %v447 = vld [vmem:[%s215 + $0x228] sm:$0xf]
      %v448 = vld [vmem:[%s215 + $0x22c] sm:$0xf]
      %v449 = vld [vmem:[%s215 + $0x230] sm:$0xf]
      %v450 = vld [vmem:[%s215 + $0x234] sm:$0xf]
      %v451 = vld [vmem:[%s215 + $0x238] sm:$0xf]
      %v452 = vld [vmem:[%s215 + $0x23c] sm:$0xf]
      %v453 = vld [vmem:[%s218] sm:$0x1]
      %v455 = vlaneseq
      %v456 = vshrl.u32 %v455, 7
      %v457 = vsub.s32 0, %v456
      %v458 = vrot.slane %v453, %v457
      %v540 = vunpack.c.l.b16 %v229
      %v541 = vunpack.c.h.b16 %v229
      %v542 = vunpack.c.l.b16 %v230
      %v543 = vunpack.c.h.b16 %v230
      %v544 = vunpack.c.l.b16 %v231
      %v545 = vunpack.c.h.b16 %v231
      %v546 = vunpack.c.l.b16 %v232
      %v547 = vunpack.c.h.b16 %v232
      %v548 = vunpack.c.l.b16 %v233
      %v549 = vunpack.c.l.b16 %v234
      %v550 = vunpack.c.h.b16 %v234
      %v551 = vunpack.c.l.b16 %v235
      %v552 = vunpack.c.h.b16 %v235
      %v553 = vunpack.c.l.b16 %v236
      %v554 = vunpack.c.h.b16 %v236
      %v555 = vunpack.c.l.b16 %v237
      %v556 = vunpack.c.h.b16 %v237
      %v557 = vunpack.c.l.b16 %v238
      %v558 = vunpack.c.l.b16 %v239
      %v559 = vunpack.c.h.b16 %v239
      %v560 = vunpack.c.l.b16 %v240
      %v561 = vunpack.c.h.b16 %v240
      %v562 = vunpack.c.l.b16 %v241
      %v563 = vunpack.c.h.b16 %v241
      %v564 = vunpack.c.l.b16 %v242
      %v565 = vunpack.c.h.b16 %v242
      %v566 = vunpack.c.l.b16 %v243
      %v567 = vunpack.c.l.b16 %v244
      %v568 = vunpack.c.h.b16 %v244
      %v569 = vunpack.c.l.b16 %v245
      %v570 = vunpack.c.h.b16 %v245
      %v571 = vunpack.c.l.b16 %v246
      %v572 = vunpack.c.h.b16 %v246
      %v573 = vunpack.c.l.b16 %v247
      %v574 = vunpack.c.h.b16 %v247
      %v575 = vunpack.c.l.b16 %v248
      %v576 = vunpack.c.l.b16 %v249
      %v577 = vunpack.c.h.b16 %v249
      %v578 = vunpack.c.l.b16 %v250
      %v579 = vunpack.c.h.b16 %v250
      %v580 = vunpack.c.l.b16 %v251
      %v581 = vunpack.c.h.b16 %v251
      %v582 = vunpack.c.l.b16 %v252
      %v583 = vunpack.c.h.b16 %v252
      %v584 = vunpack.c.l.b16 %v253
      %v585 = vunpack.c.l.b16 %v254
      %v586 = vunpack.c.h.b16 %v254
      %v587 = vunpack.c.l.b16 %v255
      %v588 = vunpack.c.h.b16 %v255
      %v589 = vunpack.c.l.b16 %v256
      %v590 = vunpack.c.h.b16 %v256
      %v591 = vunpack.c.l.b16 %v257
      %v592 = vunpack.c.h.b16 %v257
      %v593 = vunpack.c.l.b16 %v258
      %v594 = vunpack.c.l.b16 %v259
      %v595 = vunpack.c.h.b16 %v259
      %v596 = vunpack.c.l.b16 %v260
      %v597 = vunpack.c.h.b16 %v260
      %v598 = vunpack.c.l.b16 %v261
      %v599 = vunpack.c.h.b16 %v261
      %v600 = vunpack.c.l.b16 %v262
      %v601 = vunpack.c.h.b16 %v262
      %v602 = vunpack.c.l.b16 %v263
      %v603 = vunpack.c.l.b16 %v264
      %v604 = vunpack.c.h.b16 %v264
      %v605 = vunpack.c.l.b16 %v265
      %v606 = vunpack.c.h.b16 %v265
      %v607 = vunpack.c.l.b16 %v266
      %v608 = vunpack.c.h.b16 %v266
      %v609 = vunpack.c.l.b16 %v267
      %v610 = vunpack.c.h.b16 %v267
      %v611 = vunpack.c.l.b16 %v268
      %v612 = vunpack.c.l.b16 %v269
      %v613 = vunpack.c.h.b16 %v269
      %v614 = vunpack.c.l.b16 %v270
      %v615 = vunpack.c.h.b16 %v270
      %v616 = vunpack.c.l.b16 %v271
      %v617 = vunpack.c.h.b16 %v271
      %v618 = vunpack.c.l.b16 %v272
      %v619 = vunpack.c.h.b16 %v272
      %v620 = vunpack.c.l.b16 %v273
      %v621 = vunpack.c.l.b16 %v274
      %v622 = vunpack.c.h.b16 %v274
      %v623 = vunpack.c.l.b16 %v275
      %v624 = vunpack.c.h.b16 %v275
      %v625 = vunpack.c.l.b16 %v276
      %v626 = vunpack.c.h.b16 %v276
      %v627 = vunpack.c.l.b16 %v277
      %v628 = vunpack.c.h.b16 %v277
      %v629 = vunpack.c.l.b16 %v278
      %v630 = vunpack.c.l.b16 %v279
      %v631 = vunpack.c.h.b16 %v279
      %v632 = vunpack.c.l.b16 %v280
      %v633 = vunpack.c.h.b16 %v280
      %v634 = vunpack.c.l.b16 %v281
      %v635 = vunpack.c.h.b16 %v281
      %v636 = vunpack.c.l.b16 %v282
      %v637 = vunpack.c.h.b16 %v282
      %v638 = vunpack.c.l.b16 %v283
      %v639 = vunpack.c.l.b16 %v284
      %v640 = vunpack.c.h.b16 %v284
      %v641 = vunpack.c.l.b16 %v285
      %v642 = vunpack.c.h.b16 %v285
      %v643 = vunpack.c.l.b16 %v286
      %v644 = vunpack.c.h.b16 %v286
      %v645 = vunpack.c.l.b16 %v287
      %v646 = vunpack.c.h.b16 %v287
      %v647 = vunpack.c.l.b16 %v288
      %v648 = vunpack.c.l.b16 %v289
      %v649 = vunpack.c.h.b16 %v289
      %v650 = vunpack.c.l.b16 %v290
      %v651 = vunpack.c.h.b16 %v290
      %v652 = vunpack.c.l.b16 %v291
      %v653 = vunpack.c.h.b16 %v291
      %v654 = vunpack.c.l.b16 %v292
      %v655 = vunpack.c.h.b16 %v292
      %v656 = vunpack.c.l.b16 %v293
      %v657 = vunpack.c.l.b16 %v294
      %v658 = vunpack.c.h.b16 %v294
      %v659 = vunpack.c.l.b16 %v295
      %v660 = vunpack.c.h.b16 %v295
      %v661 = vunpack.c.l.b16 %v296
      %v662 = vunpack.c.h.b16 %v296
      %v663 = vunpack.c.l.b16 %v297
      %v664 = vunpack.c.h.b16 %v297
      %v665 = vunpack.c.l.b16 %v298
      %v666 = vunpack.c.l.b16 %v299
      %v667 = vunpack.c.h.b16 %v299
      %v668 = vunpack.c.l.b16 %v300
      %v669 = vunpack.c.h.b16 %v300
      %v670 = vunpack.c.l.b16 %v301
      %v671 = vunpack.c.h.b16 %v301
      %v672 = vunpack.c.l.b16 %v302
      %v673 = vunpack.c.h.b16 %v302
      %v674 = vunpack.c.l.b16 %v303
      %v675 = vunpack.c.l.b16 %v304
      %v676 = vunpack.c.h.b16 %v304
      %v677 = vunpack.c.l.b16 %v305
      %v678 = vunpack.c.h.b16 %v305
      %v679 = vunpack.c.l.b16 %v306
      %v680 = vunpack.c.h.b16 %v306
      %v681 = vunpack.c.l.b16 %v307
      %v682 = vunpack.c.h.b16 %v307
      %v683 = vunpack.c.l.b16 %v308
      %v684 = vpack.c.b16 %v549, %v540
      %v685 = vpack.c.b16 %v550, %v541
      %v686 = vpack.c.b16 %v551, %v542
      %v687 = vpack.c.b16 %v552, %v543
      %v688 = vpack.c.b16 %v553, %v544
      %v689 = vpack.c.b16 %v554, %v545
      %v690 = vpack.c.b16 %v555, %v546
      %v691 = vpack.c.b16 %v556, %v547
      %v692 = vpack.c.b16 %v557, %v548
      %v693 = vpack.c.b16 %v567, %v558
      %v694 = vpack.c.b16 %v568, %v559
      %v695 = vpack.c.b16 %v569, %v560
      %v696 = vpack.c.b16 %v570, %v561
      %v697 = vpack.c.b16 %v571, %v562
      %v698 = vpack.c.b16 %v572, %v563
      %v699 = vpack.c.b16 %v573, %v564
      %v700 = vpack.c.b16 %v574, %v565
      %v701 = vpack.c.b16 %v575, %v566
      %v702 = vpack.c.b16 %v585, %v576
      %v703 = vpack.c.b16 %v586, %v577
      %v704 = vpack.c.b16 %v587, %v578
      %v705 = vpack.c.b16 %v588, %v579
      %v706 = vpack.c.b16 %v589, %v580
      %v707 = vpack.c.b16 %v590, %v581
      %v708 = vpack.c.b16 %v591, %v582
      %v709 = vpack.c.b16 %v592, %v583
      %v710 = vpack.c.b16 %v593, %v584
      %v711 = vpack.c.b16 %v603, %v594
      %v712 = vpack.c.b16 %v604, %v595
      %v713 = vpack.c.b16 %v605, %v596
      %v714 = vpack.c.b16 %v606, %v597
      %v715 = vpack.c.b16 %v607, %v598
      %v716 = vpack.c.b16 %v608, %v599
      %v717 = vpack.c.b16 %v609, %v600
      %v718 = vpack.c.b16 %v610, %v601
      %v719 = vpack.c.b16 %v611, %v602
      %v720 = vpack.c.b16 %v621, %v612
      %v721 = vpack.c.b16 %v622, %v613
      %v722 = vpack.c.b16 %v623, %v614
      %v723 = vpack.c.b16 %v624, %v615
      %v724 = vpack.c.b16 %v625, %v616
      %v725 = vpack.c.b16 %v626, %v617
      %v726 = vpack.c.b16 %v627, %v618
      %v727 = vpack.c.b16 %v628, %v619
      %v728 = vpack.c.b16 %v629, %v620
      %v729 = vpack.c.b16 %v639, %v630
      %v730 = vpack.c.b16 %v640, %v631
      %v731 = vpack.c.b16 %v641, %v632
      %v732 = vpack.c.b16 %v642, %v633
      %v733 = vpack.c.b16 %v643, %v634
      %v734 = vpack.c.b16 %v644, %v635
      %v735 = vpack.c.b16 %v645, %v636
      %v736 = vpack.c.b16 %v646, %v637
      %v737 = vpack.c.b16 %v647, %v638
      %v738 = vpack.c.b16 %v657, %v648
      %v739 = vpack.c.b16 %v658, %v649
      %v740 = vpack.c.b16 %v659, %v650
      %v741 = vpack.c.b16 %v660, %v651
      %v742 = vpack.c.b16 %v661, %v652
      %v743 = vpack.c.b16 %v662, %v653
      %v744 = vpack.c.b16 %v663, %v654
      %v745 = vpack.c.b16 %v664, %v655
      %v746 = vpack.c.b16 %v665, %v656
      %v747 = vpack.c.b16 %v675, %v666
      %v748 = vpack.c.b16 %v676, %v667
      %v749 = vpack.c.b16 %v677, %v668
      %v750 = vpack.c.b16 %v678, %v669
      %v751 = vpack.c.b16 %v679, %v670
      %v752 = vpack.c.b16 %v680, %v671
      %v753 = vpack.c.b16 %v681, %v672
      %v754 = vpack.c.b16 %v682, %v673
      %v755 = vpack.c.b16 %v683, %v674
      %v972 = vunpack.c.l.b16 %v309
      %v973 = vunpack.c.l.b16 %v310
      %v974 = vunpack.c.l.b16 %v311
      %v975 = vunpack.c.l.b16 %v312
      %v976 = vunpack.c.l.b16 %v313
      %v977 = vunpack.c.l.b16 %v314
      %v978 = vunpack.c.l.b16 %v315
      %v979 = vunpack.c.l.b16 %v316
      %v980 = vunpack.c.l.b16 %v317
      %v981 = vunpack.c.l.b16 %v318
      %v982 = vunpack.c.l.b16 %v319
      %v983 = vunpack.c.l.b16 %v320
      %v984 = vunpack.c.l.b16 %v321
      %v985 = vunpack.c.l.b16 %v322
      %v986 = vunpack.c.l.b16 %v323
      %v987 = vunpack.c.l.b16 %v324
      %v988 = vunpack.c.l.b16 %v325
      %v989 = vunpack.c.l.b16 %v326
      %v990 = vunpack.c.l.b16 %v327
      %v991 = vunpack.c.l.b16 %v328
      %v992 = vunpack.c.l.b16 %v329
      %v993 = vunpack.c.l.b16 %v330
      %v994 = vunpack.c.l.b16 %v331
      %v995 = vunpack.c.l.b16 %v332
      %v996 = vunpack.c.l.b16 %v333
      %v997 = vunpack.c.l.b16 %v334
      %v998 = vunpack.c.l.b16 %v335
      %v999 = vunpack.c.l.b16 %v336
      %v1000 = vunpack.c.l.b16 %v337
      %v1001 = vunpack.c.l.b16 %v338
      %v1002 = vunpack.c.l.b16 %v339
      %v1003 = vunpack.c.l.b16 %v340
      %v1004 = vunpack.c.l.b16 %v341
      %v1005 = vunpack.c.l.b16 %v342
      %v1006 = vunpack.c.l.b16 %v343
      %v1007 = vunpack.c.l.b16 %v344
      %v1008 = vunpack.c.l.b16 %v345
      %v1009 = vunpack.c.l.b16 %v346
      %v1010 = vunpack.c.l.b16 %v347
      %v1011 = vunpack.c.l.b16 %v348
      %v1012 = vunpack.c.l.b16 %v349
      %v1013 = vunpack.c.l.b16 %v350
      %v1014 = vunpack.c.l.b16 %v351
      %v1015 = vunpack.c.l.b16 %v352
      %v1016 = vunpack.c.l.b16 %v353
      %v1017 = vunpack.c.l.b16 %v354
      %v1018 = vunpack.c.l.b16 %v355
      %v1019 = vunpack.c.l.b16 %v356
      %v1020 = vunpack.c.l.b16 %v357
      %v1021 = vunpack.c.l.b16 %v358
      %v1022 = vunpack.c.l.b16 %v359
      %v1023 = vunpack.c.l.b16 %v360
      %v1024 = vunpack.c.l.b16 %v361
      %v1025 = vunpack.c.l.b16 %v362
      %v1026 = vunpack.c.l.b16 %v363
      %v1027 = vunpack.c.l.b16 %v364
      %v1028 = vunpack.c.l.b16 %v365
      %v1029 = vunpack.c.l.b16 %v366
      %v1030 = vunpack.c.l.b16 %v367
      %v1031 = vunpack.c.l.b16 %v368
      %v1032 = vunpack.c.l.b16 %v369
      %v1033 = vunpack.c.l.b16 %v370
      %v1034 = vunpack.c.l.b16 %v371
      %v1035 = vunpack.c.l.b16 %v372
      %v1036 = vunpack.c.l.b16 %v373
      %v1037 = vunpack.c.l.b16 %v374
      %v1038 = vunpack.c.l.b16 %v375
      %v1039 = vunpack.c.l.b16 %v376
      %v1040 = vunpack.c.l.b16 %v377
      %v1041 = vunpack.c.l.b16 %v378
      %v1042 = vunpack.c.l.b16 %v379
      %v1043 = vunpack.c.l.b16 %v380
      %v1044 = vunpack.c.l.b16 %v381
      %v1045 = vunpack.c.l.b16 %v382
      %v1046 = vunpack.c.l.b16 %v383
      %v1047 = vunpack.c.l.b16 %v384
      %v1048 = vunpack.c.l.b16 %v385
      %v1049 = vunpack.c.l.b16 %v386
      %v1050 = vunpack.c.l.b16 %v387
      %v1051 = vunpack.c.l.b16 %v388
      %v1052 = vunpack.c.l.b16 %v389
      %v1053 = vunpack.c.l.b16 %v390
      %v1054 = vunpack.c.l.b16 %v391
      %v1055 = vunpack.c.l.b16 %v392
      %v1056 = vunpack.c.l.b16 %v393
      %v1057 = vunpack.c.l.b16 %v394
      %v1058 = vunpack.c.l.b16 %v395
      %v1059 = vunpack.c.l.b16 %v396
      %v1060 = vunpack.c.l.b16 %v397
      %v1061 = vunpack.c.l.b16 %v398
      %v1062 = vunpack.c.l.b16 %v399
      %v1063 = vunpack.c.l.b16 %v400
      %v1064 = vunpack.c.l.b16 %v401
      %v1065 = vunpack.c.l.b16 %v402
      %v1066 = vunpack.c.l.b16 %v403
      %v1067 = vunpack.c.l.b16 %v404
      %v1068 = vunpack.c.l.b16 %v405
      %v1069 = vunpack.c.l.b16 %v406
      %v1070 = vunpack.c.l.b16 %v407
      %v1071 = vunpack.c.l.b16 %v408
      %v1072 = vunpack.c.l.b16 %v409
      %v1073 = vunpack.c.l.b16 %v410
      %v1074 = vunpack.c.l.b16 %v411
      %v1075 = vunpack.c.l.b16 %v412
      %v1076 = vunpack.c.l.b16 %v413
      %v1077 = vunpack.c.l.b16 %v414
      %v1078 = vunpack.c.l.b16 %v415
      %v1079 = vunpack.c.l.b16 %v416
      %v1080 = vunpack.c.l.b16 %v417
      %v1081 = vunpack.c.l.b16 %v418
      %v1082 = vunpack.c.l.b16 %v419
      %v1083 = vunpack.c.l.b16 %v420
      %v1084 = vunpack.c.l.b16 %v421
      %v1085 = vunpack.c.l.b16 %v422
      %v1086 = vunpack.c.l.b16 %v423
      %v1087 = vunpack.c.l.b16 %v424
      %v1088 = vunpack.c.l.b16 %v425
      %v1089 = vunpack.c.l.b16 %v426
      %v1090 = vunpack.c.l.b16 %v427
      %v1091 = vunpack.c.l.b16 %v428
      %v1092 = vunpack.c.l.b16 %v429
      %v1093 = vunpack.c.l.b16 %v430
      %v1094 = vunpack.c.l.b16 %v431
      %v1095 = vunpack.c.l.b16 %v432
      %v1096 = vunpack.c.l.b16 %v433
      %v1097 = vunpack.c.l.b16 %v434
      %v1098 = vunpack.c.l.b16 %v435
      %v1099 = vunpack.c.l.b16 %v436
      %v1100 = vunpack.c.l.b16 %v437
      %v1101 = vunpack.c.l.b16 %v438
      %v1102 = vunpack.c.l.b16 %v439
      %v1103 = vunpack.c.l.b16 %v440
      %v1104 = vunpack.c.l.b16 %v441
      %v1105 = vunpack.c.l.b16 %v442
      %v1106 = vunpack.c.l.b16 %v443
      %v1107 = vunpack.c.l.b16 %v444
      %v1108 = vunpack.c.l.b16 %v445
      %v1109 = vunpack.c.l.b16 %v446
      %v1110 = vunpack.c.l.b16 %v447
      %v1111 = vunpack.c.l.b16 %v448
      %v1112 = vunpack.c.l.b16 %v449
      %v1113 = vunpack.c.l.b16 %v450
      %v1114 = vunpack.c.l.b16 %v451
      %v1115 = vunpack.c.l.b16 %v452
      %v1116 = vpack.c.b16 %v973, %v972
      %v1117 = vpack.c.b16 %v975, %v974
      %v1118 = vpack.c.b16 %v977, %v976
      %v1119 = vpack.c.b16 %v979, %v978
      %v1120 = vpack.c.b16 %v981, %v980
      %v1121 = vpack.c.b16 %v983, %v982
      %v1122 = vpack.c.b16 %v985, %v984
      %v1123 = vpack.c.b16 %v987, %v986
      %v1124 = vpack.c.b16 %v989, %v988
      %v1125 = vpack.c.b16 %v991, %v990
      %v1126 = vpack.c.b16 %v993, %v992
      %v1127 = vpack.c.b16 %v995, %v994
      %v1128 = vpack.c.b16 %v997, %v996
      %v1129 = vpack.c.b16 %v999, %v998
      %v1130 = vpack.c.b16 %v1001, %v1000
      %v1131 = vpack.c.b16 %v1003, %v1002
      %v1132 = vpack.c.b16 %v1005, %v1004
      %v1133 = vpack.c.b16 %v1007, %v1006
      %v1134 = vpack.c.b16 %v1009, %v1008
      %v1135 = vpack.c.b16 %v1011, %v1010
      %v1136 = vpack.c.b16 %v1013, %v1012
      %v1137 = vpack.c.b16 %v1015, %v1014
      %v1138 = vpack.c.b16 %v1017, %v1016
      %v1139 = vpack.c.b16 %v1019, %v1018
      %v1140 = vpack.c.b16 %v1021, %v1020
      %v1141 = vpack.c.b16 %v1023, %v1022
      %v1142 = vpack.c.b16 %v1025, %v1024
      %v1143 = vpack.c.b16 %v1027, %v1026
      %v1144 = vpack.c.b16 %v1029, %v1028
      %v1145 = vpack.c.b16 %v1031, %v1030
      %v1146 = vpack.c.b16 %v1033, %v1032
      %v1147 = vpack.c.b16 %v1035, %v1034
      %v1148 = vpack.c.b16 %v1037, %v1036
      %v1149 = vpack.c.b16 %v1039, %v1038
      %v1150 = vpack.c.b16 %v1041, %v1040
      %v1151 = vpack.c.b16 %v1043, %v1042
      %v1152 = vpack.c.b16 %v1045, %v1044
      %v1153 = vpack.c.b16 %v1047, %v1046
      %v1154 = vpack.c.b16 %v1049, %v1048
      %v1155 = vpack.c.b16 %v1051, %v1050
      %v1156 = vpack.c.b16 %v1053, %v1052
      %v1157 = vpack.c.b16 %v1055, %v1054
      %v1158 = vpack.c.b16 %v1057, %v1056
      %v1159 = vpack.c.b16 %v1059, %v1058
      %v1160 = vpack.c.b16 %v1061, %v1060
      %v1161 = vpack.c.b16 %v1063, %v1062
      %v1162 = vpack.c.b16 %v1065, %v1064
      %v1163 = vpack.c.b16 %v1067, %v1066
      %v1164 = vpack.c.b16 %v1069, %v1068
      %v1165 = vpack.c.b16 %v1071, %v1070
      %v1166 = vpack.c.b16 %v1073, %v1072
      %v1167 = vpack.c.b16 %v1075, %v1074
      %v1168 = vpack.c.b16 %v1077, %v1076
      %v1169 = vpack.c.b16 %v1079, %v1078
      %v1170 = vpack.c.b16 %v1081, %v1080
      %v1171 = vpack.c.b16 %v1083, %v1082
      %v1172 = vpack.c.b16 %v1085, %v1084
      %v1173 = vpack.c.b16 %v1087, %v1086
      %v1174 = vpack.c.b16 %v1089, %v1088
      %v1175 = vpack.c.b16 %v1091, %v1090
      %v1176 = vpack.c.b16 %v1093, %v1092
      %v1177 = vpack.c.b16 %v1095, %v1094
      %v1178 = vpack.c.b16 %v1097, %v1096
      %v1179 = vpack.c.b16 %v1099, %v1098
      %v1180 = vpack.c.b16 %v1101, %v1100
      %v1181 = vpack.c.b16 %v1103, %v1102
      %v1182 = vpack.c.b16 %v1105, %v1104
      %v1183 = vpack.c.b16 %v1107, %v1106
      %v1184 = vpack.c.b16 %v1109, %v1108
      %v1185 = vpack.c.b16 %v1111, %v1110
      %v1186 = vpack.c.b16 %v1113, %v1112
      %v1187 = vpack.c.b16 %v1115, %v1114
      %1260 = vmatprep.subr.bf16.mxu0 0
      %1261 = vmatpush1.bf16.msra.mxu0 %v1116
      %1262 = vmatprep.subr.bf16.mxu0 0
      %1263 = vmatpush1.bf16.msra.mxu0 %v1117
      %1264 = vmatprep.subr.bf16.mxu0 0
      %1265 = vmatpush1.bf16.msra.mxu0 %v1118
      %1266 = vmatprep.subr.bf16.mxu0 0
      %1267 = vmatpush1.bf16.msra.mxu0 %v1119
      %1268 = vmatprep.subr.bf16.mxu0 0
      %1269 = vmatpush1.bf16.msra.mxu0 %v1120
      %1270 = vmatprep.subr.bf16.mxu0 0
      %1271 = vmatpush1.bf16.msra.mxu0 %v1121
      %1272 = vmatprep.subr.bf16.mxu0 0
      %1273 = vmatpush1.bf16.msra.mxu0 %v1122
      %1274 = vmatprep.subr.bf16.mxu0 0
      %1275 = vmatpush1.bf16.msra.mxu0 %v1123
      %1276 = vmatprep.subr.bf16.mxu0 0
      %1277 = vmatpush1.bf16.msra.mxu0 %v1124
      %1278 = vmatprep.subr.bf16.mxu0 0
      %1279 = vmatpush1.bf16.msra.mxu0 %v1125
      %1280 = vmatprep.subr.bf16.mxu0 0
      %1281 = vmatpush1.bf16.msra.mxu0 %v1126
      %1282 = vmatprep.subr.bf16.mxu0 0
      %1283 = vmatpush1.bf16.msra.mxu0 %v1127
      %1284 = vmatprep.subr.bf16.mxu0 0
      %1285 = vmatpush1.bf16.msra.mxu0 %v1128
      %1286 = vmatprep.subr.bf16.mxu0 0
      %1287 = vmatpush1.bf16.msra.mxu0 %v1129
      %1288 = vmatprep.subr.bf16.mxu0 0
      %1289 = vmatpush1.bf16.msra.mxu0 %v1130
      %1290 = vmatprep.subr.bf16.mxu0 0
      %1291 = vmatpush1.bf16.msra.mxu0 %v1131
      %1292 = vmatprep.mubr.bf16.mxu0 %v685
      %1293 = vmatmul.mubr.bf16.gmra.mrb[0].mxu0 %v684
      %v1294 = vpop.f32.mrb[0].mxu0
      %v1295 = vadd.f32 %v458, %v1294
      %v1296 = vpop.f32.mrb[0].mxu0
      %v1297 = vpop.f32.mrb[0].mxu0
      %v1298 = vadd.f32 %v458, %v1297
      %v1299 = vpop.f32.mrb[0].mxu0
      %1300 = vmatprep.mubr.bf16.mxu0 %v694
      %1301 = vmatmul.mubr.bf16.gmra.mrb[0].mxu0 %v693
      %v1302 = vpop.f32.mrb[0].mxu0
      %v1303 = vadd.f32 %v458, %v1302
      %v1304 = vpop.f32.mrb[0].mxu0
      %v1305 = vpop.f32.mrb[0].mxu0
      %v1306 = vadd.f32 %v458, %v1305
      %v1307 = vpop.f32.mrb[0].mxu0
      %1308 = vmatprep.mubr.bf16.mxu0 %v703
      %1309 = vmatmul.mubr.bf16.gmra.mrb[0].mxu0 %v702
      %v1310 = vpop.f32.mrb[0].mxu0
      %v1311 = vadd.f32 %v458, %v1310
      %v1312 = vpop.f32.mrb[0].mxu0
      %v1313 = vpop.f32.mrb[0].mxu0
      %v1314 = vadd.f32 %v458, %v1313
      %v1315 = vpop.f32.mrb[0].mxu0
      %1316 = vmatprep.mubr.bf16.mxu0 %v712
      %1317 = vmatmul.mubr.bf16.gmra.mrb[0].mxu0 %v711
      %v1318 = vpop.f32.mrb[0].mxu0
      %v1319 = vadd.f32 %v458, %v1318
      %v1320 = vpop.f32.mrb[0].mxu0
      %v1321 = vpop.f32.mrb[0].mxu0
      %v1322 = vadd.f32 %v458, %v1321
      %v1323 = vpop.f32.mrb[0].mxu0
      %1324 = vmatprep.mubr.bf16.mxu0 %v721
      %1325 = vmatmul.mubr.bf16.gmra.mrb[0].mxu0 %v720
      %v1326 = vpop.f32.mrb[0].mxu0
      %v1327 = vadd.f32 %v458, %v1326
      %v1328 = vpop.f32.mrb[0].mxu0
      %v1329 = vpop.f32.mrb[0].mxu0
      %v1330 = vadd.f32 %v458, %v1329
      %v1331 = vpop.f32.mrb[0].mxu0
      %1332 = vmatprep.mubr.bf16.mxu0 %v730
      %1333 = vmatmul.mubr.bf16.gmra.mrb[0].mxu0 %v729
      %v1334 = vpop.f32.mrb[0].mxu0
      %v1335 = vadd.f32 %v458, %v1334
      %v1336 = vpop.f32.mrb[0].mxu0
      %v1337 = vpop.f32.mrb[0].mxu0
      %v1338 = vadd.f32 %v458, %v1337
      %v1339 = vpop.f32.mrb[0].mxu0
      %1340 = vmatprep.mubr.bf16.mxu0 %v739
      %1341 = vmatmul.mubr.bf16.gmra.mrb[0].mxu0 %v738
      %v1342 = vpop.f32.mrb[0].mxu0
      %v1343 = vadd.f32 %v458, %v1342
      %v1344 = vpop.f32.mrb[0].mxu0
      %v1345 = vpop.f32.mrb[0].mxu0
      %v1346 = vadd.f32 %v458, %v1345
      %v1347 = vpop.f32.mrb[0].mxu0
      %1348 = vmatprep.mubr.bf16.mxu0 %v748
      %1349 = vmatmul.mubr.bf16.gmra.mrb[0].mxu0 %v747
      %v1350 = vpop.f32.mrb[0].mxu0
      %v1351 = vadd.f32 %v458, %v1350
      %v1352 = vpop.f32.mrb[0].mxu0
      %v1353 = vpop.f32.mrb[0].mxu0
      %v1354 = vadd.f32 %v458, %v1353
      %v1355 = vpop.f32.mrb[0].mxu0
      %1356 = vdwg.mxu0
      %1357 = vmatprep.subr.bf16.mxu0 0
      %1358 = vmatpush1.bf16.msra.mxu0 %v1132
      %1359 = vmatprep.subr.bf16.mxu0 0
      %1360 = vmatpush1.bf16.msra.mxu0 %v1133
      %1361 = vmatprep.subr.bf16.mxu0 0
      %1362 = vmatpush1.bf16.msra.mxu0 %v1134
      %1363 = vmatprep.subr.bf16.mxu0 0
      %1364 = vmatpush1.bf16.msra.mxu0 %v1135
      %1365 = vmatprep.subr.bf16.mxu0 0
      %1366 = vmatpush1.bf16.msra.mxu0 %v1136
      %1367 = vmatprep.subr.bf16.mxu0 0
      %1368 = vmatpush1.bf16.msra.mxu0 %v1137
      %1369 = vmatprep.subr.bf16.mxu0 0
      %1370 = vmatpush1.bf16.msra.mxu0 %v1138
      %1371 = vmatprep.subr.bf16.mxu0 0
      %1372 = vmatpush1.bf16.msra.mxu0 %v1139
      %1373 = vmatprep.subr.bf16.mxu0 0
      %1374 = vmatpush1.bf16.msra.mxu0 %v1140
      %1375 = vmatprep.subr.bf16.mxu0 0
      %1376 = vmatpush1.bf16.msra.mxu0 %v1141
      %1377 = vmatprep.subr.bf16.mxu0 0
      %1378 = vmatpush1.bf16.msra.mxu0 %v1142
      %1379 = vmatprep.subr.bf16.mxu0 0
      %1380 = vmatpush1.bf16.msra.mxu0 %v1143
      %1381 = vmatprep.subr.bf16.mxu0 0
      %1382 = vmatpush1.bf16.msra.mxu0 %v1144
      %1383 = vmatprep.subr.bf16.mxu0 0
      %1384 = vmatpush1.bf16.msra.mxu0 %v1145
      %1385 = vmatprep.subr.bf16.mxu0 0
      %1386 = vmatpush1.bf16.msra.mxu0 %v1146
      %1387 = vmatprep.subr.bf16.mxu0 0
      %1388 = vmatpush1.bf16.msra.mxu0 %v1147
      %1389 = vmatprep.mubr.bf16.mxu0 %v687
      %1390 = vmatmul.mubr.bf16.gmra.mrb[0].mxu0 %v686
      %v1391 = vpop.f32.mrb[0].mxu0
      %v1392 = vadd.f32 %v1295, %v1391
      %v1393 = vpop.f32.mrb[0].mxu0
      %v1394 = vpop.f32.mrb[0].mxu0
      %v1395 = vadd.f32 %v1298, %v1394
      %v1396 = vpop.f32.mrb[0].mxu0
      %1397 = vmatprep.mubr.bf16.mxu0 %v696
      %1398 = vmatmul.mubr.bf16.gmra.mrb[0].mxu0 %v695
      %v1399 = vpop.f32.mrb[0].mxu0
      %v1400 = vadd.f32 %v1303, %v1399
      %v1401 = vpop.f32.mrb[0].mxu0
      %v1402 = vpop.f32.mrb[0].mxu0
      %v1403 = vadd.f32 %v1306, %v1402
      %v1404 = vpop.f32.mrb[0].mxu0
      %1405 = vmatprep.mubr.bf16.mxu0 %v705
      %1406 = vmatmul.mubr.bf16.gmra.mrb[0].mxu0 %v704
      %v1407 = vpop.f32.mrb[0].mxu0
      %v1408 = vadd.f32 %v1311, %v1407
      %v1409 = vpop.f32.mrb[0].mxu0
      %v1410 = vpop.f32.mrb[0].mxu0
      %v1411 = vadd.f32 %v1314, %v1410
      %v1412 = vpop.f32.mrb[0].mxu0
      %1413 = vmatprep.mubr.bf16.mxu0 %v714
      %1414 = vmatmul.mubr.bf16.gmra.mrb[0].mxu0 %v713
      %v1415 = vpop.f32.mrb[0].mxu0
      %v1416 = vadd.f32 %v1319, %v1415
      %v1417 = vpop.f32.mrb[0].mxu0
      %v1418 = vpop.f32.mrb[0].mxu0
      %v1419 = vadd.f32 %v1322, %v1418
      %v1420 = vpop.f32.mrb[0].mxu0
      %1421 = vmatprep.mubr.bf16.mxu0 %v723
      %1422 = vmatmul.mubr.bf16.gmra.mrb[0].mxu0 %v722
      %v1423 = vpop.f32.mrb[0].mxu0
      %v1424 = vadd.f32 %v1327, %v1423
      %v1425 = vpop.f32.mrb[0].mxu0
      %v1426 = vpop.f32.mrb[0].mxu0
      %v1427 = vadd.f32 %v1330, %v1426
      %v1428 = vpop.f32.mrb[0].mxu0
      %1429 = vmatprep.mubr.bf16.mxu0 %v732
      %1430 = vmatmul.mubr.bf16.gmra.mrb[0].mxu0 %v731
      %v1431 = vpop.f32.mrb[0].mxu0
      %v1432 = vadd.f32 %v1335, %v1431
      %v1433 = vpop.f32.mrb[0].mxu0
      %v1434 = vpop.f32.mrb[0].mxu0
      %v1435 = vadd.f32 %v1338, %v1434
      %v1436 = vpop.f32.mrb[0].mxu0
      %1437 = vmatprep.mubr.bf16.mxu0 %v741
      %1438 = vmatmul.mubr.bf16.gmra.mrb[0].mxu0 %v740
      %v1439 = vpop.f32.mrb[0].mxu0
      %v1440 = vadd.f32 %v1343, %v1439
      %v1441 = vpop.f32.mrb[0].mxu0
      %v1442 = vpop.f32.mrb[0].mxu0
      %v1443 = vadd.f32 %v1346, %v1442
      %v1444 = vpop.f32.mrb[0].mxu0
      %1445 = vmatprep.mubr.bf16.mxu0 %v750
      %1446 = vmatmul.mubr.bf16.gmra.mrb[0].mxu0 %v749
      %v1447 = vpop.f32.mrb[0].mxu0
      %v1448 = vadd.f32 %v1351, %v1447
      %v1449 = vpop.f32.mrb[0].mxu0
      %v1450 = vpop.f32.mrb[0].mxu0
      %v1451 = vadd.f32 %v1354, %v1450
      %v1452 = vpop.f32.mrb[0].mxu0
      %1453 = vdwg.mxu0
      %1454 = vmatprep.subr.bf16.mxu0 0
      %1455 = vmatpush1.bf16.msra.mxu0 %v1148
      %1456 = vmatprep.subr.bf16.mxu0 0
      %1457 = vmatpush1.bf16.msra.mxu0 %v1149
      %1458 = vmatprep.subr.bf16.mxu0 0
      %1459 = vmatpush1.bf16.msra.mxu0 %v1150
      %1460 = vmatprep.subr.bf16.mxu0 0
      %1461 = vmatpush1.bf16.msra.mxu0 %v1151
      %1462 = vmatprep.subr.bf16.mxu0 0
      %1463 = vmatpush1.bf16.msra.mxu0 %v1152
      %1464 = vmatprep.subr.bf16.mxu0 0
      %1465 = vmatpush1.bf16.msra.mxu0 %v1153
      %1466 = vmatprep.subr.bf16.mxu0 0
      %1467 = vmatpush1.bf16.msra.mxu0 %v1154
      %1468 = vmatprep.subr.bf16.mxu0 0
      %1469 = vmatpush1.bf16.msra.mxu0 %v1155
      %1470 = vmatprep.subr.bf16.mxu0 0
      %1471 = vmatpush1.bf16.msra.mxu0 %v1156
      %1472 = vmatprep.subr.bf16.mxu0 0
      %1473 = vmatpush1.bf16.msra.mxu0 %v1157
      %1474 = vmatprep.subr.bf16.mxu0 0
      %1475 = vmatpush1.bf16.msra.mxu0 %v1158
      %1476 = vmatprep.subr.bf16.mxu0 0
      %1477 = vmatpush1.bf16.msra.mxu0 %v1159
      %1478 = vmatprep.subr.bf16.mxu0 0
      %1479 = vmatpush1.bf16.msra.mxu0 %v1160
      %1480 = vmatprep.subr.bf16.mxu0 0
      %1481 = vmatpush1.bf16.msra.mxu0 %v1161
      %1482 = vmatprep.subr.bf16.mxu0 0
      %1483 = vmatpush1.bf16.msra.mxu0 %v1162
      %1484 = vmatprep.subr.bf16.mxu0 0
      %1485 = vmatpush1.bf16.msra.mxu0 %v1163
      %1486 = vmatprep.mubr.bf16.mxu0 %v689
      %1487 = vmatmul.mubr.bf16.gmra.mrb[0].mxu0 %v688
      %v1488 = vpop.f32.mrb[0].mxu0
      %v1489 = vadd.f32 %v1392, %v1488
      %v1490 = vpop.f32.mrb[0].mxu0
      %v1491 = vpop.f32.mrb[0].mxu0
      %v1492 = vadd.f32 %v1395, %v1491
      %v1493 = vpop.f32.mrb[0].mxu0
      %1494 = vmatprep.mubr.bf16.mxu0 %v698
      %1495 = vmatmul.mubr.bf16.gmra.mrb[0].mxu0 %v697
      %v1496 = vpop.f32.mrb[0].mxu0
      %v1497 = vadd.f32 %v1400, %v1496
      %v1498 = vpop.f32.mrb[0].mxu0
      %v1499 = vpop.f32.mrb[0].mxu0
      %v1500 = vadd.f32 %v1403, %v1499
      %v1501 = vpop.f32.mrb[0].mxu0
      %1502 = vmatprep.mubr.bf16.mxu0 %v707
      %1503 = vmatmul.mubr.bf16.gmra.mrb[0].mxu0 %v706
      %v1504 = vpop.f32.mrb[0].mxu0
      %v1505 = vadd.f32 %v1408, %v1504
      %v1506 = vpop.f32.mrb[0].mxu0
      %v1507 = vpop.f32.mrb[0].mxu0
      %v1508 = vadd.f32 %v1411, %v1507
      %v1509 = vpop.f32.mrb[0].mxu0
      %1510 = vmatprep.mubr.bf16.mxu0 %v716
      %1511 = vmatmul.mubr.bf16.gmra.mrb[0].mxu0 %v715
      %v1512 = vpop.f32.mrb[0].mxu0
      %v1513 = vadd.f32 %v1416, %v1512
      %v1514 = vpop.f32.mrb[0].mxu0
      %v1515 = vpop.f32.mrb[0].mxu0
      %v1516 = vadd.f32 %v1419, %v1515
      %v1517 = vpop.f32.mrb[0].mxu0
      %1518 = vmatprep.mubr.bf16.mxu0 %v725
      %1519 = vmatmul.mubr.bf16.gmra.mrb[0].mxu0 %v724
      %v1520 = vpop.f32.mrb[0].mxu0
      %v1521 = vadd.f32 %v1424, %v1520
      %v1522 = vpop.f32.mrb[0].mxu0
      %v1523 = vpop.f32.mrb[0].mxu0
      %v1524 = vadd.f32 %v1427, %v1523
      %v1525 = vpop.f32.mrb[0].mxu0
      %1526 = vmatprep.mubr.bf16.mxu0 %v734
      %1527 = vmatmul.mubr.bf16.gmra.mrb[0].mxu0 %v733
      %v1528 = vpop.f32.mrb[0].mxu0
      %v1529 = vadd.f32 %v1432, %v1528
      %v1530 = vpop.f32.mrb[0].mxu0
      %v1531 = vpop.f32.mrb[0].mxu0
      %v1532 = vadd.f32 %v1435, %v1531
      %v1533 = vpop.f32.mrb[0].mxu0
      %1534 = vmatprep.mubr.bf16.mxu0 %v743
      %1535 = vmatmul.mubr.bf16.gmra.mrb[0].mxu0 %v742
      %v1536 = vpop.f32.mrb[0].mxu0
      %v1537 = vadd.f32 %v1440, %v1536
      %v1538 = vpop.f32.mrb[0].mxu0
      %v1539 = vpop.f32.mrb[0].mxu0
      %v1540 = vadd.f32 %v1443, %v1539
      %v1541 = vpop.f32.mrb[0].mxu0
      %1542 = vmatprep.mubr.bf16.mxu0 %v752
      %1543 = vmatmul.mubr.bf16.gmra.mrb[0].mxu0 %v751
      %v1544 = vpop.f32.mrb[0].mxu0
      %v1545 = vadd.f32 %v1448, %v1544
      %v1546 = vpop.f32.mrb[0].mxu0
      %v1547 = vpop.f32.mrb[0].mxu0
      %v1548 = vadd.f32 %v1451, %v1547
      %v1549 = vpop.f32.mrb[0].mxu0
      %1550 = vdwg.mxu0
      %1551 = vmatprep.subr.bf16.mxu0 0
      %1552 = vmatpush1.bf16.msra.mxu0 %v1164
      %1553 = vmatprep.subr.bf16.mxu0 0
      %1554 = vmatpush1.bf16.msra.mxu0 %v1165
      %1555 = vmatprep.subr.bf16.mxu0 0
      %1556 = vmatpush1.bf16.msra.mxu0 %v1166
      %1557 = vmatprep.subr.bf16.mxu0 0
      %1558 = vmatpush1.bf16.msra.mxu0 %v1167
      %1559 = vmatprep.subr.bf16.mxu0 0
      %1560 = vmatpush1.bf16.msra.mxu0 %v1168
      %1561 = vmatprep.subr.bf16.mxu0 0
      %1562 = vmatpush1.bf16.msra.mxu0 %v1169
      %1563 = vmatprep.subr.bf16.mxu0 0
      %1564 = vmatpush1.bf16.msra.mxu0 %v1170
      %1565 = vmatprep.subr.bf16.mxu0 0
      %1566 = vmatpush1.bf16.msra.mxu0 %v1171
      %1567 = vmatprep.subr.bf16.mxu0 0
      %1568 = vmatpush1.bf16.msra.mxu0 %v1172
      %1569 = vmatprep.subr.bf16.mxu0 0
      %1570 = vmatpush1.bf16.msra.mxu0 %v1173
      %1571 = vmatprep.subr.bf16.mxu0 0
      %1572 = vmatpush1.bf16.msra.mxu0 %v1174
      %1573 = vmatprep.subr.bf16.mxu0 0
      %1574 = vmatpush1.bf16.msra.mxu0 %v1175
      %1575 = vmatprep.subr.bf16.mxu0 0
      %1576 = vmatpush1.bf16.msra.mxu0 %v1176
      %1577 = vmatprep.subr.bf16.mxu0 0
      %1578 = vmatpush1.bf16.msra.mxu0 %v1177
      %1579 = vmatprep.subr.bf16.mxu0 0
      %1580 = vmatpush1.bf16.msra.mxu0 %v1178
      %1581 = vmatprep.subr.bf16.mxu0 0
      %1582 = vmatpush1.bf16.msra.mxu0 %v1179
      %1583 = vmatprep.mubr.bf16.mxu0 %v691
      %1584 = vmatmul.mubr.bf16.gmra.mrb[0].mxu0 %v690
      %v1585 = vpop.f32.mrb[0].mxu0
      %v1586 = vadd.f32 %v1489, %v1585
      %v1587 = vpop.f32.mrb[0].mxu0
      %v1588 = vpop.f32.mrb[0].mxu0
      %v1589 = vadd.f32 %v1492, %v1588
      %v1590 = vpop.f32.mrb[0].mxu0
      %1591 = vmatprep.mubr.bf16.mxu0 %v700
      %1592 = vmatmul.mubr.bf16.gmra.mrb[0].mxu0 %v699
      %v1593 = vpop.f32.mrb[0].mxu0
      %v1594 = vadd.f32 %v1497, %v1593
      %v1595 = vpop.f32.mrb[0].mxu0
      %v1596 = vpop.f32.mrb[0].mxu0
      %v1597 = vadd.f32 %v1500, %v1596
      %v1598 = vpop.f32.mrb[0].mxu0
      %1599 = vmatprep.mubr.bf16.mxu0 %v709
      %1600 = vmatmul.mubr.bf16.gmra.mrb[0].mxu0 %v708
      %v1601 = vpop.f32.mrb[0].mxu0
      %v1602 = vadd.f32 %v1505, %v1601
      %v1603 = vpop.f32.mrb[0].mxu0
      %v1604 = vpop.f32.mrb[0].mxu0
      %v1605 = vadd.f32 %v1508, %v1604
      %v1606 = vpop.f32.mrb[0].mxu0
      %1607 = vmatprep.mubr.bf16.mxu0 %v718
      %1608 = vmatmul.mubr.bf16.gmra.mrb[0].mxu0 %v717
      %v1609 = vpop.f32.mrb[0].mxu0
      %v1610 = vadd.f32 %v1513, %v1609
      %v1611 = vpop.f32.mrb[0].mxu0
      %v1612 = vpop.f32.mrb[0].mxu0
      %v1613 = vadd.f32 %v1516, %v1612
      %v1614 = vpop.f32.mrb[0].mxu0
      %1615 = vmatprep.mubr.bf16.mxu0 %v727
      %1616 = vmatmul.mubr.bf16.gmra.mrb[0].mxu0 %v726
      %v1617 = vpop.f32.mrb[0].mxu0
      %v1618 = vadd.f32 %v1521, %v1617
      %v1619 = vpop.f32.mrb[0].mxu0
      %v1620 = vpop.f32.mrb[0].mxu0
      %v1621 = vadd.f32 %v1524, %v1620
      %v1622 = vpop.f32.mrb[0].mxu0
      %1623 = vmatprep.mubr.bf16.mxu0 %v736
      %1624 = vmatmul.mubr.bf16.gmra.mrb[0].mxu0 %v735
      %v1625 = vpop.f32.mrb[0].mxu0
      %v1626 = vadd.f32 %v1529, %v1625
      %v1627 = vpop.f32.mrb[0].mxu0
      %v1628 = vpop.f32.mrb[0].mxu0
      %v1629 = vadd.f32 %v1532, %v1628
      %v1630 = vpop.f32.mrb[0].mxu0
      %1631 = vmatprep.mubr.bf16.mxu0 %v745
      %1632 = vmatmul.mubr.bf16.gmra.mrb[0].mxu0 %v744
      %v1633 = vpop.f32.mrb[0].mxu0
      %v1634 = vadd.f32 %v1537, %v1633
      %v1635 = vpop.f32.mrb[0].mxu0
      %v1636 = vpop.f32.mrb[0].mxu0
      %v1637 = vadd.f32 %v1540, %v1636
      %v1638 = vpop.f32.mrb[0].mxu0
      %1639 = vmatprep.mubr.bf16.mxu0 %v754
      %1640 = vmatmul.mubr.bf16.gmra.mrb[0].mxu0 %v753
      %v1641 = vpop.f32.mrb[0].mxu0
      %v1642 = vadd.f32 %v1545, %v1641
      %v1643 = vpop.f32.mrb[0].mxu0
      %v1644 = vpop.f32.mrb[0].mxu0
      %v1645 = vadd.f32 %v1548, %v1644
      %v1646 = vpop.f32.mrb[0].mxu0
      %1647 = vdwg.mxu0
      %1648 = vmatprep.subr.bf16.mxu0 0
      %1649 = vmatpush1.bf16.msra.mxu0 %v1180
      %1650 = vmatprep.subr.bf16.mxu0 0
      %1651 = vmatpush1.bf16.msra.mxu0 %v1181
      %1652 = vmatprep.subr.bf16.mxu0 0
      %1653 = vmatpush1.bf16.msra.mxu0 %v1182
      %1654 = vmatprep.subr.bf16.mxu0 0
      %1655 = vmatpush1.bf16.msra.mxu0 %v1183
      %1656 = vmatprep.subr.bf16.mxu0 0
      %1657 = vmatpush1.bf16.msra.mxu0 %v1184
      %1658 = vmatprep.subr.bf16.mxu0 0
      %1659 = vmatpush1.bf16.msra.mxu0 %v1185
      %1660 = vmatprep.subr.bf16.mxu0 0
      %1661 = vmatpush1.bf16.msra.mxu0 %v1186
      %1662 = vmatprep.subr.bf16.mxu0 0
      %1663 = vmatpush1.bf16.msra.mxu0 %v1187
      %1664 = vmatprep.subr.bf16.mxu0 0
      %1665 = vmatpush1.bf16.msra.mxu0 0
      %1666 = vmatprep.subr.bf16.mxu0 0
      %1667 = vmatpush1.bf16.msra.mxu0 0
      %1668 = vmatprep.subr.bf16.mxu0 0
      %1669 = vmatpush1.bf16.msra.mxu0 0
      %1670 = vmatprep.subr.bf16.mxu0 0
      %1671 = vmatpush1.bf16.msra.mxu0 0
      %1672 = vmatprep.subr.bf16.mxu0 0
      %1673 = vmatpush1.bf16.msra.mxu0 0
      %1674 = vmatprep.subr.bf16.mxu0 0
      %1675 = vmatpush1.bf16.msra.mxu0 0
      %1676 = vmatprep.subr.bf16.mxu0 0
      %1677 = vmatpush1.bf16.msra.mxu0 0
      %1678 = vmatprep.subr.bf16.mxu0 0
      %1679 = vmatpush1.bf16.msra.mxu0 0
      %1680 = vmatprep.mubr.bf16.mxu0 0
      %1681 = vmatmul.mubr.bf16.gmra.mrb[0].mxu0 %v692
      %v1682 = vpop.f32.mrb[0].mxu0
      %v1683 = vadd.f32 %v1586, %v1682
      %v1684 = vpop.f32.mrb[0].mxu0
      %v1685 = vpop.f32.mrb[0].mxu0
      %v1686 = vadd.f32 %v1589, %v1685
      %v1687 = vpop.f32.mrb[0].mxu0
      %1688 = vmatprep.mubr.bf16.mxu0 0
      %1689 = vmatmul.mubr.bf16.gmra.mrb[0].mxu0 %v701
      %v1690 = vpop.f32.mrb[0].mxu0
      %v1691 = vadd.f32 %v1594, %v1690
      %v1692 = vpop.f32.mrb[0].mxu0
      %v1693 = vpop.f32.mrb[0].mxu0
      %v1694 = vadd.f32 %v1597, %v1693
      %v1695 = vpop.f32.mrb[0].mxu0
      %1696 = vmatprep.mubr.bf16.mxu0 0
      %1697 = vmatmul.mubr.bf16.gmra.mrb[0].mxu0 %v710
      %v1698 = vpop.f32.mrb[0].mxu0
      %v1699 = vadd.f32 %v1602, %v1698
      %v1700 = vpop.f32.mrb[0].mxu0
      %v1701 = vpop.f32.mrb[0].mxu0
      %v1702 = vadd.f32 %v1605, %v1701
      %v1703 = vpop.f32.mrb[0].mxu0
      %1704 = vmatprep.mubr.bf16.mxu0 0
      %1705 = vmatmul.mubr.bf16.gmra.mrb[0].mxu0 %v719
      %v1706 = vpop.f32.mrb[0].mxu0
      %v1707 = vadd.f32 %v1610, %v1706
      %v1708 = vpop.f32.mrb[0].mxu0
      %v1709 = vpop.f32.mrb[0].mxu0
      %v1710 = vadd.f32 %v1613, %v1709
      %v1711 = vpop.f32.mrb[0].mxu0
      %1712 = vmatprep.mubr.bf16.mxu0 0
      %1713 = vmatmul.mubr.bf16.gmra.mrb[0].mxu0 %v728
      %v1714 = vpop.f32.mrb[0].mxu0
      %v1715 = vadd.f32 %v1618, %v1714
      %v1716 = vpop.f32.mrb[0].mxu0
      %v1717 = vpop.f32.mrb[0].mxu0
      %v1718 = vadd.f32 %v1621, %v1717
      %v1719 = vpop.f32.mrb[0].mxu0
      %1720 = vmatprep.mubr.bf16.mxu0 0
      %1721 = vmatmul.mubr.bf16.gmra.mrb[0].mxu0 %v737
      %v1722 = vpop.f32.mrb[0].mxu0
      %v1723 = vadd.f32 %v1626, %v1722
      %v1724 = vpop.f32.mrb[0].mxu0
      %v1725 = vpop.f32.mrb[0].mxu0
      %v1726 = vadd.f32 %v1629, %v1725
      %v1727 = vpop.f32.mrb[0].mxu0
      %1728 = vmatprep.mubr.bf16.mxu0 0
      %1729 = vmatmul.mubr.bf16.gmra.mrb[0].mxu0 %v746
      %v1730 = vpop.f32.mrb[0].mxu0
      %v1731 = vadd.f32 %v1634, %v1730
      %v1732 = vpop.f32.mrb[0].mxu0
      %v1733 = vpop.f32.mrb[0].mxu0
      %v1734 = vadd.f32 %v1637, %v1733
      %v1735 = vpop.f32.mrb[0].mxu0
      %1736 = vmatprep.mubr.bf16.mxu0 0
      %1737 = vmatmul.mubr.bf16.gmra.mrb[0].mxu0 %v755
      %v1738 = vpop.f32.mrb[0].mxu0
      %v1739 = vadd.f32 %v1642, %v1738
      %v1740 = vpop.f32.mrb[0].mxu0
      %v1741 = vpop.f32.mrb[0].mxu0
      %v1742 = vadd.f32 %v1645, %v1741
      %v1743 = vpop.f32.mrb[0].mxu0
      %1744 = vdwg.mxu0
      %v1745 = vmax.f32 %v1683, 0.0
      %v1746 = vmax.f32 %v1686, 0.0
      %v1747 = vmax.f32 %v1691, 0.0
      %v1748 = vmax.f32 %v1694, 0.0
      %v1749 = vmax.f32 %v1699, 0.0
      %v1750 = vmax.f32 %v1702, 0.0
      %v1751 = vmax.f32 %v1707, 0.0
      %v1752 = vmax.f32 %v1710, 0.0
      %v1753 = vmax.f32 %v1715, 0.0
      %v1754 = vmax.f32 %v1718, 0.0
      %v1755 = vmax.f32 %v1723, 0.0
      %v1756 = vmax.f32 %v1726, 0.0
      %v1757 = vmax.f32 %v1731, 0.0
      %v1758 = vmax.f32 %v1734, 0.0
      %v1759 = vmax.f32 %v1739, 0.0
      %v1760 = vmax.f32 %v1742, 0.0
      %v1761 = vpack.c.bf16 %v1746, %v1745
      %v1762 = vpack.c.bf16 %v1748, %v1747
      %v1763 = vpack.c.bf16 %v1750, %v1749
      %v1764 = vpack.c.bf16 %v1752, %v1751
      %v1765 = vpack.c.bf16 %v1754, %v1753
      %v1766 = vpack.c.bf16 %v1756, %v1755
      %v1767 = vpack.c.bf16 %v1758, %v1757
      %v1768 = vpack.c.bf16 %v1760, %v1759
      %v1777 = vunpack.c.l.b16 %v1761
      %v1778 = vunpack.c.h.b16 %v1761
      %v1779 = vunpack.c.l.b16 %v1762
      %v1780 = vunpack.c.h.b16 %v1762
      %v1781 = vunpack.c.l.b16 %v1763
      %v1782 = vunpack.c.h.b16 %v1763
      %v1783 = vunpack.c.l.b16 %v1764
      %v1784 = vunpack.c.h.b16 %v1764
      %v1785 = vunpack.c.l.b16 %v1765
      %v1786 = vunpack.c.h.b16 %v1765
      %v1787 = vunpack.c.l.b16 %v1766
      %v1788 = vunpack.c.h.b16 %v1766
      %v1789 = vunpack.c.l.b16 %v1767
      %v1790 = vunpack.c.h.b16 %v1767
      %v1791 = vunpack.c.l.b16 %v1768
      %v1792 = vunpack.c.h.b16 %v1768
      %v1793 = vpack.c.b16 %v1777, %v1777
      %v1794 = vpack.c.b16 %v1778, %v1778
      %v1795 = vpack.c.b16 %v1779, %v1779
      %v1796 = vpack.c.b16 %v1780, %v1780
      %v1797 = vpack.c.b16 %v1781, %v1781
      %v1798 = vpack.c.b16 %v1782, %v1782
      %v1799 = vpack.c.b16 %v1783, %v1783
      %v1800 = vpack.c.b16 %v1784, %v1784
      %v1801 = vpack.c.b16 %v1785, %v1785
      %v1802 = vpack.c.b16 %v1786, %v1786
      %v1803 = vpack.c.b16 %v1787, %v1787
      %v1804 = vpack.c.b16 %v1788, %v1788
      %v1805 = vpack.c.b16 %v1789, %v1789
      %v1806 = vpack.c.b16 %v1790, %v1790
      %v1807 = vpack.c.b16 %v1791, %v1791
      %v1808 = vpack.c.b16 %v1792, %v1792
      %1825 = vst [vmem:[%s226] sm:$0xf] %v1793
      %1826 = vst [vmem:[%s226 + $0x4] sm:$0xf] %v1794
      %1827 = vst [vmem:[%s226 + $0x8] sm:$0xf] %v1795
      %1828 = vst [vmem:[%s226 + $0xc] sm:$0xf] %v1796
      %1829 = vst [vmem:[%s226 + $0x10] sm:$0xf] %v1797
      %1830 = vst [vmem:[%s226 + $0x14] sm:$0xf] %v1798
      %1831 = vst [vmem:[%s226 + $0x18] sm:$0xf] %v1799
      %1832 = vst [vmem:[%s226 + $0x1c] sm:$0xf] %v1800
      %1833 = vst [vmem:[%s226 + $0x20] sm:$0xf] %v1801
      %1834 = vst [vmem:[%s226 + $0x24] sm:$0xf] %v1802
      %1835 = vst [vmem:[%s226 + $0x28] sm:$0xf] %v1803
      %1836 = vst [vmem:[%s226 + $0x2c] sm:$0xf] %v1804
      %1837 = vst [vmem:[%s226 + $0x30] sm:$0xf] %v1805
      %1838 = vst [vmem:[%s226 + $0x34] sm:$0xf] %v1806
      %1839 = vst [vmem:[%s226 + $0x38] sm:$0xf] %v1807
      %1840 = vst [vmem:[%s226 + $0x3c] sm:$0xf] %v1808
      %s1841 = smul.u32 16, %s18
      %p1842 = scmp.lt.s32.totalorder %s1841, 31
      %s1843 = scalar_select %p1842, %s1841, 31
      %p1844 = scmp.lt.s32.totalorder %s19, 0
      %s1845 = scalar_select %p1844, %s19, 0
      %s1846 = sadd.s32 %s1845, %s1843
      %s1847 = smul.addr %s1846, 4
      %s1848 = scalar_lea.vmem %s3, %s1847
      // Predicated region
      $region33: #{_lambda_.25} parent=31 // pred_check
        %p1849 = pneg %p124
      $region34: #{_lambda_.25} parent=31 // pred_check_branch
        %1851 = sbr.rel (%p1849) target = $region36
      $region35: #{_lambda_.25} parent=31 // pred_region
        %s1852 = smul.u32 16, %s18
      $region36: #{_lambda_.25} parent=31 // pred_fallthru
        _
    $region32: #{_lambda_.25} parent=5 // pred_fallthru
      _
    %p1853 = scmp.le.s32.totalorder 2, %s9
    // Predicated region
    $region37: #{_lambda_.25} parent=5 // pred_check
      %p1854 = pneg %p1853
    $region38: #{_lambda_.25} parent=5 // pred_check_branch
      %1856 = sbr.rel (%p1854) target = $region40
    $region39: #{_lambda_.25} parent=5 // pred_region
      %s1857 = ssub.s32 %s9, 2
      // Predicated region
      $region41: #{_lambda_.25} parent=39 // pred_check
        %p1858 = pneg %p130
      $region42: #{_lambda_.25} parent=39 // pred_check_branch
        %1860 = sbr.rel (%p1858) target = $region44
      $region43: #{_lambda_.25} parent=39 // pred_region
        %s1861 = smul.u32 16, %s20
        %p1862 = scmp.lt.s32.totalorder %s1861, 31
        %s1863 = scalar_select %p1862, %s1861, 31
        %p1864 = scmp.lt.s32.totalorder %s21, 0
        %s1865 = scalar_select %p1864, %s21, 0
        %s1866 = sadd.s32 %s1865, %s1863
        %s1867 = smul.addr %s1866, 4
        %s1868 = scalar_lea.vmem %s3, %s1867
      $region44: #{_lambda_.25} parent=39 // pred_fallthru
        _
    $region40: #{_lambda_.25} parent=5 // pred_fallthru
      _
  $region6: #{_lambda_.25} parent=0 // loop_footer
    %s13 = sadd.s32 1, %s9
  $region7: #{_lambda_.25} parent=0 // loop_footer_branch
    %8 = sbr.rel target = $region3
  $region8: #{_lambda_.25} parent=0 // loop_exit
    _

// kernel: _lambda_.31
$region0: #{_lambda_.31}
  #allocation0 [shape = 'u32[]', space=smem, size = 0x4, offset = 0x4, fixed_abs, tag = 'smem constant byte address 0x4 - core index']
  #allocation1 [shape = 'u32[144,128]{1,0:T(1,128)}', space=vmem, size = 0x12000, scoped, tag = 'internal scratch']
  %s0 = inlined_call_operand.vmem [shape: bf16[64,128], index: 0, kind: input, shape index: {}]
  %s1 = inlined_call_operand.vmem [shape: bf16[128,128], index: 1, kind: input, shape index: {}]
  %s2 = inlined_call_operand.vmem [shape: f32[1,128], index: 2, kind: input, shape index: {}]
  %s3 = inlined_call_operand.vmem [shape: bf16[64,128], index: 3, kind: output, shape index: {}]
  %s4 = sld [smem:[#allocation0]]
  $region22: #{_lambda_.31} parent=0
    _
  %s6 = ssub.s32 1, %s4
  %s7 = scalar_select 0, %s6, %s4
  // Predicated region
  $region2: #{_lambda_.31} parent=0 // pred_check
    _
  $region3: #{_lambda_.31} parent=0 // pred_check_branch
    %9 = sbr.rel (0) target = $region5
  $region4: #{_lambda_.31} parent=0 // pred_region
    _
  $region5: #{_lambda_.31} parent=0 // pred_fallthru
    _
  // Predicated region
  $region6: #{_lambda_.31} parent=0 // pred_check
    _
  $region7: #{_lambda_.31} parent=0 // pred_check_branch
    %11 = sbr.rel (0) target = $region9
  $region8: #{_lambda_.31} parent=0 // pred_region
    _
  $region9: #{_lambda_.31} parent=0 // pred_fallthru
    _
  // Predicated region
  $region10: #{_lambda_.31} parent=0 // pred_check
    _
  $region11: #{_lambda_.31} parent=0 // pred_check_branch
    %13 = sbr.rel (0) target = $region13
  $region12: #{_lambda_.31} parent=0 // pred_region
    _
  $region13: #{_lambda_.31} parent=0 // pred_fallthru
    _
  %v15 = vld [vmem:[%s0] sm:$0xf]
  %v16 = vld [vmem:[%s0 + $0x4] sm:$0xf]
  %v17 = vld [vmem:[%s0 + $0x8] sm:$0xf]
  %v18 = vld [vmem:[%s0 + $0xc] sm:$0xf]
  %v19 = vld [vmem:[%s0 + $0x10] sm:$0xf]
  %v20 = vld [vmem:[%s0 + $0x14] sm:$0xf]
  %v21 = vld [vmem:[%s0 + $0x18] sm:$0xf]
  %v22 = vld [vmem:[%s0 + $0x1c] sm:$0xf]
  %v23 = vld [vmem:[%s1] sm:$0xf]
  %v24 = vld [vmem:[%s1 + $0x4] sm:$0xf]
  %v25 = vld [vmem:[%s1 + $0x8] sm:$0xf]
  %v26 = vld [vmem:[%s1 + $0xc] sm:$0xf]
  %v27 = vld [vmem:[%s1 + $0x10] sm:$0xf]
  %v28 = vld [vmem:[%s1 + $0x14] sm:$0xf]
  %v29 = vld [vmem:[%s1 + $0x18] sm:$0xf]
  %v30 = vld [vmem:[%s1 + $0x1c] sm:$0xf]
  %v31 = vld [vmem:[%s1 + $0x20] sm:$0xf]
  %v32 = vld [vmem:[%s1 + $0x24] sm:$0xf]
  %v33 = vld [vmem:[%s1 + $0x28] sm:$0xf]
  %v34 = vld [vmem:[%s1 + $0x2c] sm:$0xf]
  %v35 = vld [vmem:[%s1 + $0x30] sm:$0xf]
  %v36 = vld [vmem:[%s1 + $0x34] sm:$0xf]
  %v37 = vld [vmem:[%s1 + $0x38] sm:$0xf]
  %v38 = vld [vmem:[%s1 + $0x3c] sm:$0xf]
  %v39 = vld [vmem:[%s2] sm:$0x1]
  %v41 = vlaneseq
  %v42 = vshrl.u32 %v41, 7
  %v43 = vsub.s32 0, %v42
  %v44 = vrot.slane %v39, %v43
  %v54 = vunpack.c.l.b16 %v15
  %v55 = vunpack.c.l.b16 %v16
  %v56 = vunpack.c.l.b16 %v17
  %v57 = vunpack.c.l.b16 %v18
  %v58 = vunpack.c.l.b16 %v19
  %v59 = vunpack.c.l.b16 %v20
  %v60 = vunpack.c.l.b16 %v21
  %v61 = vunpack.c.l.b16 %v22
  %v62 = vpack.c.b16 %v55, %v54
  %v63 = vpack.c.b16 %v57, %v56
  %v64 = vpack.c.b16 %v59, %v58
  %v65 = vpack.c.b16 %v61, %v60
  %v86 = vunpack.c.l.b16 %v23
  %v87 = vunpack.c.l.b16 %v24
  %v88 = vunpack.c.l.b16 %v25
  %v89 = vunpack.c.l.b16 %v26
  %v90 = vunpack.c.l.b16 %v27
  %v91 = vunpack.c.l.b16 %v28
  %v92 = vunpack.c.l.b16 %v29
  %v93 = vunpack.c.l.b16 %v30
  %v94 = vunpack.c.l.b16 %v31
  %v95 = vunpack.c.l.b16 %v32
  %v96 = vunpack.c.l.b16 %v33
  %v97 = vunpack.c.l.b16 %v34
  %v98 = vunpack.c.l.b16 %v35
  %v99 = vunpack.c.l.b16 %v36
  %v100 = vunpack.c.l.b16 %v37
  %v101 = vunpack.c.l.b16 %v38
  %v102 = vpack.c.b16 %v87, %v86
  %v103 = vpack.c.b16 %v89, %v88
  %v104 = vpack.c.b16 %v91, %v90
  %v105 = vpack.c.b16 %v93, %v92
  %v106 = vpack.c.b16 %v95, %v94
  %v107 = vpack.c.b16 %v97, %v96
  %v108 = vpack.c.b16 %v99, %v98
  %v109 = vpack.c.b16 %v101, %v100
  %118 = vmatprep.subr.bf16.mxu0 0
  %119 = vmatpush1.bf16.msra.mxu0 %v102
  %120 = vmatprep.subr.bf16.mxu0 0
  %121 = vmatpush1.bf16.msra.mxu0 %v103
  %122 = vmatprep.subr.bf16.mxu0 0
  %123 = vmatpush1.bf16.msra.mxu0 %v104
  %124 = vmatprep.subr.bf16.mxu0 0
  %125 = vmatpush1.bf16.msra.mxu0 %v105
  %126 = vmatprep.subr.bf16.mxu0 0
  %127 = vmatpush1.bf16.msra.mxu0 %v106
  %128 = vmatprep.subr.bf16.mxu0 0
  %129 = vmatpush1.bf16.msra.mxu0 %v107
  %130 = vmatprep.subr.bf16.mxu0 0
  %131 = vmatpush1.bf16.msra.mxu0 %v108
  %132 = vmatprep.subr.bf16.mxu0 0
  %133 = vmatpush1.bf16.msra.mxu0 %v109
  %134 = vmatprep.subr.bf16.mxu0 0
  %135 = vmatpush1.bf16.msra.mxu0 0
  %136 = vmatprep.subr.bf16.mxu0 0
  %137 = vmatpush1.bf16.msra.mxu0 0
  %138 = vmatprep.subr.bf16.mxu0 0
  %139 = vmatpush1.bf16.msra.mxu0 0
  %140 = vmatprep.subr.bf16.mxu0 0
  %141 = vmatpush1.bf16.msra.mxu0 0
  %142 = vmatprep.subr.bf16.mxu0 0
  %143 = vmatpush1.bf16.msra.mxu0 0
  %144 = vmatprep.subr.bf16.mxu0 0
  %145 = vmatpush1.bf16.msra.mxu0 0
  %146 = vmatprep.subr.bf16.mxu0 0
  %147 = vmatpush1.bf16.msra.mxu0 0
  %148 = vmatprep.subr.bf16.mxu0 0
  %149 = vmatpush1.bf16.msra.mxu0 0
  %150 = vmatprep.mubr.bf16.mxu0 0
  %151 = vmatmul.mubr.bf16.gmra.mrb[0].mxu0 %v62
  %v152 = vpop.f32.mrb[0].mxu0
  %v153 = vadd.f32 %v44, %v152
  %v154 = vpop.f32.mrb[0].mxu0
  %v155 = vpop.f32.mrb[0].mxu0
  %v156 = vadd.f32 %v44, %v155
  %v157 = vpop.f32.mrb[0].mxu0
  %158 = vmatprep.mubr.bf16.mxu0 0
  %159 = vmatmul.mubr.bf16.gmra.mrb[0].mxu0 %v63
  %v160 = vpop.f32.mrb[0].mxu0
  %v161 = vadd.f32 %v44, %v160
  %v162 = vpop.f32.mrb[0].mxu0
  %v163 = vpop.f32.mrb[0].mxu0
  %v164 = vadd.f32 %v44, %v163
  %v165 = vpop.f32.mrb[0].mxu0
  %166 = vmatprep.mubr.bf16.mxu0 0
  %167 = vmatmul.mubr.bf16.gmra.mrb[0].mxu0 %v64
  %v168 = vpop.f32.mrb[0].mxu0
  %v169 = vadd.f32 %v44, %v168
  %v170 = vpop.f32.mrb[0].mxu0
  %v171 = vpop.f32.mrb[0].mxu0
  %v172 = vadd.f32 %v44, %v171
  %v173 = vpop.f32.mrb[0].mxu0
  %174 = vmatprep.mubr.bf16.mxu0 0
  %175 = vmatmul.mubr.bf16.gmra.mrb[0].mxu0 %v65
  %v176 = vpop.f32.mrb[0].mxu0
  %v177 = vadd.f32 %v44, %v176
  %v178 = vpop.f32.mrb[0].mxu0
  %v179 = vpop.f32.mrb[0].mxu0
  %v180 = vadd.f32 %v44, %v179
  %v181 = vpop.f32.mrb[0].mxu0
  %182 = vdwg.mxu0
  %v183 = vpack.c.bf16 %v156, %v153
  %v184 = vpack.c.bf16 %v164, %v161
  %v185 = vpack.c.bf16 %v172, %v169
  %v186 = vpack.c.bf16 %v180, %v177
  %v191 = vunpack.c.l.b16 %v183
  %v192 = vunpack.c.h.b16 %v183
  %v193 = vunpack.c.l.b16 %v184
  %v194 = vunpack.c.h.b16 %v184
  %v195 = vunpack.c.l.b16 %v185
  %v196 = vunpack.c.h.b16 %v185
  %v197 = vunpack.c.l.b16 %v186
  %v198 = vunpack.c.h.b16 %v186
  %v199 = vpack.c.b16 %v191, %v191
  %v200 = vpack.c.b16 %v192, %v192
  %v201 = vpack.c.b16 %v193, %v193
  %v202 = vpack.c.b16 %v194, %v194
  %v203 = vpack.c.b16 %v195, %v195
  %v204 = vpack.c.b16 %v196, %v196
  %v205 = vpack.c.b16 %v197, %v197
  %v206 = vpack.c.b16 %v198, %v198
  %215 = vst [vmem:[%s3] sm:$0xf] %v199
  %216 = vst [vmem:[%s3 + $0x4] sm:$0xf] %v200
  %217 = vst [vmem:[%s3 + $0x8] sm:$0xf] %v201
  %218 = vst [vmem:[%s3 + $0xc] sm:$0xf] %v202
  %219 = vst [vmem:[%s3 + $0x10] sm:$0xf] %v203
  %220 = vst [vmem:[%s3 + $0x14] sm:$0xf] %v204
  %221 = vst [vmem:[%s3 + $0x18] sm:$0xf] %v205
  %222 = vst [vmem:[%s3 + $0x1c] sm:$0xf] %v206
  // Predicated region
  $region14: #{_lambda_.31} parent=0 // pred_check
    _
  $region15: #{_lambda_.31} parent=0 // pred_check_branch
    %224 = sbr.rel (0) target = $region17
  $region16: #{_lambda_.31} parent=0 // pred_region
    _
  $region17: #{_lambda_.31} parent=0 // pred_fallthru
    _
  // Predicated region
  $region18: #{_lambda_.31} parent=0 // pred_check
    _
  $region19: #{_lambda_.31} parent=0 // pred_check_branch
    %226 = sbr.rel (0) target = $region21
  $region20: #{_lambda_.31} parent=0 // pred_region
    _
  $region21: #{_lambda_.31} parent=0 // pred_fallthru
    _

// kernel: _lambda_.30
$region0: #{_lambda_.30}
  #allocation0 [shape = 'u32[]', space=smem, size = 0x4, offset = 0x4, fixed_abs, tag = 'smem constant byte address 0x4 - core index']
  #allocation1 [shape = 'u32[144,128]{1,0:T(1,128)}', space=vmem, size = 0x12000, scoped, tag = 'internal scratch']
  %s0 = inlined_call_operand.vmem [shape: bf16[64,1152], index: 0, kind: input, shape index: {}]
  %s1 = inlined_call_operand.vmem [shape: bf16[1152,128], index: 1, kind: input, shape index: {}]
  %s2 = inlined_call_operand.vmem [shape: f32[1,128], index: 2, kind: input, shape index: {}]
  %s3 = inlined_call_operand.vmem [shape: bf16[64,128], index: 3, kind: output, shape index: {}]
  %s4 = sld [smem:[#allocation0]]
  $region22: #{_lambda_.30} parent=0
    _
  %s6 = ssub.s32 1, %s4
  %s7 = scalar_select 0, %s6, %s4
  // Predicated region
  $region2: #{_lambda_.30} parent=0 // pred_check
    _
  $region3: #{_lambda_.30} parent=0 // pred_check_branch
    %9 = sbr.rel (0) target = $region5
  $region4: #{_lambda_.30} parent=0 // pred_region
    _
  $region5: #{_lambda_.30} parent=0 // pred_fallthru
    _
  // Predicated region
  $region6: #{_lambda_.30} parent=0 // pred_check
    _
  $region7: #{_lambda_.30} parent=0 // pred_check_branch
    %11 = sbr.rel (0) target = $region9
  $region8: #{_lambda_.30} parent=0 // pred_region
    _
  $region9: #{_lambda_.30} parent=0 // pred_fallthru
    _
  // Predicated region
  $region10: #{_lambda_.30} parent=0 // pred_check
    _
  $region11: #{_lambda_.30} parent=0 // pred_check_branch
    %13 = sbr.rel (0) target = $region13
  $region12: #{_lambda_.30} parent=0 // pred_region
    _
  $region13: #{_lambda_.30} parent=0 // pred_fallthru
    _
  %v15 = vld [vmem:[%s0] sm:$0xff]
  %v16 = vld [vmem:[%s0 + $0x8] sm:$0xff]
  %v17 = vld [vmem:[%s0 + $0x10] sm:$0xff]
  %v18 = vld [vmem:[%s0 + $0x18] sm:$0xff]
  %v19 = vld [vmem:[%s0 + $0x20] sm:$0xf]
  %v20 = vld [vmem:[%s0 + $0x24] sm:$0xff]
  %v21 = vld [vmem:[%s0 + $0x2c] sm:$0xff]
  %v22 = vld [vmem:[%s0 + $0x34] sm:$0xff]
  %v23 = vld [vmem:[%s0 + $0x3c] sm:$0xff]
  %v24 = vld [vmem:[%s0 + $0x44] sm:$0xf]
  %v25 = vld [vmem:[%s0 + $0x48] sm:$0xff]
  %v26 = vld [vmem:[%s0 + $0x50] sm:$0xff]
  %v27 = vld [vmem:[%s0 + $0x58] sm:$0xff]
  %v28 = vld [vmem:[%s0 + $0x60] sm:$0xff]
  %v29 = vld [vmem:[%s0 + $0x68] sm:$0xf]
  %v30 = vld [vmem:[%s0 + $0x6c] sm:$0xff]
  %v31 = vld [vmem:[%s0 + $0x74] sm:$0xff]
  %v32 = vld [vmem:[%s0 + $0x7c] sm:$0xff]
  %v33 = vld [vmem:[%s0 + $0x84] sm:$0xff]
  %v34 = vld [vmem:[%s0 + $0x8c] sm:$0xf]
  %v35 = vld [vmem:[%s0 + $0x90] sm:$0xff]
  %v36 = vld [vmem:[%s0 + $0x98] sm:$0xff]
  %v37 = vld [vmem:[%s0 + $0xa0] sm:$0xff]
  %v38 = vld [vmem:[%s0 + $0xa8] sm:$0xff]
  %v39 = vld [vmem:[%s0 + $0xb0] sm:$0xf]
  %v40 = vld [vmem:[%s0 + $0xb4] sm:$0xff]
  %v41 = vld [vmem:[%s0 + $0xbc] sm:$0xff]
  %v42 = vld [vmem:[%s0 + $0xc4] sm:$0xff]
  %v43 = vld [vmem:[%s0 + $0xcc] sm:$0xff]
  %v44 = vld [vmem:[%s0 + $0xd4] sm:$0xf]
  %v45 = vld [vmem:[%s0 + $0xd8] sm:$0xff]
  %v46 = vld [vmem:[%s0 + $0xe0] sm:$0xff]
  %v47 = vld [vmem:[%s0 + $0xe8] sm:$0xff]
  %v48 = vld [vmem:[%s0 + $0xf0] sm:$0xff]
  %v49 = vld [vmem:[%s0 + $0xf8] sm:$0xf]
  %v50 = vld [vmem:[%s0 + $0xfc] sm:$0xff]
  %v51 = vld [vmem:[%s0 + $0x104] sm:$0xff]
  %v52 = vld [vmem:[%s0 + $0x10c] sm:$0xff]
  %v53 = vld [vmem:[%s0 + $0x114] sm:$0xff]
  %v54 = vld [vmem:[%s0 + $0x11c] sm:$0xf]
  %v55 = vld [vmem:[%s1] sm:$0xf]
  %v56 = vld [vmem:[%s1 + $0x4] sm:$0xf]
  %v57 = vld [vmem:[%s1 + $0x8] sm:$0xf]
  %v58 = vld [vmem:[%s1 + $0xc] sm:$0xf]
  %v59 = vld [vmem:[%s1 + $0x10] sm:$0xf]
  %v60 = vld [vmem:[%s1 + $0x14] sm:$0xf]
  %v61 = vld [vmem:[%s1 + $0x18] sm:$0xf]
  %v62 = vld [vmem:[%s1 + $0x1c] sm:$0xf]
  %v63 = vld [vmem:[%s1 + $0x20] sm:$0xf]
  %v64 = vld [vmem:[%s1 + $0x24] sm:$0xf]
  %v65 = vld [vmem:[%s1 + $0x28] sm:$0xf]
  %v66 = vld [vmem:[%s1 + $0x2c] sm:$0xf]
  %v67 = vld [vmem:[%s1 + $0x30] sm:$0xf]
  %v68 = vld [vmem:[%s1 + $0x34] sm:$0xf]
  %v69 = vld [vmem:[%s1 + $0x38] sm:$0xf]
  %v70 = vld [vmem:[%s1 + $0x3c] sm:$0xf]
  %v71 = vld [vmem:[%s1 + $0x40] sm:$0xf]
  %v72 = vld [vmem:[%s1 + $0x44] sm:$0xf]
  %v73 = vld [vmem:[%s1 + $0x48] sm:$0xf]
  %v74 = vld [vmem:[%s1 + $0x4c] sm:$0xf]
  %v75 = vld [vmem:[%s1 + $0x50] sm:$0xf]
  %v76 = vld [vmem:[%s1 + $0x54] sm:$0xf]
  %v77 = vld [vmem:[%s1 + $0x58] sm:$0xf]
  %v78 = vld [vmem:[%s1 + $0x5c] sm:$0xf]
  %v79 = vld [vmem:[%s1 + $0x60] sm:$0xf]
  %v80 = vld [vmem:[%s1 + $0x64] sm:$0xf]
  %v81 = vld [vmem:[%s1 + $0x68] sm:$0xf]
  %v82 = vld [vmem:[%s1 + $0x6c] sm:$0xf]
  %v83 = vld [vmem:[%s1 + $0x70] sm:$0xf]
  %v84 = vld [vmem:[%s1 + $0x74] sm:$0xf]
  %v85 = vld [vmem:[%s1 + $0x78] sm:$0xf]
  %v86 = vld [vmem:[%s1 + $0x7c] sm:$0xf]
  %v87 = vld [vmem:[%s1 + $0x80] sm:$0xf]
  %v88 = vld [vmem:[%s1 + $0x84] sm:$0xf]
  %v89 = vld [vmem:[%s1 + $0x88] sm:$0xf]
  %v90 = vld [vmem:[%s1 + $0x8c] sm:$0xf]
  %v91 = vld [vmem:[%s1 + $0x90] sm:$0xf]
  %v92 = vld [vmem:[%s1 + $0x94] sm:$0xf]
  %v93 = vld [vmem:[%s1 + $0x98] sm:$0xf]
  %v94 = vld [vmem:[%s1 + $0x9c] sm:$0xf]
  %v95 = vld [vmem:[%s1 + $0xa0] sm:$0xf]
  %v96 = vld [vmem:[%s1 + $0xa4] sm:$0xf]
  %v97 = vld [vmem:[%s1 + $0xa8] sm:$0xf]
  %v98 = vld [vmem:[%s1 + $0xac] sm:$0xf]
  %v99 = vld [vmem:[%s1 + $0xb0] sm:$0xf]
  %v100 = vld [vmem:[%s1 + $0xb4] sm:$0xf]
  %v101 = vld [vmem:[%s1 + $0xb8] sm:$0xf]
  %v102 = vld [vmem:[%s1 + $0xbc] sm:$0xf]
  %v103 = vld [vmem:[%s1 + $0xc0] sm:$0xf]
  %v104 = vld [vmem:[%s1 + $0xc4] sm:$0xf]
  %v105 = vld [vmem:[%s1 + $0xc8] sm:$0xf]
  %v106 = vld [vmem:[%s1 + $0xcc] sm:$0xf]
  %v107 = vld [vmem:[%s1 + $0xd0] sm:$0xf]
  %v108 = vld [vmem:[%s1 + $0xd4] sm:$0xf]
  %v109 = vld [vmem:[%s1 + $0xd8] sm:$0xf]
  %v110 = vld [vmem:[%s1 + $0xdc] sm:$0xf]
  %v111 = vld [vmem:[%s1 + $0xe0] sm:$0xf]
  %v112 = vld [vmem:[%s1 + $0xe4] sm:$0xf]
  %v113 = vld [vmem:[%s1 + $0xe8] sm:$0xf]
  %v114 = vld [vmem:[%s1 + $0xec] sm:$0xf]
  %v115 = vld [vmem:[%s1 + $0xf0] sm:$0xf]
  %v116 = vld [vmem:[%s1 + $0xf4] sm:$0xf]
  %v117 = vld [vmem:[%s1 + $0xf8] sm:$0xf]
  %v118 = vld [vmem:[%s1 + $0xfc] sm:$0xf]
  %v119 = vld [vmem:[%s1 + $0x100] sm:$0xf]
  %v120 = vld [vmem:[%s1 + $0x104] sm:$0xf]
  %v121 = vld [vmem:[%s1 + $0x108] sm:$0xf]
  %v122 = vld [vmem:[%s1 + $0x10c] sm:$0xf]
  %v123 = vld [vmem:[%s1 + $0x110] sm:$0xf]
  %v124 = vld [vmem:[%s1 + $0x114] sm:$0xf]
  %v125 = vld [vmem:[%s1 + $0x118] sm:$0xf]
  %v126 = vld [vmem:[%s1 + $0x11c] sm:$0xf]
  %v127 = vld [vmem:[%s1 + $0x120] sm:$0xf]
  %v128 = vld [vmem:[%s1 + $0x124] sm:$0xf]
  %v129 = vld [vmem:[%s1 + $0x128] sm:$0xf]
  %v130 = vld [vmem:[%s1 + $0x12c] sm:$0xf]
  %v131 = vld [vmem:[%s1 + $0x130] sm:$0xf]
  %v132 = vld [vmem:[%s1 + $0x134] sm:$0xf]
  %v133 = vld [vmem:[%s1 + $0x138] sm:$0xf]
  %v134 = vld [vmem:[%s1 + $0x13c] sm:$0xf]
  %v135 = vld [vmem:[%s1 + $0x140] sm:$0xf]
  %v136 = vld [vmem:[%s1 + $0x144] sm:$0xf]
  %v137 = vld [vmem:[%s1 + $0x148] sm:$0xf]
  %v138 = vld [vmem:[%s1 + $0x14c] sm:$0xf]
  %v139 = vld [vmem:[%s1 + $0x150] sm:$0xf]
  %v140 = vld [vmem:[%s1 + $0x154] sm:$0xf]
  %v141 = vld [vmem:[%s1 + $0x158] sm:$0xf]
  %v142 = vld [vmem:[%s1 + $0x15c] sm:$0xf]
  %v143 = vld [vmem:[%s1 + $0x160] sm:$0xf]
  %v144 = vld [vmem:[%s1 + $0x164] sm:$0xf]
  %v145 = vld [vmem:[%s1 + $0x168] sm:$0xf]
  %v146 = vld [vmem:[%s1 + $0x16c] sm:$0xf]
  %v147 = vld [vmem:[%s1 + $0x170] sm:$0xf]
  %v148 = vld [vmem:[%s1 + $0x174] sm:$0xf]
  %v149 = vld [vmem:[%s1 + $0x178] sm:$0xf]
  %v150 = vld [vmem:[%s1 + $0x17c] sm:$0xf]
  %v151 = vld [vmem:[%s1 + $0x180] sm:$0xf]
  %v152 = vld [vmem:[%s1 + $0x184] sm:$0xf]
  %v153 = vld [vmem:[%s1 + $0x188] sm:$0xf]
  %v154 = vld [vmem:[%s1 + $0x18c] sm:$0xf]
  %v155 = vld [vmem:[%s1 + $0x190] sm:$0xf]
  %v156 = vld [vmem:[%s1 + $0x194] sm:$0xf]
  %v157 = vld [vmem:[%s1 + $0x198] sm:$0xf]
  %v158 = vld [vmem:[%s1 + $0x19c] sm:$0xf]
  %v159 = vld [vmem:[%s1 + $0x1a0] sm:$0xf]
  %v160 = vld [vmem:[%s1 + $0x1a4] sm:$0xf]
  %v161 = vld [vmem:[%s1 + $0x1a8] sm:$0xf]
  %v162 = vld [vmem:[%s1 + $0x1ac] sm:$0xf]
  %v163 = vld [vmem:[%s1 + $0x1b0] sm:$0xf]
  %v164 = vld [vmem:[%s1 + $0x1b4] sm:$0xf]
  %v165 = vld [vmem:[%s1 + $0x1b8] sm:$0xf]
  %v166 = vld [vmem:[%s1 + $0x1bc] sm:$0xf]
  %v167 = vld [vmem:[%s1 + $0x1c0] sm:$0xf]
  %v168 = vld [vmem:[%s1 + $0x1c4] sm:$0xf]
  %v169 = vld [vmem:[%s1 + $0x1c8] sm:$0xf]
  %v170 = vld [vmem:[%s1 + $0x1cc] sm:$0xf]
  %v171 = vld [vmem:[%s1 + $0x1d0] sm:$0xf]
  %v172 = vld [vmem:[%s1 + $0x1d4] sm:$0xf]
  %v173 = vld [vmem:[%s1 + $0x1d8] sm:$0xf]
  %v174 = vld [vmem:[%s1 + $0x1dc] sm:$0xf]
  %v175 = vld [vmem:[%s1 + $0x1e0] sm:$0xf]
  %v176 = vld [vmem:[%s1 + $0x1e4] sm:$0xf]
  %v177 = vld [vmem:[%s1 + $0x1e8] sm:$0xf]
  %v178 = vld [vmem:[%s1 + $0x1ec] sm:$0xf]
  %v179 = vld [vmem:[%s1 + $0x1f0] sm:$0xf]
  %v180 = vld [vmem:[%s1 + $0x1f4] sm:$0xf]
  %v181 = vld [vmem:[%s1 + $0x1f8] sm:$0xf]
  %v182 = vld [vmem:[%s1 + $0x1fc] sm:$0xf]
  %v183 = vld [vmem:[%s1 + $0x200] sm:$0xf]
  %v184 = vld [vmem:[%s1 + $0x204] sm:$0xf]
  %v185 = vld [vmem:[%s1 + $0x208] sm:$0xf]
  %v186 = vld [vmem:[%s1 + $0x20c] sm:$0xf]
  %v187 = vld [vmem:[%s1 + $0x210] sm:$0xf]
  %v188 = vld [vmem:[%s1 + $0x214] sm:$0xf]
  %v189 = vld [vmem:[%s1 + $0x218] sm:$0xf]
  %v190 = vld [vmem:[%s1 + $0x21c] sm:$0xf]
  %v191 = vld [vmem:[%s1 + $0x220] sm:$0xf]
  %v192 = vld [vmem:[%s1 + $0x224] sm:$0xf]
  %v193 = vld [vmem:[%s1 + $0x228] sm:$0xf]
  %v194 = vld [vmem:[%s1 + $0x22c] sm:$0xf]
  %v195 = vld [vmem:[%s1 + $0x230] sm:$0xf]
  %v196 = vld [vmem:[%s1 + $0x234] sm:$0xf]
  %v197 = vld [vmem:[%s1 + $0x238] sm:$0xf]
  %v198 = vld [vmem:[%s1 + $0x23c] sm:$0xf]
  %v199 = vld [vmem:[%s2] sm:$0x1]
  %v201 = vlaneseq
  %v202 = vshrl.u32 %v201, 7
  %v203 = vsub.s32 0, %v202
  %v204 = vrot.slane %v199, %v203
  %v246 = vunpack.c.l.b16 %v15
  %v247 = vunpack.c.h.b16 %v15
  %v248 = vunpack.c.l.b16 %v16
  %v249 = vunpack.c.h.b16 %v16
  %v250 = vunpack.c.l.b16 %v17
  %v251 = vunpack.c.h.b16 %v17
  %v252 = vunpack.c.l.b16 %v18
  %v253 = vunpack.c.h.b16 %v18
  %v254 = vunpack.c.l.b16 %v19
  %v255 = vunpack.c.l.b16 %v20
  %v256 = vunpack.c.h.b16 %v20
  %v257 = vunpack.c.l.b16 %v21
  %v258 = vunpack.c.h.b16 %v21
  %v259 = vunpack.c.l.b16 %v22
  %v260 = vunpack.c.h.b16 %v22
  %v261 = vunpack.c.l.b16 %v23
  %v262 = vunpack.c.h.b16 %v23
  %v263 = vunpack.c.l.b16 %v24
  %v264 = vunpack.c.l.b16 %v25
  %v265 = vunpack.c.h.b16 %v25
  %v266 = vunpack.c.l.b16 %v26
  %v267 = vunpack.c.h.b16 %v26
  %v268 = vunpack.c.l.b16 %v27
  %v269 = vunpack.c.h.b16 %v27
  %v270 = vunpack.c.l.b16 %v28
  %v271 = vunpack.c.h.b16 %v28
  %v272 = vunpack.c.l.b16 %v29
  %v273 = vunpack.c.l.b16 %v30
  %v274 = vunpack.c.h.b16 %v30
  %v275 = vunpack.c.l.b16 %v31
  %v276 = vunpack.c.h.b16 %v31
  %v277 = vunpack.c.l.b16 %v32
  %v278 = vunpack.c.h.b16 %v32
  %v279 = vunpack.c.l.b16 %v33
  %v280 = vunpack.c.h.b16 %v33
  %v281 = vunpack.c.l.b16 %v34
  %v282 = vunpack.c.l.b16 %v35
  %v283 = vunpack.c.h.b16 %v35
  %v284 = vunpack.c.l.b16 %v36
  %v285 = vunpack.c.h.b16 %v36
  %v286 = vunpack.c.l.b16 %v37
  %v287 = vunpack.c.h.b16 %v37
  %v288 = vunpack.c.l.b16 %v38
  %v289 = vunpack.c.h.b16 %v38
  %v290 = vunpack.c.l.b16 %v39
  %v291 = vunpack.c.l.b16 %v40
  %v292 = vunpack.c.h.b16 %v40
  %v293 = vunpack.c.l.b16 %v41
  %v294 = vunpack.c.h.b16 %v41
  %v295 = vunpack.c.l.b16 %v42
  %v296 = vunpack.c.h.b16 %v42
  %v297 = vunpack.c.l.b16 %v43
  %v298 = vunpack.c.h.b16 %v43
  %v299 = vunpack.c.l.b16 %v44
  %v300 = vunpack.c.l.b16 %v45
  %v301 = vunpack.c.h.b16 %v45
  %v302 = vunpack.c.l.b16 %v46
  %v303 = vunpack.c.h.b16 %v46
  %v304 = vunpack.c.l.b16 %v47
  %v305 = vunpack.c.h.b16 %v47
  %v306 = vunpack.c.l.b16 %v48
  %v307 = vunpack.c.h.b16 %v48
  %v308 = vunpack.c.l.b16 %v49
  %v309 = vunpack.c.l.b16 %v50
  %v310 = vunpack.c.h.b16 %v50
  %v311 = vunpack.c.l.b16 %v51
  %v312 = vunpack.c.h.b16 %v51
  %v313 = vunpack.c.l.b16 %v52
  %v314 = vunpack.c.h.b16 %v52
  %v315 = vunpack.c.l.b16 %v53
  %v316 = vunpack.c.h.b16 %v53
  %v317 = vunpack.c.l.b16 %v54
  %v318 = vpack.c.b16 %v255, %v246
  %v319 = vpack.c.b16 %v256, %v247
  %v320 = vpack.c.b16 %v257, %v248
  %v321 = vpack.c.b16 %v258, %v249
  %v322 = vpack.c.b16 %v259, %v250
  %v323 = vpack.c.b16 %v260, %v251
  %v324 = vpack.c.b16 %v261, %v252
  %v325 = vpack.c.b16 %v262, %v253
  %v326 = vpack.c.b16 %v263, %v254
  %v327 = vpack.c.b16 %v273, %v264
  %v328 = vpack.c.b16 %v274, %v265
  %v329 = vpack.c.b16 %v275, %v266
  %v330 = vpack.c.b16 %v276, %v267
  %v331 = vpack.c.b16 %v277, %v268
  %v332 = vpack.c.b16 %v278, %v269
  %v333 = vpack.c.b16 %v279, %v270
  %v334 = vpack.c.b16 %v280, %v271
  %v335 = vpack.c.b16 %v281, %v272
  %v336 = vpack.c.b16 %v291, %v282
  %v337 = vpack.c.b16 %v292, %v283
  %v338 = vpack.c.b16 %v293, %v284
  %v339 = vpack.c.b16 %v294, %v285
  %v340 = vpack.c.b16 %v295, %v286
  %v341 = vpack.c.b16 %v296, %v287
  %v342 = vpack.c.b16 %v297, %v288
  %v343 = vpack.c.b16 %v298, %v289
  %v344 = vpack.c.b16 %v299, %v290
  %v345 = vpack.c.b16 %v309, %v300
  %v346 = vpack.c.b16 %v310, %v301
  %v347 = vpack.c.b16 %v311, %v302
  %v348 = vpack.c.b16 %v312, %v303
  %v349 = vpack.c.b16 %v313, %v304
  %v350 = vpack.c.b16 %v314, %v305
  %v351 = vpack.c.b16 %v315, %v306
  %v352 = vpack.c.b16 %v316, %v307
  %v353 = vpack.c.b16 %v317, %v308
  %v534 = vunpack.c.l.b16 %v55
  %v535 = vunpack.c.l.b16 %v56
  %v536 = vunpack.c.l.b16 %v57
  %v537 = vunpack.c.l.b16 %v58
  %v538 = vunpack.c.l.b16 %v59
  %v539 = vunpack.c.l.b16 %v60
  %v540 = vunpack.c.l.b16 %v61
  %v541 = vunpack.c.l.b16 %v62
  %v542 = vunpack.c.l.b16 %v63
  %v543 = vunpack.c.l.b16 %v64
  %v544 = vunpack.c.l.b16 %v65
  %v545 = vunpack.c.l.b16 %v66
  %v546 = vunpack.c.l.b16 %v67
  %v547 = vunpack.c.l.b16 %v68
  %v548 = vunpack.c.l.b16 %v69
  %v549 = vunpack.c.l.b16 %v70
  %v550 = vunpack.c.l.b16 %v71
  %v551 = vunpack.c.l.b16 %v72
  %v552 = vunpack.c.l.b16 %v73
  %v553 = vunpack.c.l.b16 %v74
  %v554 = vunpack.c.l.b16 %v75
  %v555 = vunpack.c.l.b16 %v76
  %v556 = vunpack.c.l.b16 %v77
  %v557 = vunpack.c.l.b16 %v78
  %v558 = vunpack.c.l.b16 %v79
  %v559 = vunpack.c.l.b16 %v80
  %v560 = vunpack.c.l.b16 %v81
  %v561 = vunpack.c.l.b16 %v82
  %v562 = vunpack.c.l.b16 %v83
  %v563 = vunpack.c.l.b16 %v84
  %v564 = vunpack.c.l.b16 %v85
  %v565 = vunpack.c.l.b16 %v86
  %v566 = vunpack.c.l.b16 %v87
  %v567 = vunpack.c.l.b16 %v88
  %v568 = vunpack.c.l.b16 %v89
  %v569 = vunpack.c.l.b16 %v90
  %v570 = vunpack.c.l.b16 %v91
  %v571 = vunpack.c.l.b16 %v92
  %v572 = vunpack.c.l.b16 %v93
  %v573 = vunpack.c.l.b16 %v94
  %v574 = vunpack.c.l.b16 %v95
  %v575 = vunpack.c.l.b16 %v96
  %v576 = vunpack.c.l.b16 %v97
  %v577 = vunpack.c.l.b16 %v98
  %v578 = vunpack.c.l.b16 %v99
  %v579 = vunpack.c.l.b16 %v100
  %v580 = vunpack.c.l.b16 %v101
  %v581 = vunpack.c.l.b16 %v102
  %v582 = vunpack.c.l.b16 %v103
  %v583 = vunpack.c.l.b16 %v104
  %v584 = vunpack.c.l.b16 %v105
  %v585 = vunpack.c.l.b16 %v106
  %v586 = vunpack.c.l.b16 %v107
  %v587 = vunpack.c.l.b16 %v108
  %v588 = vunpack.c.l.b16 %v109
  %v589 = vunpack.c.l.b16 %v110
  %v590 = vunpack.c.l.b16 %v111
  %v591 = vunpack.c.l.b16 %v112
  %v592 = vunpack.c.l.b16 %v113
  %v593 = vunpack.c.l.b16 %v114
  %v594 = vunpack.c.l.b16 %v115
  %v595 = vunpack.c.l.b16 %v116
  %v596 = vunpack.c.l.b16 %v117
  %v597 = vunpack.c.l.b16 %v118
  %v598 = vunpack.c.l.b16 %v119
  %v599 = vunpack.c.l.b16 %v120
  %v600 = vunpack.c.l.b16 %v121
  %v601 = vunpack.c.l.b16 %v122
  %v602 = vunpack.c.l.b16 %v123
  %v603 = vunpack.c.l.b16 %v124
  %v604 = vunpack.c.l.b16 %v125
  %v605 = vunpack.c.l.b16 %v126
  %v606 = vunpack.c.l.b16 %v127
  %v607 = vunpack.c.l.b16 %v128
  %v608 = vunpack.c.l.b16 %v129
  %v609 = vunpack.c.l.b16 %v130
  %v610 = vunpack.c.l.b16 %v131
  %v611 = vunpack.c.l.b16 %v132
  %v612 = vunpack.c.l.b16 %v133
  %v613 = vunpack.c.l.b16 %v134
  %v614 = vunpack.c.l.b16 %v135
  %v615 = vunpack.c.l.b16 %v136
  %v616 = vunpack.c.l.b16 %v137
  %v617 = vunpack.c.l.b16 %v138
  %v618 = vunpack.c.l.b16 %v139
  %v619 = vunpack.c.l.b16 %v140
  %v620 = vunpack.c.l.b16 %v141
  %v621 = vunpack.c.l.b16 %v142
  %v622 = vunpack.c.l.b16 %v143
  %v623 = vunpack.c.l.b16 %v144
  %v624 = vunpack.c.l.b16 %v145
  %v625 = vunpack.c.l.b16 %v146
  %v626 = vunpack.c.l.b16 %v147
  %v627 = vunpack.c.l.b16 %v148
  %v628 = vunpack.c.l.b16 %v149
  %v629 = vunpack.c.l.b16 %v150
  %v630 = vunpack.c.l.b16 %v151
  %v631 = vunpack.c.l.b16 %v152
  %v632 = vunpack.c.l.b16 %v153
  %v633 = vunpack.c.l.b16 %v154
  %v634 = vunpack.c.l.b16 %v155
  %v635 = vunpack.c.l.b16 %v156
  %v636 = vunpack.c.l.b16 %v157
  %v637 = vunpack.c.l.b16 %v158
  %v638 = vunpack.c.l.b16 %v159
  %v639 = vunpack.c.l.b16 %v160
  %v640 = vunpack.c.l.b16 %v161
  %v641 = vunpack.c.l.b16 %v162
  %v642 = vunpack.c.l.b16 %v163
  %v643 = vunpack.c.l.b16 %v164
  %v644 = vunpack.c.l.b16 %v165
  %v645 = vunpack.c.l.b16 %v166
  %v646 = vunpack.c.l.b16 %v167
  %v647 = vunpack.c.l.b16 %v168
  %v648 = vunpack.c.l.b16 %v169
  %v649 = vunpack.c.l.b16 %v170
  %v650 = vunpack.c.l.b16 %v171
  %v651 = vunpack.c.l.b16 %v172
  %v652 = vunpack.c.l.b16 %v173
  %v653 = vunpack.c.l.b16 %v174
  %v654 = vunpack.c.l.b16 %v175
  %v655 = vunpack.c.l.b16 %v176
  %v656 = vunpack.c.l.b16 %v177
  %v657 = vunpack.c.l.b16 %v178
  %v658 = vunpack.c.l.b16 %v179
  %v659 = vunpack.c.l.b16 %v180
  %v660 = vunpack.c.l.b16 %v181
  %v661 = vunpack.c.l.b16 %v182
  %v662 = vunpack.c.l.b16 %v183
  %v663 = vunpack.c.l.b16 %v184
  %v664 = vunpack.c.l.b16 %v185
  %v665 = vunpack.c.l.b16 %v186
  %v666 = vunpack.c.l.b16 %v187
  %v667 = vunpack.c.l.b16 %v188
  %v668 = vunpack.c.l.b16 %v189
  %v669 = vunpack.c.l.b16 %v190
  %v670 = vunpack.c.l.b16 %v191
  %v671 = vunpack.c.l.b16 %v192
  %v672 = vunpack.c.l.b16 %v193
  %v673 = vunpack.c.l.b16 %v194
  %v674 = vunpack.c.l.b16 %v195
  %v675 = vunpack.c.l.b16 %v196
  %v676 = vunpack.c.l.b16 %v197
  %v677 = vunpack.c.l.b16 %v198
  %v678 = vpack.c.b16 %v535, %v534
  %v679 = vpack.c.b16 %v537, %v536
  %v680 = vpack.c.b16 %v539, %v538
  %v681 = vpack.c.b16 %v541, %v540
  %v682 = vpack.c.b16 %v543, %v542
  %v683 = vpack.c.b16 %v545, %v544
  %v684 = vpack.c.b16 %v547, %v546
  %v685 = vpack.c.b16 %v549, %v548
  %v686 = vpack.c.b16 %v551, %v550
  %v687 = vpack.c.b16 %v553, %v552
  %v688 = vpack.c.b16 %v555, %v554
  %v689 = vpack.c.b16 %v557, %v556
  %v690 = vpack.c.b16 %v559, %v558
  %v691 = vpack.c.b16 %v561, %v560
  %v692 = vpack.c.b16 %v563, %v562
  %v693 = vpack.c.b16 %v565, %v564
  %v694 = vpack.c.b16 %v567, %v566
  %v695 = vpack.c.b16 %v569, %v568
  %v696 = vpack.c.b16 %v571, %v570
  %v697 = vpack.c.b16 %v573, %v572
  %v698 = vpack.c.b16 %v575, %v574
  %v699 = vpack.c.b16 %v577, %v576
  %v700 = vpack.c.b16 %v579, %v578
  %v701 = vpack.c.b16 %v581, %v580
  %v702 = vpack.c.b16 %v583, %v582
  %v703 = vpack.c.b16 %v585, %v584
  %v704 = vpack.c.b16 %v587, %v586
  %v705 = vpack.c.b16 %v589, %v588
  %v706 = vpack.c.b16 %v591, %v590
  %v707 = vpack.c.b16 %v593, %v592
  %v708 = vpack.c.b16 %v595, %v594
  %v709 = vpack.c.b16 %v597, %v596
  %v710 = vpack.c.b16 %v599, %v598
  %v711 = vpack.c.b16 %v601, %v600
  %v712 = vpack.c.b16 %v603, %v602
  %v713 = vpack.c.b16 %v605, %v604
  %v714 = vpack.c.b16 %v607, %v606
  %v715 = vpack.c.b16 %v609, %v608
  %v716 = vpack.c.b16 %v611, %v610
  %v717 = vpack.c.b16 %v613, %v612
  %v718 = vpack.c.b16 %v615, %v614
  %v719 = vpack.c.b16 %v617, %v616
  %v720 = vpack.c.b16 %v619, %v618
  %v721 = vpack.c.b16 %v621, %v620
  %v722 = vpack.c.b16 %v623, %v622
  %v723 = vpack.c.b16 %v625, %v624
  %v724 = vpack.c.b16 %v627, %v626
  %v725 = vpack.c.b16 %v629, %v628
  %v726 = vpack.c.b16 %v631, %v630
  %v727 = vpack.c.b16 %v633, %v632
  %v728 = vpack.c.b16 %v635, %v634
  %v729 = vpack.c.b16 %v637, %v636
  %v730 = vpack.c.b16 %v639, %v638
  %v731 = vpack.c.b16 %v641, %v640
  %v732 = vpack.c.b16 %v643, %v642
  %v733 = vpack.c.b16 %v645, %v644
  %v734 = vpack.c.b16 %v647, %v646
  %v735 = vpack.c.b16 %v649, %v648
  %v736 = vpack.c.b16 %v651, %v650
  %v737 = vpack.c.b16 %v653, %v652
  %v738 = vpack.c.b16 %v655, %v654
  %v739 = vpack.c.b16 %v657, %v656
  %v740 = vpack.c.b16 %v659, %v658
  %v741 = vpack.c.b16 %v661, %v660
  %v742 = vpack.c.b16 %v663, %v662
  %v743 = vpack.c.b16 %v665, %v664
  %v744 = vpack.c.b16 %v667, %v666
  %v745 = vpack.c.b16 %v669, %v668
  %v746 = vpack.c.b16 %v671, %v670
  %v747 = vpack.c.b16 %v673, %v672
  %v748 = vpack.c.b16 %v675, %v674
  %v749 = vpack.c.b16 %v677, %v676
  %822 = vmatprep.subr.bf16.mxu0 0
  %823 = vmatpush1.bf16.msra.mxu0 %v678
  %824 = vmatprep.subr.bf16.mxu0 0
  %825 = vmatpush1.bf16.msra.mxu0 %v679
  %826 = vmatprep.subr.bf16.mxu0 0
  %827 = vmatpush1.bf16.msra.mxu0 %v680
  %828 = vmatprep.subr.bf16.mxu0 0
  %829 = vmatpush1.bf16.msra.mxu0 %v681
  %830 = vmatprep.subr.bf16.mxu0 0
  %831 = vmatpush1.bf16.msra.mxu0 %v682
  %832 = vmatprep.subr.bf16.mxu0 0
  %833 = vmatpush1.bf16.msra.mxu0 %v683
  %834 = vmatprep.subr.bf16.mxu0 0
  %835 = vmatpush1.bf16.msra.mxu0 %v684
  %836 = vmatprep.subr.bf16.mxu0 0
  %837 = vmatpush1.bf16.msra.mxu0 %v685
  %838 = vmatprep.subr.bf16.mxu0 0
  %839 = vmatpush1.bf16.msra.mxu0 %v686
  %840 = vmatprep.subr.bf16.mxu0 0
  %841 = vmatpush1.bf16.msra.mxu0 %v687
  %842 = vmatprep.subr.bf16.mxu0 0
  %843 = vmatpush1.bf16.msra.mxu0 %v688
  %844 = vmatprep.subr.bf16.mxu0 0
  %845 = vmatpush1.bf16.msra.mxu0 %v689
  %846 = vmatprep.subr.bf16.mxu0 0
  %847 = vmatpush1.bf16.msra.mxu0 %v690
  %848 = vmatprep.subr.bf16.mxu0 0
  %849 = vmatpush1.bf16.msra.mxu0 %v691
  %850 = vmatprep.subr.bf16.mxu0 0
  %851 = vmatpush1.bf16.msra.mxu0 %v692
  %852 = vmatprep.subr.bf16.mxu0 0
  %853 = vmatpush1.bf16.msra.mxu0 %v693
  %854 = vmatprep.mubr.bf16.mxu0 %v319
  %855 = vmatmul.mubr.bf16.gmra.mrb[0].mxu0 %v318
  %v856 = vpop.f32.mrb[0].mxu0
  %v857 = vadd.f32 %v204, %v856
  %v858 = vpop.f32.mrb[0].mxu0
  %v859 = vpop.f32.mrb[0].mxu0
  %v860 = vadd.f32 %v204, %v859
  %v861 = vpop.f32.mrb[0].mxu0
  %862 = vmatprep.mubr.bf16.mxu0 %v328
  %863 = vmatmul.mubr.bf16.gmra.mrb[0].mxu0 %v327
  %v864 = vpop.f32.mrb[0].mxu0
  %v865 = vadd.f32 %v204, %v864
  %v866 = vpop.f32.mrb[0].mxu0
  %v867 = vpop.f32.mrb[0].mxu0
  %v868 = vadd.f32 %v204, %v867
  %v869 = vpop.f32.mrb[0].mxu0
  %870 = vmatprep.mubr.bf16.mxu0 %v337
  %871 = vmatmul.mubr.bf16.gmra.mrb[0].mxu0 %v336
  %v872 = vpop.f32.mrb[0].mxu0
  %v873 = vadd.f32 %v204, %v872
  %v874 = vpop.f32.mrb[0].mxu0
  %v875 = vpop.f32.mrb[0].mxu0
  %v876 = vadd.f32 %v204, %v875
  %v877 = vpop.f32.mrb[0].mxu0
  %878 = vmatprep.mubr.bf16.mxu0 %v346
  %879 = vmatmul.mubr.bf16.gmra.mrb[0].mxu0 %v345
  %v880 = vpop.f32.mrb[0].mxu0
  %v881 = vadd.f32 %v204, %v880
  %v882 = vpop.f32.mrb[0].mxu0
  %v883 = vpop.f32.mrb[0].mxu0
  %v884 = vadd.f32 %v204, %v883
  %v885 = vpop.f32.mrb[0].mxu0
  %886 = vdwg.mxu0
  %887 = vmatprep.subr.bf16.mxu0 0
  %888 = vmatpush1.bf16.msra.mxu0 %v694
  %889 = vmatprep.subr.bf16.mxu0 0
  %890 = vmatpush1.bf16.msra.mxu0 %v695
  %891 = vmatprep.subr.bf16.mxu0 0
  %892 = vmatpush1.bf16.msra.mxu0 %v696
  %893 = vmatprep.subr.bf16.mxu0 0
  %894 = vmatpush1.bf16.msra.mxu0 %v697
  %895 = vmatprep.subr.bf16.mxu0 0
  %896 = vmatpush1.bf16.msra.mxu0 %v698
  %897 = vmatprep.subr.bf16.mxu0 0
  %898 = vmatpush1.bf16.msra.mxu0 %v699
  %899 = vmatprep.subr.bf16.mxu0 0
  %900 = vmatpush1.bf16.msra.mxu0 %v700
  %901 = vmatprep.subr.bf16.mxu0 0
  %902 = vmatpush1.bf16.msra.mxu0 %v701
  %903 = vmatprep.subr.bf16.mxu0 0
  %904 = vmatpush1.bf16.msra.mxu0 %v702
  %905 = vmatprep.subr.bf16.mxu0 0
  %906 = vmatpush1.bf16.msra.mxu0 %v703
  %907 = vmatprep.subr.bf16.mxu0 0
  %908 = vmatpush1.bf16.msra.mxu0 %v704
  %909 = vmatprep.subr.bf16.mxu0 0
  %910 = vmatpush1.bf16.msra.mxu0 %v705
  %911 = vmatprep.subr.bf16.mxu0 0
  %912 = vmatpush1.bf16.msra.mxu0 %v706
  %913 = vmatprep.subr.bf16.mxu0 0
  %914 = vmatpush1.bf16.msra.mxu0 %v707
  %915 = vmatprep.subr.bf16.mxu0 0
  %916 = vmatpush1.bf16.msra.mxu0 %v708
  %917 = vmatprep.subr.bf16.mxu0 0
  %918 = vmatpush1.bf16.msra.mxu0 %v709
  %919 = vmatprep.mubr.bf16.mxu0 %v321
  %920 = vmatmul.mubr.bf16.gmra.mrb[0].mxu0 %v320
  %v921 = vpop.f32.mrb[0].mxu0
  %v922 = vadd.f32 %v857, %v921
  %v923 = vpop.f32.mrb[0].mxu0
  %v924 = vpop.f32.mrb[0].mxu0
  %v925 = vadd.f32 %v860, %v924
  %v926 = vpop.f32.mrb[0].mxu0
  %927 = vmatprep.mubr.bf16.mxu0 %v330
  %928 = vmatmul.mubr.bf16.gmra.mrb[0].mxu0 %v329
  %v929 = vpop.f32.mrb[0].mxu0
  %v930 = vadd.f32 %v865, %v929
  %v931 = vpop.f32.mrb[0].mxu0
  %v932 = vpop.f32.mrb[0].mxu0
  %v933 = vadd.f32 %v868, %v932
  %v934 = vpop.f32.mrb[0].mxu0
  %935 = vmatprep.mubr.bf16.mxu0 %v339
  %936 = vmatmul.mubr.bf16.gmra.mrb[0].mxu0 %v338
  %v937 = vpop.f32.mrb[0].mxu0
  %v938 = vadd.f32 %v873, %v937
  %v939 = vpop.f32.mrb[0].mxu0
  %v940 = vpop.f32.mrb[0].mxu0
  %v941 = vadd.f32 %v876, %v940
  %v942 = vpop.f32.mrb[0].mxu0
  %943 = vmatprep.mubr.bf16.mxu0 %v348
  %944 = vmatmul.mubr.bf16.gmra.mrb[0].mxu0 %v347
  %v945 = vpop.f32.mrb[0].mxu0
  %v946 = vadd.f32 %v881, %v945
  %v947 = vpop.f32.mrb[0].mxu0
  %v948 = vpop.f32.mrb[0].mxu0
  %v949 = vadd.f32 %v884, %v948
  %v950 = vpop.f32.mrb[0].mxu0
  %951 = vdwg.mxu0
  %952 = vmatprep.subr.bf16.mxu0 0
  %953 = vmatpush1.bf16.msra.mxu0 %v710
  %954 = vmatprep.subr.bf16.mxu0 0
  %955 = vmatpush1.bf16.msra.mxu0 %v711
  %956 = vmatprep.subr.bf16.mxu0 0
  %957 = vmatpush1.bf16.msra.mxu0 %v712
  %958 = vmatprep.subr.bf16.mxu0 0
  %959 = vmatpush1.bf16.msra.mxu0 %v713
  %960 = vmatprep.subr.bf16.mxu0 0
  %961 = vmatpush1.bf16.msra.mxu0 %v714
  %962 = vmatprep.subr.bf16.mxu0 0
  %963 = vmatpush1.bf16.msra.mxu0 %v715
  %964 = vmatprep.subr.bf16.mxu0 0
  %965 = vmatpush1.bf16.msra.mxu0 %v716
  %966 = vmatprep.subr.bf16.mxu0 0
  %967 = vmatpush1.bf16.msra.mxu0 %v717
  %968 = vmatprep.subr.bf16.mxu0 0
  %969 = vmatpush1.bf16.msra.mxu0 %v718
  %970 = vmatprep.subr.bf16.mxu0 0
  %971 = vmatpush1.bf16.msra.mxu0 %v719
  %972 = vmatprep.subr.bf16.mxu0 0
  %973 = vmatpush1.bf16.msra.mxu0 %v720
  %974 = vmatprep.subr.bf16.mxu0 0
  %975 = vmatpush1.bf16.msra.mxu0 %v721
  %976 = vmatprep.subr.bf16.mxu0 0
  %977 = vmatpush1.bf16.msra.mxu0 %v722
  %978 = vmatprep.subr.bf16.mxu0 0
  %979 = vmatpush1.bf16.msra.mxu0 %v723
  %980 = vmatprep.subr.bf16.mxu0 0
  %981 = vmatpush1.bf16.msra.mxu0 %v724
  %982 = vmatprep.subr.bf16.mxu0 0
  %983 = vmatpush1.bf16.msra.mxu0 %v725
  %984 = vmatprep.mubr.bf16.mxu0 %v323
  %985 = vmatmul.mubr.bf16.gmra.mrb[0].mxu0 %v322
  %v986 = vpop.f32.mrb[0].mxu0
  %v987 = vadd.f32 %v922, %v986
  %v988 = vpop.f32.mrb[0].mxu0
  %v989 = vpop.f32.mrb[0].mxu0
  %v990 = vadd.f32 %v925, %v989
  %v991 = vpop.f32.mrb[0].mxu0
  %992 = vmatprep.mubr.bf16.mxu0 %v332
  %993 = vmatmul.mubr.bf16.gmra.mrb[0].mxu0 %v331
  %v994 = vpop.f32.mrb[0].mxu0
  %v995 = vadd.f32 %v930, %v994
  %v996 = vpop.f32.mrb[0].mxu0
  %v997 = vpop.f32.mrb[0].mxu0
  %v998 = vadd.f32 %v933, %v997
  %v999 = vpop.f32.mrb[0].mxu0
  %1000 = vmatprep.mubr.bf16.mxu0 %v341
  %1001 = vmatmul.mubr.bf16.gmra.mrb[0].mxu0 %v340
  %v1002 = vpop.f32.mrb[0].mxu0
  %v1003 = vadd.f32 %v938, %v1002
  %v1004 = vpop.f32.mrb[0].mxu0
  %v1005 = vpop.f32.mrb[0].mxu0
  %v1006 = vadd.f32 %v941, %v1005
  %v1007 = vpop.f32.mrb[0].mxu0
  %1008 = vmatprep.mubr.bf16.mxu0 %v350
  %1009 = vmatmul.mubr.bf16.gmra.mrb[0].mxu0 %v349
  %v1010 = vpop.f32.mrb[0].mxu0
  %v1011 = vadd.f32 %v946, %v1010
  %v1012 = vpop.f32.mrb[0].mxu0
  %v1013 = vpop.f32.mrb[0].mxu0
  %v1014 = vadd.f32 %v949, %v1013
  %v1015 = vpop.f32.mrb[0].mxu0
  %1016 = vdwg.mxu0
  %1017 = vmatprep.subr.bf16.mxu0 0
  %1018 = vmatpush1.bf16.msra.mxu0 %v726
  %1019 = vmatprep.subr.bf16.mxu0 0
  %1020 = vmatpush1.bf16.msra.mxu0 %v727
  %1021 = vmatprep.subr.bf16.mxu0 0
  %1022 = vmatpush1.bf16.msra.mxu0 %v728
  %1023 = vmatprep.subr.bf16.mxu0 0
  %1024 = vmatpush1.bf16.msra.mxu0 %v729
  %1025 = vmatprep.subr.bf16.mxu0 0
  %1026 = vmatpush1.bf16.msra.mxu0 %v730
  %1027 = vmatprep.subr.bf16.mxu0 0
  %1028 = vmatpush1.bf16.msra.mxu0 %v731
  %1029 = vmatprep.subr.bf16.mxu0 0
  %1030 = vmatpush1.bf16.msra.mxu0 %v732
  %1031 = vmatprep.subr.bf16.mxu0 0
  %1032 = vmatpush1.bf16.msra.mxu0 %v733
  %1033 = vmatprep.subr.bf16.mxu0 0
  %1034 = vmatpush1.bf16.msra.mxu0 %v734
  %1035 = vmatprep.subr.bf16.mxu0 0
  %1036 = vmatpush1.bf16.msra.mxu0 %v735
  %1037 = vmatprep.subr.bf16.mxu0 0
  %1038 = vmatpush1.bf16.msra.mxu0 %v736
  %1039 = vmatprep.subr.bf16.mxu0 0
  %1040 = vmatpush1.bf16.msra.mxu0 %v737
  %1041 = vmatprep.subr.bf16.mxu0 0
  %1042 = vmatpush1.bf16.msra.mxu0 %v738
  %1043 = vmatprep.subr.bf16.mxu0 0
  %1044 = vmatpush1.bf16.msra.mxu0 %v739
  %1045 = vmatprep.subr.bf16.mxu0 0
  %1046 = vmatpush1.bf16.msra.mxu0 %v740
  %1047 = vmatprep.subr.bf16.mxu0 0
  %1048 = vmatpush1.bf16.msra.mxu0 %v741
  %1049 = vmatprep.mubr.bf16.mxu0 %v325
  %1050 = vmatmul.mubr.bf16.gmra.mrb[0].mxu0 %v324
  %v1051 = vpop.f32.mrb[0].mxu0
  %v1052 = vadd.f32 %v987, %v1051
  %v1053 = vpop.f32.mrb[0].mxu0
  %v1054 = vpop.f32.mrb[0].mxu0
  %v1055 = vadd.f32 %v990, %v1054
  %v1056 = vpop.f32.mrb[0].mxu0
  %1057 = vmatprep.mubr.bf16.mxu0 %v334
  %1058 = vmatmul.mubr.bf16.gmra.mrb[0].mxu0 %v333
  %v1059 = vpop.f32.mrb[0].mxu0
  %v1060 = vadd.f32 %v995, %v1059
  %v1061 = vpop.f32.mrb[0].mxu0
  %v1062 = vpop.f32.mrb[0].mxu0
  %v1063 = vadd.f32 %v998, %v1062
  %v1064 = vpop.f32.mrb[0].mxu0
  %1065 = vmatprep.mubr.bf16.mxu0 %v343
  %1066 = vmatmul.mubr.bf16.gmra.mrb[0].mxu0 %v342
  %v1067 = vpop.f32.mrb[0].mxu0
  %v1068 = vadd.f32 %v1003, %v1067
  %v1069 = vpop.f32.mrb[0].mxu0
  %v1070 = vpop.f32.mrb[0].mxu0
  %v1071 = vadd.f32 %v1006, %v1070
  %v1072 = vpop.f32.mrb[0].mxu0
  %1073 = vmatprep.mubr.bf16.mxu0 %v352
  %1074 = vmatmul.mubr.bf16.gmra.mrb[0].mxu0 %v351
  %v1075 = vpop.f32.mrb[0].mxu0
  %v1076 = vadd.f32 %v1011, %v1075
  %v1077 = vpop.f32.mrb[0].mxu0
  %v1078 = vpop.f32.mrb[0].mxu0
  %v1079 = vadd.f32 %v1014, %v1078
  %v1080 = vpop.f32.mrb[0].mxu0
  %1081 = vdwg.mxu0
  %1082 = vmatprep.subr.bf16.mxu0 0
  %1083 = vmatpush1.bf16.msra.mxu0 %v742
  %1084 = vmatprep.subr.bf16.mxu0 0
  %1085 = vmatpush1.bf16.msra.mxu0 %v743
  %1086 = vmatprep.subr.bf16.mxu0 0
  %1087 = vmatpush1.bf16.msra.mxu0 %v744
  %1088 = vmatprep.subr.bf16.mxu0 0
  %1089 = vmatpush1.bf16.msra.mxu0 %v745
  %1090 = vmatprep.subr.bf16.mxu0 0
  %1091 = vmatpush1.bf16.msra.mxu0 %v746
  %1092 = vmatprep.subr.bf16.mxu0 0
  %1093 = vmatpush1.bf16.msra.mxu0 %v747
  %1094 = vmatprep.subr.bf16.mxu0 0
  %1095 = vmatpush1.bf16.msra.mxu0 %v748
  %1096 = vmatprep.subr.bf16.mxu0 0
  %1097 = vmatpush1.bf16.msra.mxu0 %v749
  %1098 = vmatprep.subr.bf16.mxu0 0
  %1099 = vmatpush1.bf16.msra.mxu0 0
  %1100 = vmatprep.subr.bf16.mxu0 0
  %1101 = vmatpush1.bf16.msra.mxu0 0
  %1102 = vmatprep.subr.bf16.mxu0 0
  %1103 = vmatpush1.bf16.msra.mxu0 0
  %1104 = vmatprep.subr.bf16.mxu0 0
  %1105 = vmatpush1.bf16.msra.mxu0 0
  %1106 = vmatprep.subr.bf16.mxu0 0
  %1107 = vmatpush1.bf16.msra.mxu0 0
  %1108 = vmatprep.subr.bf16.mxu0 0
  %1109 = vmatpush1.bf16.msra.mxu0 0
  %1110 = vmatprep.subr.bf16.mxu0 0
  %1111 = vmatpush1.bf16.msra.mxu0 0
  %1112 = vmatprep.subr.bf16.mxu0 0
  %1113 = vmatpush1.bf16.msra.mxu0 0
  %1114 = vmatprep.mubr.bf16.mxu0 0
  %1115 = vmatmul.mubr.bf16.gmra.mrb[0].mxu0 %v326
  %v1116 = vpop.f32.mrb[0].mxu0
  %v1117 = vadd.f32 %v1052, %v1116
  %v1118 = vpop.f32.mrb[0].mxu0
  %v1119 = vpop.f32.mrb[0].mxu0
  %v1120 = vadd.f32 %v1055, %v1119
  %v1121 = vpop.f32.mrb[0].mxu0
  %1122 = vmatprep.mubr.bf16.mxu0 0
  %1123 = vmatmul.mubr.bf16.gmra.mrb[0].mxu0 %v335
  %v1124 = vpop.f32.mrb[0].mxu0
  %v1125 = vadd.f32 %v1060, %v1124
  %v1126 = vpop.f32.mrb[0].mxu0
  %v1127 = vpop.f32.mrb[0].mxu0
  %v1128 = vadd.f32 %v1063, %v1127
  %v1129 = vpop.f32.mrb[0].mxu0
  %1130 = vmatprep.mubr.bf16.mxu0 0
  %1131 = vmatmul.mubr.bf16.gmra.mrb[0].mxu0 %v344
  %v1132 = vpop.f32.mrb[0].mxu0
  %v1133 = vadd.f32 %v1068, %v1132
  %v1134 = vpop.f32.mrb[0].mxu0
  %v1135 = vpop.f32.mrb[0].mxu0
  %v1136 = vadd.f32 %v1071, %v1135
  %v1137 = vpop.f32.mrb[0].mxu0
  %1138 = vmatprep.mubr.bf16.mxu0 0
  %1139 = vmatmul.mubr.bf16.gmra.mrb[0].mxu0 %v353
  %v1140 = vpop.f32.mrb[0].mxu0
  %v1141 = vadd.f32 %v1076, %v1140
  %v1142 = vpop.f32.mrb[0].mxu0
  %v1143 = vpop.f32.mrb[0].mxu0
  %v1144 = vadd.f32 %v1079, %v1143
  %v1145 = vpop.f32.mrb[0].mxu0
  %1146 = vdwg.mxu0
  %v1147 = vmax.f32 %v1117, 0.0
  %v1148 = vmax.f32 %v1120, 0.0
  %v1149 = vmax.f32 %v1125, 0.0
  %v1150 = vmax.f32 %v1128, 0.0
  %v1151 = vmax.f32 %v1133, 0.0
  %v1152 = vmax.f32 %v1136, 0.0
  %v1153 = vmax.f32 %v1141, 0.0
  %v1154 = vmax.f32 %v1144, 0.0
  %v1155 = vpack.c.bf16 %v1148, %v1147
  %v1156 = vpack.c.bf16 %v1150, %v1149
  %v1157 = vpack.c.bf16 %v1152, %v1151
  %v1158 = vpack.c.bf16 %v1154, %v1153
  %v1163 = vunpack.c.l.b16 %v1155
  %v1164 = vunpack.c.h.b16 %v1155
  %v1165 = vunpack.c.l.b16 %v1156
  %v1166 = vunpack.c.h.b16 %v1156
  %v1167 = vunpack.c.l.b16 %v1157
  %v1168 = vunpack.c.h.b16 %v1157
  %v1169 = vunpack.c.l.b16 %v1158
  %v1170 = vunpack.c.h.b16 %v1158
  %v1171 = vpack.c.b16 %v1163, %v1163
  %v1172 = vpack.c.b16 %v1164, %v1164
  %v1173 = vpack.c.b16 %v1165, %v1165
  %v1174 = vpack.c.b16 %v1166, %v1166
  %v1175 = vpack.c.b16 %v1167, %v1167
  %v1176 = vpack.c.b16 %v1168, %v1168
  %v1177 = vpack.c.b16 %v1169, %v1169
  %v1178 = vpack.c.b16 %v1170, %v1170
  %1187 = vst [vmem:[%s3] sm:$0xf] %v1171
  %1188 = vst [vmem:[%s3 + $0x4] sm:$0xf] %v1172
  %1189 = vst [vmem:[%s3 + $0x8] sm:$0xf] %v1173
  %1190 = vst [vmem:[%s3 + $0xc] sm:$0xf] %v1174
  %1191 = vst [vmem:[%s3 + $0x10] sm:$0xf] %v1175
  %1192 = vst [vmem:[%s3 + $0x14] sm:$0xf] %v1176
  %1193 = vst [vmem:[%s3 + $0x18] sm:$0xf] %v1177
  %1194 = vst [vmem:[%s3 + $0x1c] sm:$0xf] %v1178
  // Predicated region
  $region14: #{_lambda_.30} parent=0 // pred_check
    _
  $region15: #{_lambda_.30} parent=0 // pred_check_branch
    %1196 = sbr.rel (0) target = $region17
  $region16: #{_lambda_.30} parent=0 // pred_region
    _
  $region17: #{_lambda_.30} parent=0 // pred_fallthru
    _
  // Predicated region
  $region18: #{_lambda_.30} parent=0 // pred_check
    _
  $region19: #{_lambda_.30} parent=0 // pred_check_branch
    %1198 = sbr.rel (0) target = $region21
  $region20: #{_lambda_.30} parent=0 // pred_region
    _
  $region21: #{_lambda_.30} parent=0 // pred_fallthru
    _

// kernel: _lambda_.33
$region0: #{_lambda_.33}
  #allocation0 [shape = 'u32[]', space=smem, size = 0x4, offset = 0x4, fixed_abs, tag = 'smem constant byte address 0x4 - core index']
  #allocation1 [shape = 'u32[144,128]{1,0:T(1,128)}', space=vmem, size = 0x12000, scoped, tag = 'internal scratch']
  %s0 = inlined_call_operand.vmem [shape: bf16[4,16,128], index: 0, kind: input, shape index: {}]
  %s1 = inlined_call_operand.vmem [shape: bf16[4,16,128], index: 1, kind: input, shape index: {}]
  %s2 = inlined_call_operand.vmem [shape: bf16[128,128], index: 2, kind: input, shape index: {}]
  %s3 = inlined_call_operand.vmem [shape: f32[1,128], index: 3, kind: input, shape index: {}, may-alias: {3,5}]
  %s4 = inlined_call_operand.vmem [shape: bf16[128,128], index: 4, kind: input, shape index: {}]
  %s5 = inlined_call_operand.vmem [shape: f32[1,128], index: 5, kind: input, shape index: {}, may-alias: {3,5}]
  %s6 = inlined_call_operand.vmem [shape: bf16[4,16,128], index: 6, kind: output, shape index: {}]
  %s7 = sld [smem:[#allocation0]]
  $region34: #{_lambda_.33} parent=0
    _
  %s9 = ssub.s32 1, %s7
  %s10 = scalar_select 0, %s9, %s7
  // Predicated region
  $region2: #{_lambda_.33} parent=0 // pred_check
    _
  $region3: #{_lambda_.33} parent=0 // pred_check_branch
    %12 = sbr.rel (0) target = $region5
  $region4: #{_lambda_.33} parent=0 // pred_region
    _
  $region5: #{_lambda_.33} parent=0 // pred_fallthru
    _
  // Predicated region
  $region6: #{_lambda_.33} parent=0 // pred_check
    _
  $region7: #{_lambda_.33} parent=0 // pred_check_branch
    %14 = sbr.rel (0) target = $region9
  $region8: #{_lambda_.33} parent=0 // pred_region
    _
  $region9: #{_lambda_.33} parent=0 // pred_fallthru
    _
  // Predicated region
  $region10: #{_lambda_.33} parent=0 // pred_check
    _
  $region11: #{_lambda_.33} parent=0 // pred_check_branch
    %16 = sbr.rel (0) target = $region13
  $region12: #{_lambda_.33} parent=0 // pred_region
    _
  $region13: #{_lambda_.33} parent=0 // pred_fallthru
    _
  // Predicated region
  $region14: #{_lambda_.33} parent=0 // pred_check
    _
  $region15: #{_lambda_.33} parent=0 // pred_check_branch
    %18 = sbr.rel (0) target = $region17
  $region16: #{_lambda_.33} parent=0 // pred_region
    _
  $region17: #{_lambda_.33} parent=0 // pred_fallthru
    _
  // Predicated region
  $region18: #{_lambda_.33} parent=0 // pred_check
    _
  $region19: #{_lambda_.33} parent=0 // pred_check_branch
    %20 = sbr.rel (0) target = $region21
  $region20: #{_lambda_.33} parent=0 // pred_region
    _
  $region21: #{_lambda_.33} parent=0 // pred_fallthru
    _
  // Predicated region
  $region22: #{_lambda_.33} parent=0 // pred_check
    _
  $region23: #{_lambda_.33} parent=0 // pred_check_branch
    %22 = sbr.rel (0) target = $region25
  $region24: #{_lambda_.33} parent=0 // pred_region
    _
  $region25: #{_lambda_.33} parent=0 // pred_fallthru
    _
  %v24 = vld [vmem:[%s0] sm:$0xf]
  %v25 = vld [vmem:[%s0 + $0x4] sm:$0xf]
  %v26 = vld [vmem:[%s0 + $0x8] sm:$0xf]
  %v27 = vld [vmem:[%s0 + $0xc] sm:$0xf]
  %v28 = vld [vmem:[%s0 + $0x10] sm:$0xf]
  %v29 = vld [vmem:[%s0 + $0x14] sm:$0xf]
  %v30 = vld [vmem:[%s0 + $0x18] sm:$0xf]
  %v31 = vld [vmem:[%s0 + $0x1c] sm:$0xf]
  %v32 = vunpack.c.l.bf16 %v24
  %v33 = vunpack.c.l.bf16 %v25
  %v34 = vunpack.c.l.bf16 %v26
  %v35 = vunpack.c.l.bf16 %v27
  %v36 = vunpack.c.l.bf16 %v28
  %v37 = vunpack.c.l.bf16 %v29
  %v38 = vunpack.c.l.bf16 %v30
  %v39 = vunpack.c.l.bf16 %v31
  %v40 = vadd.f32 %v32, %v33
  %v41 = vrot.slane %v40, 4
  %v42 = vadd.f32 %v40, %v41
  %v43 = vrot.slane %v42, 2
  %v44 = vadd.f32 %v42, %v43
  %v45 = vrot.slane %v44, 1
  %v46 = vadd.f32 %v44, %v45
  %v47 = vadd.f32 %v34, %v35
  %v48 = vrot.slane %v47, 4
  %v49 = vadd.f32 %v47, %v48
  %v50 = vrot.slane %v49, 2
  %v51 = vadd.f32 %v49, %v50
  %v52 = vrot.slane %v51, 1
  %v53 = vadd.f32 %v51, %v52
  %v54 = vadd.f32 %v36, %v37
  %v55 = vrot.slane %v54, 4
  %v56 = vadd.f32 %v54, %v55
  %v57 = vrot.slane %v56, 2
  %v58 = vadd.f32 %v56, %v57
  %v59 = vrot.slane %v58, 1
  %v60 = vadd.f32 %v58, %v59
  %v61 = vadd.f32 %v38, %v39
  %v62 = vrot.slane %v61, 4
  %v63 = vadd.f32 %v61, %v62
  %v64 = vrot.slane %v63, 2
  %v65 = vadd.f32 %v63, %v64
  %v66 = vrot.slane %v65, 1
  %v67 = vadd.f32 %v65, %v66
  %v68 = vrcp.pop 16.0
  %v69 = vmul.f32 %v46, %v68
  %v70 = vmul.f32 %v53, %v68
  %v71 = vmul.f32 %v60, %v68
  %v72 = vmul.f32 %v67, %v68
  %v73 = vpack.c.bf16 %v69, %v69
  %v74 = vpack.c.bf16 %v70, %v70
  %v75 = vpack.c.bf16 %v71, %v71
  %v76 = vpack.c.bf16 %v72, %v72
  %v77 = vld [vmem:[%s2] sm:$0xf]
  %v78 = vld [vmem:[%s2 + $0x4] sm:$0xf]
  %v79 = vld [vmem:[%s2 + $0x8] sm:$0xf]
  %v80 = vld [vmem:[%s2 + $0xc] sm:$0xf]
  %v81 = vld [vmem:[%s2 + $0x10] sm:$0xf]
  %v82 = vld [vmem:[%s2 + $0x14] sm:$0xf]
  %v83 = vld [vmem:[%s2 + $0x18] sm:$0xf]
  %v84 = vld [vmem:[%s2 + $0x1c] sm:$0xf]
  %v85 = vld [vmem:[%s2 + $0x20] sm:$0xf]
  %v86 = vld [vmem:[%s2 + $0x24] sm:$0xf]
  %v87 = vld [vmem:[%s2 + $0x28] sm:$0xf]
  %v88 = vld [vmem:[%s2 + $0x2c] sm:$0xf]
  %v89 = vld [vmem:[%s2 + $0x30] sm:$0xf]
  %v90 = vld [vmem:[%s2 + $0x34] sm:$0xf]
  %v91 = vld [vmem:[%s2 + $0x38] sm:$0xf]
  %v92 = vld [vmem:[%s2 + $0x3c] sm:$0xf]
  %v93 = vld [vmem:[%s3] sm:$0x1]
  %v95 = vlaneseq
  %v96 = vshrl.u32 %v95, 7
  %v97 = vsub.s32 0, %v96
  %v98 = vrot.slane %v93, %v97
  %v104 = vunpack.c.l.b16 %v73
  %v105 = vunpack.c.l.b16 %v74
  %v106 = vunpack.c.l.b16 %v75
  %v107 = vunpack.c.l.b16 %v76
  %vm108 = vcmask 1041409
  %v109 = vsel %vm108, %v105, %v104
  %vm110 = vcmask 1042434
  %v111 = vsel %vm110, %v106, %v109
  %vm112 = vcmask 1043459
  %v113 = vsel %vm112, %v107, %v111
  %v114 = vpack.c.b16 %v113, %v113
  %v132 = vunpack.c.l.b16 %v77
  %v133 = vunpack.c.l.b16 %v78
  %v134 = vunpack.c.l.b16 %v79
  %v135 = vunpack.c.l.b16 %v80
  %v136 = vunpack.c.l.b16 %v81
  %v137 = vunpack.c.l.b16 %v82
  %v138 = vunpack.c.l.b16 %v83
  %v139 = vunpack.c.l.b16 %v84
  %v140 = vunpack.c.l.b16 %v85
  %v141 = vunpack.c.l.b16 %v86
  %v142 = vunpack.c.l.b16 %v87
  %v143 = vunpack.c.l.b16 %v88
  %v144 = vunpack.c.l.b16 %v89
  %v145 = vunpack.c.l.b16 %v90
  %v146 = vunpack.c.l.b16 %v91
  %v147 = vunpack.c.l.b16 %v92
  %v148 = vpack.c.b16 %v133, %v132
  %v149 = vpack.c.b16 %v135, %v134
  %v150 = vpack.c.b16 %v137, %v136
  %v151 = vpack.c.b16 %v139, %v138
  %v152 = vpack.c.b16 %v141, %v140
  %v153 = vpack.c.b16 %v143, %v142
  %v154 = vpack.c.b16 %v145, %v144
  %v155 = vpack.c.b16 %v147, %v146
  %164 = vmatprep.subr.bf16.mxu0 0
  %165 = vmatpush1.bf16.msra.mxu0 %v148
  %166 = vmatprep.subr.bf16.mxu0 0
  %167 = vmatpush1.bf16.msra.mxu0 %v149
  %168 = vmatprep.subr.bf16.mxu0 0
  %169 = vmatpush1.bf16.msra.mxu0 %v150
  %170 = vmatprep.subr.bf16.mxu0 0
  %171 = vmatpush1.bf16.msra.mxu0 %v151
  %172 = vmatprep.subr.bf16.mxu0 0
  %173 = vmatpush1.bf16.msra.mxu0 %v152
  %174 = vmatprep.subr.bf16.mxu0 0
  %175 = vmatpush1.bf16.msra.mxu0 %v153
  %176 = vmatprep.subr.bf16.mxu0 0
  %177 = vmatpush1.bf16.msra.mxu0 %v154
  %178 = vmatprep.subr.bf16.mxu0 0
  %179 = vmatpush1.bf16.msra.mxu0 %v155
  %180 = vmatprep.subr.bf16.mxu0 0
  %181 = vmatpush1.bf16.msra.mxu0 0
  %182 = vmatprep.subr.bf16.mxu0 0
  %183 = vmatpush1.bf16.msra.mxu0 0
  %184 = vmatprep.subr.bf16.mxu0 0
  %185 = vmatpush1.bf16.msra.mxu0 0
  %186 = vmatprep.subr.bf16.mxu0 0
  %187 = vmatpush1.bf16.msra.mxu0 0
  %188 = vmatprep.subr.bf16.mxu0 0
  %189 = vmatpush1.bf16.msra.mxu0 0
  %190 = vmatprep.subr.bf16.mxu0 0
  %191 = vmatpush1.bf16.msra.mxu0 0
  %192 = vmatprep.subr.bf16.mxu0 0
  %193 = vmatpush1.bf16.msra.mxu0 0
  %194 = vmatprep.subr.bf16.mxu0 0
  %195 = vmatpush1.bf16.msra.mxu0 0
  %196 = vmatprep.mubr.bf16.mxu0 0
  %197 = vmatmul.mubr.bf16.gmra.mrb[0].mxu0 %v114
  %v198 = vpop.f32.mrb[0].mxu0
  %v199 = vadd.f32 %v98, %v198
  %v200 = vpop.f32.mrb[0].mxu0
  %v201 = vpop.f32.mrb[0].mxu0
  %v202 = vpop.f32.mrb[0].mxu0
  %203 = vdwg.mxu0
  %v204 = vmax.f32 %v199, 0.0
  %v205 = vpack.c.bf16 %v204, %v204
  %v206 = vld [vmem:[%s4] sm:$0xf]
  %v207 = vld [vmem:[%s4 + $0x4] sm:$0xf]
  %v208 = vld [vmem:[%s4 + $0x8] sm:$0xf]
  %v209 = vld [vmem:[%s4 + $0xc] sm:$0xf]
  %v210 = vld [vmem:[%s4 + $0x10] sm:$0xf]
  %v211 = vld [vmem:[%s4 + $0x14] sm:$0xf]
  %v212 = vld [vmem:[%s4 + $0x18] sm:$0xf]
  %v213 = vld [vmem:[%s4 + $0x1c] sm:$0xf]
  %v214 = vld [vmem:[%s4 + $0x20] sm:$0xf]
  %v215 = vld [vmem:[%s4 + $0x24] sm:$0xf]
  %v216 = vld [vmem:[%s4 + $0x28] sm:$0xf]
  %v217 = vld [vmem:[%s4 + $0x2c] sm:$0xf]
  %v218 = vld [vmem:[%s4 + $0x30] sm:$0xf]
  %v219 = vld [vmem:[%s4 + $0x34] sm:$0xf]
  %v220 = vld [vmem:[%s4 + $0x38] sm:$0xf]
  %v221 = vld [vmem:[%s4 + $0x3c] sm:$0xf]
  %v222 = vld [vmem:[%s5] sm:$0x1]
  %v224 = vlaneseq
  %v225 = vshrl.u32 %v224, 7
  %v226 = vsub.s32 0, %v225
  %v227 = vrot.slane %v222, %v226
  %v245 = vunpack.c.l.b16 %v206
  %v246 = vunpack.c.l.b16 %v207
  %v247 = vunpack.c.l.b16 %v208
  %v248 = vunpack.c.l.b16 %v209
  %v249 = vunpack.c.l.b16 %v210
  %v250 = vunpack.c.l.b16 %v211
  %v251 = vunpack.c.l.b16 %v212
  %v252 = vunpack.c.l.b16 %v213
  %v253 = vunpack.c.l.b16 %v214
  %v254 = vunpack.c.l.b16 %v215
  %v255 = vunpack.c.l.b16 %v216
  %v256 = vunpack.c.l.b16 %v217
  %v257 = vunpack.c.l.b16 %v218
  %v258 = vunpack.c.l.b16 %v219
  %v259 = vunpack.c.l.b16 %v220
  %v260 = vunpack.c.l.b16 %v221
  %v261 = vpack.c.b16 %v246, %v245
  %v262 = vpack.c.b16 %v248, %v247
  %v263 = vpack.c.b16 %v250, %v249
  %v264 = vpack.c.b16 %v252, %v251
  %v265 = vpack.c.b16 %v254, %v253
  %v266 = vpack.c.b16 %v256, %v255
  %v267 = vpack.c.b16 %v258, %v257
  %v268 = vpack.c.b16 %v260, %v259
  %277 = vmatprep.subr.bf16.mxu0 0
  %278 = vmatpush1.bf16.msra.mxu0 %v261
  %279 = vmatprep.subr.bf16.mxu0 0
  %280 = vmatpush1.bf16.msra.mxu0 %v262
  %281 = vmatprep.subr.bf16.mxu0 0
  %282 = vmatpush1.bf16.msra.mxu0 %v263
  %283 = vmatprep.subr.bf16.mxu0 0
  %284 = vmatpush1.bf16.msra.mxu0 %v264
  %285 = vmatprep.subr.bf16.mxu0 0
  %286 = vmatpush1.bf16.msra.mxu0 %v265
  %287 = vmatprep.subr.bf16.mxu0 0
  %288 = vmatpush1.bf16.msra.mxu0 %v266
  %289 = vmatprep.subr.bf16.mxu0 0
  %290 = vmatpush1.bf16.msra.mxu0 %v267
  %291 = vmatprep.subr.bf16.mxu0 0
  %292 = vmatpush1.bf16.msra.mxu0 %v268
  %293 = vmatprep.subr.bf16.mxu0 0
  %294 = vmatpush1.bf16.msra.mxu0 0
  %295 = vmatprep.subr.bf16.mxu0 0
  %296 = vmatpush1.bf16.msra.mxu0 0
  %297 = vmatprep.subr.bf16.mxu0 0
  %298 = vmatpush1.bf16.msra.mxu0 0
  %299 = vmatprep.subr.bf16.mxu0 0
  %300 = vmatpush1.bf16.msra.mxu0 0
  %301 = vmatprep.subr.bf16.mxu0 0
  %302 = vmatpush1.bf16.msra.mxu0 0
  %303 = vmatprep.subr.bf16.mxu0 0
  %304 = vmatpush1.bf16.msra.mxu0 0
  %305 = vmatprep.subr.bf16.mxu0 0
  %306 = vmatpush1.bf16.msra.mxu0 0
  %307 = vmatprep.subr.bf16.mxu0 0
  %308 = vmatpush1.bf16.msra.mxu0 0
  %309 = vmatprep.mubr.bf16.mxu0 0
  %310 = vmatmul.mubr.bf16.gmra.mrb[0].mxu0 %v205
  %v311 = vpop.f32.mrb[0].mxu0
  %v312 = vadd.f32 %v227, %v311
  %v313 = vpop.f32.mrb[0].mxu0
  %v314 = vpop.f32.mrb[0].mxu0
  %v315 = vpop.f32.mrb[0].mxu0
  %316 = vdwg.mxu0
  %v317 = vsub.f32 0.0, %v312
  %v318 = vmul.f32 %v317, 1.442695
  %v319 = vpow.pop %v318
  %v320 = vadd.f32 %v319, 1.0
  %v321 = vrcp.pop %v320
  %v322 = vmul.f32 1.0, %v321
  %v325 = vunpack.c.l.s4 1966171168
  %v326 = vunpack.c.0.s8 %v325
  %v327 = vlaneseq
  %v328 = vshrl.u32 %v327, 7
  %v329 = vsub.s32 %v326, %v328
  %v330 = vrot.slane %v322, %v329
  %v331 = vcombine.high %v330, %v330
  %v333 = vunpack.c.l.s4 1966171168
  %v334 = vunpack.c.0.s8 %v333
  %v335 = vlaneseq
  %v336 = vshrl.u32 %v335, 7
  %v337 = vsub.s32 %v334, %v336
  %v338 = vrot.slane %v330, %v337
  %v340 = vunpack.c.l.s4 1966171168
  %v341 = vunpack.c.0.s8 %v340
  %v342 = vlaneseq
  %v343 = vshrl.u32 %v342, 7
  %v344 = vsub.s32 %v341, %v343
  %v345 = vrot.slane %v331, %v344
  %v346 = vcombine.high %v338, %v338
  %v347 = vcombine.high %v345, %v345
  %v348 = vlaneseq
  %v349 = vshrl.u32 %v348, 7
  %v350 = vsub.s32 0, %v349
  %v351 = vrot.slane %v338, %v350
  %v352 = vlaneseq
  %v353 = vshrl.u32 %v352, 7
  %v354 = vsub.s32 0, %v353
  %v355 = vrot.slane %v345, %v354
  %v356 = vlaneseq
  %v357 = vshrl.u32 %v356, 7
  %v358 = vsub.s32 0, %v357
  %v359 = vrot.slane %v346, %v358
  %v360 = vlaneseq
  %v361 = vshrl.u32 %v360, 7
  %v362 = vsub.s32 0, %v361
  %v363 = vrot.slane %v347, %v362
  %v368 = vmul.f32 %v32, %v351
  %v369 = vmul.f32 %v33, %v351
  %v370 = vmul.f32 %v34, %v355
  %v371 = vmul.f32 %v35, %v355
  %v372 = vmul.f32 %v36, %v359
  %v373 = vmul.f32 %v37, %v359
  %v374 = vmul.f32 %v38, %v363
  %v375 = vmul.f32 %v39, %v363
  %v376 = vld [vmem:[%s1] sm:$0xf]
  %v377 = vld [vmem:[%s1 + $0x4] sm:$0xf]
  %v378 = vld [vmem:[%s1 + $0x8] sm:$0xf]
  %v379 = vld [vmem:[%s1 + $0xc] sm:$0xf]
  %v380 = vld [vmem:[%s1 + $0x10] sm:$0xf]
  %v381 = vld [vmem:[%s1 + $0x14] sm:$0xf]
  %v382 = vld [vmem:[%s1 + $0x18] sm:$0xf]
  %v383 = vld [vmem:[%s1 + $0x1c] sm:$0xf]
  %v384 = vunpack.c.l.bf16 %v376
  %v385 = vunpack.c.l.bf16 %v377
  %v386 = vunpack.c.l.bf16 %v378
  %v387 = vunpack.c.l.bf16 %v379
  %v388 = vunpack.c.l.bf16 %v380
  %v389 = vunpack.c.l.bf16 %v381
  %v390 = vunpack.c.l.bf16 %v382
  %v391 = vunpack.c.l.bf16 %v383
  %v392 = vadd.f32 %v368, %v384
  %v393 = vadd.f32 %v369, %v385
  %v394 = vadd.f32 %v370, %v386
  %v395 = vadd.f32 %v371, %v387
  %v396 = vadd.f32 %v372, %v388
  %v397 = vadd.f32 %v373, %v389
  %v398 = vadd.f32 %v374, %v390
  %v399 = vadd.f32 %v375, %v391
  %v400 = vmax.f32 %v392, 0.0
  %v401 = vmax.f32 %v393, 0.0
  %v402 = vmax.f32 %v394, 0.0
  %v403 = vmax.f32 %v395, 0.0
  %v404 = vmax.f32 %v396, 0.0
  %v405 = vmax.f32 %v397, 0.0
  %v406 = vmax.f32 %v398, 0.0
  %v407 = vmax.f32 %v399, 0.0
  %v408 = vpack.c.bf16 %v401, %v400
  %v409 = vpack.c.bf16 %v403, %v402
  %v410 = vpack.c.bf16 %v405, %v404
  %v411 = vpack.c.bf16 %v407, %v406
  %v416 = vunpack.c.l.b16 %v408
  %v417 = vunpack.c.h.b16 %v408
  %v418 = vunpack.c.l.b16 %v409
  %v419 = vunpack.c.h.b16 %v409
  %v420 = vunpack.c.l.b16 %v410
  %v421 = vunpack.c.h.b16 %v410
  %v422 = vunpack.c.l.b16 %v411
  %v423 = vunpack.c.h.b16 %v411
  %v424 = vpack.c.b16 %v416, %v416
  %v425 = vpack.c.b16 %v417, %v417
  %v426 = vpack.c.b16 %v418, %v418
  %v427 = vpack.c.b16 %v419, %v419
  %v428 = vpack.c.b16 %v420, %v420
  %v429 = vpack.c.b16 %v421, %v421
  %v430 = vpack.c.b16 %v422, %v422
  %v431 = vpack.c.b16 %v423, %v423
  %440 = vst [vmem:[%s6] sm:$0xf] %v424
  %441 = vst [vmem:[%s6 + $0x4] sm:$0xf] %v425
  %442 = vst [vmem:[%s6 + $0x8] sm:$0xf] %v426
  %443 = vst [vmem:[%s6 + $0xc] sm:$0xf] %v427
  %444 = vst [vmem:[%s6 + $0x10] sm:$0xf] %v428
  %445 = vst [vmem:[%s6 + $0x14] sm:$0xf] %v429
  %446 = vst [vmem:[%s6 + $0x18] sm:$0xf] %v430
  %447 = vst [vmem:[%s6 + $0x1c] sm:$0xf] %v431
  // Predicated region
  $region26: #{_lambda_.33} parent=0 // pred_check
    _
  $region27: #{_lambda_.33} parent=0 // pred_check_branch
    %449 = sbr.rel (0) target = $region29
  $region28: #{_lambda_.33} parent=0 // pred_region
    _
  $region29: #{_lambda_.33} parent=0 // pred_fallthru
    _
  // Predicated region
  $region30: #{_lambda_.33} parent=0 // pred_check
    _
  $region31: #{_lambda_.33} parent=0 // pred_check_branch
    %451 = sbr.rel (0) target = $region33
  $region32: #{_lambda_.33} parent=0 // pred_region
    _
  $region33: #{_lambda_.33} parent=0 // pred_fallthru
    _

// kernel: _lambda_.34
$region0: #{_lambda_.34}
  #allocation0 [shape = 'u32[]', space=smem, size = 0x4, offset = 0x4, fixed_abs, tag = 'smem constant byte address 0x4 - core index']
  #allocation1 [shape = 'u32[144,128]{1,0:T(1,128)}', space=vmem, size = 0x12000, scoped, tag = 'internal scratch']
  %s0 = inlined_call_operand.vmem [shape: bf16[64,128], index: 0, kind: input, shape index: {}]
  %s1 = inlined_call_operand.vmem [shape: bf16[128,128], index: 1, kind: input, shape index: {}]
  %s2 = inlined_call_operand.vmem [shape: f32[1,128], index: 2, kind: input, shape index: {}]
  %s3 = inlined_call_operand.vmem [shape: bf16[64,128], index: 3, kind: output, shape index: {}]
  %s4 = sld [smem:[#allocation0]]
  $region22: #{_lambda_.34} parent=0
    _
  %s6 = ssub.s32 1, %s4
  %s7 = scalar_select 0, %s6, %s4
  // Predicated region
  $region2: #{_lambda_.34} parent=0 // pred_check
    _
  $region3: #{_lambda_.34} parent=0 // pred_check_branch
    %9 = sbr.rel (0) target = $region5
  $region4: #{_lambda_.34} parent=0 // pred_region
    _
  $region5: #{_lambda_.34} parent=0 // pred_fallthru
    _
  // Predicated region
  $region6: #{_lambda_.34} parent=0 // pred_check
    _
  $region7: #{_lambda_.34} parent=0 // pred_check_branch
    %11 = sbr.rel (0) target = $region9
  $region8: #{_lambda_.34} parent=0 // pred_region
    _
  $region9: #{_lambda_.34} parent=0 // pred_fallthru
    _
  // Predicated region
  $region10: #{_lambda_.34} parent=0 // pred_check
    _
  $region11: #{_lambda_.34} parent=0 // pred_check_branch
    %13 = sbr.rel (0) target = $region13
  $region12: #{_lambda_.34} parent=0 // pred_region
    _
  $region13: #{_lambda_.34} parent=0 // pred_fallthru
    _
  %v15 = vld [vmem:[%s0] sm:$0xf]
  %v16 = vld [vmem:[%s0 + $0x4] sm:$0xf]
  %v17 = vld [vmem:[%s0 + $0x8] sm:$0xf]
  %v18 = vld [vmem:[%s0 + $0xc] sm:$0xf]
  %v19 = vld [vmem:[%s0 + $0x10] sm:$0xf]
  %v20 = vld [vmem:[%s0 + $0x14] sm:$0xf]
  %v21 = vld [vmem:[%s0 + $0x18] sm:$0xf]
  %v22 = vld [vmem:[%s0 + $0x1c] sm:$0xf]
  %v23 = vld [vmem:[%s1] sm:$0xf]
  %v24 = vld [vmem:[%s1 + $0x4] sm:$0xf]
  %v25 = vld [vmem:[%s1 + $0x8] sm:$0xf]
  %v26 = vld [vmem:[%s1 + $0xc] sm:$0xf]
  %v27 = vld [vmem:[%s1 + $0x10] sm:$0xf]
  %v28 = vld [vmem:[%s1 + $0x14] sm:$0xf]
  %v29 = vld [vmem:[%s1 + $0x18] sm:$0xf]
  %v30 = vld [vmem:[%s1 + $0x1c] sm:$0xf]
  %v31 = vld [vmem:[%s1 + $0x20] sm:$0xf]
  %v32 = vld [vmem:[%s1 + $0x24] sm:$0xf]
  %v33 = vld [vmem:[%s1 + $0x28] sm:$0xf]
  %v34 = vld [vmem:[%s1 + $0x2c] sm:$0xf]
  %v35 = vld [vmem:[%s1 + $0x30] sm:$0xf]
  %v36 = vld [vmem:[%s1 + $0x34] sm:$0xf]
  %v37 = vld [vmem:[%s1 + $0x38] sm:$0xf]
  %v38 = vld [vmem:[%s1 + $0x3c] sm:$0xf]
  %v39 = vld [vmem:[%s2] sm:$0x1]
  %v41 = vlaneseq
  %v42 = vshrl.u32 %v41, 7
  %v43 = vsub.s32 0, %v42
  %v44 = vrot.slane %v39, %v43
  %v54 = vunpack.c.l.b16 %v15
  %v55 = vunpack.c.l.b16 %v16
  %v56 = vunpack.c.l.b16 %v17
  %v57 = vunpack.c.l.b16 %v18
  %v58 = vunpack.c.l.b16 %v19
  %v59 = vunpack.c.l.b16 %v20
  %v60 = vunpack.c.l.b16 %v21
  %v61 = vunpack.c.l.b16 %v22
  %v62 = vpack.c.b16 %v55, %v54
  %v63 = vpack.c.b16 %v57, %v56
  %v64 = vpack.c.b16 %v59, %v58
  %v65 = vpack.c.b16 %v61, %v60
  %v86 = vunpack.c.l.b16 %v23
  %v87 = vunpack.c.l.b16 %v24
  %v88 = vunpack.c.l.b16 %v25
  %v89 = vunpack.c.l.b16 %v26
  %v90 = vunpack.c.l.b16 %v27
  %v91 = vunpack.c.l.b16 %v28
  %v92 = vunpack.c.l.b16 %v29
  %v93 = vunpack.c.l.b16 %v30
  %v94 = vunpack.c.l.b16 %v31
  %v95 = vunpack.c.l.b16 %v32
  %v96 = vunpack.c.l.b16 %v33
  %v97 = vunpack.c.l.b16 %v34
  %v98 = vunpack.c.l.b16 %v35
  %v99 = vunpack.c.l.b16 %v36
  %v100 = vunpack.c.l.b16 %v37
  %v101 = vunpack.c.l.b16 %v38
  %v102 = vpack.c.b16 %v87, %v86
  %v103 = vpack.c.b16 %v89, %v88
  %v104 = vpack.c.b16 %v91, %v90
  %v105 = vpack.c.b16 %v93, %v92
  %v106 = vpack.c.b16 %v95, %v94
  %v107 = vpack.c.b16 %v97, %v96
  %v108 = vpack.c.b16 %v99, %v98
  %v109 = vpack.c.b16 %v101, %v100
  %118 = vmatprep.subr.bf16.mxu0 0
  %119 = vmatpush1.bf16.msra.mxu0 %v102
  %120 = vmatprep.subr.bf16.mxu0 0
  %121 = vmatpush1.bf16.msra.mxu0 %v103
  %122 = vmatprep.subr.bf16.mxu0 0
  %123 = vmatpush1.bf16.msra.mxu0 %v104
  %124 = vmatprep.subr.bf16.mxu0 0
  %125 = vmatpush1.bf16.msra.mxu0 %v105
  %126 = vmatprep.subr.bf16.mxu0 0
  %127 = vmatpush1.bf16.msra.mxu0 %v106
  %128 = vmatprep.subr.bf16.mxu0 0
  %129 = vmatpush1.bf16.msra.mxu0 %v107
  %130 = vmatprep.subr.bf16.mxu0 0
  %131 = vmatpush1.bf16.msra.mxu0 %v108
  %132 = vmatprep.subr.bf16.mxu0 0
  %133 = vmatpush1.bf16.msra.mxu0 %v109
  %134 = vmatprep.subr.bf16.mxu0 0
  %135 = vmatpush1.bf16.msra.mxu0 0
  %136 = vmatprep.subr.bf16.mxu0 0
  %137 = vmatpush1.bf16.msra.mxu0 0
  %138 = vmatprep.subr.bf16.mxu0 0
  %139 = vmatpush1.bf16.msra.mxu0 0
  %140 = vmatprep.subr.bf16.mxu0 0
  %141 = vmatpush1.bf16.msra.mxu0 0
  %142 = vmatprep.subr.bf16.mxu0 0
  %143 = vmatpush1.bf16.msra.mxu0 0
  %144 = vmatprep.subr.bf16.mxu0 0
  %145 = vmatpush1.bf16.msra.mxu0 0
  %146 = vmatprep.subr.bf16.mxu0 0
  %147 = vmatpush1.bf16.msra.mxu0 0
  %148 = vmatprep.subr.bf16.mxu0 0
  %149 = vmatpush1.bf16.msra.mxu0 0
  %150 = vmatprep.mubr.bf16.mxu0 0
  %151 = vmatmul.mubr.bf16.gmra.mrb[0].mxu0 %v62
  %v152 = vpop.f32.mrb[0].mxu0
  %v153 = vadd.f32 %v44, %v152
  %v154 = vpop.f32.mrb[0].mxu0
  %v155 = vpop.f32.mrb[0].mxu0
  %v156 = vadd.f32 %v44, %v155
  %v157 = vpop.f32.mrb[0].mxu0
  %158 = vmatprep.mubr.bf16.mxu0 0
  %159 = vmatmul.mubr.bf16.gmra.mrb[0].mxu0 %v63
  %v160 = vpop.f32.mrb[0].mxu0
  %v161 = vadd.f32 %v44, %v160
  %v162 = vpop.f32.mrb[0].mxu0
  %v163 = vpop.f32.mrb[0].mxu0
  %v164 = vadd.f32 %v44, %v163
  %v165 = vpop.f32.mrb[0].mxu0
  %166 = vmatprep.mubr.bf16.mxu0 0
  %167 = vmatmul.mubr.bf16.gmra.mrb[0].mxu0 %v64
  %v168 = vpop.f32.mrb[0].mxu0
  %v169 = vadd.f32 %v44, %v168
  %v170 = vpop.f32.mrb[0].mxu0
  %v171 = vpop.f32.mrb[0].mxu0
  %v172 = vadd.f32 %v44, %v171
  %v173 = vpop.f32.mrb[0].mxu0
  %174 = vmatprep.mubr.bf16.mxu0 0
  %175 = vmatmul.mubr.bf16.gmra.mrb[0].mxu0 %v65
  %v176 = vpop.f32.mrb[0].mxu0
  %v177 = vadd.f32 %v44, %v176
  %v178 = vpop.f32.mrb[0].mxu0
  %v179 = vpop.f32.mrb[0].mxu0
  %v180 = vadd.f32 %v44, %v179
  %v181 = vpop.f32.mrb[0].mxu0
  %182 = vdwg.mxu0
  %v183 = vmax.f32 %v153, 0.0
  %v184 = vmax.f32 %v156, 0.0
  %v185 = vmax.f32 %v161, 0.0
  %v186 = vmax.f32 %v164, 0.0
  %v187 = vmax.f32 %v169, 0.0
  %v188 = vmax.f32 %v172, 0.0
  %v189 = vmax.f32 %v177, 0.0
  %v190 = vmax.f32 %v180, 0.0
  %v191 = vpack.c.bf16 %v184, %v183
  %v192 = vpack.c.bf16 %v186, %v185
  %v193 = vpack.c.bf16 %v188, %v187
  %v194 = vpack.c.bf16 %v190, %v189
  %v199 = vunpack.c.l.b16 %v191
  %v200 = vunpack.c.h.b16 %v191
  %v201 = vunpack.c.l.b16 %v192
  %v202 = vunpack.c.h.b16 %v192
  %v203 = vunpack.c.l.b16 %v193
  %v204 = vunpack.c.h.b16 %v193
  %v205 = vunpack.c.l.b16 %v194
  %v206 = vunpack.c.h.b16 %v194
  %v207 = vpack.c.b16 %v199, %v199
  %v208 = vpack.c.b16 %v200, %v200
  %v209 = vpack.c.b16 %v201, %v201
  %v210 = vpack.c.b16 %v202, %v202
  %v211 = vpack.c.b16 %v203, %v203
  %v212 = vpack.c.b16 %v204, %v204
  %v213 = vpack.c.b16 %v205, %v205
  %v214 = vpack.c.b16 %v206, %v206
  %223 = vst [vmem:[%s3] sm:$0xf] %v207
  %224 = vst [vmem:[%s3 + $0x4] sm:$0xf] %v208
  %225 = vst [vmem:[%s3 + $0x8] sm:$0xf] %v209
  %226 = vst [vmem:[%s3 + $0xc] sm:$0xf] %v210
  %227 = vst [vmem:[%s3 + $0x10] sm:$0xf] %v211
  %228 = vst [vmem:[%s3 + $0x14] sm:$0xf] %v212
  %229 = vst [vmem:[%s3 + $0x18] sm:$0xf] %v213
  %230 = vst [vmem:[%s3 + $0x1c] sm:$0xf] %v214
  // Predicated region
  $region14: #{_lambda_.34} parent=0 // pred_check
    _
  $region15: #{_lambda_.34} parent=0 // pred_check_branch
    %232 = sbr.rel (0) target = $region17
  $region16: #{_lambda_.34} parent=0 // pred_region
    _
  $region17: #{_lambda_.34} parent=0 // pred_fallthru
    _
  // Predicated region
  $region18: #{_lambda_.34} parent=0 // pred_check
    _
  $region19: #{_lambda_.34} parent=0 // pred_check_branch
    %234 = sbr.rel (0) target = $region21
  $region20: #{_lambda_.34} parent=0 // pred_region
    _
  $region21: #{_lambda_.34} parent=0 // pred_fallthru
    _

// kernel: _lambda_.36
$region0: #{_lambda_.36}
  #allocation0 [shape = 'u32[]', space=smem, size = 0x4, offset = 0x4, fixed_abs, tag = 'smem constant byte address 0x4 - core index']
  #allocation1 [shape = 'u32[144,128]{1,0:T(1,128)}', space=vmem, size = 0x12000, scoped, tag = 'internal scratch']
  %s0 = inlined_call_operand.vmem [shape: bf16[16,128], index: 0, kind: input, shape index: {}]
  %s1 = inlined_call_operand.vmem [shape: bf16[128,128], index: 1, kind: input, shape index: {}]
  %s2 = inlined_call_operand.vmem [shape: f32[1,128], index: 2, kind: input, shape index: {}]
  %s3 = inlined_call_operand.vmem [shape: bf16[16,128], index: 3, kind: output, shape index: {}]
  %s4 = sld [smem:[#allocation0]]
  $region22: #{_lambda_.36} parent=0
    _
  %s6 = ssub.s32 1, %s4
  %s7 = scalar_select 0, %s6, %s4
  // Predicated region
  $region2: #{_lambda_.36} parent=0 // pred_check
    _
  $region3: #{_lambda_.36} parent=0 // pred_check_branch
    %9 = sbr.rel (0) target = $region5
  $region4: #{_lambda_.36} parent=0 // pred_region
    _
  $region5: #{_lambda_.36} parent=0 // pred_fallthru
    _
  // Predicated region
  $region6: #{_lambda_.36} parent=0 // pred_check
    _
  $region7: #{_lambda_.36} parent=0 // pred_check_branch
    %11 = sbr.rel (0) target = $region9
  $region8: #{_lambda_.36} parent=0 // pred_region
    _
  $region9: #{_lambda_.36} parent=0 // pred_fallthru
    _
  // Predicated region
  $region10: #{_lambda_.36} parent=0 // pred_check
    _
  $region11: #{_lambda_.36} parent=0 // pred_check_branch
    %13 = sbr.rel (0) target = $region13
  $region12: #{_lambda_.36} parent=0 // pred_region
    _
  $region13: #{_lambda_.36} parent=0 // pred_fallthru
    _
  %v15 = vld [vmem:[%s0] sm:$0xf]
  %v16 = vld [vmem:[%s0 + $0x4] sm:$0xf]
  %v17 = vld [vmem:[%s1] sm:$0xf]
  %v18 = vld [vmem:[%s1 + $0x4] sm:$0xf]
  %v19 = vld [vmem:[%s1 + $0x8] sm:$0xf]
  %v20 = vld [vmem:[%s1 + $0xc] sm:$0xf]
  %v21 = vld [vmem:[%s1 + $0x10] sm:$0xf]
  %v22 = vld [vmem:[%s1 + $0x14] sm:$0xf]
  %v23 = vld [vmem:[%s1 + $0x18] sm:$0xf]
  %v24 = vld [vmem:[%s1 + $0x1c] sm:$0xf]
  %v25 = vld [vmem:[%s1 + $0x20] sm:$0xf]
  %v26 = vld [vmem:[%s1 + $0x24] sm:$0xf]
  %v27 = vld [vmem:[%s1 + $0x28] sm:$0xf]
  %v28 = vld [vmem:[%s1 + $0x2c] sm:$0xf]
  %v29 = vld [vmem:[%s1 + $0x30] sm:$0xf]
  %v30 = vld [vmem:[%s1 + $0x34] sm:$0xf]
  %v31 = vld [vmem:[%s1 + $0x38] sm:$0xf]
  %v32 = vld [vmem:[%s1 + $0x3c] sm:$0xf]
  %v33 = vld [vmem:[%s2] sm:$0x1]
  %v35 = vlaneseq
  %v36 = vshrl.u32 %v35, 7
  %v37 = vsub.s32 0, %v36
  %v38 = vrot.slane %v33, %v37
  %v42 = vunpack.c.l.b16 %v15
  %v43 = vunpack.c.l.b16 %v16
  %v44 = vpack.c.b16 %v43, %v42
  %v62 = vunpack.c.l.b16 %v17
  %v63 = vunpack.c.l.b16 %v18
  %v64 = vunpack.c.l.b16 %v19
  %v65 = vunpack.c.l.b16 %v20
  %v66 = vunpack.c.l.b16 %v21
  %v67 = vunpack.c.l.b16 %v22
  %v68 = vunpack.c.l.b16 %v23
  %v69 = vunpack.c.l.b16 %v24
  %v70 = vunpack.c.l.b16 %v25
  %v71 = vunpack.c.l.b16 %v26
  %v72 = vunpack.c.l.b16 %v27
  %v73 = vunpack.c.l.b16 %v28
  %v74 = vunpack.c.l.b16 %v29
  %v75 = vunpack.c.l.b16 %v30
  %v76 = vunpack.c.l.b16 %v31
  %v77 = vunpack.c.l.b16 %v32
  %v78 = vpack.c.b16 %v63, %v62
  %v79 = vpack.c.b16 %v65, %v64
  %v80 = vpack.c.b16 %v67, %v66
  %v81 = vpack.c.b16 %v69, %v68
  %v82 = vpack.c.b16 %v71, %v70
  %v83 = vpack.c.b16 %v73, %v72
  %v84 = vpack.c.b16 %v75, %v74
  %v85 = vpack.c.b16 %v77, %v76
  %94 = vmatprep.subr.bf16.mxu0 0
  %95 = vmatpush1.bf16.msra.mxu0 %v78
  %96 = vmatprep.subr.bf16.mxu0 0
  %97 = vmatpush1.bf16.msra.mxu0 %v79
  %98 = vmatprep.subr.bf16.mxu0 0
  %99 = vmatpush1.bf16.msra.mxu0 %v80
  %100 = vmatprep.subr.bf16.mxu0 0
  %101 = vmatpush1.bf16.msra.mxu0 %v81
  %102 = vmatprep.subr.bf16.mxu0 0
  %103 = vmatpush1.bf16.msra.mxu0 %v82
  %104 = vmatprep.subr.bf16.mxu0 0
  %105 = vmatpush1.bf16.msra.mxu0 %v83
  %106 = vmatprep.subr.bf16.mxu0 0
  %107 = vmatpush1.bf16.msra.mxu0 %v84
  %108 = vmatprep.subr.bf16.mxu0 0
  %109 = vmatpush1.bf16.msra.mxu0 %v85
  %110 = vmatprep.subr.bf16.mxu0 0
  %111 = vmatpush1.bf16.msra.mxu0 0
  %112 = vmatprep.subr.bf16.mxu0 0
  %113 = vmatpush1.bf16.msra.mxu0 0
  %114 = vmatprep.subr.bf16.mxu0 0
  %115 = vmatpush1.bf16.msra.mxu0 0
  %116 = vmatprep.subr.bf16.mxu0 0
  %117 = vmatpush1.bf16.msra.mxu0 0
  %118 = vmatprep.subr.bf16.mxu0 0
  %119 = vmatpush1.bf16.msra.mxu0 0
  %120 = vmatprep.subr.bf16.mxu0 0
  %121 = vmatpush1.bf16.msra.mxu0 0
  %122 = vmatprep.subr.bf16.mxu0 0
  %123 = vmatpush1.bf16.msra.mxu0 0
  %124 = vmatprep.subr.bf16.mxu0 0
  %125 = vmatpush1.bf16.msra.mxu0 0
  %126 = vmatprep.mubr.bf16.mxu0 0
  %127 = vmatmul.mubr.bf16.gmra.mrb[0].mxu0 %v44
  %v128 = vpop.f32.mrb[0].mxu0
  %v129 = vadd.f32 %v38, %v128
  %v130 = vpop.f32.mrb[0].mxu0
  %v131 = vpop.f32.mrb[0].mxu0
  %v132 = vadd.f32 %v38, %v131
  %v133 = vpop.f32.mrb[0].mxu0
  %134 = vdwg.mxu0
  %v135 = vpack.c.bf16 %v132, %v129
  %v137 = vunpack.c.l.b16 %v135
  %v138 = vunpack.c.h.b16 %v135
  %v139 = vpack.c.b16 %v137, %v137
  %v140 = vpack.c.b16 %v138, %v138
  %143 = vst [vmem:[%s3] sm:$0xf] %v139
  %144 = vst [vmem:[%s3 + $0x4] sm:$0xf] %v140
  // Predicated region
  $region14: #{_lambda_.36} parent=0 // pred_check
    _
  $region15: #{_lambda_.36} parent=0 // pred_check_branch
    %146 = sbr.rel (0) target = $region17
  $region16: #{_lambda_.36} parent=0 // pred_region
    _
  $region17: #{_lambda_.36} parent=0 // pred_fallthru
    _
  // Predicated region
  $region18: #{_lambda_.36} parent=0 // pred_check
    _
  $region19: #{_lambda_.36} parent=0 // pred_check_branch
    %148 = sbr.rel (0) target = $region21
  $region20: #{_lambda_.36} parent=0 // pred_region
    _
  $region21: #{_lambda_.36} parent=0 // pred_fallthru
    _

// kernel: _lambda_.38
$region0: #{_lambda_.38}
  #allocation0 [shape = 'u32[]', space=smem, size = 0x4, offset = 0x4, fixed_abs, tag = 'smem constant byte address 0x4 - core index']
  #allocation1 [shape = 'u32[144,128]{1,0:T(1,128)}', space=vmem, size = 0x12000, scoped, tag = 'internal scratch']
  %s0 = inlined_call_operand.vmem [shape: bf16[4,4,128], index: 0, kind: input, shape index: {}]
  %s1 = inlined_call_operand.vmem [shape: bf16[4,4,128], index: 1, kind: input, shape index: {}]
  %s2 = inlined_call_operand.vmem [shape: bf16[128,128], index: 2, kind: input, shape index: {}]
  %s3 = inlined_call_operand.vmem [shape: f32[1,128], index: 3, kind: input, shape index: {}, may-alias: {3,5}]
  %s4 = inlined_call_operand.vmem [shape: bf16[128,128], index: 4, kind: input, shape index: {}]
  %s5 = inlined_call_operand.vmem [shape: f32[1,128], index: 5, kind: input, shape index: {}, may-alias: {3,5}]
  %s6 = inlined_call_operand.vmem [shape: bf16[4,4,128], index: 6, kind: output, shape index: {}]
  %s7 = sld [smem:[#allocation0]]
  $region34: #{_lambda_.38} parent=0
    _
  %s9 = ssub.s32 1, %s7
  %s10 = scalar_select 0, %s9, %s7
  // Predicated region
  $region2: #{_lambda_.38} parent=0 // pred_check
    _
  $region3: #{_lambda_.38} parent=0 // pred_check_branch
    %12 = sbr.rel (0) target = $region5
  $region4: #{_lambda_.38} parent=0 // pred_region
    _
  $region5: #{_lambda_.38} parent=0 // pred_fallthru
    _
  // Predicated region
  $region6: #{_lambda_.38} parent=0 // pred_check
    _
  $region7: #{_lambda_.38} parent=0 // pred_check_branch
    %14 = sbr.rel (0) target = $region9
  $region8: #{_lambda_.38} parent=0 // pred_region
    _
  $region9: #{_lambda_.38} parent=0 // pred_fallthru
    _
  // Predicated region
  $region10: #{_lambda_.38} parent=0 // pred_check
    _
  $region11: #{_lambda_.38} parent=0 // pred_check_branch
    %16 = sbr.rel (0) target = $region13
  $region12: #{_lambda_.38} parent=0 // pred_region
    _
  $region13: #{_lambda_.38} parent=0 // pred_fallthru
    _
  // Predicated region
  $region14: #{_lambda_.38} parent=0 // pred_check
    _
  $region15: #{_lambda_.38} parent=0 // pred_check_branch
    %18 = sbr.rel (0) target = $region17
  $region16: #{_lambda_.38} parent=0 // pred_region
    _
  $region17: #{_lambda_.38} parent=0 // pred_fallthru
    _
  // Predicated region
  $region18: #{_lambda_.38} parent=0 // pred_check
    _
  $region19: #{_lambda_.38} parent=0 // pred_check_branch
    %20 = sbr.rel (0) target = $region21
  $region20: #{_lambda_.38} parent=0 // pred_region
    _
  $region21: #{_lambda_.38} parent=0 // pred_fallthru
    _
  // Predicated region
  $region22: #{_lambda_.38} parent=0 // pred_check
    _
  $region23: #{_lambda_.38} parent=0 // pred_check_branch
    %22 = sbr.rel (0) target = $region25
  $region24: #{_lambda_.38} parent=0 // pred_region
    _
  $region25: #{_lambda_.38} parent=0 // pred_fallthru
    _
  %v24 = vld [vmem:[%s0] sm:$0x3]
  %v25 = vld [vmem:[%s0 + $0x2] sm:$0x3]
  %v26 = vld [vmem:[%s0 + $0x4] sm:$0x3]
  %v27 = vld [vmem:[%s0 + $0x6] sm:$0x3]
  %v28 = vunpack.c.l.bf16 %v24
  %v29 = vunpack.c.l.bf16 %v25
  %v30 = vunpack.c.l.bf16 %v26
  %v31 = vunpack.c.l.bf16 %v27
  %vm32 = vcmask 1043456
  %v33 = vsel %vm32, %v28, 0.0
  %v34 = vrot.slane %v33, 4
  %v35 = vadd.f32 %v33, %v34
  %v36 = vrot.slane %v35, 2
  %v37 = vadd.f32 %v35, %v36
  %v38 = vrot.slane %v37, 1
  %v39 = vadd.f32 %v37, %v38
  %v40 = vsel %vm32, %v29, 0.0
  %v41 = vrot.slane %v40, 4
  %v42 = vadd.f32 %v40, %v41
  %v43 = vrot.slane %v42, 2
  %v44 = vadd.f32 %v42, %v43
  %v45 = vrot.slane %v44, 1
  %v46 = vadd.f32 %v44, %v45
  %v47 = vsel %vm32, %v30, 0.0
  %v48 = vrot.slane %v47, 4
  %v49 = vadd.f32 %v47, %v48
  %v50 = vrot.slane %v49, 2
  %v51 = vadd.f32 %v49, %v50
  %v52 = vrot.slane %v51, 1
  %v53 = vadd.f32 %v51, %v52
  %v54 = vsel %vm32, %v31, 0.0
  %v55 = vrot.slane %v54, 4
  %v56 = vadd.f32 %v54, %v55
  %v57 = vrot.slane %v56, 2
  %v58 = vadd.f32 %v56, %v57
  %v59 = vrot.slane %v58, 1
  %v60 = vadd.f32 %v58, %v59
  %v61 = vrcp.pop 4.0
  %v62 = vmul.f32 %v39, %v61
  %v63 = vmul.f32 %v46, %v61
  %v64 = vmul.f32 %v53, %v61
  %v65 = vmul.f32 %v60, %v61
  %v66 = vpack.c.bf16 %v62, %v62
  %v67 = vpack.c.bf16 %v63, %v63
  %v68 = vpack.c.bf16 %v64, %v64
  %v69 = vpack.c.bf16 %v65, %v65
  %v70 = vld [vmem:[%s2] sm:$0xf]
  %v71 = vld [vmem:[%s2 + $0x4] sm:$0xf]
  %v72 = vld [vmem:[%s2 + $0x8] sm:$0xf]
  %v73 = vld [vmem:[%s2 + $0xc] sm:$0xf]
  %v74 = vld [vmem:[%s2 + $0x10] sm:$0xf]
  %v75 = vld [vmem:[%s2 + $0x14] sm:$0xf]
  %v76 = vld [vmem:[%s2 + $0x18] sm:$0xf]
  %v77 = vld [vmem:[%s2 + $0x1c] sm:$0xf]
  %v78 = vld [vmem:[%s2 + $0x20] sm:$0xf]
  %v79 = vld [vmem:[%s2 + $0x24] sm:$0xf]
  %v80 = vld [vmem:[%s2 + $0x28] sm:$0xf]
  %v81 = vld [vmem:[%s2 + $0x2c] sm:$0xf]
  %v82 = vld [vmem:[%s2 + $0x30] sm:$0xf]
  %v83 = vld [vmem:[%s2 + $0x34] sm:$0xf]
  %v84 = vld [vmem:[%s2 + $0x38] sm:$0xf]
  %v85 = vld [vmem:[%s2 + $0x3c] sm:$0xf]
  %v86 = vld [vmem:[%s3] sm:$0x1]
  %v88 = vlaneseq
  %v89 = vshrl.u32 %v88, 7
  %v90 = vsub.s32 0, %v89
  %v91 = vrot.slane %v86, %v90
  %v97 = vunpack.c.l.b16 %v66
  %v98 = vunpack.c.l.b16 %v67
  %v99 = vunpack.c.l.b16 %v68
  %v100 = vunpack.c.l.b16 %v69
  %vm101 = vcmask 1041409
  %v102 = vsel %vm101, %v98, %v97
  %vm103 = vcmask 1042434
  %v104 = vsel %vm103, %v99, %v102
  %vm105 = vcmask 1043459
  %v106 = vsel %vm105, %v100, %v104
  %v107 = vpack.c.b16 %v106, %v106
  %v125 = vunpack.c.l.b16 %v70
  %v126 = vunpack.c.l.b16 %v71
  %v127 = vunpack.c.l.b16 %v72
  %v128 = vunpack.c.l.b16 %v73
  %v129 = vunpack.c.l.b16 %v74
  %v130 = vunpack.c.l.b16 %v75
  %v131 = vunpack.c.l.b16 %v76
  %v132 = vunpack.c.l.b16 %v77
  %v133 = vunpack.c.l.b16 %v78
  %v134 = vunpack.c.l.b16 %v79
  %v135 = vunpack.c.l.b16 %v80
  %v136 = vunpack.c.l.b16 %v81
  %v137 = vunpack.c.l.b16 %v82
  %v138 = vunpack.c.l.b16 %v83
  %v139 = vunpack.c.l.b16 %v84
  %v140 = vunpack.c.l.b16 %v85
  %v141 = vpack.c.b16 %v126, %v125
  %v142 = vpack.c.b16 %v128, %v127
  %v143 = vpack.c.b16 %v130, %v129
  %v144 = vpack.c.b16 %v132, %v131
  %v145 = vpack.c.b16 %v134, %v133
  %v146 = vpack.c.b16 %v136, %v135
  %v147 = vpack.c.b16 %v138, %v137
  %v148 = vpack.c.b16 %v140, %v139
  %157 = vmatprep.subr.bf16.mxu0 0
  %158 = vmatpush1.bf16.msra.mxu0 %v141
  %159 = vmatprep.subr.bf16.mxu0 0
  %160 = vmatpush1.bf16.msra.mxu0 %v142
  %161 = vmatprep.subr.bf16.mxu0 0
  %162 = vmatpush1.bf16.msra.mxu0 %v143
  %163 = vmatprep.subr.bf16.mxu0 0
  %164 = vmatpush1.bf16.msra.mxu0 %v144
  %165 = vmatprep.subr.bf16.mxu0 0
  %166 = vmatpush1.bf16.msra.mxu0 %v145
  %167 = vmatprep.subr.bf16.mxu0 0
  %168 = vmatpush1.bf16.msra.mxu0 %v146
  %169 = vmatprep.subr.bf16.mxu0 0
  %170 = vmatpush1.bf16.msra.mxu0 %v147
  %171 = vmatprep.subr.bf16.mxu0 0
  %172 = vmatpush1.bf16.msra.mxu0 %v148
  %173 = vmatprep.subr.bf16.mxu0 0
  %174 = vmatpush1.bf16.msra.mxu0 0
  %175 = vmatprep.subr.bf16.mxu0 0
  %176 = vmatpush1.bf16.msra.mxu0 0
  %177 = vmatprep.subr.bf16.mxu0 0
  %178 = vmatpush1.bf16.msra.mxu0 0
  %179 = vmatprep.subr.bf16.mxu0 0
  %180 = vmatpush1.bf16.msra.mxu0 0
  %181 = vmatprep.subr.bf16.mxu0 0
  %182 = vmatpush1.bf16.msra.mxu0 0
  %183 = vmatprep.subr.bf16.mxu0 0
  %184 = vmatpush1.bf16.msra.mxu0 0
  %185 = vmatprep.subr.bf16.mxu0 0
  %186 = vmatpush1.bf16.msra.mxu0 0
  %187 = vmatprep.subr.bf16.mxu0 0
  %188 = vmatpush1.bf16.msra.mxu0 0
  %189 = vmatprep.mubr.bf16.mxu0 0
  %190 = vmatmul.mubr.bf16.gmra.mrb[0].mxu0 %v107
  %v191 = vpop.f32.mrb[0].mxu0
  %v192 = vadd.f32 %v91, %v191
  %v193 = vpop.f32.mrb[0].mxu0
  %v194 = vpop.f32.mrb[0].mxu0
  %v195 = vpop.f32.mrb[0].mxu0
  %196 = vdwg.mxu0
  %v197 = vmax.f32 %v192, 0.0
  %v198 = vpack.c.bf16 %v197, %v197
  %v199 = vld [vmem:[%s4] sm:$0xf]
  %v200 = vld [vmem:[%s4 + $0x4] sm:$0xf]
  %v201 = vld [vmem:[%s4 + $0x8] sm:$0xf]
  %v202 = vld [vmem:[%s4 + $0xc] sm:$0xf]
  %v203 = vld [vmem:[%s4 + $0x10] sm:$0xf]
  %v204 = vld [vmem:[%s4 + $0x14] sm:$0xf]
  %v205 = vld [vmem:[%s4 + $0x18] sm:$0xf]
  %v206 = vld [vmem:[%s4 + $0x1c] sm:$0xf]
  %v207 = vld [vmem:[%s4 + $0x20] sm:$0xf]
  %v208 = vld [vmem:[%s4 + $0x24] sm:$0xf]
  %v209 = vld [vmem:[%s4 + $0x28] sm:$0xf]
  %v210 = vld [vmem:[%s4 + $0x2c] sm:$0xf]
  %v211 = vld [vmem:[%s4 + $0x30] sm:$0xf]
  %v212 = vld [vmem:[%s4 + $0x34] sm:$0xf]
  %v213 = vld [vmem:[%s4 + $0x38] sm:$0xf]
  %v214 = vld [vmem:[%s4 + $0x3c] sm:$0xf]
  %v215 = vld [vmem:[%s5] sm:$0x1]
  %v217 = vlaneseq
  %v218 = vshrl.u32 %v217, 7
  %v219 = vsub.s32 0, %v218
  %v220 = vrot.slane %v215, %v219
  %v238 = vunpack.c.l.b16 %v199
  %v239 = vunpack.c.l.b16 %v200
  %v240 = vunpack.c.l.b16 %v201
  %v241 = vunpack.c.l.b16 %v202
  %v242 = vunpack.c.l.b16 %v203
  %v243 = vunpack.c.l.b16 %v204
  %v244 = vunpack.c.l.b16 %v205
  %v245 = vunpack.c.l.b16 %v206
  %v246 = vunpack.c.l.b16 %v207
  %v247 = vunpack.c.l.b16 %v208
  %v248 = vunpack.c.l.b16 %v209
  %v249 = vunpack.c.l.b16 %v210
  %v250 = vunpack.c.l.b16 %v211
  %v251 = vunpack.c.l.b16 %v212
  %v252 = vunpack.c.l.b16 %v213
  %v253 = vunpack.c.l.b16 %v214
  %v254 = vpack.c.b16 %v239, %v238
  %v255 = vpack.c.b16 %v241, %v240
  %v256 = vpack.c.b16 %v243, %v242
  %v257 = vpack.c.b16 %v245, %v244
  %v258 = vpack.c.b16 %v247, %v246
  %v259 = vpack.c.b16 %v249, %v248
  %v260 = vpack.c.b16 %v251, %v250
  %v261 = vpack.c.b16 %v253, %v252
  %270 = vmatprep.subr.bf16.mxu0 0
  %271 = vmatpush1.bf16.msra.mxu0 %v254
  %272 = vmatprep.subr.bf16.mxu0 0
  %273 = vmatpush1.bf16.msra.mxu0 %v255
  %274 = vmatprep.subr.bf16.mxu0 0
  %275 = vmatpush1.bf16.msra.mxu0 %v256
  %276 = vmatprep.subr.bf16.mxu0 0
  %277 = vmatpush1.bf16.msra.mxu0 %v257
  %278 = vmatprep.subr.bf16.mxu0 0
  %279 = vmatpush1.bf16.msra.mxu0 %v258
  %280 = vmatprep.subr.bf16.mxu0 0
  %281 = vmatpush1.bf16.msra.mxu0 %v259
  %282 = vmatprep.subr.bf16.mxu0 0
  %283 = vmatpush1.bf16.msra.mxu0 %v260
  %284 = vmatprep.subr.bf16.mxu0 0
  %285 = vmatpush1.bf16.msra.mxu0 %v261
  %286 = vmatprep.subr.bf16.mxu0 0
  %287 = vmatpush1.bf16.msra.mxu0 0
  %288 = vmatprep.subr.bf16.mxu0 0
  %289 = vmatpush1.bf16.msra.mxu0 0
  %290 = vmatprep.subr.bf16.mxu0 0
  %291 = vmatpush1.bf16.msra.mxu0 0
  %292 = vmatprep.subr.bf16.mxu0 0
  %293 = vmatpush1.bf16.msra.mxu0 0
  %294 = vmatprep.subr.bf16.mxu0 0
  %295 = vmatpush1.bf16.msra.mxu0 0
  %296 = vmatprep.subr.bf16.mxu0 0
  %297 = vmatpush1.bf16.msra.mxu0 0
  %298 = vmatprep.subr.bf16.mxu0 0
  %299 = vmatpush1.bf16.msra.mxu0 0
  %300 = vmatprep.subr.bf16.mxu0 0
  %301 = vmatpush1.bf16.msra.mxu0 0
  %302 = vmatprep.mubr.bf16.mxu0 0
  %303 = vmatmul.mubr.bf16.gmra.mrb[0].mxu0 %v198
  %v304 = vpop.f32.mrb[0].mxu0
  %v305 = vadd.f32 %v220, %v304
  %v306 = vpop.f32.mrb[0].mxu0
  %v307 = vpop.f32.mrb[0].mxu0
  %v308 = vpop.f32.mrb[0].mxu0
  %309 = vdwg.mxu0
  %v310 = vsub.f32 0.0, %v305
  %v311 = vmul.f32 %v310, 1.442695
  %v312 = vpow.pop %v311
  %v313 = vadd.f32 %v312, 1.0
  %v314 = vrcp.pop %v313
  %v315 = vmul.f32 1.0, %v314
  %v318 = vunpack.c.l.s4 1966171168
  %v319 = vunpack.c.0.s8 %v318
  %v320 = vlaneseq
  %v321 = vshrl.u32 %v320, 7
  %v322 = vsub.s32 %v319, %v321
  %v323 = vrot.slane %v315, %v322
  %v324 = vcombine.high %v323, %v323
  %v326 = vunpack.c.l.s4 1966171168
  %v327 = vunpack.c.0.s8 %v326
  %v328 = vlaneseq
  %v329 = vshrl.u32 %v328, 7
  %v330 = vsub.s32 %v327, %v329
  %v331 = vrot.slane %v323, %v330
  %v333 = vunpack.c.l.s4 1966171168
  %v334 = vunpack.c.0.s8 %v333
  %v335 = vlaneseq
  %v336 = vshrl.u32 %v335, 7
  %v337 = vsub.s32 %v334, %v336
  %v338 = vrot.slane %v324, %v337
  %v339 = vcombine.high %v331, %v331
  %v340 = vcombine.high %v338, %v338
  %v341 = vlaneseq
  %v342 = vshrl.u32 %v341, 7
  %v343 = vsub.s32 0, %v342
  %v344 = vrot.slane %v331, %v343
  %v345 = vlaneseq
  %v346 = vshrl.u32 %v345, 7
  %v347 = vsub.s32 0, %v346
  %v348 = vrot.slane %v338, %v347
  %v349 = vlaneseq
  %v350 = vshrl.u32 %v349, 7
  %v351 = vsub.s32 0, %v350
  %v352 = vrot.slane %v339, %v351
  %v353 = vlaneseq
  %v354 = vshrl.u32 %v353, 7
  %v355 = vsub.s32 0, %v354
  %v356 = vrot.slane %v340, %v355
  %v361 = vmul.f32 %v28, %v344
  %v362 = vmul.f32 %v29, %v348
  %v363 = vmul.f32 %v30, %v352
  %v364 = vmul.f32 %v31, %v356
  %v365 = vld [vmem:[%s1] sm:$0x3]
  %v366 = vld [vmem:[%s1 + $0x2] sm:$0x3]
  %v367 = vld [vmem:[%s1 + $0x4] sm:$0x3]
  %v368 = vld [vmem:[%s1 + $0x6] sm:$0x3]
  %v369 = vunpack.c.l.bf16 %v365
  %v370 = vunpack.c.l.bf16 %v366
  %v371 = vunpack.c.l.bf16 %v367
  %v372 = vunpack.c.l.bf16 %v368
  %v373 = vadd.f32 %v361, %v369
  %v374 = vadd.f32 %v362, %v370
  %v375 = vadd.f32 %v363, %v371
  %v376 = vadd.f32 %v364, %v372
  %v377 = vmax.f32 %v373, 0.0
  %v378 = vmax.f32 %v374, 0.0
  %v379 = vmax.f32 %v375, 0.0
  %v380 = vmax.f32 %v376, 0.0
  %v381 = vpack.c.bf16 %v377, %v377
  %v382 = vpack.c.bf16 %v378, %v378
  %v383 = vpack.c.bf16 %v379, %v379
  %v384 = vpack.c.bf16 %v380, %v380
  %385 = vst [vmem:[%s6] sm:$0x3] %v381
  %386 = vst [vmem:[%s6 + $0x2] sm:$0x3] %v382
  %387 = vst [vmem:[%s6 + $0x4] sm:$0x3] %v383
  %388 = vst [vmem:[%s6 + $0x6] sm:$0x3] %v384
  // Predicated region
  $region26: #{_lambda_.38} parent=0 // pred_check
    _
  $region27: #{_lambda_.38} parent=0 // pred_check_branch
    %390 = sbr.rel (0) target = $region29
  $region28: #{_lambda_.38} parent=0 // pred_region
    _
  $region29: #{_lambda_.38} parent=0 // pred_fallthru
    _
  // Predicated region
  $region30: #{_lambda_.38} parent=0 // pred_check
    _
  $region31: #{_lambda_.38} parent=0 // pred_check_branch
    %392 = sbr.rel (0) target = $region33
  $region32: #{_lambda_.38} parent=0 // pred_region
    _
  $region33: #{_lambda_.38} parent=0 // pred_fallthru
    _

// kernel: _lambda_.39
$region0: #{_lambda_.39}
  #allocation0 [shape = 'u32[]', space=smem, size = 0x4, offset = 0x4, fixed_abs, tag = 'smem constant byte address 0x4 - core index']
  #allocation1 [shape = 'u32[144,128]{1,0:T(1,128)}', space=vmem, size = 0x12000, scoped, tag = 'internal scratch']
  %s0 = inlined_call_operand.vmem [shape: bf16[16,128], index: 0, kind: input, shape index: {}]
  %s1 = inlined_call_operand.vmem [shape: bf16[128,128], index: 1, kind: input, shape index: {}]
  %s2 = inlined_call_operand.vmem [shape: f32[1,128], index: 2, kind: input, shape index: {}]
  %s3 = inlined_call_operand.vmem [shape: bf16[16,128], index: 3, kind: output, shape index: {}]
  %s4 = sld [smem:[#allocation0]]
  $region22: #{_lambda_.39} parent=0
    _
  %s6 = ssub.s32 1, %s4
  %s7 = scalar_select 0, %s6, %s4
  // Predicated region
  $region2: #{_lambda_.39} parent=0 // pred_check
    _
  $region3: #{_lambda_.39} parent=0 // pred_check_branch
    %9 = sbr.rel (0) target = $region5
  $region4: #{_lambda_.39} parent=0 // pred_region
    _
  $region5: #{_lambda_.39} parent=0 // pred_fallthru
    _
  // Predicated region
  $region6: #{_lambda_.39} parent=0 // pred_check
    _
  $region7: #{_lambda_.39} parent=0 // pred_check_branch
    %11 = sbr.rel (0) target = $region9
  $region8: #{_lambda_.39} parent=0 // pred_region
    _
  $region9: #{_lambda_.39} parent=0 // pred_fallthru
    _
  // Predicated region
  $region10: #{_lambda_.39} parent=0 // pred_check
    _
  $region11: #{_lambda_.39} parent=0 // pred_check_branch
    %13 = sbr.rel (0) target = $region13
  $region12: #{_lambda_.39} parent=0 // pred_region
    _
  $region13: #{_lambda_.39} parent=0 // pred_fallthru
    _
  %v15 = vld [vmem:[%s0] sm:$0xf]
  %v16 = vld [vmem:[%s0 + $0x4] sm:$0xf]
  %v17 = vld [vmem:[%s1] sm:$0xf]
  %v18 = vld [vmem:[%s1 + $0x4] sm:$0xf]
  %v19 = vld [vmem:[%s1 + $0x8] sm:$0xf]
  %v20 = vld [vmem:[%s1 + $0xc] sm:$0xf]
  %v21 = vld [vmem:[%s1 + $0x10] sm:$0xf]
  %v22 = vld [vmem:[%s1 + $0x14] sm:$0xf]
  %v23 = vld [vmem:[%s1 + $0x18] sm:$0xf]
  %v24 = vld [vmem:[%s1 + $0x1c] sm:$0xf]
  %v25 = vld [vmem:[%s1 + $0x20] sm:$0xf]
  %v26 = vld [vmem:[%s1 + $0x24] sm:$0xf]
  %v27 = vld [vmem:[%s1 + $0x28] sm:$0xf]
  %v28 = vld [vmem:[%s1 + $0x2c] sm:$0xf]
  %v29 = vld [vmem:[%s1 + $0x30] sm:$0xf]
  %v30 = vld [vmem:[%s1 + $0x34] sm:$0xf]
  %v31 = vld [vmem:[%s1 + $0x38] sm:$0xf]
  %v32 = vld [vmem:[%s1 + $0x3c] sm:$0xf]
  %v33 = vld [vmem:[%s2] sm:$0x1]
  %v35 = vlaneseq
  %v36 = vshrl.u32 %v35, 7
  %v37 = vsub.s32 0, %v36
  %v38 = vrot.slane %v33, %v37
  %v42 = vunpack.c.l.b16 %v15
  %v43 = vunpack.c.l.b16 %v16
  %v44 = vpack.c.b16 %v43, %v42
  %v62 = vunpack.c.l.b16 %v17
  %v63 = vunpack.c.l.b16 %v18
  %v64 = vunpack.c.l.b16 %v19
  %v65 = vunpack.c.l.b16 %v20
  %v66 = vunpack.c.l.b16 %v21
  %v67 = vunpack.c.l.b16 %v22
  %v68 = vunpack.c.l.b16 %v23
  %v69 = vunpack.c.l.b16 %v24
  %v70 = vunpack.c.l.b16 %v25
  %v71 = vunpack.c.l.b16 %v26
  %v72 = vunpack.c.l.b16 %v27
  %v73 = vunpack.c.l.b16 %v28
  %v74 = vunpack.c.l.b16 %v29
  %v75 = vunpack.c.l.b16 %v30
  %v76 = vunpack.c.l.b16 %v31
  %v77 = vunpack.c.l.b16 %v32
  %v78 = vpack.c.b16 %v63, %v62
  %v79 = vpack.c.b16 %v65, %v64
  %v80 = vpack.c.b16 %v67, %v66
  %v81 = vpack.c.b16 %v69, %v68
  %v82 = vpack.c.b16 %v71, %v70
  %v83 = vpack.c.b16 %v73, %v72
  %v84 = vpack.c.b16 %v75, %v74
  %v85 = vpack.c.b16 %v77, %v76
  %94 = vmatprep.subr.bf16.mxu0 0
  %95 = vmatpush1.bf16.msra.mxu0 %v78
  %96 = vmatprep.subr.bf16.mxu0 0
  %97 = vmatpush1.bf16.msra.mxu0 %v79
  %98 = vmatprep.subr.bf16.mxu0 0
  %99 = vmatpush1.bf16.msra.mxu0 %v80
  %100 = vmatprep.subr.bf16.mxu0 0
  %101 = vmatpush1.bf16.msra.mxu0 %v81
  %102 = vmatprep.subr.bf16.mxu0 0
  %103 = vmatpush1.bf16.msra.mxu0 %v82
  %104 = vmatprep.subr.bf16.mxu0 0
  %105 = vmatpush1.bf16.msra.mxu0 %v83
  %106 = vmatprep.subr.bf16.mxu0 0
  %107 = vmatpush1.bf16.msra.mxu0 %v84
  %108 = vmatprep.subr.bf16.mxu0 0
  %109 = vmatpush1.bf16.msra.mxu0 %v85
  %110 = vmatprep.subr.bf16.mxu0 0
  %111 = vmatpush1.bf16.msra.mxu0 0
  %112 = vmatprep.subr.bf16.mxu0 0
  %113 = vmatpush1.bf16.msra.mxu0 0
  %114 = vmatprep.subr.bf16.mxu0 0
  %115 = vmatpush1.bf16.msra.mxu0 0
  %116 = vmatprep.subr.bf16.mxu0 0
  %117 = vmatpush1.bf16.msra.mxu0 0
  %118 = vmatprep.subr.bf16.mxu0 0
  %119 = vmatpush1.bf16.msra.mxu0 0
  %120 = vmatprep.subr.bf16.mxu0 0
  %121 = vmatpush1.bf16.msra.mxu0 0
  %122 = vmatprep.subr.bf16.mxu0 0
  %123 = vmatpush1.bf16.msra.mxu0 0
  %124 = vmatprep.subr.bf16.mxu0 0
  %125 = vmatpush1.bf16.msra.mxu0 0
  %126 = vmatprep.mubr.bf16.mxu0 0
  %127 = vmatmul.mubr.bf16.gmra.mrb[0].mxu0 %v44
  %v128 = vpop.f32.mrb[0].mxu0
  %v129 = vadd.f32 %v38, %v128
  %v130 = vpop.f32.mrb[0].mxu0
  %v131 = vpop.f32.mrb[0].mxu0
  %v132 = vadd.f32 %v38, %v131
  %v133 = vpop.f32.mrb[0].mxu0
  %134 = vdwg.mxu0
  %v135 = vmax.f32 %v129, 0.0
  %v136 = vmax.f32 %v132, 0.0
  %v137 = vpack.c.bf16 %v136, %v135
  %v139 = vunpack.c.l.b16 %v137
  %v140 = vunpack.c.h.b16 %v137
  %v141 = vpack.c.b16 %v139, %v139
  %v142 = vpack.c.b16 %v140, %v140
  %145 = vst [vmem:[%s3] sm:$0xf] %v141
  %146 = vst [vmem:[%s3 + $0x4] sm:$0xf] %v142
  // Predicated region
  $region14: #{_lambda_.39} parent=0 // pred_check
    _
  $region15: #{_lambda_.39} parent=0 // pred_check_branch
    %148 = sbr.rel (0) target = $region17
  $region16: #{_lambda_.39} parent=0 // pred_region
    _
  $region17: #{_lambda_.39} parent=0 // pred_fallthru
    _
  // Predicated region
  $region18: #{_lambda_.39} parent=0 // pred_check
    _
  $region19: #{_lambda_.39} parent=0 // pred_check_branch
    %150 = sbr.rel (0) target = $region21
  $region20: #{_lambda_.39} parent=0 // pred_region
    _
  $region21: #{_lambda_.39} parent=0 // pred_fallthru
    _

// kernel: _lambda_.35
$region0: #{_lambda_.35}
  #allocation0 [shape = 'u32[]', space=smem, size = 0x4, offset = 0x4, fixed_abs, tag = 'smem constant byte address 0x4 - core index']
  #allocation1 [shape = 'u32[144,128]{1,0:T(1,128)}', space=vmem, size = 0x12000, scoped, tag = 'internal scratch']
  %s0 = inlined_call_operand.vmem [shape: bf16[16,1152], index: 0, kind: input, shape index: {}]
  %s1 = inlined_call_operand.vmem [shape: bf16[1152,128], index: 1, kind: input, shape index: {}]
  %s2 = inlined_call_operand.vmem [shape: f32[1,128], index: 2, kind: input, shape index: {}]
  %s3 = inlined_call_operand.vmem [shape: bf16[16,128], index: 3, kind: output, shape index: {}]
  %s4 = sld [smem:[#allocation0]]
  $region22: #{_lambda_.35} parent=0
    _
  %s6 = ssub.s32 1, %s4
  %s7 = scalar_select 0, %s6, %s4
  // Predicated region
  $region2: #{_lambda_.35} parent=0 // pred_check
    _
  $region3: #{_lambda_.35} parent=0 // pred_check_branch
    %9 = sbr.rel (0) target = $region5
  $region4: #{_lambda_.35} parent=0 // pred_region
    _
  $region5: #{_lambda_.35} parent=0 // pred_fallthru
    _
  // Predicated region
  $region6: #{_lambda_.35} parent=0 // pred_check
    _
  $region7: #{_lambda_.35} parent=0 // pred_check_branch
    %11 = sbr.rel (0) target = $region9
  $region8: #{_lambda_.35} parent=0 // pred_region
    _
  $region9: #{_lambda_.35} parent=0 // pred_fallthru
    _
  // Predicated region
  $region10: #{_lambda_.35} parent=0 // pred_check
    _
  $region11: #{_lambda_.35} parent=0 // pred_check_branch
    %13 = sbr.rel (0) target = $region13
  $region12: #{_lambda_.35} parent=0 // pred_region
    _
  $region13: #{_lambda_.35} parent=0 // pred_fallthru
    _
  %v15 = vld [vmem:[%s0] sm:$0xff]
  %v16 = vld [vmem:[%s0 + $0x8] sm:$0xff]
  %v17 = vld [vmem:[%s0 + $0x10] sm:$0xff]
  %v18 = vld [vmem:[%s0 + $0x18] sm:$0xff]
  %v19 = vld [vmem:[%s0 + $0x20] sm:$0xf]
  %v20 = vld [vmem:[%s0 + $0x24] sm:$0xff]
  %v21 = vld [vmem:[%s0 + $0x2c] sm:$0xff]
  %v22 = vld [vmem:[%s0 + $0x34] sm:$0xff]
  %v23 = vld [vmem:[%s0 + $0x3c] sm:$0xff]
  %v24 = vld [vmem:[%s0 + $0x44] sm:$0xf]
  %v25 = vld [vmem:[%s1] sm:$0xf]
  %v26 = vld [vmem:[%s1 + $0x4] sm:$0xf]
  %v27 = vld [vmem:[%s1 + $0x8] sm:$0xf]
  %v28 = vld [vmem:[%s1 + $0xc] sm:$0xf]
  %v29 = vld [vmem:[%s1 + $0x10] sm:$0xf]
  %v30 = vld [vmem:[%s1 + $0x14] sm:$0xf]
  %v31 = vld [vmem:[%s1 + $0x18] sm:$0xf]
  %v32 = vld [vmem:[%s1 + $0x1c] sm:$0xf]
  %v33 = vld [vmem:[%s1 + $0x20] sm:$0xf]
  %v34 = vld [vmem:[%s1 + $0x24] sm:$0xf]
  %v35 = vld [vmem:[%s1 + $0x28] sm:$0xf]
  %v36 = vld [vmem:[%s1 + $0x2c] sm:$0xf]
  %v37 = vld [vmem:[%s1 + $0x30] sm:$0xf]
  %v38 = vld [vmem:[%s1 + $0x34] sm:$0xf]
  %v39 = vld [vmem:[%s1 + $0x38] sm:$0xf]
  %v40 = vld [vmem:[%s1 + $0x3c] sm:$0xf]
  %v41 = vld [vmem:[%s1 + $0x40] sm:$0xf]
  %v42 = vld [vmem:[%s1 + $0x44] sm:$0xf]
  %v43 = vld [vmem:[%s1 + $0x48] sm:$0xf]
  %v44 = vld [vmem:[%s1 + $0x4c] sm:$0xf]
  %v45 = vld [vmem:[%s1 + $0x50] sm:$0xf]
  %v46 = vld [vmem:[%s1 + $0x54] sm:$0xf]
  %v47 = vld [vmem:[%s1 + $0x58] sm:$0xf]
  %v48 = vld [vmem:[%s1 + $0x5c] sm:$0xf]
  %v49 = vld [vmem:[%s1 + $0x60] sm:$0xf]
  %v50 = vld [vmem:[%s1 + $0x64] sm:$0xf]
  %v51 = vld [vmem:[%s1 + $0x68] sm:$0xf]
  %v52 = vld [vmem:[%s1 + $0x6c] sm:$0xf]
  %v53 = vld [vmem:[%s1 + $0x70] sm:$0xf]
  %v54 = vld [vmem:[%s1 + $0x74] sm:$0xf]
  %v55 = vld [vmem:[%s1 + $0x78] sm:$0xf]
  %v56 = vld [vmem:[%s1 + $0x7c] sm:$0xf]
  %v57 = vld [vmem:[%s1 + $0x80] sm:$0xf]
  %v58 = vld [vmem:[%s1 + $0x84] sm:$0xf]
  %v59 = vld [vmem:[%s1 + $0x88] sm:$0xf]
  %v60 = vld [vmem:[%s1 + $0x8c] sm:$0xf]
  %v61 = vld [vmem:[%s1 + $0x90] sm:$0xf]
  %v62 = vld [vmem:[%s1 + $0x94] sm:$0xf]
  %v63 = vld [vmem:[%s1 + $0x98] sm:$0xf]
  %v64 = vld [vmem:[%s1 + $0x9c] sm:$0xf]
  %v65 = vld [vmem:[%s1 + $0xa0] sm:$0xf]
  %v66 = vld [vmem:[%s1 + $0xa4] sm:$0xf]
  %v67 = vld [vmem:[%s1 + $0xa8] sm:$0xf]
  %v68 = vld [vmem:[%s1 + $0xac] sm:$0xf]
  %v69 = vld [vmem:[%s1 + $0xb0] sm:$0xf]
  %v70 = vld [vmem:[%s1 + $0xb4] sm:$0xf]
  %v71 = vld [vmem:[%s1 + $0xb8] sm:$0xf]
  %v72 = vld [vmem:[%s1 + $0xbc] sm:$0xf]
  %v73 = vld [vmem:[%s1 + $0xc0] sm:$0xf]
  %v74 = vld [vmem:[%s1 + $0xc4] sm:$0xf]
  %v75 = vld [vmem:[%s1 + $0xc8] sm:$0xf]
  %v76 = vld [vmem:[%s1 + $0xcc] sm:$0xf]
  %v77 = vld [vmem:[%s1 + $0xd0] sm:$0xf]
  %v78 = vld [vmem:[%s1 + $0xd4] sm:$0xf]
  %v79 = vld [vmem:[%s1 + $0xd8] sm:$0xf]
  %v80 = vld [vmem:[%s1 + $0xdc] sm:$0xf]
  %v81 = vld [vmem:[%s1 + $0xe0] sm:$0xf]
  %v82 = vld [vmem:[%s1 + $0xe4] sm:$0xf]
  %v83 = vld [vmem:[%s1 + $0xe8] sm:$0xf]
  %v84 = vld [vmem:[%s1 + $0xec] sm:$0xf]
  %v85 = vld [vmem:[%s1 + $0xf0] sm:$0xf]
  %v86 = vld [vmem:[%s1 + $0xf4] sm:$0xf]
  %v87 = vld [vmem:[%s1 + $0xf8] sm:$0xf]
  %v88 = vld [vmem:[%s1 + $0xfc] sm:$0xf]
  %v89 = vld [vmem:[%s1 + $0x100] sm:$0xf]
  %v90 = vld [vmem:[%s1 + $0x104] sm:$0xf]
  %v91 = vld [vmem:[%s1 + $0x108] sm:$0xf]
  %v92 = vld [vmem:[%s1 + $0x10c] sm:$0xf]
  %v93 = vld [vmem:[%s1 + $0x110] sm:$0xf]
  %v94 = vld [vmem:[%s1 + $0x114] sm:$0xf]
  %v95 = vld [vmem:[%s1 + $0x118] sm:$0xf]
  %v96 = vld [vmem:[%s1 + $0x11c] sm:$0xf]
  %v97 = vld [vmem:[%s1 + $0x120] sm:$0xf]
  %v98 = vld [vmem:[%s1 + $0x124] sm:$0xf]
  %v99 = vld [vmem:[%s1 + $0x128] sm:$0xf]
  %v100 = vld [vmem:[%s1 + $0x12c] sm:$0xf]
  %v101 = vld [vmem:[%s1 + $0x130] sm:$0xf]
  %v102 = vld [vmem:[%s1 + $0x134] sm:$0xf]
  %v103 = vld [vmem:[%s1 + $0x138] sm:$0xf]
  %v104 = vld [vmem:[%s1 + $0x13c] sm:$0xf]
  %v105 = vld [vmem:[%s1 + $0x140] sm:$0xf]
  %v106 = vld [vmem:[%s1 + $0x144] sm:$0xf]
  %v107 = vld [vmem:[%s1 + $0x148] sm:$0xf]
  %v108 = vld [vmem:[%s1 + $0x14c] sm:$0xf]
  %v109 = vld [vmem:[%s1 + $0x150] sm:$0xf]
  %v110 = vld [vmem:[%s1 + $0x154] sm:$0xf]
  %v111 = vld [vmem:[%s1 + $0x158] sm:$0xf]
  %v112 = vld [vmem:[%s1 + $0x15c] sm:$0xf]
  %v113 = vld [vmem:[%s1 + $0x160] sm:$0xf]
  %v114 = vld [vmem:[%s1 + $0x164] sm:$0xf]
  %v115 = vld [vmem:[%s1 + $0x168] sm:$0xf]
  %v116 = vld [vmem:[%s1 + $0x16c] sm:$0xf]
  %v117 = vld [vmem:[%s1 + $0x170] sm:$0xf]
  %v118 = vld [vmem:[%s1 + $0x174] sm:$0xf]
  %v119 = vld [vmem:[%s1 + $0x178] sm:$0xf]
  %v120 = vld [vmem:[%s1 + $0x17c] sm:$0xf]
  %v121 = vld [vmem:[%s1 + $0x180] sm:$0xf]
  %v122 = vld [vmem:[%s1 + $0x184] sm:$0xf]
  %v123 = vld [vmem:[%s1 + $0x188] sm:$0xf]
  %v124 = vld [vmem:[%s1 + $0x18c] sm:$0xf]
  %v125 = vld [vmem:[%s1 + $0x190] sm:$0xf]
  %v126 = vld [vmem:[%s1 + $0x194] sm:$0xf]
  %v127 = vld [vmem:[%s1 + $0x198] sm:$0xf]
  %v128 = vld [vmem:[%s1 + $0x19c] sm:$0xf]
  %v129 = vld [vmem:[%s1 + $0x1a0] sm:$0xf]
  %v130 = vld [vmem:[%s1 + $0x1a4] sm:$0xf]
  %v131 = vld [vmem:[%s1 + $0x1a8] sm:$0xf]
  %v132 = vld [vmem:[%s1 + $0x1ac] sm:$0xf]
  %v133 = vld [vmem:[%s1 + $0x1b0] sm:$0xf]
  %v134 = vld [vmem:[%s1 + $0x1b4] sm:$0xf]
  %v135 = vld [vmem:[%s1 + $0x1b8] sm:$0xf]
  %v136 = vld [vmem:[%s1 + $0x1bc] sm:$0xf]
  %v137 = vld [vmem:[%s1 + $0x1c0] sm:$0xf]
  %v138 = vld [vmem:[%s1 + $0x1c4] sm:$0xf]
  %v139 = vld [vmem:[%s1 + $0x1c8] sm:$0xf]
  %v140 = vld [vmem:[%s1 + $0x1cc] sm:$0xf]
  %v141 = vld [vmem:[%s1 + $0x1d0] sm:$0xf]
  %v142 = vld [vmem:[%s1 + $0x1d4] sm:$0xf]
  %v143 = vld [vmem:[%s1 + $0x1d8] sm:$0xf]
  %v144 = vld [vmem:[%s1 + $0x1dc] sm:$0xf]
  %v145 = vld [vmem:[%s1 + $0x1e0] sm:$0xf]
  %v146 = vld [vmem:[%s1 + $0x1e4] sm:$0xf]
  %v147 = vld [vmem:[%s1 + $0x1e8] sm:$0xf]
  %v148 = vld [vmem:[%s1 + $0x1ec] sm:$0xf]
  %v149 = vld [vmem:[%s1 + $0x1f0] sm:$0xf]
  %v150 = vld [vmem:[%s1 + $0x1f4] sm:$0xf]
  %v151 = vld [vmem:[%s1 + $0x1f8] sm:$0xf]
  %v152 = vld [vmem:[%s1 + $0x1fc] sm:$0xf]
  %v153 = vld [vmem:[%s1 + $0x200] sm:$0xf]
  %v154 = vld [vmem:[%s1 + $0x204] sm:$0xf]
  %v155 = vld [vmem:[%s1 + $0x208] sm:$0xf]
  %v156 = vld [vmem:[%s1 + $0x20c] sm:$0xf]
  %v157 = vld [vmem:[%s1 + $0x210] sm:$0xf]
  %v158 = vld [vmem:[%s1 + $0x214] sm:$0xf]
  %v159 = vld [vmem:[%s1 + $0x218] sm:$0xf]
  %v160 = vld [vmem:[%s1 + $0x21c] sm:$0xf]
  %v161 = vld [vmem:[%s1 + $0x220] sm:$0xf]
  %v162 = vld [vmem:[%s1 + $0x224] sm:$0xf]
  %v163 = vld [vmem:[%s1 + $0x228] sm:$0xf]
  %v164 = vld [vmem:[%s1 + $0x22c] sm:$0xf]
  %v165 = vld [vmem:[%s1 + $0x230] sm:$0xf]
  %v166 = vld [vmem:[%s1 + $0x234] sm:$0xf]
  %v167 = vld [vmem:[%s1 + $0x238] sm:$0xf]
  %v168 = vld [vmem:[%s1 + $0x23c] sm:$0xf]
  %v169 = vld [vmem:[%s2] sm:$0x1]
  %v171 = vlaneseq
  %v172 = vshrl.u32 %v171, 7
  %v173 = vsub.s32 0, %v172
  %v174 = vrot.slane %v169, %v173
  %v186 = vunpack.c.l.b16 %v15
  %v187 = vunpack.c.h.b16 %v15
  %v188 = vunpack.c.l.b16 %v16
  %v189 = vunpack.c.h.b16 %v16
  %v190 = vunpack.c.l.b16 %v17
  %v191 = vunpack.c.h.b16 %v17
  %v192 = vunpack.c.l.b16 %v18
  %v193 = vunpack.c.h.b16 %v18
  %v194 = vunpack.c.l.b16 %v19
  %v195 = vunpack.c.l.b16 %v20
  %v196 = vunpack.c.h.b16 %v20
  %v197 = vunpack.c.l.b16 %v21
  %v198 = vunpack.c.h.b16 %v21
  %v199 = vunpack.c.l.b16 %v22
  %v200 = vunpack.c.h.b16 %v22
  %v201 = vunpack.c.l.b16 %v23
  %v202 = vunpack.c.h.b16 %v23
  %v203 = vunpack.c.l.b16 %v24
  %v204 = vpack.c.b16 %v195, %v186
  %v205 = vpack.c.b16 %v196, %v187
  %v206 = vpack.c.b16 %v197, %v188
  %v207 = vpack.c.b16 %v198, %v189
  %v208 = vpack.c.b16 %v199, %v190
  %v209 = vpack.c.b16 %v200, %v191
  %v210 = vpack.c.b16 %v201, %v192
  %v211 = vpack.c.b16 %v202, %v193
  %v212 = vpack.c.b16 %v203, %v194
  %v366 = vunpack.c.l.b16 %v25
  %v367 = vunpack.c.l.b16 %v26
  %v368 = vunpack.c.l.b16 %v27
  %v369 = vunpack.c.l.b16 %v28
  %v370 = vunpack.c.l.b16 %v29
  %v371 = vunpack.c.l.b16 %v30
  %v372 = vunpack.c.l.b16 %v31
  %v373 = vunpack.c.l.b16 %v32
  %v374 = vunpack.c.l.b16 %v33
  %v375 = vunpack.c.l.b16 %v34
  %v376 = vunpack.c.l.b16 %v35
  %v377 = vunpack.c.l.b16 %v36
  %v378 = vunpack.c.l.b16 %v37
  %v379 = vunpack.c.l.b16 %v38
  %v380 = vunpack.c.l.b16 %v39
  %v381 = vunpack.c.l.b16 %v40
  %v382 = vunpack.c.l.b16 %v41
  %v383 = vunpack.c.l.b16 %v42
  %v384 = vunpack.c.l.b16 %v43
  %v385 = vunpack.c.l.b16 %v44
  %v386 = vunpack.c.l.b16 %v45
  %v387 = vunpack.c.l.b16 %v46
  %v388 = vunpack.c.l.b16 %v47
  %v389 = vunpack.c.l.b16 %v48
  %v390 = vunpack.c.l.b16 %v49
  %v391 = vunpack.c.l.b16 %v50
  %v392 = vunpack.c.l.b16 %v51
  %v393 = vunpack.c.l.b16 %v52
  %v394 = vunpack.c.l.b16 %v53
  %v395 = vunpack.c.l.b16 %v54
  %v396 = vunpack.c.l.b16 %v55
  %v397 = vunpack.c.l.b16 %v56
  %v398 = vunpack.c.l.b16 %v57
  %v399 = vunpack.c.l.b16 %v58
  %v400 = vunpack.c.l.b16 %v59
  %v401 = vunpack.c.l.b16 %v60
  %v402 = vunpack.c.l.b16 %v61
  %v403 = vunpack.c.l.b16 %v62
  %v404 = vunpack.c.l.b16 %v63
  %v405 = vunpack.c.l.b16 %v64
  %v406 = vunpack.c.l.b16 %v65
  %v407 = vunpack.c.l.b16 %v66
  %v408 = vunpack.c.l.b16 %v67
  %v409 = vunpack.c.l.b16 %v68
  %v410 = vunpack.c.l.b16 %v69
  %v411 = vunpack.c.l.b16 %v70
  %v412 = vunpack.c.l.b16 %v71
  %v413 = vunpack.c.l.b16 %v72
  %v414 = vunpack.c.l.b16 %v73
  %v415 = vunpack.c.l.b16 %v74
  %v416 = vunpack.c.l.b16 %v75
  %v417 = vunpack.c.l.b16 %v76
  %v418 = vunpack.c.l.b16 %v77
  %v419 = vunpack.c.l.b16 %v78
  %v420 = vunpack.c.l.b16 %v79
  %v421 = vunpack.c.l.b16 %v80
  %v422 = vunpack.c.l.b16 %v81
  %v423 = vunpack.c.l.b16 %v82
  %v424 = vunpack.c.l.b16 %v83
  %v425 = vunpack.c.l.b16 %v84
  %v426 = vunpack.c.l.b16 %v85
  %v427 = vunpack.c.l.b16 %v86
  %v428 = vunpack.c.l.b16 %v87
  %v429 = vunpack.c.l.b16 %v88
  %v430 = vunpack.c.l.b16 %v89
  %v431 = vunpack.c.l.b16 %v90
  %v432 = vunpack.c.l.b16 %v91
  %v433 = vunpack.c.l.b16 %v92
  %v434 = vunpack.c.l.b16 %v93
  %v435 = vunpack.c.l.b16 %v94
  %v436 = vunpack.c.l.b16 %v95
  %v437 = vunpack.c.l.b16 %v96
  %v438 = vunpack.c.l.b16 %v97
  %v439 = vunpack.c.l.b16 %v98
  %v440 = vunpack.c.l.b16 %v99
  %v441 = vunpack.c.l.b16 %v100
  %v442 = vunpack.c.l.b16 %v101
  %v443 = vunpack.c.l.b16 %v102
  %v444 = vunpack.c.l.b16 %v103
  %v445 = vunpack.c.l.b16 %v104
  %v446 = vunpack.c.l.b16 %v105
  %v447 = vunpack.c.l.b16 %v106
  %v448 = vunpack.c.l.b16 %v107
  %v449 = vunpack.c.l.b16 %v108
  %v450 = vunpack.c.l.b16 %v109
  %v451 = vunpack.c.l.b16 %v110
  %v452 = vunpack.c.l.b16 %v111
  %v453 = vunpack.c.l.b16 %v112
  %v454 = vunpack.c.l.b16 %v113
  %v455 = vunpack.c.l.b16 %v114
  %v456 = vunpack.c.l.b16 %v115
  %v457 = vunpack.c.l.b16 %v116
  %v458 = vunpack.c.l.b16 %v117
  %v459 = vunpack.c.l.b16 %v118
  %v460 = vunpack.c.l.b16 %v119
  %v461 = vunpack.c.l.b16 %v120
  %v462 = vunpack.c.l.b16 %v121
  %v463 = vunpack.c.l.b16 %v122
  %v464 = vunpack.c.l.b16 %v123
  %v465 = vunpack.c.l.b16 %v124
  %v466 = vunpack.c.l.b16 %v125
  %v467 = vunpack.c.l.b16 %v126
  %v468 = vunpack.c.l.b16 %v127
  %v469 = vunpack.c.l.b16 %v128
  %v470 = vunpack.c.l.b16 %v129
  %v471 = vunpack.c.l.b16 %v130
  %v472 = vunpack.c.l.b16 %v131
  %v473 = vunpack.c.l.b16 %v132
  %v474 = vunpack.c.l.b16 %v133
  %v475 = vunpack.c.l.b16 %v134
  %v476 = vunpack.c.l.b16 %v135
  %v477 = vunpack.c.l.b16 %v136
  %v478 = vunpack.c.l.b16 %v137
  %v479 = vunpack.c.l.b16 %v138
  %v480 = vunpack.c.l.b16 %v139
  %v481 = vunpack.c.l.b16 %v140
  %v482 = vunpack.c.l.b16 %v141
  %v483 = vunpack.c.l.b16 %v142
  %v484 = vunpack.c.l.b16 %v143
  %v485 = vunpack.c.l.b16 %v144
  %v486 = vunpack.c.l.b16 %v145
  %v487 = vunpack.c.l.b16 %v146
  %v488 = vunpack.c.l.b16 %v147
  %v489 = vunpack.c.l.b16 %v148
  %v490 = vunpack.c.l.b16 %v149
  %v491 = vunpack.c.l.b16 %v150
  %v492 = vunpack.c.l.b16 %v151
  %v493 = vunpack.c.l.b16 %v152
  %v494 = vunpack.c.l.b16 %v153
  %v495 = vunpack.c.l.b16 %v154
  %v496 = vunpack.c.l.b16 %v155
  %v497 = vunpack.c.l.b16 %v156
  %v498 = vunpack.c.l.b16 %v157
  %v499 = vunpack.c.l.b16 %v158
  %v500 = vunpack.c.l.b16 %v159
  %v501 = vunpack.c.l.b16 %v160
  %v502 = vunpack.c.l.b16 %v161
  %v503 = vunpack.c.l.b16 %v162
  %v504 = vunpack.c.l.b16 %v163
  %v505 = vunpack.c.l.b16 %v164
  %v506 = vunpack.c.l.b16 %v165
  %v507 = vunpack.c.l.b16 %v166
  %v508 = vunpack.c.l.b16 %v167
  %v509 = vunpack.c.l.b16 %v168
  %v510 = vpack.c.b16 %v367, %v366
  %v511 = vpack.c.b16 %v369, %v368
  %v512 = vpack.c.b16 %v371, %v370
  %v513 = vpack.c.b16 %v373, %v372
  %v514 = vpack.c.b16 %v375, %v374
  %v515 = vpack.c.b16 %v377, %v376
  %v516 = vpack.c.b16 %v379, %v378
  %v517 = vpack.c.b16 %v381, %v380
  %v518 = vpack.c.b16 %v383, %v382
  %v519 = vpack.c.b16 %v385, %v384
  %v520 = vpack.c.b16 %v387, %v386
  %v521 = vpack.c.b16 %v389, %v388
  %v522 = vpack.c.b16 %v391, %v390
  %v523 = vpack.c.b16 %v393, %v392
  %v524 = vpack.c.b16 %v395, %v394
  %v525 = vpack.c.b16 %v397, %v396
  %v526 = vpack.c.b16 %v399, %v398
  %v527 = vpack.c.b16 %v401, %v400
  %v528 = vpack.c.b16 %v403, %v402
  %v529 = vpack.c.b16 %v405, %v404
  %v530 = vpack.c.b16 %v407, %v406
  %v531 = vpack.c.b16 %v409, %v408
  %v532 = vpack.c.b16 %v411, %v410
  %v533 = vpack.c.b16 %v413, %v412
  %v534 = vpack.c.b16 %v415, %v414
  %v535 = vpack.c.b16 %v417, %v416
  %v536 = vpack.c.b16 %v419, %v418
  %v537 = vpack.c.b16 %v421, %v420
  %v538 = vpack.c.b16 %v423, %v422
  %v539 = vpack.c.b16 %v425, %v424
  %v540 = vpack.c.b16 %v427, %v426
  %v541 = vpack.c.b16 %v429, %v428
  %v542 = vpack.c.b16 %v431, %v430
  %v543 = vpack.c.b16 %v433, %v432
  %v544 = vpack.c.b16 %v435, %v434
  %v545 = vpack.c.b16 %v437, %v436
  %v546 = vpack.c.b16 %v439, %v438
  %v547 = vpack.c.b16 %v441, %v440
  %v548 = vpack.c.b16 %v443, %v442
  %v549 = vpack.c.b16 %v445, %v444
  %v550 = vpack.c.b16 %v447, %v446
  %v551 = vpack.c.b16 %v449, %v448
  %v552 = vpack.c.b16 %v451, %v450
  %v553 = vpack.c.b16 %v453, %v452
  %v554 = vpack.c.b16 %v455, %v454
  %v555 = vpack.c.b16 %v457, %v456
  %v556 = vpack.c.b16 %v459, %v458
  %v557 = vpack.c.b16 %v461, %v460
  %v558 = vpack.c.b16 %v463, %v462
  %v559 = vpack.c.b16 %v465, %v464
  %v560 = vpack.c.b16 %v467, %v466
  %v561 = vpack.c.b16 %v469, %v468
  %v562 = vpack.c.b16 %v471, %v470
  %v563 = vpack.c.b16 %v473, %v472
  %v564 = vpack.c.b16 %v475, %v474
  %v565 = vpack.c.b16 %v477, %v476
  %v566 = vpack.c.b16 %v479, %v478
  %v567 = vpack.c.b16 %v481, %v480
  %v568 = vpack.c.b16 %v483, %v482
  %v569 = vpack.c.b16 %v485, %v484
  %v570 = vpack.c.b16 %v487, %v486
  %v571 = vpack.c.b16 %v489, %v488
  %v572 = vpack.c.b16 %v491, %v490
  %v573 = vpack.c.b16 %v493, %v492
  %v574 = vpack.c.b16 %v495, %v494
  %v575 = vpack.c.b16 %v497, %v496
  %v576 = vpack.c.b16 %v499, %v498
  %v577 = vpack.c.b16 %v501, %v500
  %v578 = vpack.c.b16 %v503, %v502
  %v579 = vpack.c.b16 %v505, %v504
  %v580 = vpack.c.b16 %v507, %v506
  %v581 = vpack.c.b16 %v509, %v508
  %654 = vmatprep.subr.bf16.mxu0 0
  %655 = vmatpush1.bf16.msra.mxu0 %v510
  %656 = vmatprep.subr.bf16.mxu0 0
  %657 = vmatpush1.bf16.msra.mxu0 %v511
  %658 = vmatprep.subr.bf16.mxu0 0
  %659 = vmatpush1.bf16.msra.mxu0 %v512
  %660 = vmatprep.subr.bf16.mxu0 0
  %661 = vmatpush1.bf16.msra.mxu0 %v513
  %662 = vmatprep.subr.bf16.mxu0 0
  %663 = vmatpush1.bf16.msra.mxu0 %v514
  %664 = vmatprep.subr.bf16.mxu0 0
  %665 = vmatpush1.bf16.msra.mxu0 %v515
  %666 = vmatprep.subr.bf16.mxu0 0
  %667 = vmatpush1.bf16.msra.mxu0 %v516
  %668 = vmatprep.subr.bf16.mxu0 0
  %669 = vmatpush1.bf16.msra.mxu0 %v517
  %670 = vmatprep.subr.bf16.mxu0 0
  %671 = vmatpush1.bf16.msra.mxu0 %v518
  %672 = vmatprep.subr.bf16.mxu0 0
  %673 = vmatpush1.bf16.msra.mxu0 %v519
  %674 = vmatprep.subr.bf16.mxu0 0
  %675 = vmatpush1.bf16.msra.mxu0 %v520
  %676 = vmatprep.subr.bf16.mxu0 0
  %677 = vmatpush1.bf16.msra.mxu0 %v521
  %678 = vmatprep.subr.bf16.mxu0 0
  %679 = vmatpush1.bf16.msra.mxu0 %v522
  %680 = vmatprep.subr.bf16.mxu0 0
  %681 = vmatpush1.bf16.msra.mxu0 %v523
  %682 = vmatprep.subr.bf16.mxu0 0
  %683 = vmatpush1.bf16.msra.mxu0 %v524
  %684 = vmatprep.subr.bf16.mxu0 0
  %685 = vmatpush1.bf16.msra.mxu0 %v525
  %686 = vmatprep.mubr.bf16.mxu0 %v205
  %687 = vmatmul.mubr.bf16.gmra.mrb[0].mxu0 %v204
  %v688 = vpop.f32.mrb[0].mxu0
  %v689 = vadd.f32 %v174, %v688
  %v690 = vpop.f32.mrb[0].mxu0
  %v691 = vpop.f32.mrb[0].mxu0
  %v692 = vadd.f32 %v174, %v691
  %v693 = vpop.f32.mrb[0].mxu0
  %694 = vdwg.mxu0
  %695 = vmatprep.subr.bf16.mxu0 0
  %696 = vmatpush1.bf16.msra.mxu0 %v526
  %697 = vmatprep.subr.bf16.mxu0 0
  %698 = vmatpush1.bf16.msra.mxu0 %v527
  %699 = vmatprep.subr.bf16.mxu0 0
  %700 = vmatpush1.bf16.msra.mxu0 %v528
  %701 = vmatprep.subr.bf16.mxu0 0
  %702 = vmatpush1.bf16.msra.mxu0 %v529
  %703 = vmatprep.subr.bf16.mxu0 0
  %704 = vmatpush1.bf16.msra.mxu0 %v530
  %705 = vmatprep.subr.bf16.mxu0 0
  %706 = vmatpush1.bf16.msra.mxu0 %v531
  %707 = vmatprep.subr.bf16.mxu0 0
  %708 = vmatpush1.bf16.msra.mxu0 %v532
  %709 = vmatprep.subr.bf16.mxu0 0
  %710 = vmatpush1.bf16.msra.mxu0 %v533
  %711 = vmatprep.subr.bf16.mxu0 0
  %712 = vmatpush1.bf16.msra.mxu0 %v534
  %713 = vmatprep.subr.bf16.mxu0 0
  %714 = vmatpush1.bf16.msra.mxu0 %v535
  %715 = vmatprep.subr.bf16.mxu0 0
  %716 = vmatpush1.bf16.msra.mxu0 %v536
  %717 = vmatprep.subr.bf16.mxu0 0
  %718 = vmatpush1.bf16.msra.mxu0 %v537
  %719 = vmatprep.subr.bf16.mxu0 0
  %720 = vmatpush1.bf16.msra.mxu0 %v538
  %721 = vmatprep.subr.bf16.mxu0 0
  %722 = vmatpush1.bf16.msra.mxu0 %v539
  %723 = vmatprep.subr.bf16.mxu0 0
  %724 = vmatpush1.bf16.msra.mxu0 %v540
  %725 = vmatprep.subr.bf16.mxu0 0
  %726 = vmatpush1.bf16.msra.mxu0 %v541
  %727 = vmatprep.mubr.bf16.mxu0 %v207
  %728 = vmatmul.mubr.bf16.gmra.mrb[0].mxu0 %v206
  %v729 = vpop.f32.mrb[0].mxu0
  %v730 = vadd.f32 %v689, %v729
  %v731 = vpop.f32.mrb[0].mxu0
  %v732 = vpop.f32.mrb[0].mxu0
  %v733 = vadd.f32 %v692, %v732
  %v734 = vpop.f32.mrb[0].mxu0
  %735 = vdwg.mxu0
  %736 = vmatprep.subr.bf16.mxu0 0
  %737 = vmatpush1.bf16.msra.mxu0 %v542
  %738 = vmatprep.subr.bf16.mxu0 0
  %739 = vmatpush1.bf16.msra.mxu0 %v543
  %740 = vmatprep.subr.bf16.mxu0 0
  %741 = vmatpush1.bf16.msra.mxu0 %v544
  %742 = vmatprep.subr.bf16.mxu0 0
  %743 = vmatpush1.bf16.msra.mxu0 %v545
  %744 = vmatprep.subr.bf16.mxu0 0
  %745 = vmatpush1.bf16.msra.mxu0 %v546
  %746 = vmatprep.subr.bf16.mxu0 0
  %747 = vmatpush1.bf16.msra.mxu0 %v547
  %748 = vmatprep.subr.bf16.mxu0 0
  %749 = vmatpush1.bf16.msra.mxu0 %v548
  %750 = vmatprep.subr.bf16.mxu0 0
  %751 = vmatpush1.bf16.msra.mxu0 %v549
  %752 = vmatprep.subr.bf16.mxu0 0
  %753 = vmatpush1.bf16.msra.mxu0 %v550
  %754 = vmatprep.subr.bf16.mxu0 0
  %755 = vmatpush1.bf16.msra.mxu0 %v551
  %756 = vmatprep.subr.bf16.mxu0 0
  %757 = vmatpush1.bf16.msra.mxu0 %v552
  %758 = vmatprep.subr.bf16.mxu0 0
  %759 = vmatpush1.bf16.msra.mxu0 %v553
  %760 = vmatprep.subr.bf16.mxu0 0
  %761 = vmatpush1.bf16.msra.mxu0 %v554
  %762 = vmatprep.subr.bf16.mxu0 0
  %763 = vmatpush1.bf16.msra.mxu0 %v555
  %764 = vmatprep.subr.bf16.mxu0 0
  %765 = vmatpush1.bf16.msra.mxu0 %v556
  %766 = vmatprep.subr.bf16.mxu0 0
  %767 = vmatpush1.bf16.msra.mxu0 %v557
  %768 = vmatprep.mubr.bf16.mxu0 %v209
  %769 = vmatmul.mubr.bf16.gmra.mrb[0].mxu0 %v208
  %v770 = vpop.f32.mrb[0].mxu0
  %v771 = vadd.f32 %v730, %v770
  %v772 = vpop.f32.mrb[0].mxu0
  %v773 = vpop.f32.mrb[0].mxu0
  %v774 = vadd.f32 %v733, %v773
  %v775 = vpop.f32.mrb[0].mxu0
  %776 = vdwg.mxu0
  %777 = vmatprep.subr.bf16.mxu0 0
  %778 = vmatpush1.bf16.msra.mxu0 %v558
  %779 = vmatprep.subr.bf16.mxu0 0
  %780 = vmatpush1.bf16.msra.mxu0 %v559
  %781 = vmatprep.subr.bf16.mxu0 0
  %782 = vmatpush1.bf16.msra.mxu0 %v560
  %783 = vmatprep.subr.bf16.mxu0 0
  %784 = vmatpush1.bf16.msra.mxu0 %v561
  %785 = vmatprep.subr.bf16.mxu0 0
  %786 = vmatpush1.bf16.msra.mxu0 %v562
  %787 = vmatprep.subr.bf16.mxu0 0
  %788 = vmatpush1.bf16.msra.mxu0 %v563
  %789 = vmatprep.subr.bf16.mxu0 0
  %790 = vmatpush1.bf16.msra.mxu0 %v564
  %791 = vmatprep.subr.bf16.mxu0 0
  %792 = vmatpush1.bf16.msra.mxu0 %v565
  %793 = vmatprep.subr.bf16.mxu0 0
  %794 = vmatpush1.bf16.msra.mxu0 %v566
  %795 = vmatprep.subr.bf16.mxu0 0
  %796 = vmatpush1.bf16.msra.mxu0 %v567
  %797 = vmatprep.subr.bf16.mxu0 0
  %798 = vmatpush1.bf16.msra.mxu0 %v568
  %799 = vmatprep.subr.bf16.mxu0 0
  %800 = vmatpush1.bf16.msra.mxu0 %v569
  %801 = vmatprep.subr.bf16.mxu0 0
  %802 = vmatpush1.bf16.msra.mxu0 %v570
  %803 = vmatprep.subr.bf16.mxu0 0
  %804 = vmatpush1.bf16.msra.mxu0 %v571
  %805 = vmatprep.subr.bf16.mxu0 0
  %806 = vmatpush1.bf16.msra.mxu0 %v572
  %807 = vmatprep.subr.bf16.mxu0 0
  %808 = vmatpush1.bf16.msra.mxu0 %v573
  %809 = vmatprep.mubr.bf16.mxu0 %v211
  %810 = vmatmul.mubr.bf16.gmra.mrb[0].mxu0 %v210
  %v811 = vpop.f32.mrb[0].mxu0
  %v812 = vadd.f32 %v771, %v811
  %v813 = vpop.f32.mrb[0].mxu0
  %v814 = vpop.f32.mrb[0].mxu0
  %v815 = vadd.f32 %v774, %v814
  %v816 = vpop.f32.mrb[0].mxu0
  %817 = vdwg.mxu0
  %818 = vmatprep.subr.bf16.mxu0 0
  %819 = vmatpush1.bf16.msra.mxu0 %v574
  %820 = vmatprep.subr.bf16.mxu0 0
  %821 = vmatpush1.bf16.msra.mxu0 %v575
  %822 = vmatprep.subr.bf16.mxu0 0
  %823 = vmatpush1.bf16.msra.mxu0 %v576
  %824 = vmatprep.subr.bf16.mxu0 0
  %825 = vmatpush1.bf16.msra.mxu0 %v577
  %826 = vmatprep.subr.bf16.mxu0 0
  %827 = vmatpush1.bf16.msra.mxu0 %v578
  %828 = vmatprep.subr.bf16.mxu0 0
  %829 = vmatpush1.bf16.msra.mxu0 %v579
  %830 = vmatprep.subr.bf16.mxu0 0
  %831 = vmatpush1.bf16.msra.mxu0 %v580
  %832 = vmatprep.subr.bf16.mxu0 0
  %833 = vmatpush1.bf16.msra.mxu0 %v581
  %834 = vmatprep.subr.bf16.mxu0 0
  %835 = vmatpush1.bf16.msra.mxu0 0
  %836 = vmatprep.subr.bf16.mxu0 0
  %837 = vmatpush1.bf16.msra.mxu0 0
  %838 = vmatprep.subr.bf16.mxu0 0
  %839 = vmatpush1.bf16.msra.mxu0 0
  %840 = vmatprep.subr.bf16.mxu0 0
  %841 = vmatpush1.bf16.msra.mxu0 0
  %842 = vmatprep.subr.bf16.mxu0 0
  %843 = vmatpush1.bf16.msra.mxu0 0
  %844 = vmatprep.subr.bf16.mxu0 0
  %845 = vmatpush1.bf16.msra.mxu0 0
  %846 = vmatprep.subr.bf16.mxu0 0
  %847 = vmatpush1.bf16.msra.mxu0 0
  %848 = vmatprep.subr.bf16.mxu0 0
  %849 = vmatpush1.bf16.msra.mxu0 0
  %850 = vmatprep.mubr.bf16.mxu0 0
  %851 = vmatmul.mubr.bf16.gmra.mrb[0].mxu0 %v212
  %v852 = vpop.f32.mrb[0].mxu0
  %v853 = vadd.f32 %v812, %v852
  %v854 = vpop.f32.mrb[0].mxu0
  %v855 = vpop.f32.mrb[0].mxu0
  %v856 = vadd.f32 %v815, %v855
  %v857 = vpop.f32.mrb[0].mxu0
  %858 = vdwg.mxu0
  %v859 = vmax.f32 %v853, 0.0
  %v860 = vmax.f32 %v856, 0.0
  %v861 = vpack.c.bf16 %v860, %v859
  %v863 = vunpack.c.l.b16 %v861
  %v864 = vunpack.c.h.b16 %v861
  %v865 = vpack.c.b16 %v863, %v863
  %v866 = vpack.c.b16 %v864, %v864
  %869 = vst [vmem:[%s3] sm:$0xf] %v865
  %870 = vst [vmem:[%s3 + $0x4] sm:$0xf] %v866
  // Predicated region
  $region14: #{_lambda_.35} parent=0 // pred_check
    _
  $region15: #{_lambda_.35} parent=0 // pred_check_branch
    %872 = sbr.rel (0) target = $region17
  $region16: #{_lambda_.35} parent=0 // pred_region
    _
  $region17: #{_lambda_.35} parent=0 // pred_fallthru
    _
  // Predicated region
  $region18: #{_lambda_.35} parent=0 // pred_check
    _
  $region19: #{_lambda_.35} parent=0 // pred_check_branch
    %874 = sbr.rel (0) target = $region21
  $region20: #{_lambda_.35} parent=0 // pred_region
    _
  $region21: #{_lambda_.35} parent=0 // pred_fallthru
    _

// kernel: _lambda_.41
$region0: #{_lambda_.41}
  #allocation0 [shape = 'u32[]', space=smem, size = 0x4, offset = 0x4, fixed_abs, tag = 'smem constant byte address 0x4 - core index']
  #allocation1 [shape = 'u32[144,128]{1,0:T(1,128)}', space=vmem, size = 0x12000, scoped, tag = 'internal scratch']
  %s0 = inlined_call_operand.vmem [shape: bf16[4,128], index: 0, kind: input, shape index: {}]
  %s1 = inlined_call_operand.vmem [shape: bf16[128,128], index: 1, kind: input, shape index: {}]
  %s2 = inlined_call_operand.vmem [shape: f32[1,128], index: 2, kind: input, shape index: {}]
  %s3 = inlined_call_operand.vmem [shape: bf16[4,128], index: 3, kind: output, shape index: {}]
  %s4 = sld [smem:[#allocation0]]
  $region22: #{_lambda_.41} parent=0
    _
  %s6 = ssub.s32 1, %s4
  %s7 = scalar_select 0, %s6, %s4
  // Predicated region
  $region2: #{_lambda_.41} parent=0 // pred_check
    _
  $region3: #{_lambda_.41} parent=0 // pred_check_branch
    %9 = sbr.rel (0) target = $region5
  $region4: #{_lambda_.41} parent=0 // pred_region
    _
  $region5: #{_lambda_.41} parent=0 // pred_fallthru
    _
  // Predicated region
  $region6: #{_lambda_.41} parent=0 // pred_check
    _
  $region7: #{_lambda_.41} parent=0 // pred_check_branch
    %11 = sbr.rel (0) target = $region9
  $region8: #{_lambda_.41} parent=0 // pred_region
    _
  $region9: #{_lambda_.41} parent=0 // pred_fallthru
    _
  // Predicated region
  $region10: #{_lambda_.41} parent=0 // pred_check
    _
  $region11: #{_lambda_.41} parent=0 // pred_check_branch
    %13 = sbr.rel (0) target = $region13
  $region12: #{_lambda_.41} parent=0 // pred_region
    _
  $region13: #{_lambda_.41} parent=0 // pred_fallthru
    _
  %v15 = vld [vmem:[%s0] sm:$0x3]
  %v16 = vld [vmem:[%s1] sm:$0xf]
  %v17 = vld [vmem:[%s1 + $0x4] sm:$0xf]
  %v18 = vld [vmem:[%s1 + $0x8] sm:$0xf]
  %v19 = vld [vmem:[%s1 + $0xc] sm:$0xf]
  %v20 = vld [vmem:[%s1 + $0x10] sm:$0xf]
  %v21 = vld [vmem:[%s1 + $0x14] sm:$0xf]
  %v22 = vld [vmem:[%s1 + $0x18] sm:$0xf]
  %v23 = vld [vmem:[%s1 + $0x1c] sm:$0xf]
  %v24 = vld [vmem:[%s1 + $0x20] sm:$0xf]
  %v25 = vld [vmem:[%s1 + $0x24] sm:$0xf]
  %v26 = vld [vmem:[%s1 + $0x28] sm:$0xf]
  %v27 = vld [vmem:[%s1 + $0x2c] sm:$0xf]
  %v28 = vld [vmem:[%s1 + $0x30] sm:$0xf]
  %v29 = vld [vmem:[%s1 + $0x34] sm:$0xf]
  %v30 = vld [vmem:[%s1 + $0x38] sm:$0xf]
  %v31 = vld [vmem:[%s1 + $0x3c] sm:$0xf]
  %v32 = vld [vmem:[%s2] sm:$0x1]
  %v34 = vlaneseq
  %v35 = vshrl.u32 %v34, 7
  %v36 = vsub.s32 0, %v35
  %v37 = vrot.slane %v32, %v36
  %v55 = vunpack.c.l.b16 %v16
  %v56 = vunpack.c.l.b16 %v17
  %v57 = vunpack.c.l.b16 %v18
  %v58 = vunpack.c.l.b16 %v19
  %v59 = vunpack.c.l.b16 %v20
  %v60 = vunpack.c.l.b16 %v21
  %v61 = vunpack.c.l.b16 %v22
  %v62 = vunpack.c.l.b16 %v23
  %v63 = vunpack.c.l.b16 %v24
  %v64 = vunpack.c.l.b16 %v25
  %v65 = vunpack.c.l.b16 %v26
  %v66 = vunpack.c.l.b16 %v27
  %v67 = vunpack.c.l.b16 %v28
  %v68 = vunpack.c.l.b16 %v29
  %v69 = vunpack.c.l.b16 %v30
  %v70 = vunpack.c.l.b16 %v31
  %v71 = vpack.c.b16 %v56, %v55
  %v72 = vpack.c.b16 %v58, %v57
  %v73 = vpack.c.b16 %v60, %v59
  %v74 = vpack.c.b16 %v62, %v61
  %v75 = vpack.c.b16 %v64, %v63
  %v76 = vpack.c.b16 %v66, %v65
  %v77 = vpack.c.b16 %v68, %v67
  %v78 = vpack.c.b16 %v70, %v69
  %87 = vmatprep.subr.bf16.mxu0 0
  %88 = vmatpush1.bf16.msra.mxu0 %v71
  %89 = vmatprep.subr.bf16.mxu0 0
  %90 = vmatpush1.bf16.msra.mxu0 %v72
  %91 = vmatprep.subr.bf16.mxu0 0
  %92 = vmatpush1.bf16.msra.mxu0 %v73
  %93 = vmatprep.subr.bf16.mxu0 0
  %94 = vmatpush1.bf16.msra.mxu0 %v74
  %95 = vmatprep.subr.bf16.mxu0 0
  %96 = vmatpush1.bf16.msra.mxu0 %v75
  %97 = vmatprep.subr.bf16.mxu0 0
  %98 = vmatpush1.bf16.msra.mxu0 %v76
  %99 = vmatprep.subr.bf16.mxu0 0
  %100 = vmatpush1.bf16.msra.mxu0 %v77
  %101 = vmatprep.subr.bf16.mxu0 0
  %102 = vmatpush1.bf16.msra.mxu0 %v78
  %103 = vmatprep.subr.bf16.mxu0 0
  %104 = vmatpush1.bf16.msra.mxu0 0
  %105 = vmatprep.subr.bf16.mxu0 0
  %106 = vmatpush1.bf16.msra.mxu0 0
  %107 = vmatprep.subr.bf16.mxu0 0
  %108 = vmatpush1.bf16.msra.mxu0 0
  %109 = vmatprep.subr.bf16.mxu0 0
  %110 = vmatpush1.bf16.msra.mxu0 0
  %111 = vmatprep.subr.bf16.mxu0 0
  %112 = vmatpush1.bf16.msra.mxu0 0
  %113 = vmatprep.subr.bf16.mxu0 0
  %114 = vmatpush1.bf16.msra.mxu0 0
  %115 = vmatprep.subr.bf16.mxu0 0
  %116 = vmatpush1.bf16.msra.mxu0 0
  %117 = vmatprep.subr.bf16.mxu0 0
  %118 = vmatpush1.bf16.msra.mxu0 0
  %119 = vmatprep.mubr.bf16.mxu0 0
  %120 = vmatmul.mubr.bf16.gmra.mrb[0].mxu0 %v15
  %v121 = vpop.f32.mrb[0].mxu0
  %v122 = vadd.f32 %v37, %v121
  %v123 = vpop.f32.mrb[0].mxu0
  %v124 = vpop.f32.mrb[0].mxu0
  %v125 = vpop.f32.mrb[0].mxu0
  %126 = vdwg.mxu0
  %v127 = vpack.c.bf16 %v122, %v122
  %128 = vst [vmem:[%s3] sm:$0x3] %v127
  // Predicated region
  $region14: #{_lambda_.41} parent=0 // pred_check
    _
  $region15: #{_lambda_.41} parent=0 // pred_check_branch
    %130 = sbr.rel (0) target = $region17
  $region16: #{_lambda_.41} parent=0 // pred_region
    _
  $region17: #{_lambda_.41} parent=0 // pred_fallthru
    _
  // Predicated region
  $region18: #{_lambda_.41} parent=0 // pred_check
    _
  $region19: #{_lambda_.41} parent=0 // pred_check_branch
    %132 = sbr.rel (0) target = $region21
  $region20: #{_lambda_.41} parent=0 // pred_region
    _
  $region21: #{_lambda_.41} parent=0 // pred_fallthru
    _

// kernel: _lambda_.44
$region0: #{_lambda_.44}
  #allocation0 [shape = 'u32[]', space=smem, size = 0x4, offset = 0x4, fixed_abs, tag = 'smem constant byte address 0x4 - core index']
  #allocation1 [shape = 'u32[144,128]{1,0:T(1,128)}', space=vmem, size = 0x12000, scoped, tag = 'internal scratch']
  %s0 = inlined_call_operand.vmem [shape: bf16[4,1,128], index: 0, kind: input, shape index: {}]
  %s1 = inlined_call_operand.vmem [shape: f32[4,128], index: 1, kind: output, shape index: {}]
  %s2 = sld [smem:[#allocation0]]
  $region14: #{_lambda_.44} parent=0
    _
  %s4 = ssub.s32 1, %s2
  %s5 = scalar_select 0, %s4, %s2
  // Predicated region
  $region2: #{_lambda_.44} parent=0 // pred_check
    _
  $region3: #{_lambda_.44} parent=0 // pred_check_branch
    %7 = sbr.rel (0) target = $region5
  $region4: #{_lambda_.44} parent=0 // pred_region
    _
  $region5: #{_lambda_.44} parent=0 // pred_fallthru
    _
  %v8 = vld [vmem:[%s0] sm:$0x1]
  %v9 = vld [vmem:[%s0 + $0x1] sm:$0x1]
  %v10 = vld [vmem:[%s0 + $0x2] sm:$0x1]
  %v11 = vld [vmem:[%s0 + $0x3] sm:$0x1]
  %v12 = vunpack.c.l.bf16 %v8
  %v13 = vunpack.c.l.bf16 %v9
  %v14 = vunpack.c.l.bf16 %v10
  %v15 = vunpack.c.l.bf16 %v11
  %v16 = vadd.f32 %v12, 0.0
  %v17 = vadd.f32 %v13, 0.0
  %v18 = vadd.f32 %v14, 0.0
  %v19 = vadd.f32 %v15, 0.0
  %v24 = vlaneseq
  %v25 = vshrl.u32 %v24, 7
  %v26 = vsub.s32 0, %v25
  %v27 = vrot.slane %v16, %v26
  %v28 = vlaneseq
  %v29 = vshrl.u32 %v28, 7
  %v30 = vsub.s32 0, %v29
  %v31 = vrot.slane %v17, %v30
  %v32 = vlaneseq
  %v33 = vshrl.u32 %v32, 7
  %v34 = vsub.s32 0, %v33
  %v35 = vrot.slane %v18, %v34
  %v36 = vlaneseq
  %v37 = vshrl.u32 %v36, 7
  %v38 = vsub.s32 0, %v37
  %v39 = vrot.slane %v19, %v38
  %vm40 = vcmask 1041409
  %v41 = vsel %vm40, %v31, %v27
  %vm42 = vcmask 1042434
  %v43 = vsel %vm42, %v35, %v41
  %vm44 = vcmask 1043459
  %v45 = vsel %vm44, %v39, %v43
  %47 = vst [vmem:[%s1] sm:$0xf] %v45
  // Predicated region
  $region6: #{_lambda_.44} parent=0 // pred_check
    _
  $region7: #{_lambda_.44} parent=0 // pred_check_branch
    %49 = sbr.rel (0) target = $region9
  $region8: #{_lambda_.44} parent=0 // pred_region
    _
  $region9: #{_lambda_.44} parent=0 // pred_fallthru
    _
  // Predicated region
  $region10: #{_lambda_.44} parent=0 // pred_check
    _
  $region11: #{_lambda_.44} parent=0 // pred_check_branch
    %51 = sbr.rel (0) target = $region13
  $region12: #{_lambda_.44} parent=0 // pred_region
    _
  $region13: #{_lambda_.44} parent=0 // pred_fallthru
    _

// kernel: _lambda_.40
$region0: #{_lambda_.40}
  #allocation0 [shape = 'u32[]', space=smem, size = 0x4, offset = 0x4, fixed_abs, tag = 'smem constant byte address 0x4 - core index']
  #allocation1 [shape = 'u32[144,128]{1,0:T(1,128)}', space=vmem, size = 0x12000, scoped, tag = 'internal scratch']
  %s0 = inlined_call_operand.vmem [shape: bf16[4,1152], index: 0, kind: input, shape index: {}]
  %s1 = inlined_call_operand.vmem [shape: bf16[1152,128], index: 1, kind: input, shape index: {}]
  %s2 = inlined_call_operand.vmem [shape: f32[1,128], index: 2, kind: input, shape index: {}]
  %s3 = inlined_call_operand.vmem [shape: bf16[4,128], index: 3, kind: output, shape index: {}]
  %s4 = sld [smem:[#allocation0]]
  $region22: #{_lambda_.40} parent=0
    _
  %s6 = ssub.s32 1, %s4
  %s7 = scalar_select 0, %s6, %s4
  // Predicated region
  $region2: #{_lambda_.40} parent=0 // pred_check
    _
  $region3: #{_lambda_.40} parent=0 // pred_check_branch
    %9 = sbr.rel (0) target = $region5
  $region4: #{_lambda_.40} parent=0 // pred_region
    _
  $region5: #{_lambda_.40} parent=0 // pred_fallthru
    _
  // Predicated region
  $region6: #{_lambda_.40} parent=0 // pred_check
    _
  $region7: #{_lambda_.40} parent=0 // pred_check_branch
    %11 = sbr.rel (0) target = $region9
  $region8: #{_lambda_.40} parent=0 // pred_region
    _
  $region9: #{_lambda_.40} parent=0 // pred_fallthru
    _
  // Predicated region
  $region10: #{_lambda_.40} parent=0 // pred_check
    _
  $region11: #{_lambda_.40} parent=0 // pred_check_branch
    %13 = sbr.rel (0) target = $region13
  $region12: #{_lambda_.40} parent=0 // pred_region
    _
  $region13: #{_lambda_.40} parent=0 // pred_fallthru
    _
  %v15 = vld [vmem:[%s0] sm:$0xff]
  %v16 = vld [vmem:[%s0 + $0x8] sm:$0xff]
  %v17 = vld [vmem:[%s0 + $0x10] sm:$0x3]
  %v18 = vld [vmem:[%s1] sm:$0xf]
  %v19 = vld [vmem:[%s1 + $0x4] sm:$0xf]
  %v20 = vld [vmem:[%s1 + $0x8] sm:$0xf]
  %v21 = vld [vmem:[%s1 + $0xc] sm:$0xf]
  %v22 = vld [vmem:[%s1 + $0x10] sm:$0xf]
  %v23 = vld [vmem:[%s1 + $0x14] sm:$0xf]
  %v24 = vld [vmem:[%s1 + $0x18] sm:$0xf]
  %v25 = vld [vmem:[%s1 + $0x1c] sm:$0xf]
  %v26 = vld [vmem:[%s1 + $0x20] sm:$0xf]
  %v27 = vld [vmem:[%s1 + $0x24] sm:$0xf]
  %v28 = vld [vmem:[%s1 + $0x28] sm:$0xf]
  %v29 = vld [vmem:[%s1 + $0x2c] sm:$0xf]
  %v30 = vld [vmem:[%s1 + $0x30] sm:$0xf]
  %v31 = vld [vmem:[%s1 + $0x34] sm:$0xf]
  %v32 = vld [vmem:[%s1 + $0x38] sm:$0xf]
  %v33 = vld [vmem:[%s1 + $0x3c] sm:$0xf]
  %v34 = vld [vmem:[%s1 + $0x40] sm:$0xf]
  %v35 = vld [vmem:[%s1 + $0x44] sm:$0xf]
  %v36 = vld [vmem:[%s1 + $0x48] sm:$0xf]
  %v37 = vld [vmem:[%s1 + $0x4c] sm:$0xf]
  %v38 = vld [vmem:[%s1 + $0x50] sm:$0xf]
  %v39 = vld [vmem:[%s1 + $0x54] sm:$0xf]
  %v40 = vld [vmem:[%s1 + $0x58] sm:$0xf]
  %v41 = vld [vmem:[%s1 + $0x5c] sm:$0xf]
  %v42 = vld [vmem:[%s1 + $0x60] sm:$0xf]
  %v43 = vld [vmem:[%s1 + $0x64] sm:$0xf]
  %v44 = vld [vmem:[%s1 + $0x68] sm:$0xf]
  %v45 = vld [vmem:[%s1 + $0x6c] sm:$0xf]
  %v46 = vld [vmem:[%s1 + $0x70] sm:$0xf]
  %v47 = vld [vmem:[%s1 + $0x74] sm:$0xf]
  %v48 = vld [vmem:[%s1 + $0x78] sm:$0xf]
  %v49 = vld [vmem:[%s1 + $0x7c] sm:$0xf]
  %v50 = vld [vmem:[%s1 + $0x80] sm:$0xf]
  %v51 = vld [vmem:[%s1 + $0x84] sm:$0xf]
  %v52 = vld [vmem:[%s1 + $0x88] sm:$0xf]
  %v53 = vld [vmem:[%s1 + $0x8c] sm:$0xf]
  %v54 = vld [vmem:[%s1 + $0x90] sm:$0xf]
  %v55 = vld [vmem:[%s1 + $0x94] sm:$0xf]
  %v56 = vld [vmem:[%s1 + $0x98] sm:$0xf]
  %v57 = vld [vmem:[%s1 + $0x9c] sm:$0xf]
  %v58 = vld [vmem:[%s1 + $0xa0] sm:$0xf]
  %v59 = vld [vmem:[%s1 + $0xa4] sm:$0xf]
  %v60 = vld [vmem:[%s1 + $0xa8] sm:$0xf]
  %v61 = vld [vmem:[%s1 + $0xac] sm:$0xf]
  %v62 = vld [vmem:[%s1 + $0xb0] sm:$0xf]
  %v63 = vld [vmem:[%s1 + $0xb4] sm:$0xf]
  %v64 = vld [vmem:[%s1 + $0xb8] sm:$0xf]
  %v65 = vld [vmem:[%s1 + $0xbc] sm:$0xf]
  %v66 = vld [vmem:[%s1 + $0xc0] sm:$0xf]
  %v67 = vld [vmem:[%s1 + $0xc4] sm:$0xf]
  %v68 = vld [vmem:[%s1 + $0xc8] sm:$0xf]
  %v69 = vld [vmem:[%s1 + $0xcc] sm:$0xf]
  %v70 = vld [vmem:[%s1 + $0xd0] sm:$0xf]
  %v71 = vld [vmem:[%s1 + $0xd4] sm:$0xf]
  %v72 = vld [vmem:[%s1 + $0xd8] sm:$0xf]
  %v73 = vld [vmem:[%s1 + $0xdc] sm:$0xf]
  %v74 = vld [vmem:[%s1 + $0xe0] sm:$0xf]
  %v75 = vld [vmem:[%s1 + $0xe4] sm:$0xf]
  %v76 = vld [vmem:[%s1 + $0xe8] sm:$0xf]
  %v77 = vld [vmem:[%s1 + $0xec] sm:$0xf]
  %v78 = vld [vmem:[%s1 + $0xf0] sm:$0xf]
  %v79 = vld [vmem:[%s1 + $0xf4] sm:$0xf]
  %v80 = vld [vmem:[%s1 + $0xf8] sm:$0xf]
  %v81 = vld [vmem:[%s1 + $0xfc] sm:$0xf]
  %v82 = vld [vmem:[%s1 + $0x100] sm:$0xf]
  %v83 = vld [vmem:[%s1 + $0x104] sm:$0xf]
  %v84 = vld [vmem:[%s1 + $0x108] sm:$0xf]
  %v85 = vld [vmem:[%s1 + $0x10c] sm:$0xf]
  %v86 = vld [vmem:[%s1 + $0x110] sm:$0xf]
  %v87 = vld [vmem:[%s1 + $0x114] sm:$0xf]
  %v88 = vld [vmem:[%s1 + $0x118] sm:$0xf]
  %v89 = vld [vmem:[%s1 + $0x11c] sm:$0xf]
  %v90 = vld [vmem:[%s1 + $0x120] sm:$0xf]
  %v91 = vld [vmem:[%s1 + $0x124] sm:$0xf]
  %v92 = vld [vmem:[%s1 + $0x128] sm:$0xf]
  %v93 = vld [vmem:[%s1 + $0x12c] sm:$0xf]
  %v94 = vld [vmem:[%s1 + $0x130] sm:$0xf]
  %v95 = vld [vmem:[%s1 + $0x134] sm:$0xf]
  %v96 = vld [vmem:[%s1 + $0x138] sm:$0xf]
  %v97 = vld [vmem:[%s1 + $0x13c] sm:$0xf]
  %v98 = vld [vmem:[%s1 + $0x140] sm:$0xf]
  %v99 = vld [vmem:[%s1 + $0x144] sm:$0xf]
  %v100 = vld [vmem:[%s1 + $0x148] sm:$0xf]
  %v101 = vld [vmem:[%s1 + $0x14c] sm:$0xf]
  %v102 = vld [vmem:[%s1 + $0x150] sm:$0xf]
  %v103 = vld [vmem:[%s1 + $0x154] sm:$0xf]
  %v104 = vld [vmem:[%s1 + $0x158] sm:$0xf]
  %v105 = vld [vmem:[%s1 + $0x15c] sm:$0xf]
  %v106 = vld [vmem:[%s1 + $0x160] sm:$0xf]
  %v107 = vld [vmem:[%s1 + $0x164] sm:$0xf]
  %v108 = vld [vmem:[%s1 + $0x168] sm:$0xf]
  %v109 = vld [vmem:[%s1 + $0x16c] sm:$0xf]
  %v110 = vld [vmem:[%s1 + $0x170] sm:$0xf]
  %v111 = vld [vmem:[%s1 + $0x174] sm:$0xf]
  %v112 = vld [vmem:[%s1 + $0x178] sm:$0xf]
  %v113 = vld [vmem:[%s1 + $0x17c] sm:$0xf]
  %v114 = vld [vmem:[%s1 + $0x180] sm:$0xf]
  %v115 = vld [vmem:[%s1 + $0x184] sm:$0xf]
  %v116 = vld [vmem:[%s1 + $0x188] sm:$0xf]
  %v117 = vld [vmem:[%s1 + $0x18c] sm:$0xf]
  %v118 = vld [vmem:[%s1 + $0x190] sm:$0xf]
  %v119 = vld [vmem:[%s1 + $0x194] sm:$0xf]
  %v120 = vld [vmem:[%s1 + $0x198] sm:$0xf]
  %v121 = vld [vmem:[%s1 + $0x19c] sm:$0xf]
  %v122 = vld [vmem:[%s1 + $0x1a0] sm:$0xf]
  %v123 = vld [vmem:[%s1 + $0x1a4] sm:$0xf]
  %v124 = vld [vmem:[%s1 + $0x1a8] sm:$0xf]
  %v125 = vld [vmem:[%s1 + $0x1ac] sm:$0xf]
  %v126 = vld [vmem:[%s1 + $0x1b0] sm:$0xf]
  %v127 = vld [vmem:[%s1 + $0x1b4] sm:$0xf]
  %v128 = vld [vmem:[%s1 + $0x1b8] sm:$0xf]
  %v129 = vld [vmem:[%s1 + $0x1bc] sm:$0xf]
  %v130 = vld [vmem:[%s1 + $0x1c0] sm:$0xf]
  %v131 = vld [vmem:[%s1 + $0x1c4] sm:$0xf]
  %v132 = vld [vmem:[%s1 + $0x1c8] sm:$0xf]
  %v133 = vld [vmem:[%s1 + $0x1cc] sm:$0xf]
  %v134 = vld [vmem:[%s1 + $0x1d0] sm:$0xf]
  %v135 = vld [vmem:[%s1 + $0x1d4] sm:$0xf]
  %v136 = vld [vmem:[%s1 + $0x1d8] sm:$0xf]
  %v137 = vld [vmem:[%s1 + $0x1dc] sm:$0xf]
  %v138 = vld [vmem:[%s1 + $0x1e0] sm:$0xf]
  %v139 = vld [vmem:[%s1 + $0x1e4] sm:$0xf]
  %v140 = vld [vmem:[%s1 + $0x1e8] sm:$0xf]
  %v141 = vld [vmem:[%s1 + $0x1ec] sm:$0xf]
  %v142 = vld [vmem:[%s1 + $0x1f0] sm:$0xf]
  %v143 = vld [vmem:[%s1 + $0x1f4] sm:$0xf]
  %v144 = vld [vmem:[%s1 + $0x1f8] sm:$0xf]
  %v145 = vld [vmem:[%s1 + $0x1fc] sm:$0xf]
  %v146 = vld [vmem:[%s1 + $0x200] sm:$0xf]
  %v147 = vld [vmem:[%s1 + $0x204] sm:$0xf]
  %v148 = vld [vmem:[%s1 + $0x208] sm:$0xf]
  %v149 = vld [vmem:[%s1 + $0x20c] sm:$0xf]
  %v150 = vld [vmem:[%s1 + $0x210] sm:$0xf]
  %v151 = vld [vmem:[%s1 + $0x214] sm:$0xf]
  %v152 = vld [vmem:[%s1 + $0x218] sm:$0xf]
  %v153 = vld [vmem:[%s1 + $0x21c] sm:$0xf]
  %v154 = vld [vmem:[%s1 + $0x220] sm:$0xf]
  %v155 = vld [vmem:[%s1 + $0x224] sm:$0xf]
  %v156 = vld [vmem:[%s1 + $0x228] sm:$0xf]
  %v157 = vld [vmem:[%s1 + $0x22c] sm:$0xf]
  %v158 = vld [vmem:[%s1 + $0x230] sm:$0xf]
  %v159 = vld [vmem:[%s1 + $0x234] sm:$0xf]
  %v160 = vld [vmem:[%s1 + $0x238] sm:$0xf]
  %v161 = vld [vmem:[%s1 + $0x23c] sm:$0xf]
  %v162 = vld [vmem:[%s2] sm:$0x1]
  %v164 = vlaneseq
  %v165 = vshrl.u32 %v164, 7
  %v166 = vsub.s32 0, %v165
  %v167 = vrot.slane %v162, %v166
  %v172 = vcombine.high %v15, %v15
  %v174 = vunpack.c.l.s4 1983009808
  %v175 = vunpack.c.0.s8 %v174
  %v176 = vlaneseq
  %v177 = vshrl.u32 %v176, 7
  %v178 = vsub.s32 %v175, %v177
  %v179 = vrot.slane %v15, %v178
  %v181 = vunpack.c.l.s4 1983009808
  %v182 = vunpack.c.0.s8 %v181
  %v183 = vlaneseq
  %v184 = vshrl.u32 %v183, 7
  %v185 = vsub.s32 %v182, %v184
  %v186 = vrot.slane %v172, %v185
  %v187 = vcombine.high %v179, %v179
  %v188 = vcombine.high %v186, %v186
  %v189 = vcombine.high %v16, %v16
  %v191 = vunpack.c.l.s4 1983009808
  %v192 = vunpack.c.0.s8 %v191
  %v193 = vlaneseq
  %v194 = vshrl.u32 %v193, 7
  %v195 = vsub.s32 %v192, %v194
  %v196 = vrot.slane %v16, %v195
  %v198 = vunpack.c.l.s4 1983009808
  %v199 = vunpack.c.0.s8 %v198
  %v200 = vlaneseq
  %v201 = vshrl.u32 %v200, 7
  %v202 = vsub.s32 %v199, %v201
  %v203 = vrot.slane %v189, %v202
  %v204 = vcombine.high %v196, %v196
  %v205 = vcombine.high %v203, %v203
  %v207 = vunpack.c.l.s4 1983009808
  %v208 = vunpack.c.0.s8 %v207
  %v209 = vlaneseq
  %v210 = vshrl.u32 %v209, 7
  %v211 = vsub.s32 %v208, %v210
  %v212 = vrot.slane %v17, %v211
  %v366 = vunpack.c.l.b16 %v18
  %v367 = vunpack.c.l.b16 %v19
  %v368 = vunpack.c.l.b16 %v20
  %v369 = vunpack.c.l.b16 %v21
  %v370 = vunpack.c.l.b16 %v22
  %v371 = vunpack.c.l.b16 %v23
  %v372 = vunpack.c.l.b16 %v24
  %v373 = vunpack.c.l.b16 %v25
  %v374 = vunpack.c.l.b16 %v26
  %v375 = vunpack.c.l.b16 %v27
  %v376 = vunpack.c.l.b16 %v28
  %v377 = vunpack.c.l.b16 %v29
  %v378 = vunpack.c.l.b16 %v30
  %v379 = vunpack.c.l.b16 %v31
  %v380 = vunpack.c.l.b16 %v32
  %v381 = vunpack.c.l.b16 %v33
  %v382 = vunpack.c.l.b16 %v34
  %v383 = vunpack.c.l.b16 %v35
  %v384 = vunpack.c.l.b16 %v36
  %v385 = vunpack.c.l.b16 %v37
  %v386 = vunpack.c.l.b16 %v38
  %v387 = vunpack.c.l.b16 %v39
  %v388 = vunpack.c.l.b16 %v40
  %v389 = vunpack.c.l.b16 %v41
  %v390 = vunpack.c.l.b16 %v42
  %v391 = vunpack.c.l.b16 %v43
  %v392 = vunpack.c.l.b16 %v44
  %v393 = vunpack.c.l.b16 %v45
  %v394 = vunpack.c.l.b16 %v46
  %v395 = vunpack.c.l.b16 %v47
  %v396 = vunpack.c.l.b16 %v48
  %v397 = vunpack.c.l.b16 %v49
  %v398 = vunpack.c.l.b16 %v50
  %v399 = vunpack.c.l.b16 %v51
  %v400 = vunpack.c.l.b16 %v52
  %v401 = vunpack.c.l.b16 %v53
  %v402 = vunpack.c.l.b16 %v54
  %v403 = vunpack.c.l.b16 %v55
  %v404 = vunpack.c.l.b16 %v56
  %v405 = vunpack.c.l.b16 %v57
  %v406 = vunpack.c.l.b16 %v58
  %v407 = vunpack.c.l.b16 %v59
  %v408 = vunpack.c.l.b16 %v60
  %v409 = vunpack.c.l.b16 %v61
  %v410 = vunpack.c.l.b16 %v62
  %v411 = vunpack.c.l.b16 %v63
  %v412 = vunpack.c.l.b16 %v64
  %v413 = vunpack.c.l.b16 %v65
  %v414 = vunpack.c.l.b16 %v66
  %v415 = vunpack.c.l.b16 %v67
  %v416 = vunpack.c.l.b16 %v68
  %v417 = vunpack.c.l.b16 %v69
  %v418 = vunpack.c.l.b16 %v70
  %v419 = vunpack.c.l.b16 %v71
  %v420 = vunpack.c.l.b16 %v72
  %v421 = vunpack.c.l.b16 %v73
  %v422 = vunpack.c.l.b16 %v74
  %v423 = vunpack.c.l.b16 %v75
  %v424 = vunpack.c.l.b16 %v76
  %v425 = vunpack.c.l.b16 %v77
  %v426 = vunpack.c.l.b16 %v78
  %v427 = vunpack.c.l.b16 %v79
  %v428 = vunpack.c.l.b16 %v80
  %v429 = vunpack.c.l.b16 %v81
  %v430 = vunpack.c.l.b16 %v82
  %v431 = vunpack.c.l.b16 %v83
  %v432 = vunpack.c.l.b16 %v84
  %v433 = vunpack.c.l.b16 %v85
  %v434 = vunpack.c.l.b16 %v86
  %v435 = vunpack.c.l.b16 %v87
  %v436 = vunpack.c.l.b16 %v88
  %v437 = vunpack.c.l.b16 %v89
  %v438 = vunpack.c.l.b16 %v90
  %v439 = vunpack.c.l.b16 %v91
  %v440 = vunpack.c.l.b16 %v92
  %v441 = vunpack.c.l.b16 %v93
  %v442 = vunpack.c.l.b16 %v94
  %v443 = vunpack.c.l.b16 %v95
  %v444 = vunpack.c.l.b16 %v96
  %v445 = vunpack.c.l.b16 %v97
  %v446 = vunpack.c.l.b16 %v98
  %v447 = vunpack.c.l.b16 %v99
  %v448 = vunpack.c.l.b16 %v100
  %v449 = vunpack.c.l.b16 %v101
  %v450 = vunpack.c.l.b16 %v102
  %v451 = vunpack.c.l.b16 %v103
  %v452 = vunpack.c.l.b16 %v104
  %v453 = vunpack.c.l.b16 %v105
  %v454 = vunpack.c.l.b16 %v106
  %v455 = vunpack.c.l.b16 %v107
  %v456 = vunpack.c.l.b16 %v108
  %v457 = vunpack.c.l.b16 %v109
  %v458 = vunpack.c.l.b16 %v110
  %v459 = vunpack.c.l.b16 %v111
  %v460 = vunpack.c.l.b16 %v112
  %v461 = vunpack.c.l.b16 %v113
  %v462 = vunpack.c.l.b16 %v114
  %v463 = vunpack.c.l.b16 %v115
  %v464 = vunpack.c.l.b16 %v116
  %v465 = vunpack.c.l.b16 %v117
  %v466 = vunpack.c.l.b16 %v118
  %v467 = vunpack.c.l.b16 %v119
  %v468 = vunpack.c.l.b16 %v120
  %v469 = vunpack.c.l.b16 %v121
  %v470 = vunpack.c.l.b16 %v122
  %v471 = vunpack.c.l.b16 %v123
  %v472 = vunpack.c.l.b16 %v124
  %v473 = vunpack.c.l.b16 %v125
  %v474 = vunpack.c.l.b16 %v126
  %v475 = vunpack.c.l.b16 %v127
  %v476 = vunpack.c.l.b16 %v128
  %v477 = vunpack.c.l.b16 %v129
  %v478 = vunpack.c.l.b16 %v130
  %v479 = vunpack.c.l.b16 %v131
  %v480 = vunpack.c.l.b16 %v132
  %v481 = vunpack.c.l.b16 %v133
  %v482 = vunpack.c.l.b16 %v134
  %v483 = vunpack.c.l.b16 %v135
  %v484 = vunpack.c.l.b16 %v136
  %v485 = vunpack.c.l.b16 %v137
  %v486 = vunpack.c.l.b16 %v138
  %v487 = vunpack.c.l.b16 %v139
  %v488 = vunpack.c.l.b16 %v140
  %v489 = vunpack.c.l.b16 %v141
  %v490 = vunpack.c.l.b16 %v142
  %v491 = vunpack.c.l.b16 %v143
  %v492 = vunpack.c.l.b16 %v144
  %v493 = vunpack.c.l.b16 %v145
  %v494 = vunpack.c.l.b16 %v146
  %v495 = vunpack.c.l.b16 %v147
  %v496 = vunpack.c.l.b16 %v148
  %v497 = vunpack.c.l.b16 %v149
  %v498 = vunpack.c.l.b16 %v150
  %v499 = vunpack.c.l.b16 %v151
  %v500 = vunpack.c.l.b16 %v152
  %v501 = vunpack.c.l.b16 %v153
  %v502 = vunpack.c.l.b16 %v154
  %v503 = vunpack.c.l.b16 %v155
  %v504 = vunpack.c.l.b16 %v156
  %v505 = vunpack.c.l.b16 %v157
  %v506 = vunpack.c.l.b16 %v158
  %v507 = vunpack.c.l.b16 %v159
  %v508 = vunpack.c.l.b16 %v160
  %v509 = vunpack.c.l.b16 %v161
  %v510 = vpack.c.b16 %v367, %v366
  %v511 = vpack.c.b16 %v369, %v368
  %v512 = vpack.c.b16 %v371, %v370
  %v513 = vpack.c.b16 %v373, %v372
  %v514 = vpack.c.b16 %v375, %v374
  %v515 = vpack.c.b16 %v377, %v376
  %v516 = vpack.c.b16 %v379, %v378
  %v517 = vpack.c.b16 %v381, %v380
  %v518 = vpack.c.b16 %v383, %v382
  %v519 = vpack.c.b16 %v385, %v384
  %v520 = vpack.c.b16 %v387, %v386
  %v521 = vpack.c.b16 %v389, %v388
  %v522 = vpack.c.b16 %v391, %v390
  %v523 = vpack.c.b16 %v393, %v392
  %v524 = vpack.c.b16 %v395, %v394
  %v525 = vpack.c.b16 %v397, %v396
  %v526 = vpack.c.b16 %v399, %v398
  %v527 = vpack.c.b16 %v401, %v400
  %v528 = vpack.c.b16 %v403, %v402
  %v529 = vpack.c.b16 %v405, %v404
  %v530 = vpack.c.b16 %v407, %v406
  %v531 = vpack.c.b16 %v409, %v408
  %v532 = vpack.c.b16 %v411, %v410
  %v533 = vpack.c.b16 %v413, %v412
  %v534 = vpack.c.b16 %v415, %v414
  %v535 = vpack.c.b16 %v417, %v416
  %v536 = vpack.c.b16 %v419, %v418
  %v537 = vpack.c.b16 %v421, %v420
  %v538 = vpack.c.b16 %v423, %v422
  %v539 = vpack.c.b16 %v425, %v424
  %v540 = vpack.c.b16 %v427, %v426
  %v541 = vpack.c.b16 %v429, %v428
  %v542 = vpack.c.b16 %v431, %v430
  %v543 = vpack.c.b16 %v433, %v432
  %v544 = vpack.c.b16 %v435, %v434
  %v545 = vpack.c.b16 %v437, %v436
  %v546 = vpack.c.b16 %v439, %v438
  %v547 = vpack.c.b16 %v441, %v440
  %v548 = vpack.c.b16 %v443, %v442
  %v549 = vpack.c.b16 %v445, %v444
  %v550 = vpack.c.b16 %v447, %v446
  %v551 = vpack.c.b16 %v449, %v448
  %v552 = vpack.c.b16 %v451, %v450
  %v553 = vpack.c.b16 %v453, %v452
  %v554 = vpack.c.b16 %v455, %v454
  %v555 = vpack.c.b16 %v457, %v456
  %v556 = vpack.c.b16 %v459, %v458
  %v557 = vpack.c.b16 %v461, %v460
  %v558 = vpack.c.b16 %v463, %v462
  %v559 = vpack.c.b16 %v465, %v464
  %v560 = vpack.c.b16 %v467, %v466
  %v561 = vpack.c.b16 %v469, %v468
  %v562 = vpack.c.b16 %v471, %v470
  %v563 = vpack.c.b16 %v473, %v472
  %v564 = vpack.c.b16 %v475, %v474
  %v565 = vpack.c.b16 %v477, %v476
  %v566 = vpack.c.b16 %v479, %v478
  %v567 = vpack.c.b16 %v481, %v480
  %v568 = vpack.c.b16 %v483, %v482
  %v569 = vpack.c.b16 %v485, %v484
  %v570 = vpack.c.b16 %v487, %v486
  %v571 = vpack.c.b16 %v489, %v488
  %v572 = vpack.c.b16 %v491, %v490
  %v573 = vpack.c.b16 %v493, %v492
  %v574 = vpack.c.b16 %v495, %v494
  %v575 = vpack.c.b16 %v497, %v496
  %v576 = vpack.c.b16 %v499, %v498
  %v577 = vpack.c.b16 %v501, %v500
  %v578 = vpack.c.b16 %v503, %v502
  %v579 = vpack.c.b16 %v505, %v504
  %v580 = vpack.c.b16 %v507, %v506
  %v581 = vpack.c.b16 %v509, %v508
  %654 = vmatprep.subr.bf16.mxu0 0
  %655 = vmatpush1.bf16.msra.mxu0 %v510
  %656 = vmatprep.subr.bf16.mxu0 0
  %657 = vmatpush1.bf16.msra.mxu0 %v511
  %658 = vmatprep.subr.bf16.mxu0 0
  %659 = vmatpush1.bf16.msra.mxu0 %v512
  %660 = vmatprep.subr.bf16.mxu0 0
  %661 = vmatpush1.bf16.msra.mxu0 %v513
  %662 = vmatprep.subr.bf16.mxu0 0
  %663 = vmatpush1.bf16.msra.mxu0 %v514
  %664 = vmatprep.subr.bf16.mxu0 0
  %665 = vmatpush1.bf16.msra.mxu0 %v515
  %666 = vmatprep.subr.bf16.mxu0 0
  %667 = vmatpush1.bf16.msra.mxu0 %v516
  %668 = vmatprep.subr.bf16.mxu0 0
  %669 = vmatpush1.bf16.msra.mxu0 %v517
  %670 = vmatprep.subr.bf16.mxu0 0
  %671 = vmatpush1.bf16.msra.mxu0 %v518
  %672 = vmatprep.subr.bf16.mxu0 0
  %673 = vmatpush1.bf16.msra.mxu0 %v519
  %674 = vmatprep.subr.bf16.mxu0 0
  %675 = vmatpush1.bf16.msra.mxu0 %v520
  %676 = vmatprep.subr.bf16.mxu0 0
  %677 = vmatpush1.bf16.msra.mxu0 %v521
  %678 = vmatprep.subr.bf16.mxu0 0
  %679 = vmatpush1.bf16.msra.mxu0 %v522
  %680 = vmatprep.subr.bf16.mxu0 0
  %681 = vmatpush1.bf16.msra.mxu0 %v523
  %682 = vmatprep.subr.bf16.mxu0 0
  %683 = vmatpush1.bf16.msra.mxu0 %v524
  %684 = vmatprep.subr.bf16.mxu0 0
  %685 = vmatpush1.bf16.msra.mxu0 %v525
  %686 = vmatprep.mubr.bf16.mxu0 %v187
  %687 = vmatmul.mubr.bf16.gmra.mrb[0].mxu0 %v179
  %v688 = vpop.f32.mrb[0].mxu0
  %v689 = vadd.f32 %v167, %v688
  %v690 = vpop.f32.mrb[0].mxu0
  %v691 = vpop.f32.mrb[0].mxu0
  %v692 = vpop.f32.mrb[0].mxu0
  %693 = vdwg.mxu0
  %694 = vmatprep.subr.bf16.mxu0 0
  %695 = vmatpush1.bf16.msra.mxu0 %v526
  %696 = vmatprep.subr.bf16.mxu0 0
  %697 = vmatpush1.bf16.msra.mxu0 %v527
  %698 = vmatprep.subr.bf16.mxu0 0
  %699 = vmatpush1.bf16.msra.mxu0 %v528
  %700 = vmatprep.subr.bf16.mxu0 0
  %701 = vmatpush1.bf16.msra.mxu0 %v529
  %702 = vmatprep.subr.bf16.mxu0 0
  %703 = vmatpush1.bf16.msra.mxu0 %v530
  %704 = vmatprep.subr.bf16.mxu0 0
  %705 = vmatpush1.bf16.msra.mxu0 %v531
  %706 = vmatprep.subr.bf16.mxu0 0
  %707 = vmatpush1.bf16.msra.mxu0 %v532
  %708 = vmatprep.subr.bf16.mxu0 0
  %709 = vmatpush1.bf16.msra.mxu0 %v533
  %710 = vmatprep.subr.bf16.mxu0 0
  %711 = vmatpush1.bf16.msra.mxu0 %v534
  %712 = vmatprep.subr.bf16.mxu0 0
  %713 = vmatpush1.bf16.msra.mxu0 %v535
  %714 = vmatprep.subr.bf16.mxu0 0
  %715 = vmatpush1.bf16.msra.mxu0 %v536
  %716 = vmatprep.subr.bf16.mxu0 0
  %717 = vmatpush1.bf16.msra.mxu0 %v537
  %718 = vmatprep.subr.bf16.mxu0 0
  %719 = vmatpush1.bf16.msra.mxu0 %v538
  %720 = vmatprep.subr.bf16.mxu0 0
  %721 = vmatpush1.bf16.msra.mxu0 %v539
  %722 = vmatprep.subr.bf16.mxu0 0
  %723 = vmatpush1.bf16.msra.mxu0 %v540
  %724 = vmatprep.subr.bf16.mxu0 0
  %725 = vmatpush1.bf16.msra.mxu0 %v541
  %726 = vmatprep.mubr.bf16.mxu0 %v188
  %727 = vmatmul.mubr.bf16.gmra.mrb[0].mxu0 %v186
  %v728 = vpop.f32.mrb[0].mxu0
  %v729 = vadd.f32 %v689, %v728
  %v730 = vpop.f32.mrb[0].mxu0
  %v731 = vpop.f32.mrb[0].mxu0
  %v732 = vpop.f32.mrb[0].mxu0
  %733 = vdwg.mxu0
  %734 = vmatprep.subr.bf16.mxu0 0
  %735 = vmatpush1.bf16.msra.mxu0 %v542
  %736 = vmatprep.subr.bf16.mxu0 0
  %737 = vmatpush1.bf16.msra.mxu0 %v543
  %738 = vmatprep.subr.bf16.mxu0 0
  %739 = vmatpush1.bf16.msra.mxu0 %v544
  %740 = vmatprep.subr.bf16.mxu0 0
  %741 = vmatpush1.bf16.msra.mxu0 %v545
  %742 = vmatprep.subr.bf16.mxu0 0
  %743 = vmatpush1.bf16.msra.mxu0 %v546
  %744 = vmatprep.subr.bf16.mxu0 0
  %745 = vmatpush1.bf16.msra.mxu0 %v547
  %746 = vmatprep.subr.bf16.mxu0 0
  %747 = vmatpush1.bf16.msra.mxu0 %v548
  %748 = vmatprep.subr.bf16.mxu0 0
  %749 = vmatpush1.bf16.msra.mxu0 %v549
  %750 = vmatprep.subr.bf16.mxu0 0
  %751 = vmatpush1.bf16.msra.mxu0 %v550
  %752 = vmatprep.subr.bf16.mxu0 0
  %753 = vmatpush1.bf16.msra.mxu0 %v551
  %754 = vmatprep.subr.bf16.mxu0 0
  %755 = vmatpush1.bf16.msra.mxu0 %v552
  %756 = vmatprep.subr.bf16.mxu0 0
  %757 = vmatpush1.bf16.msra.mxu0 %v553
  %758 = vmatprep.subr.bf16.mxu0 0
  %759 = vmatpush1.bf16.msra.mxu0 %v554
  %760 = vmatprep.subr.bf16.mxu0 0
  %761 = vmatpush1.bf16.msra.mxu0 %v555
  %762 = vmatprep.subr.bf16.mxu0 0
  %763 = vmatpush1.bf16.msra.mxu0 %v556
  %764 = vmatprep.subr.bf16.mxu0 0
  %765 = vmatpush1.bf16.msra.mxu0 %v557
  %766 = vmatprep.mubr.bf16.mxu0 %v204
  %767 = vmatmul.mubr.bf16.gmra.mrb[0].mxu0 %v196
  %v768 = vpop.f32.mrb[0].mxu0
  %v769 = vadd.f32 %v729, %v768
  %v770 = vpop.f32.mrb[0].mxu0
  %v771 = vpop.f32.mrb[0].mxu0
  %v772 = vpop.f32.mrb[0].mxu0
  %773 = vdwg.mxu0
  %774 = vmatprep.subr.bf16.mxu0 0
  %775 = vmatpush1.bf16.msra.mxu0 %v558
  %776 = vmatprep.subr.bf16.mxu0 0
  %777 = vmatpush1.bf16.msra.mxu0 %v559
  %778 = vmatprep.subr.bf16.mxu0 0
  %779 = vmatpush1.bf16.msra.mxu0 %v560
  %780 = vmatprep.subr.bf16.mxu0 0
  %781 = vmatpush1.bf16.msra.mxu0 %v561
  %782 = vmatprep.subr.bf16.mxu0 0
  %783 = vmatpush1.bf16.msra.mxu0 %v562
  %784 = vmatprep.subr.bf16.mxu0 0
  %785 = vmatpush1.bf16.msra.mxu0 %v563
  %786 = vmatprep.subr.bf16.mxu0 0
  %787 = vmatpush1.bf16.msra.mxu0 %v564
  %788 = vmatprep.subr.bf16.mxu0 0
  %789 = vmatpush1.bf16.msra.mxu0 %v565
  %790 = vmatprep.subr.bf16.mxu0 0
  %791 = vmatpush1.bf16.msra.mxu0 %v566
  %792 = vmatprep.subr.bf16.mxu0 0
  %793 = vmatpush1.bf16.msra.mxu0 %v567
  %794 = vmatprep.subr.bf16.mxu0 0
  %795 = vmatpush1.bf16.msra.mxu0 %v568
  %796 = vmatprep.subr.bf16.mxu0 0
  %797 = vmatpush1.bf16.msra.mxu0 %v569
  %798 = vmatprep.subr.bf16.mxu0 0
  %799 = vmatpush1.bf16.msra.mxu0 %v570
  %800 = vmatprep.subr.bf16.mxu0 0
  %801 = vmatpush1.bf16.msra.mxu0 %v571
  %802 = vmatprep.subr.bf16.mxu0 0
  %803 = vmatpush1.bf16.msra.mxu0 %v572
  %804 = vmatprep.subr.bf16.mxu0 0
  %805 = vmatpush1.bf16.msra.mxu0 %v573
  %806 = vmatprep.mubr.bf16.mxu0 %v205
  %807 = vmatmul.mubr.bf16.gmra.mrb[0].mxu0 %v203
  %v808 = vpop.f32.mrb[0].mxu0
  %v809 = vadd.f32 %v769, %v808
  %v810 = vpop.f32.mrb[0].mxu0
  %v811 = vpop.f32.mrb[0].mxu0
  %v812 = vpop.f32.mrb[0].mxu0
  %813 = vdwg.mxu0
  %814 = vmatprep.subr.bf16.mxu0 0
  %815 = vmatpush1.bf16.msra.mxu0 %v574
  %816 = vmatprep.subr.bf16.mxu0 0
  %817 = vmatpush1.bf16.msra.mxu0 %v575
  %818 = vmatprep.subr.bf16.mxu0 0
  %819 = vmatpush1.bf16.msra.mxu0 %v576
  %820 = vmatprep.subr.bf16.mxu0 0
  %821 = vmatpush1.bf16.msra.mxu0 %v577
  %822 = vmatprep.subr.bf16.mxu0 0
  %823 = vmatpush1.bf16.msra.mxu0 %v578
  %824 = vmatprep.subr.bf16.mxu0 0
  %825 = vmatpush1.bf16.msra.mxu0 %v579
  %826 = vmatprep.subr.bf16.mxu0 0
  %827 = vmatpush1.bf16.msra.mxu0 %v580
  %828 = vmatprep.subr.bf16.mxu0 0
  %829 = vmatpush1.bf16.msra.mxu0 %v581
  %830 = vmatprep.subr.bf16.mxu0 0
  %831 = vmatpush1.bf16.msra.mxu0 0
  %832 = vmatprep.subr.bf16.mxu0 0
  %833 = vmatpush1.bf16.msra.mxu0 0
  %834 = vmatprep.subr.bf16.mxu0 0
  %835 = vmatpush1.bf16.msra.mxu0 0
  %836 = vmatprep.subr.bf16.mxu0 0
  %837 = vmatpush1.bf16.msra.mxu0 0
  %838 = vmatprep.subr.bf16.mxu0 0
  %839 = vmatpush1.bf16.msra.mxu0 0
  %840 = vmatprep.subr.bf16.mxu0 0
  %841 = vmatpush1.bf16.msra.mxu0 0
  %842 = vmatprep.subr.bf16.mxu0 0
  %843 = vmatpush1.bf16.msra.mxu0 0
  %844 = vmatprep.subr.bf16.mxu0 0
  %845 = vmatpush1.bf16.msra.mxu0 0
  %846 = vmatprep.mubr.bf16.mxu0 0
  %847 = vmatmul.mubr.bf16.gmra.mrb[0].mxu0 %v212
  %v848 = vpop.f32.mrb[0].mxu0
  %v849 = vadd.f32 %v809, %v848
  %v850 = vpop.f32.mrb[0].mxu0
  %v851 = vpop.f32.mrb[0].mxu0
  %v852 = vpop.f32.mrb[0].mxu0
  %853 = vdwg.mxu0
  %v854 = vmax.f32 %v849, 0.0
  %v855 = vpack.c.bf16 %v854, %v854
  %856 = vst [vmem:[%s3] sm:$0x3] %v855
  // Predicated region
  $region14: #{_lambda_.40} parent=0 // pred_check
    _
  $region15: #{_lambda_.40} parent=0 // pred_check_branch
    %858 = sbr.rel (0) target = $region17
  $region16: #{_lambda_.40} parent=0 // pred_region
    _
  $region17: #{_lambda_.40} parent=0 // pred_fallthru
    _
  // Predicated region
  $region18: #{_lambda_.40} parent=0 // pred_check
    _
  $region19: #{_lambda_.40} parent=0 // pred_check_branch
    %860 = sbr.rel (0) target = $region21
  $region20: #{_lambda_.40} parent=0 // pred_region
    _
  $region21: #{_lambda_.40} parent=0 // pred_fallthru
    _

// kernel: _lambda_.43
$region0: #{_lambda_.43}
  #allocation0 [shape = 'u32[]', space=smem, size = 0x4, offset = 0x4, fixed_abs, tag = 'smem constant byte address 0x4 - core index']
  #allocation1 [shape = 'u32[144,128]{1,0:T(1,128)}', space=vmem, size = 0x12000, scoped, tag = 'internal scratch']
  %s0 = inlined_call_operand.vmem [shape: bf16[4,1,128], index: 0, kind: input, shape index: {}]
  %s1 = inlined_call_operand.vmem [shape: bf16[4,1,128], index: 1, kind: input, shape index: {}]
  %s2 = inlined_call_operand.vmem [shape: bf16[128,128], index: 2, kind: input, shape index: {}]
  %s3 = inlined_call_operand.vmem [shape: f32[1,128], index: 3, kind: input, shape index: {}, may-alias: {3,5}]
  %s4 = inlined_call_operand.vmem [shape: bf16[128,128], index: 4, kind: input, shape index: {}]
  %s5 = inlined_call_operand.vmem [shape: f32[1,128], index: 5, kind: input, shape index: {}, may-alias: {3,5}]
  %s6 = inlined_call_operand.vmem [shape: bf16[4,1,128], index: 6, kind: output, shape index: {}]
  %s7 = sld [smem:[#allocation0]]
  $region34: #{_lambda_.43} parent=0
    _
  %s9 = ssub.s32 1, %s7
  %s10 = scalar_select 0, %s9, %s7
  // Predicated region
  $region2: #{_lambda_.43} parent=0 // pred_check
    _
  $region3: #{_lambda_.43} parent=0 // pred_check_branch
    %12 = sbr.rel (0) target = $region5
  $region4: #{_lambda_.43} parent=0 // pred_region
    _
  $region5: #{_lambda_.43} parent=0 // pred_fallthru
    _
  // Predicated region
  $region6: #{_lambda_.43} parent=0 // pred_check
    _
  $region7: #{_lambda_.43} parent=0 // pred_check_branch
    %14 = sbr.rel (0) target = $region9
  $region8: #{_lambda_.43} parent=0 // pred_region
    _
  $region9: #{_lambda_.43} parent=0 // pred_fallthru
    _
  // Predicated region
  $region10: #{_lambda_.43} parent=0 // pred_check
    _
  $region11: #{_lambda_.43} parent=0 // pred_check_branch
    %16 = sbr.rel (0) target = $region13
  $region12: #{_lambda_.43} parent=0 // pred_region
    _
  $region13: #{_lambda_.43} parent=0 // pred_fallthru
    _
  // Predicated region
  $region14: #{_lambda_.43} parent=0 // pred_check
    _
  $region15: #{_lambda_.43} parent=0 // pred_check_branch
    %18 = sbr.rel (0) target = $region17
  $region16: #{_lambda_.43} parent=0 // pred_region
    _
  $region17: #{_lambda_.43} parent=0 // pred_fallthru
    _
  // Predicated region
  $region18: #{_lambda_.43} parent=0 // pred_check
    _
  $region19: #{_lambda_.43} parent=0 // pred_check_branch
    %20 = sbr.rel (0) target = $region21
  $region20: #{_lambda_.43} parent=0 // pred_region
    _
  $region21: #{_lambda_.43} parent=0 // pred_fallthru
    _
  // Predicated region
  $region22: #{_lambda_.43} parent=0 // pred_check
    _
  $region23: #{_lambda_.43} parent=0 // pred_check_branch
    %22 = sbr.rel (0) target = $region25
  $region24: #{_lambda_.43} parent=0 // pred_region
    _
  $region25: #{_lambda_.43} parent=0 // pred_fallthru
    _
  %v24 = vld [vmem:[%s0] sm:$0x1]
  %v25 = vld [vmem:[%s0 + $0x1] sm:$0x1]
  %v26 = vld [vmem:[%s0 + $0x2] sm:$0x1]
  %v27 = vld [vmem:[%s0 + $0x3] sm:$0x1]
  %v28 = vunpack.c.l.bf16 %v24
  %v29 = vunpack.c.l.bf16 %v25
  %v30 = vunpack.c.l.bf16 %v26
  %v31 = vunpack.c.l.bf16 %v27
  %v32 = vadd.f32 %v28, 0.0
  %v33 = vadd.f32 %v29, 0.0
  %v34 = vadd.f32 %v30, 0.0
  %v35 = vadd.f32 %v31, 0.0
  %v36 = vpack.c.bf16 %v32, %v32
  %v37 = vpack.c.bf16 %v33, %v33
  %v38 = vpack.c.bf16 %v34, %v34
  %v39 = vpack.c.bf16 %v35, %v35
  %v40 = vld [vmem:[%s2] sm:$0xf]
  %v41 = vld [vmem:[%s2 + $0x4] sm:$0xf]
  %v42 = vld [vmem:[%s2 + $0x8] sm:$0xf]
  %v43 = vld [vmem:[%s2 + $0xc] sm:$0xf]
  %v44 = vld [vmem:[%s2 + $0x10] sm:$0xf]
  %v45 = vld [vmem:[%s2 + $0x14] sm:$0xf]
  %v46 = vld [vmem:[%s2 + $0x18] sm:$0xf]
  %v47 = vld [vmem:[%s2 + $0x1c] sm:$0xf]
  %v48 = vld [vmem:[%s2 + $0x20] sm:$0xf]
  %v49 = vld [vmem:[%s2 + $0x24] sm:$0xf]
  %v50 = vld [vmem:[%s2 + $0x28] sm:$0xf]
  %v51 = vld [vmem:[%s2 + $0x2c] sm:$0xf]
  %v52 = vld [vmem:[%s2 + $0x30] sm:$0xf]
  %v53 = vld [vmem:[%s2 + $0x34] sm:$0xf]
  %v54 = vld [vmem:[%s2 + $0x38] sm:$0xf]
  %v55 = vld [vmem:[%s2 + $0x3c] sm:$0xf]
  %v56 = vld [vmem:[%s3] sm:$0x1]
  %v58 = vlaneseq
  %v59 = vshrl.u32 %v58, 7
  %v60 = vsub.s32 0, %v59
  %v61 = vrot.slane %v56, %v60
  %v67 = vunpack.c.l.b16 %v36
  %v68 = vunpack.c.l.b16 %v37
  %v69 = vunpack.c.l.b16 %v38
  %v70 = vunpack.c.l.b16 %v39
  %v71 = vrot.slane %v68, 7
  %vm72 = vcmask 1041409
  %v73 = vsel %vm72, %v71, %v67
  %v74 = vrot.slane %v69, 6
  %vm75 = vcmask 1042434
  %v76 = vsel %vm75, %v74, %v73
  %v77 = vrot.slane %v70, 5
  %vm78 = vcmask 1043459
  %v79 = vsel %vm78, %v77, %v76
  %v80 = vpack.c.b16 %v79, %v79
  %v98 = vunpack.c.l.b16 %v40
  %v99 = vunpack.c.l.b16 %v41
  %v100 = vunpack.c.l.b16 %v42
  %v101 = vunpack.c.l.b16 %v43
  %v102 = vunpack.c.l.b16 %v44
  %v103 = vunpack.c.l.b16 %v45
  %v104 = vunpack.c.l.b16 %v46
  %v105 = vunpack.c.l.b16 %v47
  %v106 = vunpack.c.l.b16 %v48
  %v107 = vunpack.c.l.b16 %v49
  %v108 = vunpack.c.l.b16 %v50
  %v109 = vunpack.c.l.b16 %v51
  %v110 = vunpack.c.l.b16 %v52
  %v111 = vunpack.c.l.b16 %v53
  %v112 = vunpack.c.l.b16 %v54
  %v113 = vunpack.c.l.b16 %v55
  %v114 = vpack.c.b16 %v99, %v98
  %v115 = vpack.c.b16 %v101, %v100
  %v116 = vpack.c.b16 %v103, %v102
  %v117 = vpack.c.b16 %v105, %v104
  %v118 = vpack.c.b16 %v107, %v106
  %v119 = vpack.c.b16 %v109, %v108
  %v120 = vpack.c.b16 %v111, %v110
  %v121 = vpack.c.b16 %v113, %v112
  %130 = vmatprep.subr.bf16.mxu0 0
  %131 = vmatpush1.bf16.msra.mxu0 %v114
  %132 = vmatprep.subr.bf16.mxu0 0
  %133 = vmatpush1.bf16.msra.mxu0 %v115
  %134 = vmatprep.subr.bf16.mxu0 0
  %135 = vmatpush1.bf16.msra.mxu0 %v116
  %136 = vmatprep.subr.bf16.mxu0 0
  %137 = vmatpush1.bf16.msra.mxu0 %v117
  %138 = vmatprep.subr.bf16.mxu0 0
  %139 = vmatpush1.bf16.msra.mxu0 %v118
  %140 = vmatprep.subr.bf16.mxu0 0
  %141 = vmatpush1.bf16.msra.mxu0 %v119
  %142 = vmatprep.subr.bf16.mxu0 0
  %143 = vmatpush1.bf16.msra.mxu0 %v120
  %144 = vmatprep.subr.bf16.mxu0 0
  %145 = vmatpush1.bf16.msra.mxu0 %v121
  %146 = vmatprep.subr.bf16.mxu0 0
  %147 = vmatpush1.bf16.msra.mxu0 0
  %148 = vmatprep.subr.bf16.mxu0 0
  %149 = vmatpush1.bf16.msra.mxu0 0
  %150 = vmatprep.subr.bf16.mxu0 0
  %151 = vmatpush1.bf16.msra.mxu0 0
  %152 = vmatprep.subr.bf16.mxu0 0
  %153 = vmatpush1.bf16.msra.mxu0 0
  %154 = vmatprep.subr.bf16.mxu0 0
  %155 = vmatpush1.bf16.msra.mxu0 0
  %156 = vmatprep.subr.bf16.mxu0 0
  %157 = vmatpush1.bf16.msra.mxu0 0
  %158 = vmatprep.subr.bf16.mxu0 0
  %159 = vmatpush1.bf16.msra.mxu0 0
  %160 = vmatprep.subr.bf16.mxu0 0
  %161 = vmatpush1.bf16.msra.mxu0 0
  %162 = vmatprep.mubr.bf16.mxu0 0
  %163 = vmatmul.mubr.bf16.gmra.mrb[0].mxu0 %v80
  %v164 = vpop.f32.mrb[0].mxu0
  %v165 = vadd.f32 %v61, %v164
  %v166 = vpop.f32.mrb[0].mxu0
  %v167 = vpop.f32.mrb[0].mxu0
  %v168 = vpop.f32.mrb[0].mxu0
  %169 = vdwg.mxu0
  %v170 = vmax.f32 %v165, 0.0
  %v171 = vpack.c.bf16 %v170, %v170
  %v172 = vld [vmem:[%s4] sm:$0xf]
  %v173 = vld [vmem:[%s4 + $0x4] sm:$0xf]
  %v174 = vld [vmem:[%s4 + $0x8] sm:$0xf]
  %v175 = vld [vmem:[%s4 + $0xc] sm:$0xf]
  %v176 = vld [vmem:[%s4 + $0x10] sm:$0xf]
  %v177 = vld [vmem:[%s4 + $0x14] sm:$0xf]
  %v178 = vld [vmem:[%s4 + $0x18] sm:$0xf]
  %v179 = vld [vmem:[%s4 + $0x1c] sm:$0xf]
  %v180 = vld [vmem:[%s4 + $0x20] sm:$0xf]
  %v181 = vld [vmem:[%s4 + $0x24] sm:$0xf]
  %v182 = vld [vmem:[%s4 + $0x28] sm:$0xf]
  %v183 = vld [vmem:[%s4 + $0x2c] sm:$0xf]
  %v184 = vld [vmem:[%s4 + $0x30] sm:$0xf]
  %v185 = vld [vmem:[%s4 + $0x34] sm:$0xf]
  %v186 = vld [vmem:[%s4 + $0x38] sm:$0xf]
  %v187 = vld [vmem:[%s4 + $0x3c] sm:$0xf]
  %v188 = vld [vmem:[%s5] sm:$0x1]
  %v190 = vlaneseq
  %v191 = vshrl.u32 %v190, 7
  %v192 = vsub.s32 0, %v191
  %v193 = vrot.slane %v188, %v192
  %v211 = vunpack.c.l.b16 %v172
  %v212 = vunpack.c.l.b16 %v173
  %v213 = vunpack.c.l.b16 %v174
  %v214 = vunpack.c.l.b16 %v175
  %v215 = vunpack.c.l.b16 %v176
  %v216 = vunpack.c.l.b16 %v177
  %v217 = vunpack.c.l.b16 %v178
  %v218 = vunpack.c.l.b16 %v179
  %v219 = vunpack.c.l.b16 %v180
  %v220 = vunpack.c.l.b16 %v181
  %v221 = vunpack.c.l.b16 %v182
  %v222 = vunpack.c.l.b16 %v183
  %v223 = vunpack.c.l.b16 %v184
  %v224 = vunpack.c.l.b16 %v185
  %v225 = vunpack.c.l.b16 %v186
  %v226 = vunpack.c.l.b16 %v187
  %v227 = vpack.c.b16 %v212, %v211
  %v228 = vpack.c.b16 %v214, %v213
  %v229 = vpack.c.b16 %v216, %v215
  %v230 = vpack.c.b16 %v218, %v217
  %v231 = vpack.c.b16 %v220, %v219
  %v232 = vpack.c.b16 %v222, %v221
  %v233 = vpack.c.b16 %v224, %v223
  %v234 = vpack.c.b16 %v226, %v225
  %243 = vmatprep.subr.bf16.mxu0 0
  %244 = vmatpush1.bf16.msra.mxu0 %v227
  %245 = vmatprep.subr.bf16.mxu0 0
  %246 = vmatpush1.bf16.msra.mxu0 %v228
  %247 = vmatprep.subr.bf16.mxu0 0
  %248 = vmatpush1.bf16.msra.mxu0 %v229
  %249 = vmatprep.subr.bf16.mxu0 0
  %250 = vmatpush1.bf16.msra.mxu0 %v230
  %251 = vmatprep.subr.bf16.mxu0 0
  %252 = vmatpush1.bf16.msra.mxu0 %v231
  %253 = vmatprep.subr.bf16.mxu0 0
  %254 = vmatpush1.bf16.msra.mxu0 %v232
  %255 = vmatprep.subr.bf16.mxu0 0
  %256 = vmatpush1.bf16.msra.mxu0 %v233
  %257 = vmatprep.subr.bf16.mxu0 0
  %258 = vmatpush1.bf16.msra.mxu0 %v234
  %259 = vmatprep.subr.bf16.mxu0 0
  %260 = vmatpush1.bf16.msra.mxu0 0
  %261 = vmatprep.subr.bf16.mxu0 0
  %262 = vmatpush1.bf16.msra.mxu0 0
  %263 = vmatprep.subr.bf16.mxu0 0
  %264 = vmatpush1.bf16.msra.mxu0 0
  %265 = vmatprep.subr.bf16.mxu0 0
  %266 = vmatpush1.bf16.msra.mxu0 0
  %267 = vmatprep.subr.bf16.mxu0 0
  %268 = vmatpush1.bf16.msra.mxu0 0
  %269 = vmatprep.subr.bf16.mxu0 0
  %270 = vmatpush1.bf16.msra.mxu0 0
  %271 = vmatprep.subr.bf16.mxu0 0
  %272 = vmatpush1.bf16.msra.mxu0 0
  %273 = vmatprep.subr.bf16.mxu0 0
  %274 = vmatpush1.bf16.msra.mxu0 0
  %275 = vmatprep.mubr.bf16.mxu0 0
  %276 = vmatmul.mubr.bf16.gmra.mrb[0].mxu0 %v171
  %v277 = vpop.f32.mrb[0].mxu0
  %v278 = vadd.f32 %v193, %v277
  %v279 = vpop.f32.mrb[0].mxu0
  %v280 = vpop.f32.mrb[0].mxu0
  %v281 = vpop.f32.mrb[0].mxu0
  %282 = vdwg.mxu0
  %v283 = vsub.f32 0.0, %v278
  %v284 = vmul.f32 %v283, 1.442695
  %v285 = vpow.pop %v284
  %v286 = vadd.f32 %v285, 1.0
  %v287 = vrcp.pop %v286
  %v288 = vmul.f32 1.0, %v287
  %v291 = vunpack.c.l.s4 1966171168
  %v292 = vunpack.c.0.s8 %v291
  %v293 = vlaneseq
  %v294 = vshrl.u32 %v293, 7
  %v295 = vsub.s32 %v292, %v294
  %v296 = vrot.slane %v288, %v295
  %v297 = vcombine.high %v296, %v296
  %v299 = vunpack.c.l.s4 1966171168
  %v300 = vunpack.c.0.s8 %v299
  %v301 = vlaneseq
  %v302 = vshrl.u32 %v301, 7
  %v303 = vsub.s32 %v300, %v302
  %v304 = vrot.slane %v296, %v303
  %v306 = vunpack.c.l.s4 1966171168
  %v307 = vunpack.c.0.s8 %v306
  %v308 = vlaneseq
  %v309 = vshrl.u32 %v308, 7
  %v310 = vsub.s32 %v307, %v309
  %v311 = vrot.slane %v297, %v310
  %v312 = vcombine.high %v304, %v304
  %v313 = vcombine.high %v311, %v311
  %v318 = vmul.f32 %v28, %v304
  %v319 = vmul.f32 %v29, %v311
  %v320 = vmul.f32 %v30, %v312
  %v321 = vmul.f32 %v31, %v313
  %v322 = vld [vmem:[%s1] sm:$0x1]
  %v323 = vld [vmem:[%s1 + $0x1] sm:$0x1]
  %v324 = vld [vmem:[%s1 + $0x2] sm:$0x1]
  %v325 = vld [vmem:[%s1 + $0x3] sm:$0x1]
  %v326 = vunpack.c.l.bf16 %v322
  %v327 = vunpack.c.l.bf16 %v323
  %v328 = vunpack.c.l.bf16 %v324
  %v329 = vunpack.c.l.bf16 %v325
  %v330 = vadd.f32 %v318, %v326
  %v331 = vadd.f32 %v319, %v327
  %v332 = vadd.f32 %v320, %v328
  %v333 = vadd.f32 %v321, %v329
  %v334 = vmax.f32 %v330, 0.0
  %v335 = vmax.f32 %v331, 0.0
  %v336 = vmax.f32 %v332, 0.0
  %v337 = vmax.f32 %v333, 0.0
  %v338 = vpack.c.bf16 %v334, %v334
  %v339 = vpack.c.bf16 %v335, %v335
  %v340 = vpack.c.bf16 %v336, %v336
  %v341 = vpack.c.bf16 %v337, %v337
  %vm342 = vcmask 1040384
  %vm343 = vsmask.f32 256
  %vm344 = vmand %vm342, %vm343
  %v345 = vld [vmem:[%s6] sm:$0x1]
  %v346 = vsel %vm344, %v338, %v345
  %347 = vst [vmem:[%s6] sm:$0x1] %v346
  %v348 = vld [vmem:[%s6 + $0x1] sm:$0x1]
  %v349 = vsel %vm344, %v339, %v348
  %350 = vst [vmem:[%s6 + $0x1] sm:$0x1] %v349
  %v351 = vld [vmem:[%s6 + $0x2] sm:$0x1]
  %v352 = vsel %vm344, %v340, %v351
  %353 = vst [vmem:[%s6 + $0x2] sm:$0x1] %v352
  %v354 = vld [vmem:[%s6 + $0x3] sm:$0x1]
  %v355 = vsel %vm344, %v341, %v354
  %356 = vst [vmem:[%s6 + $0x3] sm:$0x1] %v355
  // Predicated region
  $region26: #{_lambda_.43} parent=0 // pred_check
    _
  $region27: #{_lambda_.43} parent=0 // pred_check_branch
    %358 = sbr.rel (0) target = $region29
  $region28: #{_lambda_.43} parent=0 // pred_region
    _
  $region29: #{_lambda_.43} parent=0 // pred_fallthru
    _
  // Predicated region
  $region30: #{_lambda_.43} parent=0 // pred_check
    _
  $region31: #{_lambda_.43} parent=0 // pred_check_branch
    %360 = sbr.rel (0) target = $region33
  $region32: #{_lambda_.43} parent=0 // pred_region
    _
  $region33: #{_lambda_.43} parent=0 // pred_fallthru
    _

// kernel: _lambda_.45
$region0: #{_lambda_.45}
  #allocation0 [shape = 'u32[]', space=smem, size = 0x4, offset = 0x4, fixed_abs, tag = 'smem constant byte address 0x4 - core index']
  #allocation1 [shape = 'u32[144,128]{1,0:T(1,128)}', space=vmem, size = 0x12000, scoped, tag = 'internal scratch']
  %s0 = inlined_call_operand.vmem [shape: bf16[2,256], index: 0, kind: input, shape index: {}]
  %s1 = inlined_call_operand.vmem [shape: bf16[256,128], index: 1, kind: input, shape index: {}]
  %s2 = inlined_call_operand.vmem [shape: f32[1,128], index: 2, kind: input, shape index: {}]
  %s3 = inlined_call_operand.hbm [shape: f32[2,128], index: 3, kind: output, shape index: {}]
  %s4 = sld [smem:[#allocation0]]
  $region22: #{_lambda_.45} parent=0
    _
  %s6 = ssub.s32 1, %s4
  %s7 = scalar_select 0, %s6, %s4
  $region1: #{_lambda_.45} parent=0
    #allocation2 [shape = 'u8[1024]{0}', space=vmem, size = 0x400, scoped, tag = 'output window, operand 0, single buffered']
    #allocation3 [shape = 's32[1]{0}', space=sflag, size = 0x4, scoped, tag = 'scoped memory for _lambda_.45']
    %8 = vsyncpa [#allocation3], 0
    // Predicated region
    $region2: #{_lambda_.45} parent=1 // pred_check
      _
    $region3: #{_lambda_.45} parent=1 // pred_check_branch
      %10 = sbr.rel (0) target = $region5
    $region4: #{_lambda_.45} parent=1 // pred_region
      _
    $region5: #{_lambda_.45} parent=1 // pred_fallthru
      _
    // Predicated region
    $region6: #{_lambda_.45} parent=1 // pred_check
      _
    $region7: #{_lambda_.45} parent=1 // pred_check_branch
      %12 = sbr.rel (0) target = $region9
    $region8: #{_lambda_.45} parent=1 // pred_region
      _
    $region9: #{_lambda_.45} parent=1 // pred_fallthru
      _
    // Predicated region
    $region10: #{_lambda_.45} parent=1 // pred_check
      _
    $region11: #{_lambda_.45} parent=1 // pred_check_branch
      %14 = sbr.rel (0) target = $region13
    $region12: #{_lambda_.45} parent=1 // pred_region
      _
    $region13: #{_lambda_.45} parent=1 // pred_fallthru
      _
    %v16 = vld [vmem:[%s0] sm:$0x3]
    %v17 = vld [vmem:[%s1] sm:$0xf]
    %v18 = vld [vmem:[%s1 + $0x4] sm:$0xf]
    %v19 = vld [vmem:[%s1 + $0x8] sm:$0xf]
    %v20 = vld [vmem:[%s1 + $0xc] sm:$0xf]
    %v21 = vld [vmem:[%s1 + $0x10] sm:$0xf]
    %v22 = vld [vmem:[%s1 + $0x14] sm:$0xf]
    %v23 = vld [vmem:[%s1 + $0x18] sm:$0xf]
    %v24 = vld [vmem:[%s1 + $0x1c] sm:$0xf]
    %v25 = vld [vmem:[%s1 + $0x20] sm:$0xf]
    %v26 = vld [vmem:[%s1 + $0x24] sm:$0xf]
    %v27 = vld [vmem:[%s1 + $0x28] sm:$0xf]
    %v28 = vld [vmem:[%s1 + $0x2c] sm:$0xf]
    %v29 = vld [vmem:[%s1 + $0x30] sm:$0xf]
    %v30 = vld [vmem:[%s1 + $0x34] sm:$0xf]
    %v31 = vld [vmem:[%s1 + $0x38] sm:$0xf]
    %v32 = vld [vmem:[%s1 + $0x3c] sm:$0xf]
    %v33 = vld [vmem:[%s1 + $0x40] sm:$0xf]
    %v34 = vld [vmem:[%s1 + $0x44] sm:$0xf]
    %v35 = vld [vmem:[%s1 + $0x48] sm:$0xf]
    %v36 = vld [vmem:[%s1 + $0x4c] sm:$0xf]
    %v37 = vld [vmem:[%s1 + $0x50] sm:$0xf]
    %v38 = vld [vmem:[%s1 + $0x54] sm:$0xf]
    %v39 = vld [vmem:[%s1 + $0x58] sm:$0xf]
    %v40 = vld [vmem:[%s1 + $0x5c] sm:$0xf]
    %v41 = vld [vmem:[%s1 + $0x60] sm:$0xf]
    %v42 = vld [vmem:[%s1 + $0x64] sm:$0xf]
    %v43 = vld [vmem:[%s1 + $0x68] sm:$0xf]
    %v44 = vld [vmem:[%s1 + $0x6c] sm:$0xf]
    %v45 = vld [vmem:[%s1 + $0x70] sm:$0xf]
    %v46 = vld [vmem:[%s1 + $0x74] sm:$0xf]
    %v47 = vld [vmem:[%s1 + $0x78] sm:$0xf]
    %v48 = vld [vmem:[%s1 + $0x7c] sm:$0xf]
    %v49 = vld [vmem:[%s2] sm:$0x1]
    %v51 = vlaneseq
    %v52 = vshrl.u32 %v51, 7
    %v53 = vsub.s32 0, %v52
    %v54 = vrot.slane %v49, %v53
    %v58 = vunpack.c.l.s4 1966171168
    %v59 = vunpack.c.0.s8 %v58
    %v60 = vlaneseq
    %v61 = vshrl.u32 %v60, 7
    %v62 = vsub.s32 %v59, %v61
    %v63 = vrot.slane %v16, %v62
    %v64 = vcombine.high %v63, %v63
    %v66 = vunpack.c.l.s4 1966171168
    %v67 = vunpack.c.0.s8 %v66
    %v68 = vlaneseq
    %v69 = vshrl.u32 %v68, 7
    %v70 = vsub.s32 %v67, %v69
    %v71 = vrot.slane %v63, %v70
    %v73 = vunpack.c.l.s4 1966171168
    %v74 = vunpack.c.0.s8 %v73
    %v75 = vlaneseq
    %v76 = vshrl.u32 %v75, 7
    %v77 = vsub.s32 %v74, %v76
    %v78 = vrot.slane %v64, %v77
    %v113 = vunpack.c.l.b16 %v17
    %v114 = vunpack.c.l.b16 %v18
    %v115 = vunpack.c.l.b16 %v19
    %v116 = vunpack.c.l.b16 %v20
    %v117 = vunpack.c.l.b16 %v21
    %v118 = vunpack.c.l.b16 %v22
    %v119 = vunpack.c.l.b16 %v23
    %v120 = vunpack.c.l.b16 %v24
    %v121 = vunpack.c.l.b16 %v25
    %v122 = vunpack.c.l.b16 %v26
    %v123 = vunpack.c.l.b16 %v27
    %v124 = vunpack.c.l.b16 %v28
    %v125 = vunpack.c.l.b16 %v29
    %v126 = vunpack.c.l.b16 %v30
    %v127 = vunpack.c.l.b16 %v31
    %v128 = vunpack.c.l.b16 %v32
    %v129 = vunpack.c.l.b16 %v33
    %v130 = vunpack.c.l.b16 %v34
    %v131 = vunpack.c.l.b16 %v35
    %v132 = vunpack.c.l.b16 %v36
    %v133 = vunpack.c.l.b16 %v37
    %v134 = vunpack.c.l.b16 %v38
    %v135 = vunpack.c.l.b16 %v39
    %v136 = vunpack.c.l.b16 %v40
    %v137 = vunpack.c.l.b16 %v41
    %v138 = vunpack.c.l.b16 %v42
    %v139 = vunpack.c.l.b16 %v43
    %v140 = vunpack.c.l.b16 %v44
    %v141 = vunpack.c.l.b16 %v45
    %v142 = vunpack.c.l.b16 %v46
    %v143 = vunpack.c.l.b16 %v47
    %v144 = vunpack.c.l.b16 %v48
    %v145 = vpack.c.b16 %v114, %v113
    %v146 = vpack.c.b16 %v116, %v115
    %v147 = vpack.c.b16 %v118, %v117
    %v148 = vpack.c.b16 %v120, %v119
    %v149 = vpack.c.b16 %v122, %v121
    %v150 = vpack.c.b16 %v124, %v123
    %v151 = vpack.c.b16 %v126, %v125
    %v152 = vpack.c.b16 %v128, %v127
    %v153 = vpack.c.b16 %v130, %v129
    %v154 = vpack.c.b16 %v132, %v131
    %v155 = vpack.c.b16 %v134, %v133
    %v156 = vpack.c.b16 %v136, %v135
    %v157 = vpack.c.b16 %v138, %v137
    %v158 = vpack.c.b16 %v140, %v139
    %v159 = vpack.c.b16 %v142, %v141
    %v160 = vpack.c.b16 %v144, %v143
    %177 = vmatprep.subr.bf16.mxu0 0
    %178 = vmatpush1.bf16.msra.mxu0 %v145
    %179 = vmatprep.subr.bf16.mxu0 0
    %180 = vmatpush1.bf16.msra.mxu0 %v146
    %181 = vmatprep.subr.bf16.mxu0 0
    %182 = vmatpush1.bf16.msra.mxu0 %v147
    %183 = vmatprep.subr.bf16.mxu0 0
    %184 = vmatpush1.bf16.msra.mxu0 %v148
    %185 = vmatprep.subr.bf16.mxu0 0
    %186 = vmatpush1.bf16.msra.mxu0 %v149
    %187 = vmatprep.subr.bf16.mxu0 0
    %188 = vmatpush1.bf16.msra.mxu0 %v150
    %189 = vmatprep.subr.bf16.mxu0 0
    %190 = vmatpush1.bf16.msra.mxu0 %v151
    %191 = vmatprep.subr.bf16.mxu0 0
    %192 = vmatpush1.bf16.msra.mxu0 %v152
    %193 = vmatprep.subr.bf16.mxu0 0
    %194 = vmatpush1.bf16.msra.mxu0 %v153
    %195 = vmatprep.subr.bf16.mxu0 0
    %196 = vmatpush1.bf16.msra.mxu0 %v154
    %197 = vmatprep.subr.bf16.mxu0 0
    %198 = vmatpush1.bf16.msra.mxu0 %v155
    %199 = vmatprep.subr.bf16.mxu0 0
    %200 = vmatpush1.bf16.msra.mxu0 %v156
    %201 = vmatprep.subr.bf16.mxu0 0
    %202 = vmatpush1.bf16.msra.mxu0 %v157
    %203 = vmatprep.subr.bf16.mxu0 0
    %204 = vmatpush1.bf16.msra.mxu0 %v158
    %205 = vmatprep.subr.bf16.mxu0 0
    %206 = vmatpush1.bf16.msra.mxu0 %v159
    %207 = vmatprep.subr.bf16.mxu0 0
    %208 = vmatpush1.bf16.msra.mxu0 %v160
    %209 = vmatprep.mubr.bf16.mxu0 %v78
    %210 = vmatmul.mubr.bf16.gmra.mrb[0].mxu0 %v71
    %v211 = vpop.f32.mrb[0].mxu0
    %v212 = vadd.f32 %v54, %v211
    %v213 = vpop.f32.mrb[0].mxu0
    %v214 = vpop.f32.mrb[0].mxu0
    %v215 = vpop.f32.mrb[0].mxu0
    %216 = vdwg.mxu0
    %217 = vst [vmem:[#allocation2] sm:$0x3] %v212
    // Predicated region
    $region14: #{_lambda_.45} parent=1 // pred_check
      _
    $region15: #{_lambda_.45} parent=1 // pred_check_branch
      %219 = sbr.rel (0) target = $region17
    $region16: #{_lambda_.45} parent=1 // pred_region
      %s221 = ssub.s32 32, 32
      %222 = vsyncadd [#allocation3], %s221
      %s224 = sshll.u32 [#allocation2], 4
      %s225 = int_to_ptr.vmem [resolvable:$true] %s224
      %227 = dma.vmem_to_hbm [thread:$0]  %s225, 32, %s3, [#allocation3]
    $region17: #{_lambda_.45} parent=1 // pred_fallthru
      _
    // Predicated region
    $region18: #{_lambda_.45} parent=1 // pred_check
      _
    $region19: #{_lambda_.45} parent=1 // pred_check_branch
      %229 = sbr.rel (0) target = $region21
    $region20: #{_lambda_.45} parent=1 // pred_region
      %230 = dma.done [#allocation3], 32
    $region21: #{_lambda_.45} parent=1 // pred_fallthru
      _
    %231 = vsyncpa [#allocation3], 1

</llo_original>
